<compile_context>
chip_gen: v5e
topology: v5e:2x2
jax: 0.10.0
libtpu: 0.0.40
codegen_flags: <defaults>
</compile_context>

<pallas_src>
import functools

import jax
import jax.numpy as jnp
import numpy as np
from jax.experimental import pallas as pl
from jax.experimental.pallas import tpu as pltpu

EPS = 1e-5          # PyTorch LayerNorm default eps
SEQ_IN = 256        # fixed by nn.Linear(256, 64)
SEQ_OUT = 64


def _layernorm(x, g, b):
    """Reference-side LayerNorm over the last axis."""
    mu = jnp.mean(x, axis=-1, keepdims=True)
    d = x - mu
    var = jnp.mean(d * d, axis=-1, keepdims=True)
    return d * jax.lax.rsqrt(var + EPS) * g + b


def encoder_kernel(nh, tb,
                   emb_ref,     # (256, W)   bf16  lane-dense token embeddings
                   wseq_ref,    # (64, 256)  bf16
                   posb_ref,    # (64, W)    f32   pos_emb tiled + b_seq folded in
                   wqkv_ref,    # (W, 3W)    bf16  block-diag [Wq.T | Wk.T | Wv.T]
                   bqkv_ref,    # (1, 3W)    f32
                   mask_ref,    # (G*S, W)   f32   head/batch expansion mask (0/1)
                   wo_ref,      # (W, W)     bf16  block-diag out_proj.T
                   w1_ref,      # (W, tb*H)  bf16  block-diag lin1.T
                   b1_ref,      # (1, tb*H)  f32
                   w2_ref,      # (tb*H, W)  bf16  block-diag lin2.T
                   ones_ref,    # (W, W)     f32   block-diag ones (LN group sums)
                   vec_ref,     # (8, W)     f32   ln0_g,ln0_b,bo,n1_g,n1_b,b2,n2_g,n2_b
                   out_ref):    # (64, W)    f32
    f32 = jnp.float32
    cdt = wqkv_ref.dtype                 # matmul operand dtype (bf16); f32 accumulate
    S = SEQ_OUT
    W = out_ref.shape[1]
    E = W // tb
    hd = E // nh
    G = tb * nh

    vec = vec_ref[...]
    ln0_g, ln0_b = vec[0:1], vec[1:2]
    bo = vec[2:3]
    n1_g, n1_b = vec[3:4], vec[4:5]
    b2 = vec[5:6]
    n2_g, n2_b = vec[6:7], vec[7:8]

    ones_bd = ones_ref[...]
    inv_e = 1.0 / E

    def layernorm(x, g, b):
        # per-(batch, position) statistics over each E-lane group via a block-ones
        # matmul: keeps everything 128-lane dense, stats stay f32.
        mu = jnp.dot(x, ones_bd, preferred_element_type=f32) * inv_e
        d = x - mu
        var = jnp.dot(d * d, ones_bd, preferred_element_type=f32) * inv_e
        return d * jax.lax.rsqrt(var + EPS) * g + b

    # ---- seq_projection Linear(256 -> 64), all tb batch columns at once ----
    x = jnp.dot(wseq_ref[...], emb_ref[...], preferred_element_type=f32)   # (S, W)
    x = x + posb_ref[...]                     # + b_seq + positional embedding
    x = layernorm(x, ln0_g, ln0_b)            # pre-transformer LN (dropout = identity)

    # ---- self-attention (tb-block-diagonal QKV, head-expanded matmuls) ----
    qkv = jnp.dot(x.astype(cdt), wqkv_ref[...],
                  preferred_element_type=f32) + bqkv_ref[...]              # (S, 3W)
    q_wide = qkv[:, 0 * W:1 * W]
    k_wide = qkv[:, 1 * W:2 * W]
    v_wide = qkv[:, 2 * W:3 * W]

    maskg = mask_ref[...].reshape(G, S, W)                                 # (G, S, W)
    scale = 1.0 / (hd ** 0.5)
    q_exp = ((q_wide * scale)[None, :, :] * maskg).reshape(G * S, W)       # (G*S, W)

    kt = jnp.transpose(k_wide)                                             # (W, S)
    s = jnp.dot(q_exp.astype(cdt), kt.astype(cdt),
                preferred_element_type=f32)                                # (G*S, S)
    m = jnp.max(s, axis=-1, keepdims=True)
    e = jnp.exp(s - m)
    p = e / jnp.sum(e, axis=-1, keepdims=True)                             # exact softmax

    ctx = jnp.dot(p.astype(cdt), v_wide.astype(cdt),
                  preferred_element_type=f32)                              # (G*S, W)
    attn = jnp.sum(ctx.reshape(G, S, W) * maskg, axis=0)                   # (S, W)
    attn = jnp.dot(attn.astype(cdt), wo_ref[...],
                   preferred_element_type=f32) + bo

    x = layernorm(x + attn, n1_g, n1_b)

    # ---- feed-forward (ReLU), dropout = identity ----
    h1 = jnp.maximum(
        jnp.dot(x.astype(cdt), w1_ref[...], preferred_element_type=f32) + b1_ref[...],
        0.0)
    ff = jnp.dot(h1.astype(cdt), w2_ref[...], preferred_element_type=f32) + b2
    x = layernorm(x + ff, n2_g, n2_b)

    out_ref[...] = x


def init_params(key, embedding_dim, hidden_dim, vocab_size):
    E, H = embedding_dim, hidden_dim
    ks = jax.random.split(key, 20)

    def rn(k, shape, scale=0.05):
        return (scale * jax.random.normal(k, shape)).astype(jnp.float32)

    p = {}
    p['token_embedding'] = rn(ks[0], (vocab_size, E), 1.0)
    p['w_seq'] = rn(ks[1], (SEQ_OUT, SEQ_IN))
    p['b_seq'] = rn(ks[2], (SEQ_OUT,))
    p['pos_emb'] = rn(ks[3], (1, SEQ_OUT, E), 1.0)
    p['ln0_g'] = 1.0 + rn(ks[4], (E,), 0.1)
    p['ln0_b'] = rn(ks[5], (E,), 0.1)
    p['in_proj_w'] = rn(ks[6], (3 * E, E))
    p['in_proj_b'] = rn(ks[7], (3 * E,))
    p['out_proj_w'] = rn(ks[8], (E, E))
    p['out_proj_b'] = rn(ks[9], (E,))
    p['lin1_w'] = rn(ks[10], (H, E))
    p['lin1_b'] = rn(ks[11], (H,))
    p['lin2_w'] = rn(ks[12], (E, H))
    p['lin2_b'] = rn(ks[13], (E,))
    p['n1_g'] = 1.0 + rn(ks[14], (E,), 0.1)
    p['n1_b'] = rn(ks[15], (E,), 0.1)
    p['n2_g'] = 1.0 + rn(ks[16], (E,), 0.1)
    p['n2_b'] = rn(ks[17], (E,), 0.1)
    return p


def whisper_token_encoder(tokens, params, num_heads, tb=4, matmul_dtype=jnp.bfloat16):
    """tokens: (B, 256) int32 -> (B, 64, E) float32.

    tb = batch elements fused per grid step (wide lane width W = tb*E).
    Pick tb so W is a multiple of 128; keep grid = B//tb >= 2 on v7x (two
    TensorCores under dimension_semantics=('parallel',)); raise tb on single-TC
    v5e/v6e if VMEM allows.
    """
    E = params['token_embedding'].shape[1]
    H = params['lin1_w'].shape[0]
    B = tokens.shape[0]
    S = SEQ_OUT
    assert B % tb == 0, "batch must be divisible by tb"
    assert E % num_heads == 0
    W = tb * E
    assert W % 128 == 0 or B == tb, \
        "lane-dense blocks need tb*E to be a multiple of 128 (or a single grid step)"
    hd = E // num_heads
    G = tb * num_heads

    cdt = matmul_dtype
    f32 = jnp.float32

    # --- glue: embedding gather, once, in matmul dtype, already seq-major ---
    emb_wide = jnp.take(params['token_embedding'], tokens.T, axis=0)       # (256, B, E)
    emb_wide = emb_wide.astype(cdt).reshape(SEQ_IN, B * E)                 # (256, B*E)

    # --- tb-block-diagonal weights (zero blocks are free: MXU is idle at these E) ---
    eye = jnp.eye(tb, dtype=f32)

    def bd(w):                       # (i, o) -> (tb*i, tb*o) block-diagonal
        return jnp.kron(eye, w.astype(f32))

    Wq = params['in_proj_w'][0 * E:1 * E]
    Wk = params['in_proj_w'][1 * E:2 * E]
    Wv = params['in_proj_w'][2 * E:3 * E]
    wqkv_bd = jnp.concatenate([bd(Wq.T), bd(Wk.T), bd(Wv.T)], axis=1).astype(cdt)
    bq = params['in_proj_b'][0 * E:1 * E]
    bk = params['in_proj_b'][1 * E:2 * E]
    bv = params['in_proj_b'][2 * E:3 * E]
    bqkv = jnp.concatenate(
        [jnp.tile(bq, tb), jnp.tile(bk, tb), jnp.tile(bv, tb)]).reshape(1, 3 * W)

    wo_bd = bd(params['out_proj_w'].T).astype(cdt)                         # (W, W)
    w1_bd = bd(params['lin1_w'].T).astype(cdt)                             # (W, tb*H)
    b1 = jnp.tile(params['lin1_b'], tb).reshape(1, tb * H)
    w2_bd = bd(params['lin2_w'].T).astype(cdt)                             # (tb*H, W)
    ones_bd = jnp.kron(eye, jnp.ones((E, E), f32))                         # (W, W)

    # positional embedding tiled over the tb lane groups, seq-proj bias folded in
    posb = jnp.tile(params['pos_emb'][0], (1, tb)) + params['b_seq'][:, None]

    vec = jnp.tile(jnp.stack([params['ln0_g'], params['ln0_b'],
                              params['out_proj_b'],
                              params['n1_g'], params['n1_b'],
                              params['lin2_b'],
                              params['n2_g'], params['n2_b']], axis=0), (1, tb))

    # head/batch expansion mask: row (t*nh + h)*S + i keeps only the lanes of
    # (batch t, head h); built statically with numpy.
    r = np.arange(G * S)
    c = np.arange(W)
    g = r // S
    mask = ((g[:, None] // num_heads == c[None, :] // E) &
            (g[:, None] % num_heads == (c[None, :] % E) // hd))
    mask = jnp.asarray(mask.astype(np.float32))                            # (G*S, W)

    wseq = params['w_seq'].astype(cdt)                                     # (64, 256)

    weights = [wseq, posb, wqkv_bd, bqkv, mask, wo_bd, w1_bd, b1, w2_bd, ones_bd, vec]

    in_specs = [pl.BlockSpec((SEQ_IN, W), lambda b: (0, b))]
    # Grid-invariant operands: full-array blocks (block index never moves -> one DMA).
    in_specs += [pl.BlockSpec(w.shape, lambda b: (0, 0)) for w in weights]
    out_spec = pl.BlockSpec((S, W), lambda b: (0, b))

    steps = B // tb
    macs = steps * (
        S * SEQ_IN * W            # seq projection
        + 3 * 2 * S * W * W       # LayerNorm group-sum matmuls
        + S * W * 3 * W           # fused block-diag QKV
        + G * S * W * S           # scores
        + G * S * S * W           # attn @ V
        + S * W * W               # out projection
        + 2 * S * W * (tb * H))   # FFN
    cost = pl.CostEstimate(
        flops=2 * macs,
        transcendentals=steps * G * S * S,
        bytes_accessed=int(emb_wide.size * emb_wide.dtype.itemsize
                           + sum(int(w.size) * w.dtype.itemsize for w in weights)
                           + S * B * E * 4))

    out_wide = pl.pallas_call(
        functools.partial(encoder_kernel, num_heads, tb),
        out_shape=jax.ShapeDtypeStruct((S, B * E), jnp.float32),
        grid_spec=pltpu.PrefetchScalarGridSpec(
            num_scalar_prefetch=0,
            grid=(steps,),
            in_specs=in_specs,
            out_specs=out_spec),
        compiler_params=pltpu.CompilerParams(
            dimension_semantics=("parallel",)),
        cost_estimate=cost,
    )(emb_wide, *weights)

    # layout plumbing back to (B, 64, E)
    return jnp.transpose(out_wide.reshape(S, B, E), (1, 0, 2))


def reference(tokens, p, num_heads):
    """Pure-JAX f32 mirror of the PyTorch forward (eval mode)."""
    E = p['token_embedding'].shape[1]
    x = jnp.take(p['token_embedding'], tokens, axis=0).astype(jnp.float32)  # (B,256,E)
    x = jnp.transpose(x, (0, 2, 1))                                         # (B,E,256)
    x = jnp.einsum('bes,os->beo', x, p['w_seq']) + p['b_seq']               # (B,E,64)
    x = jnp.transpose(x, (0, 2, 1))                                         # (B,64,E)
    x = x + p['pos_emb']
    x = _layernorm(x, p['ln0_g'], p['ln0_b'])

    Wq, Wk, Wv = p['in_proj_w'][:E], p['in_proj_w'][E:2 * E], p['in_proj_w'][2 * E:]
    bq, bk, bv = p['in_proj_b'][:E], p['in_proj_b'][E:2 * E], p['in_proj_b'][2 * E:]
    q = x @ Wq.T + bq
    k = x @ Wk.T + bk
    v = x @ Wv.T + bv
    B, S, _ = q.shape
    hd = E // num_heads
    qh = q.reshape(B, S, num_heads, hd).transpose(0, 2, 1, 3)
    kh = k.reshape(B, S, num_heads, hd).transpose(0, 2, 1, 3)
    vh = v.reshape(B, S, num_heads, hd).transpose(0, 2, 1, 3)
    s = jnp.einsum('bhqd,bhkd->bhqk', qh, kh) / (hd ** 0.5)
    pattn = jax.nn.softmax(s, axis=-1)
    attn = jnp.einsum('bhqk,bhkd->bhqd', pattn, vh)
    attn = attn.transpose(0, 2, 1, 3).reshape(B, S, E)
    attn = attn @ p['out_proj_w'].T + p['out_proj_b']
    x = _layernorm(x + attn, p['n1_g'], p['n1_b'])
    ff = jnp.maximum(x @ p['lin1_w'].T + p['lin1_b'], 0.0)
    ff = ff @ p['lin2_w'].T + p['lin2_b']
    x = _layernorm(x + ff, p['n2_g'], p['n2_b'])
    return x


if __name__ == "__main__":
    embedding_dim = 32
    num_heads = 4
    hidden_dim = 64
    vocab_size = 512      # small synthetic vocab (module default 51866)
    B = 8
    TB = 4                # W = 128 lanes; grid = 2 keeps both v7x TensorCores busy

    key = jax.random.PRNGKey(0)
    kp, kx = jax.random.split(key)
    params = init_params(kp, embedding_dim, hidden_dim, vocab_size)
    tokens = jax.random.randint(kx, (B, SEQ_IN), 0, vocab_size, dtype=jnp.int32)

    out = whisper_token_encoder(tokens, params, num_heads, tb=TB)
    out = jax.block_until_ready(out)

    assert out.shape == (B, SEQ_OUT, embedding_dim)
    ref = reference(tokens, params, num_heads)
    np.testing.assert_allclose(np.asarray(out), np.asarray(ref), rtol=2e-2, atol=2e-2)

    print("KERNEL_OK")
</pallas_src>

<mosaic_0001>
module attributes {stable_mosaic.version = 11 : i64} {
  func.func @encoder_kernel(%arg0: i32, %arg1: memref<256x128xbf16, #tpu.memory_space<vmem>>, %arg2: memref<64x256xbf16, #tpu.memory_space<vmem>>, %arg3: memref<64x128xf32, #tpu.memory_space<vmem>>, %arg4: memref<128x384xbf16, #tpu.memory_space<vmem>>, %arg5: memref<1x384xf32, #tpu.memory_space<vmem>>, %arg6: memref<1024x128xf32, #tpu.memory_space<vmem>>, %arg7: memref<128x128xbf16, #tpu.memory_space<vmem>>, %arg8: memref<128x256xbf16, #tpu.memory_space<vmem>>, %arg9: memref<1x256xf32, #tpu.memory_space<vmem>>, %arg10: memref<256x128xbf16, #tpu.memory_space<vmem>>, %arg11: memref<128x128xf32, #tpu.memory_space<vmem>>, %arg12: memref<8x128xf32, #tpu.memory_space<vmem>>, %arg13: memref<64x128xf32, #tpu.memory_space<vmem>>) attributes {dimension_semantics = [#tpu.dimension_semantics<parallel>], iteration_bounds = array<i64: 2>, scalar_prefetch = 0 : i64, scratch_operands = 0 : i64, tpu.core_type = #tpu.core_type<tc>, window_params = [{transform_indices = @transform_0, window_bounds = array<i64: 256, 128>}, {pipeline_mode = #tpu.pipeline_mode<synchronous>, transform_indices = @transform_1, window_bounds = array<i64: 64, 256>}, {pipeline_mode = #tpu.pipeline_mode<synchronous>, transform_indices = @transform_2, window_bounds = array<i64: 64, 128>}, {pipeline_mode = #tpu.pipeline_mode<synchronous>, transform_indices = @transform_3, window_bounds = array<i64: 128, 384>}, {pipeline_mode = #tpu.pipeline_mode<synchronous>, transform_indices = @transform_4, window_bounds = array<i64: 1, 384>}, {pipeline_mode = #tpu.pipeline_mode<synchronous>, transform_indices = @transform_5, window_bounds = array<i64: 1024, 128>}, {pipeline_mode = #tpu.pipeline_mode<synchronous>, transform_indices = @transform_6, window_bounds = array<i64: 128, 128>}, {pipeline_mode = #tpu.pipeline_mode<synchronous>, transform_indices = @transform_7, window_bounds = array<i64: 128, 256>}, {pipeline_mode = #tpu.pipeline_mode<synchronous>, transform_indices = @transform_8, window_bounds = array<i64: 1, 256>}, {pipeline_mode = #tpu.pipeline_mode<synchronous>, transform_indices = @transform_9, window_bounds = array<i64: 256, 128>}, {pipeline_mode = #tpu.pipeline_mode<synchronous>, transform_indices = @transform_10, window_bounds = array<i64: 128, 128>}, {pipeline_mode = #tpu.pipeline_mode<synchronous>, transform_indices = @transform_11, window_bounds = array<i64: 8, 128>}, {transform_indices = @transform_12, window_bounds = array<i64: 64, 128>}]} {
    %c0 = arith.constant 0 : index
    %c0_0 = arith.constant 0 : index
    %0 = vector.load %arg12[%c0, %c0_0] : memref<8x128xf32, #tpu.memory_space<vmem>>, vector<8x128xf32>
    %1 = vector.extract_strided_slice %0 {offsets = [0, 0], sizes = [1, 128], strides = [1, 1]} : vector<8x128xf32> to vector<1x128xf32>
    %2 = vector.extract_strided_slice %0 {offsets = [1, 0], sizes = [1, 128], strides = [1, 1]} : vector<8x128xf32> to vector<1x128xf32>
    %3 = vector.extract_strided_slice %0 {offsets = [2, 0], sizes = [1, 128], strides = [1, 1]} : vector<8x128xf32> to vector<1x128xf32>
    %4 = vector.extract_strided_slice %0 {offsets = [3, 0], sizes = [1, 128], strides = [1, 1]} : vector<8x128xf32> to vector<1x128xf32>
    %5 = vector.extract_strided_slice %0 {offsets = [4, 0], sizes = [1, 128], strides = [1, 1]} : vector<8x128xf32> to vector<1x128xf32>
    %6 = vector.extract_strided_slice %0 {offsets = [5, 0], sizes = [1, 128], strides = [1, 1]} : vector<8x128xf32> to vector<1x128xf32>
    %7 = vector.extract_strided_slice %0 {offsets = [6, 0], sizes = [1, 128], strides = [1, 1]} : vector<8x128xf32> to vector<1x128xf32>
    %8 = vector.extract_strided_slice %0 {offsets = [7, 0], sizes = [1, 128], strides = [1, 1]} : vector<8x128xf32> to vector<1x128xf32>
    %c0_1 = arith.constant 0 : index
    %c0_2 = arith.constant 0 : index
    %9 = vector.load %arg11[%c0_1, %c0_2] : memref<128x128xf32, #tpu.memory_space<vmem>>, vector<128x128xf32>
    %c0_3 = arith.constant 0 : index
    %c0_4 = arith.constant 0 : index
    %10 = vector.load %arg2[%c0_3, %c0_4] : memref<64x256xbf16, #tpu.memory_space<vmem>>, vector<64x256xbf16>
    %c0_5 = arith.constant 0 : index
    %c0_6 = arith.constant 0 : index
    %11 = vector.load %arg1[%c0_5, %c0_6] : memref<256x128xbf16, #tpu.memory_space<vmem>>, vector<256x128xbf16>
    %cst = arith.constant dense<0.000000e+00> : vector<64x128xf32>
    %12 = tpu.matmul %10, %11, %cst {dimension_numbers = #tpu.dot_dimension_numbers<[1], [0], [0], [1], [0, 0, 1, 1], [], []>} : vector<64x256xbf16>, vector<256x128xbf16>, vector<64x128xf32> -> vector<64x128xf32>
    %c0_7 = arith.constant 0 : index
    %c0_8 = arith.constant 0 : index
    %13 = vector.load %arg3[%c0_7, %c0_8] : memref<64x128xf32, #tpu.memory_space<vmem>>, vector<64x128xf32>
    %14 = arith.addf %12, %13 : vector<64x128xf32>
    %cst_9 = arith.constant dense<0.000000e+00> : vector<64x128xf32>
    %15 = tpu.matmul %14, %9, %cst_9 {dimension_numbers = #tpu.dot_dimension_numbers<[1], [0], [0], [1], [0, 0, 1, 1], [], []>} : vector<64x128xf32>, vector<128x128xf32>, vector<64x128xf32> -> vector<64x128xf32>
    %cst_10 = arith.constant 3.125000e-02 : f32
    %16 = vector.broadcast %cst_10 : f32 to vector<64x128xf32>
    %17 = arith.mulf %15, %16 : vector<64x128xf32>
    %18 = arith.subf %14, %17 : vector<64x128xf32>
    %19 = arith.mulf %18, %18 : vector<64x128xf32>
    %cst_11 = arith.constant dense<0.000000e+00> : vector<64x128xf32>
    %20 = tpu.matmul %19, %9, %cst_11 {dimension_numbers = #tpu.dot_dimension_numbers<[1], [0], [0], [1], [0, 0, 1, 1], [], []>} : vector<64x128xf32>, vector<128x128xf32>, vector<64x128xf32> -> vector<64x128xf32>
    %cst_12 = arith.constant 3.125000e-02 : f32
    %21 = vector.broadcast %cst_12 : f32 to vector<64x128xf32>
    %22 = arith.mulf %20, %21 : vector<64x128xf32>
    %cst_13 = arith.constant 9.99999974E-6 : f32
    %23 = vector.broadcast %cst_13 : f32 to vector<64x128xf32>
    %24 = arith.addf %22, %23 : vector<64x128xf32>
    %25 = math.rsqrt %24 : vector<64x128xf32>
    %26 = arith.mulf %18, %25 : vector<64x128xf32>
    %27 = vector.broadcast %1 : vector<1x128xf32> to vector<64x128xf32>
    %28 = arith.mulf %26, %27 : vector<64x128xf32>
    %29 = vector.broadcast %2 : vector<1x128xf32> to vector<64x128xf32>
    %30 = arith.addf %28, %29 : vector<64x128xf32>
    %31 = arith.truncf %30 : vector<64x128xf32> to vector<64x128xbf16>
    %c0_14 = arith.constant 0 : index
    %c0_15 = arith.constant 0 : index
    %32 = vector.load %arg4[%c0_14, %c0_15] : memref<128x384xbf16, #tpu.memory_space<vmem>>, vector<128x384xbf16>
    %cst_16 = arith.constant dense<0.000000e+00> : vector<64x384xf32>
    %33 = tpu.matmul %31, %32, %cst_16 {dimension_numbers = #tpu.dot_dimension_numbers<[1], [0], [0], [1], [0, 0, 1, 1], [], []>} : vector<64x128xbf16>, vector<128x384xbf16>, vector<64x384xf32> -> vector<64x384xf32>
    %c0_17 = arith.constant 0 : index
    %c0_18 = arith.constant 0 : index
    %34 = vector.load %arg5[%c0_17, %c0_18] : memref<1x384xf32, #tpu.memory_space<vmem>>, vector<1x384xf32>
    %35 = vector.broadcast %34 : vector<1x384xf32> to vector<64x384xf32>
    %36 = arith.addf %33, %35 : vector<64x384xf32>
    %37 = vector.extract_strided_slice %36 {offsets = [0, 0], sizes = [64, 128], strides = [1, 1]} : vector<64x384xf32> to vector<64x128xf32>
    %38 = vector.extract_strided_slice %36 {offsets = [0, 128], sizes = [64, 128], strides = [1, 1]} : vector<64x384xf32> to vector<64x128xf32>
    %39 = vector.extract_strided_slice %36 {offsets = [0, 256], sizes = [64, 128], strides = [1, 1]} : vector<64x384xf32> to vector<64x128xf32>
    %c0_19 = arith.constant 0 : index
    %c0_20 = arith.constant 0 : index
    %40 = vector.load %arg6[%c0_19, %c0_20] : memref<1024x128xf32, #tpu.memory_space<vmem>>, vector<1024x128xf32>
    %41 = vector.shape_cast %40 : vector<1024x128xf32> to vector<16x64x128xf32>
    %cst_21 = arith.constant 0.353553385 : f32
    %42 = vector.broadcast %cst_21 : f32 to vector<64x128xf32>
    %43 = arith.mulf %37, %42 : vector<64x128xf32>
    %44 = vector.shape_cast %43 : vector<64x128xf32> to vector<1x64x128xf32>
    %45 = vector.broadcast %44 : vector<1x64x128xf32> to vector<16x64x128xf32>
    %46 = arith.mulf %45, %41 : vector<16x64x128xf32>
    %47 = vector.shape_cast %46 : vector<16x64x128xf32> to vector<1024x128xf32>
    %48 = tpu.transpose %38, [1, 0] : vector<64x128xf32> -> vector<128x64xf32>
    %49 = arith.truncf %47 : vector<1024x128xf32> to vector<1024x128xbf16>
    %50 = arith.truncf %48 : vector<128x64xf32> to vector<128x64xbf16>
    %cst_22 = arith.constant dense<0.000000e+00> : vector<1024x64xf32>
    %51 = tpu.matmul %49, %50, %cst_22 {dimension_numbers = #tpu.dot_dimension_numbers<[1], [0], [0], [1], [0, 0, 1, 1], [], []>} : vector<1024x128xbf16>, vector<128x64xbf16>, vector<1024x64xf32> -> vector<1024x64xf32>
    %cst_23 = arith.constant dense<0xFF800000> : vector<1024xf32>
    %52 = vector.multi_reduction <maximumf>, %51, %cst_23 [1] : vector<1024x64xf32> to vector<1024xf32>
    %53 = vector.shape_cast %52 : vector<1024xf32> to vector<1024x1xf32>
    %54 = vector.broadcast %53 : vector<1024x1xf32> to vector<1024x64xf32>
    %55 = arith.subf %51, %54 : vector<1024x64xf32>
    %56 = math.exp %55 : vector<1024x64xf32>
    %cst_24 = arith.constant dense<0.000000e+00> : vector<1024xf32>
    %57 = vector.multi_reduction <add>, %56, %cst_24 [1] : vector<1024x64xf32> to vector<1024xf32>
    %58 = vector.shape_cast %57 : vector<1024xf32> to vector<1024x1xf32>
    %59 = vector.broadcast %58 : vector<1024x1xf32> to vector<1024x64xf32>
    %60 = arith.divf %56, %59 : vector<1024x64xf32>
    %61 = arith.truncf %60 : vector<1024x64xf32> to vector<1024x64xbf16>
    %62 = arith.truncf %39 : vector<64x128xf32> to vector<64x128xbf16>
    %cst_25 = arith.constant dense<0.000000e+00> : vector<1024x128xf32>
    %63 = tpu.matmul %61, %62, %cst_25 {dimension_numbers = #tpu.dot_dimension_numbers<[1], [0], [0], [1], [0, 0, 1, 1], [], []>} : vector<1024x64xbf16>, vector<64x128xbf16>, vector<1024x128xf32> -> vector<1024x128xf32>
    %64 = vector.shape_cast %63 : vector<1024x128xf32> to vector<16x64x128xf32>
    %65 = arith.mulf %64, %41 : vector<16x64x128xf32>
    %cst_26 = arith.constant dense<0.000000e+00> : vector<64x128xf32>
    %66 = vector.multi_reduction <add>, %65, %cst_26 [0] : vector<16x64x128xf32> to vector<64x128xf32>
    %67 = arith.truncf %66 : vector<64x128xf32> to vector<64x128xbf16>
    %c0_27 = arith.constant 0 : index
    %c0_28 = arith.constant 0 : index
    %68 = vector.load %arg7[%c0_27, %c0_28] : memref<128x128xbf16, #tpu.memory_space<vmem>>, vector<128x128xbf16>
    %cst_29 = arith.constant dense<0.000000e+00> : vector<64x128xf32>
    %69 = tpu.matmul %67, %68, %cst_29 {dimension_numbers = #tpu.dot_dimension_numbers<[1], [0], [0], [1], [0, 0, 1, 1], [], []>} : vector<64x128xbf16>, vector<128x128xbf16>, vector<64x128xf32> -> vector<64x128xf32>
    %70 = vector.broadcast %3 : vector<1x128xf32> to vector<64x128xf32>
    %71 = arith.addf %69, %70 : vector<64x128xf32>
    %72 = arith.addf %30, %71 : vector<64x128xf32>
    %cst_30 = arith.constant dense<0.000000e+00> : vector<64x128xf32>
    %73 = tpu.matmul %72, %9, %cst_30 {dimension_numbers = #tpu.dot_dimension_numbers<[1], [0], [0], [1], [0, 0, 1, 1], [], []>} : vector<64x128xf32>, vector<128x128xf32>, vector<64x128xf32> -> vector<64x128xf32>
    %cst_31 = arith.constant 3.125000e-02 : f32
    %74 = vector.broadcast %cst_31 : f32 to vector<64x128xf32>
    %75 = arith.mulf %73, %74 : vector<64x128xf32>
    %76 = arith.subf %72, %75 : vector<64x128xf32>
    %77 = arith.mulf %76, %76 : vector<64x128xf32>
    %cst_32 = arith.constant dense<0.000000e+00> : vector<64x128xf32>
    %78 = tpu.matmul %77, %9, %cst_32 {dimension_numbers = #tpu.dot_dimension_numbers<[1], [0], [0], [1], [0, 0, 1, 1], [], []>} : vector<64x128xf32>, vector<128x128xf32>, vector<64x128xf32> -> vector<64x128xf32>
    %cst_33 = arith.constant 3.125000e-02 : f32
    %79 = vector.broadcast %cst_33 : f32 to vector<64x128xf32>
    %80 = arith.mulf %78, %79 : vector<64x128xf32>
    %cst_34 = arith.constant 9.99999974E-6 : f32
    %81 = vector.broadcast %cst_34 : f32 to vector<64x128xf32>
    %82 = arith.addf %80, %81 : vector<64x128xf32>
    %83 = math.rsqrt %82 : vector<64x128xf32>
    %84 = arith.mulf %76, %83 : vector<64x128xf32>
    %85 = vector.broadcast %4 : vector<1x128xf32> to vector<64x128xf32>
    %86 = arith.mulf %84, %85 : vector<64x128xf32>
    %87 = vector.broadcast %5 : vector<1x128xf32> to vector<64x128xf32>
    %88 = arith.addf %86, %87 : vector<64x128xf32>
    %89 = arith.truncf %88 : vector<64x128xf32> to vector<64x128xbf16>
    %c0_35 = arith.constant 0 : index
    %c0_36 = arith.constant 0 : index
    %90 = vector.load %arg8[%c0_35, %c0_36] : memref<128x256xbf16, #tpu.memory_space<vmem>>, vector<128x256xbf16>
    %cst_37 = arith.constant dense<0.000000e+00> : vector<64x256xf32>
    %91 = tpu.matmul %89, %90, %cst_37 {dimension_numbers = #tpu.dot_dimension_numbers<[1], [0], [0], [1], [0, 0, 1, 1], [], []>} : vector<64x128xbf16>, vector<128x256xbf16>, vector<64x256xf32> -> vector<64x256xf32>
    %c0_38 = arith.constant 0 : index
    %c0_39 = arith.constant 0 : index
    %92 = vector.load %arg9[%c0_38, %c0_39] : memref<1x256xf32, #tpu.memory_space<vmem>>, vector<1x256xf32>
    %93 = vector.broadcast %92 : vector<1x256xf32> to vector<64x256xf32>
    %94 = arith.addf %91, %93 : vector<64x256xf32>
    %cst_40 = arith.constant 0.000000e+00 : f32
    %95 = vector.broadcast %cst_40 : f32 to vector<64x256xf32>
    %96 = arith.maximumf %94, %95 : vector<64x256xf32>
    %97 = arith.truncf %96 : vector<64x256xf32> to vector<64x256xbf16>
    %c0_41 = arith.constant 0 : index
    %c0_42 = arith.constant 0 : index
    %98 = vector.load %arg10[%c0_41, %c0_42] : memref<256x128xbf16, #tpu.memory_space<vmem>>, vector<256x128xbf16>
    %cst_43 = arith.constant dense<0.000000e+00> : vector<64x128xf32>
    %99 = tpu.matmul %97, %98, %cst_43 {dimension_numbers = #tpu.dot_dimension_numbers<[1], [0], [0], [1], [0, 0, 1, 1], [], []>} : vector<64x256xbf16>, vector<256x128xbf16>, vector<64x128xf32> -> vector<64x128xf32>
    %100 = vector.broadcast %6 : vector<1x128xf32> to vector<64x128xf32>
    %101 = arith.addf %99, %100 : vector<64x128xf32>
    %102 = arith.addf %88, %101 : vector<64x128xf32>
    %cst_44 = arith.constant dense<0.000000e+00> : vector<64x128xf32>
    %103 = tpu.matmul %102, %9, %cst_44 {dimension_numbers = #tpu.dot_dimension_numbers<[1], [0], [0], [1], [0, 0, 1, 1], [], []>} : vector<64x128xf32>, vector<128x128xf32>, vector<64x128xf32> -> vector<64x128xf32>
    %cst_45 = arith.constant 3.125000e-02 : f32
    %104 = vector.broadcast %cst_45 : f32 to vector<64x128xf32>
    %105 = arith.mulf %103, %104 : vector<64x128xf32>
    %106 = arith.subf %102, %105 : vector<64x128xf32>
    %107 = arith.mulf %106, %106 : vector<64x128xf32>
    %cst_46 = arith.constant dense<0.000000e+00> : vector<64x128xf32>
    %108 = tpu.matmul %107, %9, %cst_46 {dimension_numbers = #tpu.dot_dimension_numbers<[1], [0], [0], [1], [0, 0, 1, 1], [], []>} : vector<64x128xf32>, vector<128x128xf32>, vector<64x128xf32> -> vector<64x128xf32>
    %cst_47 = arith.constant 3.125000e-02 : f32
    %109 = vector.broadcast %cst_47 : f32 to vector<64x128xf32>
    %110 = arith.mulf %108, %109 : vector<64x128xf32>
    %cst_48 = arith.constant 9.99999974E-6 : f32
    %111 = vector.broadcast %cst_48 : f32 to vector<64x128xf32>
    %112 = arith.addf %110, %111 : vector<64x128xf32>
    %113 = math.rsqrt %112 : vector<64x128xf32>
    %114 = arith.mulf %106, %113 : vector<64x128xf32>
    %115 = vector.broadcast %7 : vector<1x128xf32> to vector<64x128xf32>
    %116 = arith.mulf %114, %115 : vector<64x128xf32>
    %117 = vector.broadcast %8 : vector<1x128xf32> to vector<64x128xf32>
    %118 = arith.addf %116, %117 : vector<64x128xf32>
    %c0_49 = arith.constant 0 : index
    %c0_50 = arith.constant 0 : index
    %119 = vector.load %arg13[%c0_49, %c0_50] : memref<64x128xf32, #tpu.memory_space<vmem>>, vector<64x128xf32>
    tpu.vector_store %arg13[%c0_49, %c0_50], %118 {strides = array<i32>} : memref<64x128xf32, #tpu.memory_space<vmem>>, vector<64x128xf32>,
    return
  }
  func.func @transform_0(%arg0: i32) -> (i32, i32) {
    %c0_i32 = arith.constant 0 : i32
    %c0_i32_0 = arith.constant 0 : i32
    return %c0_i32, %arg0 : i32, i32
  }
  func.func @transform_1(%arg0: i32) -> (i32, i32) {
    %c0_i32 = arith.constant 0 : i32
    %c0_i32_0 = arith.constant 0 : i32
    %c0_i32_1 = arith.constant 0 : i32
    return %c0_i32, %c0_i32_0 : i32, i32
  }
  func.func @transform_2(%arg0: i32) -> (i32, i32) {
    %c0_i32 = arith.constant 0 : i32
    %c0_i32_0 = arith.constant 0 : i32
    %c0_i32_1 = arith.constant 0 : i32
    return %c0_i32, %c0_i32_0 : i32, i32
  }
  func.func @transform_3(%arg0: i32) -> (i32, i32) {
    %c0_i32 = arith.constant 0 : i32
    %c0_i32_0 = arith.constant 0 : i32
    %c0_i32_1 = arith.constant 0 : i32
    return %c0_i32, %c0_i32_0 : i32, i32
  }
  func.func @transform_4(%arg0: i32) -> (i32, i32) {
    %c0_i32 = arith.constant 0 : i32
    %c0_i32_0 = arith.constant 0 : i32
    %c0_i32_1 = arith.constant 0 : i32
    return %c0_i32, %c0_i32_0 : i32, i32
  }
  func.func @transform_5(%arg0: i32) -> (i32, i32) {
    %c0_i32 = arith.constant 0 : i32
    %c0_i32_0 = arith.constant 0 : i32
    %c0_i32_1 = arith.constant 0 : i32
    return %c0_i32, %c0_i32_0 : i32, i32
  }
  func.func @transform_6(%arg0: i32) -> (i32, i32) {
    %c0_i32 = arith.constant 0 : i32
    %c0_i32_0 = arith.constant 0 : i32
    %c0_i32_1 = arith.constant 0 : i32
    return %c0_i32, %c0_i32_0 : i32, i32
  }
  func.func @transform_7(%arg0: i32) -> (i32, i32) {
    %c0_i32 = arith.constant 0 : i32
    %c0_i32_0 = arith.constant 0 : i32
    %c0_i32_1 = arith.constant 0 : i32
    return %c0_i32, %c0_i32_0 : i32, i32
  }
  func.func @transform_8(%arg0: i32) -> (i32, i32) {
    %c0_i32 = arith.constant 0 : i32
    %c0_i32_0 = arith.constant 0 : i32
    %c0_i32_1 = arith.constant 0 : i32
    return %c0_i32, %c0_i32_0 : i32, i32
  }
  func.func @transform_9(%arg0: i32) -> (i32, i32) {
    %c0_i32 = arith.constant 0 : i32
    %c0_i32_0 = arith.constant 0 : i32
    %c0_i32_1 = arith.constant 0 : i32
    return %c0_i32, %c0_i32_0 : i32, i32
  }
  func.func @transform_10(%arg0: i32) -> (i32, i32) {
    %c0_i32 = arith.constant 0 : i32
    %c0_i32_0 = arith.constant 0 : i32
    %c0_i32_1 = arith.constant 0 : i32
    return %c0_i32, %c0_i32_0 : i32, i32
  }
  func.func @transform_11(%arg0: i32) -> (i32, i32) {
    %c0_i32 = arith.constant 0 : i32
    %c0_i32_0 = arith.constant 0 : i32
    %c0_i32_1 = arith.constant 0 : i32
    return %c0_i32, %c0_i32_0 : i32, i32
  }
  func.func @transform_12(%arg0: i32) -> (i32, i32) {
    %c0_i32 = arith.constant 0 : i32
    %c0_i32_0 = arith.constant 0 : i32
    return %c0_i32, %arg0 : i32, i32
  }
}

</mosaic_0001>

<llo_original>
// kernel: tpu_custom_call.1
$region0: #{tpu_custom_call.1}
  #allocation0 [shape = 'u32[]', space=smem, size = 0x4, offset = 0x4, fixed_abs, tag = 'smem constant byte address 0x4 - core index']
  #allocation1 [shape = 'u32[72,128]{1,0:T(1,128)}', space=vmem, size = 0x9000, scoped, tag = 'internal scratch']
  %s0 = inlined_call_operand.hbm [shape: bf16[256,256], index: 0, kind: input, shape index: {}]
  %s1 = inlined_call_operand.hbm [shape: bf16[64,256], index: 1, kind: input, shape index: {}]
  %s2 = inlined_call_operand.hbm [shape: f32[64,128], index: 2, kind: input, shape index: {}]
  %s3 = inlined_call_operand.hbm [shape: bf16[128,384], index: 3, kind: input, shape index: {}]
  %s4 = inlined_call_operand.hbm [shape: f32[1,384], index: 4, kind: input, shape index: {}]
  %s5 = inlined_call_operand.hbm [shape: f32[1024,128], index: 5, kind: input, shape index: {}]
  %s6 = inlined_call_operand.hbm [shape: bf16[128,128], index: 6, kind: input, shape index: {}]
  %s7 = inlined_call_operand.hbm [shape: bf16[128,256], index: 7, kind: input, shape index: {}]
  %s8 = inlined_call_operand.vmem [shape: f32[1,256], index: 8, kind: input, shape index: {}]
  %s9 = inlined_call_operand.hbm [shape: bf16[256,128], index: 9, kind: input, shape index: {}]
  %s10 = inlined_call_operand.hbm [shape: f32[128,128], index: 10, kind: input, shape index: {}]
  %s11 = inlined_call_operand.vmem [shape: f32[8,128], index: 11, kind: input, shape index: {}]
  %s12 = inlined_call_operand.hbm [shape: f32[64,256], index: 12, kind: output, shape index: {}]
  %s13 = sld [smem:[#allocation0]]
  $region121: #{tpu_custom_call.1} parent=0
    _
  %s15 = ssub.s32 1, %s13
  %s16 = scalar_select 0, %s15, %s13
  $region1: #{tpu_custom_call.1} parent=0
    #allocation2 [shape = 'u8[131072]{0}', space=vmem, size = 0x20000, scoped, tag = 'input window, operand 0']
    #allocation3 [shape = 's32[2]{0}', space=sflag, size = 0x8, scoped, tag = 'scoped memory for tpu_custom_call.1']
    #allocation4 [shape = 's32[2]{0}', space=sflag, size = 0x8, scoped, tag = 'scoped memory for tpu_custom_call.1']
    #allocation5 [shape = 'u8[32768]{0}', space=vmem, size = 0x8000, scoped, tag = 'input window, operand 1, single buffered']
    #allocation6 [shape = 's32[1]{0}', space=sflag, size = 0x4, scoped, tag = 'scoped memory for tpu_custom_call.1']
    #allocation7 [shape = 'u8[32768]{0}', space=vmem, size = 0x8000, scoped, tag = 'input window, operand 2, single buffered']
    #allocation8 [shape = 'u8[98304]{0}', space=vmem, size = 0x18000, scoped, tag = 'input window, operand 3, single buffered']
    #allocation9 [shape = 's32[1]{0}', space=sflag, size = 0x4, scoped, tag = 'scoped memory for tpu_custom_call.1']
    #allocation10 [shape = 'u8[1536]{0}', space=vmem, size = 0x800, scoped, tag = 'input window, operand 4, single buffered']
    #allocation11 [shape = 'u8[524288]{0}', space=vmem, size = 0x80000, scoped, tag = 'input window, operand 5, single buffered']
    #allocation12 [shape = 's32[1]{0}', space=sflag, size = 0x4, scoped, tag = 'scoped memory for tpu_custom_call.1']
    #allocation13 [shape = 'u8[32768]{0}', space=vmem, size = 0x8000, scoped, tag = 'input window, operand 6, single buffered']
    #allocation14 [shape = 'u8[65536]{0}', space=vmem, size = 0x10000, scoped, tag = 'input window, operand 7, single buffered']
    #allocation15 [shape = 's32[1]{0}', space=sflag, size = 0x4, scoped, tag = 'scoped memory for tpu_custom_call.1']
    #allocation16 [shape = 'u8[65536]{0}', space=vmem, size = 0x10000, scoped, tag = 'input window, operand 9, single buffered']
    #allocation17 [shape = 'u8[65536]{0}', space=vmem, size = 0x10000, scoped, tag = 'input window, operand 10, single buffered']
    #allocation18 [shape = 's32[1]{0}', space=sflag, size = 0x4, scoped, tag = 'scoped memory for tpu_custom_call.1']
    #allocation19 [shape = 'u8[65536]{0}', space=vmem, size = 0x10000, scoped, tag = 'output window, operand 0']
    %17 = vsyncpa [#allocation3], 0
    %s18 = scalar_lea.sflag [#allocation3], 1
    %19 = vsyncpa %s18, 0
    %20 = vsyncpa [#allocation6], 0
    %21 = vsyncpa [#allocation9], 0
    %22 = vsyncpa [#allocation12], 0
    %23 = vsyncpa [#allocation15], 0
    %24 = vsyncpa [#allocation18], 0
    %25 = vsyncpa [#allocation4], 0
    %s26 = scalar_lea.sflag [#allocation4], 1
    %27 = vsyncpa %s26, 0
    loop: start=0, step=1, limit=4
    $region2: #{tpu_custom_call.1} parent=1 // loop_pre_header
      _
    $region3: #{tpu_custom_call.1} parent=1 // loop_header
      %s29 = sphi 0, %s33
      %p30 = scmp.ge.s32.totalorder %s29, 4
      %s39 = sphi 0, %s41
      %s42 = sphi 0, %s39
      %s43 = sphi 0, %s42
      %s59 = sphi 0, %s43
      %s63 = sphi 0, %s63
      %s65 = sphi 0, %s63
      %s66 = sphi 0, %s65
      %s80 = sphi 0, %s66
      %s84 = sphi 0, %s84
      %s86 = sphi 0, %s84
      %s87 = sphi 0, %s86
      %s101 = sphi 0, %s87
      %s105 = sphi 0, %s105
      %s107 = sphi 0, %s105
      %s108 = sphi 0, %s107
      %s122 = sphi 0, %s108
      %s126 = sphi 0, %s126
      %s128 = sphi 0, %s126
      %s129 = sphi 0, %s128
      %s143 = sphi 0, %s129
      %s147 = sphi 0, %s147
      %s149 = sphi 0, %s147
      %s150 = sphi 0, %s149
      %s164 = sphi 0, %s150
      %s168 = sphi 0, %s168
      %s170 = sphi 0, %s168
      %s171 = sphi 0, %s170
      %s185 = sphi 0, %s171
      %s189 = sphi 0, %s189
      %s191 = sphi 0, %s189
      %s192 = sphi 0, %s191
      %s206 = sphi 0, %s192
      %s210 = sphi 0, %s210
      %s212 = sphi 0, %s210
      %s213 = sphi 0, %s212
      %s227 = sphi 0, %s213
      %s231 = sphi 0, %s231
      %s233 = sphi 0, %s231
      %s234 = sphi 0, %s233
      %s248 = sphi 0, %s234
      %s252 = sphi 0, %s252
      %s254 = sphi 0, %s252
      %s255 = sphi 0, %s254
      %s269 = sphi 0, %s255
      %s273 = sphi 0, %s273
      %s275 = sphi 0, %s273
      %s276 = sphi 0, %s275
      %s290 = sphi 0, %s276
      %s296 = sphi 0, %s298
      %s299 = sphi 0, %s296
      %s300 = sphi 0, %s299
      %s316 = sphi 0, %s300
    $region4: #{tpu_custom_call.1} parent=1 // loop_header_branch
      %32 = sbr.rel (%p30) target = $region8
    $region5: #{tpu_custom_call.1} parent=1 // loop_body
      %s34 = ssub.s32 %s29, 1
      %s35 = ssub.s32 %s29, 2
      %s36 = sadd.s32 %s29, 1
      %s37 = ssub.s32 %s29, %s36
      %p38 = scmp.eq.s32.totalorder %s37, 0
      %s40 = sadd.s32 %s39, 1
      %s41 = scalar_select %p38, %s39, %s40
      %p44 = pneg %p38
      %p45 = scmp.eq.s32.totalorder %s29, 1
      %p46 = por %p44, %p45
      %p47 = scmp.ne.s32.totalorder %s39, %s42
      %p48 = scmp.eq.s32.totalorder %s29, 0
      %p49 = por %p47, %p48
      %p50 = scmp.ne.s32.totalorder %s39, %s42
      %p51 = scmp.eq.s32.totalorder %s34, 1
      %p52 = por %p50, %p51
      %p53 = scmp.ne.s32.totalorder %s42, %s43
      %p54 = scmp.eq.s32.totalorder %s34, 0
      %p55 = por %p53, %p54
      %p56 = scmp.ne.s32.totalorder %s42, %s43
      %p57 = scmp.eq.s32.totalorder %s35, 1
      %p58 = por %p56, %p57
      %p60 = scmp.ne.s32.totalorder %s43, %s59
      %p61 = scmp.eq.s32.totalorder %s35, 0
      %p62 = por %p60, %p61
      %s64 = sadd.s32 %s63, 1
      %p67 = scmp.eq.s32.totalorder %s29, 1
      %p68 = scmp.ne.s32.totalorder %s63, %s65
      %p69 = scmp.eq.s32.totalorder %s29, 0
      %p70 = por %p68, %p69
      %p71 = scmp.ne.s32.totalorder %s63, %s65
      %p72 = scmp.eq.s32.totalorder %s34, 1
      %p73 = por %p71, %p72
      %p74 = scmp.ne.s32.totalorder %s65, %s66
      %p75 = scmp.eq.s32.totalorder %s34, 0
      %p76 = por %p74, %p75
      %p77 = scmp.ne.s32.totalorder %s65, %s66
      %p78 = scmp.eq.s32.totalorder %s35, 1
      %p79 = por %p77, %p78
      %p81 = scmp.ne.s32.totalorder %s66, %s80
      %p82 = scmp.eq.s32.totalorder %s35, 0
      %p83 = por %p81, %p82
      %s85 = sadd.s32 %s84, 1
      %p88 = scmp.eq.s32.totalorder %s29, 1
      %p89 = scmp.ne.s32.totalorder %s84, %s86
      %p90 = scmp.eq.s32.totalorder %s29, 0
      %p91 = por %p89, %p90
      %p92 = scmp.ne.s32.totalorder %s84, %s86
      %p93 = scmp.eq.s32.totalorder %s34, 1
      %p94 = por %p92, %p93
      %p95 = scmp.ne.s32.totalorder %s86, %s87
      %p96 = scmp.eq.s32.totalorder %s34, 0
      %p97 = por %p95, %p96
      %p98 = scmp.ne.s32.totalorder %s86, %s87
      %p99 = scmp.eq.s32.totalorder %s35, 1
      %p100 = por %p98, %p99
      %p102 = scmp.ne.s32.totalorder %s87, %s101
      %p103 = scmp.eq.s32.totalorder %s35, 0
      %p104 = por %p102, %p103
      %s106 = sadd.s32 %s105, 1
      %p109 = scmp.eq.s32.totalorder %s29, 1
      %p110 = scmp.ne.s32.totalorder %s105, %s107
      %p111 = scmp.eq.s32.totalorder %s29, 0
      %p112 = por %p110, %p111
      %p113 = scmp.ne.s32.totalorder %s105, %s107
      %p114 = scmp.eq.s32.totalorder %s34, 1
      %p115 = por %p113, %p114
      %p116 = scmp.ne.s32.totalorder %s107, %s108
      %p117 = scmp.eq.s32.totalorder %s34, 0
      %p118 = por %p116, %p117
      %p119 = scmp.ne.s32.totalorder %s107, %s108
      %p120 = scmp.eq.s32.totalorder %s35, 1
      %p121 = por %p119, %p120
      %p123 = scmp.ne.s32.totalorder %s108, %s122
      %p124 = scmp.eq.s32.totalorder %s35, 0
      %p125 = por %p123, %p124
      %s127 = sadd.s32 %s126, 1
      %p130 = scmp.eq.s32.totalorder %s29, 1
      %p131 = scmp.ne.s32.totalorder %s126, %s128
      %p132 = scmp.eq.s32.totalorder %s29, 0
      %p133 = por %p131, %p132
      %p134 = scmp.ne.s32.totalorder %s126, %s128
      %p135 = scmp.eq.s32.totalorder %s34, 1
      %p136 = por %p134, %p135
      %p137 = scmp.ne.s32.totalorder %s128, %s129
      %p138 = scmp.eq.s32.totalorder %s34, 0
      %p139 = por %p137, %p138
      %p140 = scmp.ne.s32.totalorder %s128, %s129
      %p141 = scmp.eq.s32.totalorder %s35, 1
      %p142 = por %p140, %p141
      %p144 = scmp.ne.s32.totalorder %s129, %s143
      %p145 = scmp.eq.s32.totalorder %s35, 0
      %p146 = por %p144, %p145
      %s148 = sadd.s32 %s147, 1
      %p151 = scmp.eq.s32.totalorder %s29, 1
      %p152 = scmp.ne.s32.totalorder %s147, %s149
      %p153 = scmp.eq.s32.totalorder %s29, 0
      %p154 = por %p152, %p153
      %p155 = scmp.ne.s32.totalorder %s147, %s149
      %p156 = scmp.eq.s32.totalorder %s34, 1
      %p157 = por %p155, %p156
      %p158 = scmp.ne.s32.totalorder %s149, %s150
      %p159 = scmp.eq.s32.totalorder %s34, 0
      %p160 = por %p158, %p159
      %p161 = scmp.ne.s32.totalorder %s149, %s150
      %p162 = scmp.eq.s32.totalorder %s35, 1
      %p163 = por %p161, %p162
      %p165 = scmp.ne.s32.totalorder %s150, %s164
      %p166 = scmp.eq.s32.totalorder %s35, 0
      %p167 = por %p165, %p166
      %s169 = sadd.s32 %s168, 1
      %p172 = scmp.eq.s32.totalorder %s29, 1
      %p173 = scmp.ne.s32.totalorder %s168, %s170
      %p174 = scmp.eq.s32.totalorder %s29, 0
      %p175 = por %p173, %p174
      %p176 = scmp.ne.s32.totalorder %s168, %s170
      %p177 = scmp.eq.s32.totalorder %s34, 1
      %p178 = por %p176, %p177
      %p179 = scmp.ne.s32.totalorder %s170, %s171
      %p180 = scmp.eq.s32.totalorder %s34, 0
      %p181 = por %p179, %p180
      %p182 = scmp.ne.s32.totalorder %s170, %s171
      %p183 = scmp.eq.s32.totalorder %s35, 1
      %p184 = por %p182, %p183
      %p186 = scmp.ne.s32.totalorder %s171, %s185
      %p187 = scmp.eq.s32.totalorder %s35, 0
      %p188 = por %p186, %p187
      %s190 = sadd.s32 %s189, 1
      %p193 = scmp.eq.s32.totalorder %s29, 1
      %p194 = scmp.ne.s32.totalorder %s189, %s191
      %p195 = scmp.eq.s32.totalorder %s29, 0
      %p196 = por %p194, %p195
      %p197 = scmp.ne.s32.totalorder %s189, %s191
      %p198 = scmp.eq.s32.totalorder %s34, 1
      %p199 = por %p197, %p198
      %p200 = scmp.ne.s32.totalorder %s191, %s192
      %p201 = scmp.eq.s32.totalorder %s34, 0
      %p202 = por %p200, %p201
      %p203 = scmp.ne.s32.totalorder %s191, %s192
      %p204 = scmp.eq.s32.totalorder %s35, 1
      %p205 = por %p203, %p204
      %p207 = scmp.ne.s32.totalorder %s192, %s206
      %p208 = scmp.eq.s32.totalorder %s35, 0
      %p209 = por %p207, %p208
      %s211 = sadd.s32 %s210, 1
      %p214 = scmp.eq.s32.totalorder %s29, 1
      %p215 = scmp.ne.s32.totalorder %s210, %s212
      %p216 = scmp.eq.s32.totalorder %s29, 0
      %p217 = por %p215, %p216
      %p218 = scmp.ne.s32.totalorder %s210, %s212
      %p219 = scmp.eq.s32.totalorder %s34, 1
      %p220 = por %p218, %p219
      %p221 = scmp.ne.s32.totalorder %s212, %s213
      %p222 = scmp.eq.s32.totalorder %s34, 0
      %p223 = por %p221, %p222
      %p224 = scmp.ne.s32.totalorder %s212, %s213
      %p225 = scmp.eq.s32.totalorder %s35, 1
      %p226 = por %p224, %p225
      %p228 = scmp.ne.s32.totalorder %s213, %s227
      %p229 = scmp.eq.s32.totalorder %s35, 0
      %p230 = por %p228, %p229
      %s232 = sadd.s32 %s231, 1
      %p235 = scmp.eq.s32.totalorder %s29, 1
      %p236 = scmp.ne.s32.totalorder %s231, %s233
      %p237 = scmp.eq.s32.totalorder %s29, 0
      %p238 = por %p236, %p237
      %p239 = scmp.ne.s32.totalorder %s231, %s233
      %p240 = scmp.eq.s32.totalorder %s34, 1
      %p241 = por %p239, %p240
      %p242 = scmp.ne.s32.totalorder %s233, %s234
      %p243 = scmp.eq.s32.totalorder %s34, 0
      %p244 = por %p242, %p243
      %p245 = scmp.ne.s32.totalorder %s233, %s234
      %p246 = scmp.eq.s32.totalorder %s35, 1
      %p247 = por %p245, %p246
      %p249 = scmp.ne.s32.totalorder %s234, %s248
      %p250 = scmp.eq.s32.totalorder %s35, 0
      %p251 = por %p249, %p250
      %s253 = sadd.s32 %s252, 1
      %p256 = scmp.eq.s32.totalorder %s29, 1
      %p257 = scmp.ne.s32.totalorder %s252, %s254
      %p258 = scmp.eq.s32.totalorder %s29, 0
      %p259 = por %p257, %p258
      %p260 = scmp.ne.s32.totalorder %s252, %s254
      %p261 = scmp.eq.s32.totalorder %s34, 1
      %p262 = por %p260, %p261
      %p263 = scmp.ne.s32.totalorder %s254, %s255
      %p264 = scmp.eq.s32.totalorder %s34, 0
      %p265 = por %p263, %p264
      %p266 = scmp.ne.s32.totalorder %s254, %s255
      %p267 = scmp.eq.s32.totalorder %s35, 1
      %p268 = por %p266, %p267
      %p270 = scmp.ne.s32.totalorder %s255, %s269
      %p271 = scmp.eq.s32.totalorder %s35, 0
      %p272 = por %p270, %p271
      %s274 = sadd.s32 %s273, 1
      %p277 = scmp.eq.s32.totalorder %s29, 1
      %p278 = scmp.ne.s32.totalorder %s273, %s275
      %p279 = scmp.eq.s32.totalorder %s29, 0
      %p280 = por %p278, %p279
      %p281 = scmp.ne.s32.totalorder %s273, %s275
      %p282 = scmp.eq.s32.totalorder %s34, 1
      %p283 = por %p281, %p282
      %p284 = scmp.ne.s32.totalorder %s275, %s276
      %p285 = scmp.eq.s32.totalorder %s34, 0
      %p286 = por %p284, %p285
      %p287 = scmp.ne.s32.totalorder %s275, %s276
      %p288 = scmp.eq.s32.totalorder %s35, 1
      %p289 = por %p287, %p288
      %p291 = scmp.ne.s32.totalorder %s276, %s290
      %p292 = scmp.eq.s32.totalorder %s35, 0
      %p293 = por %p291, %p292
      %s294 = ssub.s32 %s29, %s36
      %p295 = scmp.eq.s32.totalorder %s294, 0
      %s297 = sadd.s32 %s296, 1
      %s298 = scalar_select %p295, %s296, %s297
      %p301 = pneg %p295
      %p302 = scmp.eq.s32.totalorder %s29, 1
      %p303 = por %p301, %p302
      %p304 = scmp.ne.s32.totalorder %s296, %s299
      %p305 = scmp.eq.s32.totalorder %s29, 0
      %p306 = por %p304, %p305
      %p307 = scmp.ne.s32.totalorder %s296, %s299
      %p308 = scmp.eq.s32.totalorder %s34, 1
      %p309 = por %p307, %p308
      %p310 = scmp.ne.s32.totalorder %s299, %s300
      %p311 = scmp.eq.s32.totalorder %s34, 0
      %p312 = por %p310, %p311
      %p313 = scmp.ne.s32.totalorder %s299, %s300
      %p314 = scmp.eq.s32.totalorder %s35, 1
      %p315 = por %p313, %p314
      %p317 = scmp.ne.s32.totalorder %s300, %s316
      %p318 = scmp.eq.s32.totalorder %s35, 0
      %p319 = por %p317, %p318
      %p320 = scmp.le.s32.totalorder 1, %s29
      %p321 = scmp.lt.s32.totalorder %s29, 3
      %p322 = pnand %p320, %p321
      %p323 = pneg %p322
      // Predicated region
      $region9: #{tpu_custom_call.1} parent=5 // pred_check
        _
      $region10: #{tpu_custom_call.1} parent=5 // pred_check_branch
        %325 = sbr.rel (%p322) target = $region12
      $region11: #{tpu_custom_call.1} parent=5 // pred_region
        %s326 = ssub.s32 %s29, 1
        // Predicated region
        $region13: #{tpu_custom_call.1} parent=11 // pred_check
          %p327 = pneg %p76
        $region14: #{tpu_custom_call.1} parent=11 // pred_check_branch
          %329 = sbr.rel (%p327) target = $region16
        $region15: #{tpu_custom_call.1} parent=11 // pred_region
          %331 = vsyncadd [#allocation6], 0
          %s332 = sshll.u32 %s1, 4
          %s333 = int_to_ptr.hbm [resolvable:$true] %s332
          %s334 = sshll.u32 [#allocation5], 4
          %s335 = int_to_ptr.vmem [resolvable:$true] %s334
          %340 = dma.hbm_to_vmem [thread:$0]  %s333, 1024, %s335, [#allocation6], 128, 128, 8
        $region16: #{tpu_custom_call.1} parent=11 // pred_fallthru
          _
        // Predicated region
        $region17: #{tpu_custom_call.1} parent=11 // pred_check
          %p341 = pneg %p97
        $region18: #{tpu_custom_call.1} parent=11 // pred_check_branch
          %343 = sbr.rel (%p341) target = $region20
        $region19: #{tpu_custom_call.1} parent=11 // pred_region
          %345 = vsyncadd [#allocation6], 0
          %s346 = sshll.u32 %s2, 4
          %s347 = int_to_ptr.hbm [resolvable:$true] %s346
          %s348 = sshll.u32 [#allocation7], 4
          %s349 = int_to_ptr.vmem [resolvable:$true] %s348
          %354 = dma.hbm_to_vmem [thread:$0]  %s347, 1024, %s349, [#allocation6], 128, 128, 8
        $region20: #{tpu_custom_call.1} parent=11 // pred_fallthru
          _
        // Predicated region
        $region21: #{tpu_custom_call.1} parent=11 // pred_check
          %p355 = pneg %p118
        $region22: #{tpu_custom_call.1} parent=11 // pred_check_branch
          %357 = sbr.rel (%p355) target = $region24
        $region23: #{tpu_custom_call.1} parent=11 // pred_region
          %359 = vsyncadd [#allocation9], 0
          %s360 = sshll.u32 %s3, 4
          %s361 = int_to_ptr.hbm [resolvable:$true] %s360
          %s362 = sshll.u32 [#allocation8], 4
          %s363 = int_to_ptr.vmem [resolvable:$true] %s362
          %368 = dma.hbm_to_vmem [thread:$0]  %s361, 3072, %s363, [#allocation9], 192, 192, 12
        $region24: #{tpu_custom_call.1} parent=11 // pred_fallthru
          _
        // Predicated region
        $region25: #{tpu_custom_call.1} parent=11 // pred_check
          %p369 = pneg %p139
        $region26: #{tpu_custom_call.1} parent=11 // pred_check_branch
          %371 = sbr.rel (%p369) target = $region28
        $region27: #{tpu_custom_call.1} parent=11 // pred_region
          %373 = vsyncadd [#allocation9], 0
          %s375 = sshll.u32 %s4, 4
          %s376 = int_to_ptr.hbm [resolvable:$true] %s375
          %s377 = sshll.u32 [#allocation10], 4
          %s378 = int_to_ptr.vmem [resolvable:$true] %s377
          %380 = dma.hbm_to_vmem [thread:$0]  %s376, 48, %s378, [#allocation9]
        $region28: #{tpu_custom_call.1} parent=11 // pred_fallthru
          _
        // Predicated region
        $region29: #{tpu_custom_call.1} parent=11 // pred_check
          %p381 = pneg %p160
        $region30: #{tpu_custom_call.1} parent=11 // pred_check_branch
          %383 = sbr.rel (%p381) target = $region32
        $region31: #{tpu_custom_call.1} parent=11 // pred_region
          %385 = vsyncadd [#allocation12], 0
          %s386 = sshll.u32 %s5, 4
          %s387 = int_to_ptr.hbm [resolvable:$true] %s386
          %s388 = sshll.u32 [#allocation11], 4
          %s389 = int_to_ptr.vmem [resolvable:$true] %s388
          %394 = dma.hbm_to_vmem [thread:$0]  %s387, 16384, %s389, [#allocation12], 128, 128, 8
        $region32: #{tpu_custom_call.1} parent=11 // pred_fallthru
          _
        // Predicated region
        $region33: #{tpu_custom_call.1} parent=11 // pred_check
          %p395 = pneg %p181
        $region34: #{tpu_custom_call.1} parent=11 // pred_check_branch
          %397 = sbr.rel (%p395) target = $region36
        $region35: #{tpu_custom_call.1} parent=11 // pred_region
          %399 = vsyncadd [#allocation12], 0
          %s400 = sshll.u32 %s6, 4
          %s401 = int_to_ptr.hbm [resolvable:$true] %s400
          %s402 = sshll.u32 [#allocation13], 4
          %s403 = int_to_ptr.vmem [resolvable:$true] %s402
          %408 = dma.hbm_to_vmem [thread:$0]  %s401, 1024, %s403, [#allocation12], 64, 64, 4
        $region36: #{tpu_custom_call.1} parent=11 // pred_fallthru
          _
        // Predicated region
        $region37: #{tpu_custom_call.1} parent=11 // pred_check
          %p409 = pneg %p202
        $region38: #{tpu_custom_call.1} parent=11 // pred_check_branch
          %411 = sbr.rel (%p409) target = $region40
        $region39: #{tpu_custom_call.1} parent=11 // pred_region
          %413 = vsyncadd [#allocation15], 0
          %s414 = sshll.u32 %s7, 4
          %s415 = int_to_ptr.hbm [resolvable:$true] %s414
          %s416 = sshll.u32 [#allocation14], 4
          %s417 = int_to_ptr.vmem [resolvable:$true] %s416
          %422 = dma.hbm_to_vmem [thread:$0]  %s415, 2048, %s417, [#allocation15], 128, 128, 8
        $region40: #{tpu_custom_call.1} parent=11 // pred_fallthru
          _
        // Predicated region
        $region41: #{tpu_custom_call.1} parent=11 // pred_check
          %p423 = pneg %p223
        $region42: #{tpu_custom_call.1} parent=11 // pred_check_branch
          %425 = sbr.rel (%p423) target = $region44
        $region43: #{tpu_custom_call.1} parent=11 // pred_region
          _
        $region44: #{tpu_custom_call.1} parent=11 // pred_fallthru
          _
        // Predicated region
        $region45: #{tpu_custom_call.1} parent=11 // pred_check
          %p426 = pneg %p244
        $region46: #{tpu_custom_call.1} parent=11 // pred_check_branch
          %428 = sbr.rel (%p426) target = $region48
        $region47: #{tpu_custom_call.1} parent=11 // pred_region
          %430 = vsyncadd [#allocation15], 0
          %s431 = sshll.u32 %s9, 4
          %s432 = int_to_ptr.hbm [resolvable:$true] %s431
          %s433 = sshll.u32 [#allocation16], 4
          %s434 = int_to_ptr.vmem [resolvable:$true] %s433
          %439 = dma.hbm_to_vmem [thread:$0]  %s432, 2048, %s434, [#allocation15], 64, 64, 4
        $region48: #{tpu_custom_call.1} parent=11 // pred_fallthru
          _
        // Predicated region
        $region49: #{tpu_custom_call.1} parent=11 // pred_check
          %p440 = pneg %p265
        $region50: #{tpu_custom_call.1} parent=11 // pred_check_branch
          %442 = sbr.rel (%p440) target = $region52
        $region51: #{tpu_custom_call.1} parent=11 // pred_region
          %444 = vsyncadd [#allocation18], 0
          %s445 = sshll.u32 %s10, 4
          %s446 = int_to_ptr.hbm [resolvable:$true] %s445
          %s447 = sshll.u32 [#allocation17], 4
          %s448 = int_to_ptr.vmem [resolvable:$true] %s447
          %453 = dma.hbm_to_vmem [thread:$0]  %s446, 2048, %s448, [#allocation18], 128, 128, 8
        $region52: #{tpu_custom_call.1} parent=11 // pred_fallthru
          _
        // Predicated region
        $region53: #{tpu_custom_call.1} parent=11 // pred_check
          %p454 = pneg %p286
        $region54: #{tpu_custom_call.1} parent=11 // pred_check_branch
          %456 = sbr.rel (%p454) target = $region56
        $region55: #{tpu_custom_call.1} parent=11 // pred_region
          _
        $region56: #{tpu_custom_call.1} parent=11 // pred_fallthru
          _
      $region12: #{tpu_custom_call.1} parent=5 // pred_fallthru
        _
      %p457 = scmp.lt.s32.totalorder %s29, 2
      // Predicated region
      $region57: #{tpu_custom_call.1} parent=5 // pred_check
        %p458 = pneg %p457
      $region58: #{tpu_custom_call.1} parent=5 // pred_check_branch
        %460 = sbr.rel (%p458) target = $region60
      $region59: #{tpu_custom_call.1} parent=5 // pred_region
        // Predicated region
        $region61: #{tpu_custom_call.1} parent=59 // pred_check
          %p461 = pneg %p49
        $region62: #{tpu_custom_call.1} parent=59 // pred_check_branch
          %463 = sbr.rel (%p461) target = $region64
        $region63: #{tpu_custom_call.1} parent=59 // pred_region
          %s464 = sand.u32 %s39, 1
          %s465 = scalar_lea.sflag [#allocation3], %s464
          %s466 = sand.u32 %s39, 1
          %s467 = smul.addr %s466, 128
          %s468 = scalar_lea.vmem [#allocation2], %s467
          %470 = vsyncadd %s465, 0
          %s471 = smul.addr %s29, 4
          %s472 = scalar_lea.hbm %s0, %s471
          %s473 = sshll.u32 %s472, 4
          %s474 = int_to_ptr.hbm [resolvable:$true] %s473
          %s475 = sshll.u32 %s468, 4
          %s476 = int_to_ptr.vmem [resolvable:$true] %s475
          %481 = dma.hbm_to_vmem [thread:$0]  %s474, 2048, %s476, %s465, 128, 64, 4
        $region64: #{tpu_custom_call.1} parent=59 // pred_fallthru
          _
      $region60: #{tpu_custom_call.1} parent=5 // pred_fallthru
        _
      %p482 = scmp.le.s32.totalorder 1, %s29
      %p483 = scmp.lt.s32.totalorder %s29, 3
      %p484 = pnand %p482, %p483
      %p485 = pneg %p484
      // Predicated region
      $region65: #{tpu_custom_call.1} parent=5 // pred_check
        _
      $region66: #{tpu_custom_call.1} parent=5 // pred_check_branch
        %487 = sbr.rel (%p484) target = $region68
      $region67: #{tpu_custom_call.1} parent=5 // pred_region
        %s488 = ssub.s32 %s29, 1
        %s489 = sand.u32 %s42, 1
        %s490 = scalar_lea.sflag [#allocation3], %s489
        %s491 = sand.u32 %s42, 1
        %s492 = smul.addr %s491, 128
        %s493 = scalar_lea.vmem [#allocation2], %s492
        // Predicated region
        $region69: #{tpu_custom_call.1} parent=67 // pred_check
          %p494 = pneg %p55
        $region70: #{tpu_custom_call.1} parent=67 // pred_check_branch
          %496 = sbr.rel (%p494) target = $region72
        $region71: #{tpu_custom_call.1} parent=67 // pred_region
          %498 = dma.done %s490, 2048
        $region72: #{tpu_custom_call.1} parent=67 // pred_fallthru
          _
        // Predicated region
        $region73: #{tpu_custom_call.1} parent=67 // pred_check
          %p499 = pneg %p76
        $region74: #{tpu_custom_call.1} parent=67 // pred_check_branch
          %501 = sbr.rel (%p499) target = $region76
        $region75: #{tpu_custom_call.1} parent=67 // pred_region
          %503 = dma.done [#allocation6], 1024
        $region76: #{tpu_custom_call.1} parent=67 // pred_fallthru
          _
        // Predicated region
        $region77: #{tpu_custom_call.1} parent=67 // pred_check
          %p504 = pneg %p97
        $region78: #{tpu_custom_call.1} parent=67 // pred_check_branch
          %506 = sbr.rel (%p504) target = $region80
        $region79: #{tpu_custom_call.1} parent=67 // pred_region
          %508 = dma.done [#allocation6], 1024
        $region80: #{tpu_custom_call.1} parent=67 // pred_fallthru
          _
        // Predicated region
        $region81: #{tpu_custom_call.1} parent=67 // pred_check
          %p509 = pneg %p118
        $region82: #{tpu_custom_call.1} parent=67 // pred_check_branch
          %511 = sbr.rel (%p509) target = $region84
        $region83: #{tpu_custom_call.1} parent=67 // pred_region
          %513 = dma.done [#allocation9], 3072
        $region84: #{tpu_custom_call.1} parent=67 // pred_fallthru
          _
        // Predicated region
        $region85: #{tpu_custom_call.1} parent=67 // pred_check
          %p514 = pneg %p139
        $region86: #{tpu_custom_call.1} parent=67 // pred_check_branch
          %516 = sbr.rel (%p514) target = $region88
        $region87: #{tpu_custom_call.1} parent=67 // pred_region
          %518 = dma.done [#allocation9], 48
        $region88: #{tpu_custom_call.1} parent=67 // pred_fallthru
          _
        // Predicated region
        $region89: #{tpu_custom_call.1} parent=67 // pred_check
          %p519 = pneg %p160
        $region90: #{tpu_custom_call.1} parent=67 // pred_check_branch
          %521 = sbr.rel (%p519) target = $region92
        $region91: #{tpu_custom_call.1} parent=67 // pred_region
          %523 = dma.done [#allocation12], 16384
        $region92: #{tpu_custom_call.1} parent=67 // pred_fallthru
          _
        // Predicated region
        $region93: #{tpu_custom_call.1} parent=67 // pred_check
          %p524 = pneg %p181
        $region94: #{tpu_custom_call.1} parent=67 // pred_check_branch
          %526 = sbr.rel (%p524) target = $region96
        $region95: #{tpu_custom_call.1} parent=67 // pred_region
          %528 = dma.done [#allocation12], 1024
        $region96: #{tpu_custom_call.1} parent=67 // pred_fallthru
          _
        // Predicated region
        $region97: #{tpu_custom_call.1} parent=67 // pred_check
          %p529 = pneg %p202
        $region98: #{tpu_custom_call.1} parent=67 // pred_check_branch
          %531 = sbr.rel (%p529) target = $region100
        $region99: #{tpu_custom_call.1} parent=67 // pred_region
          %533 = dma.done [#allocation15], 2048
        $region100: #{tpu_custom_call.1} parent=67 // pred_fallthru
          _
        // Predicated region
        $region101: #{tpu_custom_call.1} parent=67 // pred_check
          %p534 = pneg %p244
        $region102: #{tpu_custom_call.1} parent=67 // pred_check_branch
          %536 = sbr.rel (%p534) target = $region104
        $region103: #{tpu_custom_call.1} parent=67 // pred_region
          %538 = dma.done [#allocation15], 2048
        $region104: #{tpu_custom_call.1} parent=67 // pred_fallthru
          _
        // Predicated region
        $region105: #{tpu_custom_call.1} parent=67 // pred_check
          %p539 = pneg %p265
        $region106: #{tpu_custom_call.1} parent=67 // pred_check_branch
          %541 = sbr.rel (%p539) target = $region108
        $region107: #{tpu_custom_call.1} parent=67 // pred_region
          %543 = dma.done [#allocation18], 2048
        $region108: #{tpu_custom_call.1} parent=67 // pred_fallthru
          _
        %s544 = sand.u32 %s42, 1
        %s545 = scalar_lea.sflag [#allocation3], %s544
        %s546 = sand.u32 %s42, 1
        %s547 = smul.addr %s546, 128
        %s548 = scalar_lea.vmem [#allocation2], %s547
        %p549 = pneg %p55
        %p550 = pneg %p52
        %p551 = pneg %p76
        %p552 = pneg %p73
        %p553 = pneg %p97
        %p554 = pneg %p94
        %p555 = pneg %p118
        %p556 = pneg %p115
        %p557 = pneg %p139
        %p558 = pneg %p136
        %p559 = pneg %p160
        %p560 = pneg %p157
        %p561 = pneg %p181
        %p562 = pneg %p178
        %p563 = pneg %p202
        %p564 = pneg %p199
        %p565 = pneg %p223
        %p566 = pneg %p220
        %p567 = pneg %p244
        %p568 = pneg %p241
        %p569 = pneg %p265
        %p570 = pneg %p262
        %p571 = pneg %p286
        %p572 = pneg %p283
        %p573 = pneg %p312
        %p574 = pneg %p309
        %s575 = sand.u32 %s299, 1
        %s576 = scalar_lea.sflag [#allocation4], %s575
        %s577 = sand.u32 %s299, 1
        %s578 = smul.addr %s577, 64
        %s579 = scalar_lea.vmem [#allocation19], %s578
        %v581 = vld [vmem:[%s11] sm:$0xff]
        %v582 = vld [vmem:[#allocation17] sm:$0xff]
        %v583 = vld [vmem:[#allocation17 + $0x8] sm:$0xff]
        %v584 = vld [vmem:[#allocation17 + $0x10] sm:$0xff]
        %v585 = vld [vmem:[#allocation17 + $0x18] sm:$0xff]
        %v586 = vld [vmem:[#allocation17 + $0x20] sm:$0xff]
        %v587 = vld [vmem:[#allocation17 + $0x28] sm:$0xff]
        %v588 = vld [vmem:[#allocation17 + $0x30] sm:$0xff]
        %v589 = vld [vmem:[#allocation17 + $0x38] sm:$0xff]
        %v590 = vld [vmem:[#allocation17 + $0x40] sm:$0xff]
        %v591 = vld [vmem:[#allocation17 + $0x48] sm:$0xff]
        %v592 = vld [vmem:[#allocation17 + $0x50] sm:$0xff]
        %v593 = vld [vmem:[#allocation17 + $0x58] sm:$0xff]
        %v594 = vld [vmem:[#allocation17 + $0x60] sm:$0xff]
        %v595 = vld [vmem:[#allocation17 + $0x68] sm:$0xff]
        %v596 = vld [vmem:[#allocation17 + $0x70] sm:$0xff]
        %v597 = vld [vmem:[#allocation17 + $0x78] sm:$0xff]
        %v598 = vld [vmem:[#allocation5] sm:$0xff]
        %v599 = vld [vmem:[#allocation5 + $0x8] sm:$0xff]
        %v600 = vld [vmem:[#allocation5 + $0x10] sm:$0xff]
        %v601 = vld [vmem:[#allocation5 + $0x18] sm:$0xff]
        %v602 = vld [vmem:[#allocation5 + $0x20] sm:$0xff]
        %v603 = vld [vmem:[#allocation5 + $0x28] sm:$0xff]
        %v604 = vld [vmem:[#allocation5 + $0x30] sm:$0xff]
        %v605 = vld [vmem:[#allocation5 + $0x38] sm:$0xff]
        %v606 = vld [vmem:[%s493] sm:$0xf]
        %v607 = vld [vmem:[%s493 + $0x4] sm:$0xf]
        %v608 = vld [vmem:[%s493 + $0x8] sm:$0xf]
        %v609 = vld [vmem:[%s493 + $0xc] sm:$0xf]
        %v610 = vld [vmem:[%s493 + $0x10] sm:$0xf]
        %v611 = vld [vmem:[%s493 + $0x14] sm:$0xf]
        %v612 = vld [vmem:[%s493 + $0x18] sm:$0xf]
        %v613 = vld [vmem:[%s493 + $0x1c] sm:$0xf]
        %v614 = vld [vmem:[%s493 + $0x20] sm:$0xf]
        %v615 = vld [vmem:[%s493 + $0x24] sm:$0xf]
        %v616 = vld [vmem:[%s493 + $0x28] sm:$0xf]
        %v617 = vld [vmem:[%s493 + $0x2c] sm:$0xf]
        %v618 = vld [vmem:[%s493 + $0x30] sm:$0xf]
        %v619 = vld [vmem:[%s493 + $0x34] sm:$0xf]
        %v620 = vld [vmem:[%s493 + $0x38] sm:$0xf]
        %v621 = vld [vmem:[%s493 + $0x3c] sm:$0xf]
        %v622 = vld [vmem:[%s493 + $0x40] sm:$0xf]
        %v623 = vld [vmem:[%s493 + $0x44] sm:$0xf]
        %v624 = vld [vmem:[%s493 + $0x48] sm:$0xf]
        %v625 = vld [vmem:[%s493 + $0x4c] sm:$0xf]
        %v626 = vld [vmem:[%s493 + $0x50] sm:$0xf]
        %v627 = vld [vmem:[%s493 + $0x54] sm:$0xf]
        %v628 = vld [vmem:[%s493 + $0x58] sm:$0xf]
        %v629 = vld [vmem:[%s493 + $0x5c] sm:$0xf]
        %v630 = vld [vmem:[%s493 + $0x60] sm:$0xf]
        %v631 = vld [vmem:[%s493 + $0x64] sm:$0xf]
        %v632 = vld [vmem:[%s493 + $0x68] sm:$0xf]
        %v633 = vld [vmem:[%s493 + $0x6c] sm:$0xf]
        %v634 = vld [vmem:[%s493 + $0x70] sm:$0xf]
        %v635 = vld [vmem:[%s493 + $0x74] sm:$0xf]
        %v636 = vld [vmem:[%s493 + $0x78] sm:$0xf]
        %v637 = vld [vmem:[%s493 + $0x7c] sm:$0xf]
        %v638 = vld [vmem:[#allocation7] sm:$0xff]
        %v639 = vld [vmem:[#allocation7 + $0x8] sm:$0xff]
        %v640 = vld [vmem:[#allocation7 + $0x10] sm:$0xff]
        %v641 = vld [vmem:[#allocation7 + $0x18] sm:$0xff]
        %v642 = vld [vmem:[#allocation7 + $0x20] sm:$0xff]
        %v643 = vld [vmem:[#allocation7 + $0x28] sm:$0xff]
        %v644 = vld [vmem:[#allocation7 + $0x30] sm:$0xff]
        %v645 = vld [vmem:[#allocation7 + $0x38] sm:$0xff]
        %v654 = vunpack.c.l.b16 %v598
        %v655 = vunpack.c.h.b16 %v598
        %v656 = vunpack.c.l.b16 %v599
        %v657 = vunpack.c.h.b16 %v599
        %v658 = vunpack.c.l.b16 %v600
        %v659 = vunpack.c.h.b16 %v600
        %v660 = vunpack.c.l.b16 %v601
        %v661 = vunpack.c.h.b16 %v601
        %v662 = vunpack.c.l.b16 %v602
        %v663 = vunpack.c.h.b16 %v602
        %v664 = vunpack.c.l.b16 %v603
        %v665 = vunpack.c.h.b16 %v603
        %v666 = vunpack.c.l.b16 %v604
        %v667 = vunpack.c.h.b16 %v604
        %v668 = vunpack.c.l.b16 %v605
        %v669 = vunpack.c.h.b16 %v605
        %v670 = vpack.c.b16 %v656, %v654
        %v671 = vpack.c.b16 %v657, %v655
        %v672 = vpack.c.b16 %v660, %v658
        %v673 = vpack.c.b16 %v661, %v659
        %v674 = vpack.c.b16 %v664, %v662
        %v675 = vpack.c.b16 %v665, %v663
        %v676 = vpack.c.b16 %v668, %v666
        %v677 = vpack.c.b16 %v669, %v667
        %v718 = vunpack.c.l.b16 %v606
        %v719 = vunpack.c.l.b16 %v607
        %v720 = vunpack.c.l.b16 %v608
        %v721 = vunpack.c.l.b16 %v609
        %v722 = vunpack.c.l.b16 %v610
        %v723 = vunpack.c.l.b16 %v611
        %v724 = vunpack.c.l.b16 %v612
        %v725 = vunpack.c.l.b16 %v613
        %v726 = vunpack.c.l.b16 %v614
        %v727 = vunpack.c.l.b16 %v615
        %v728 = vunpack.c.l.b16 %v616
        %v729 = vunpack.c.l.b16 %v617
        %v730 = vunpack.c.l.b16 %v618
        %v731 = vunpack.c.l.b16 %v619
        %v732 = vunpack.c.l.b16 %v620
        %v733 = vunpack.c.l.b16 %v621
        %v734 = vunpack.c.l.b16 %v622
        %v735 = vunpack.c.l.b16 %v623
        %v736 = vunpack.c.l.b16 %v624
        %v737 = vunpack.c.l.b16 %v625
        %v738 = vunpack.c.l.b16 %v626
        %v739 = vunpack.c.l.b16 %v627
        %v740 = vunpack.c.l.b16 %v628
        %v741 = vunpack.c.l.b16 %v629
        %v742 = vunpack.c.l.b16 %v630
        %v743 = vunpack.c.l.b16 %v631
        %v744 = vunpack.c.l.b16 %v632
        %v745 = vunpack.c.l.b16 %v633
        %v746 = vunpack.c.l.b16 %v634
        %v747 = vunpack.c.l.b16 %v635
        %v748 = vunpack.c.l.b16 %v636
        %v749 = vunpack.c.l.b16 %v637
        %v750 = vpack.c.b16 %v719, %v718
        %v751 = vpack.c.b16 %v721, %v720
        %v752 = vpack.c.b16 %v723, %v722
        %v753 = vpack.c.b16 %v725, %v724
        %v754 = vpack.c.b16 %v727, %v726
        %v755 = vpack.c.b16 %v729, %v728
        %v756 = vpack.c.b16 %v731, %v730
        %v757 = vpack.c.b16 %v733, %v732
        %v758 = vpack.c.b16 %v735, %v734
        %v759 = vpack.c.b16 %v737, %v736
        %v760 = vpack.c.b16 %v739, %v738
        %v761 = vpack.c.b16 %v741, %v740
        %v762 = vpack.c.b16 %v743, %v742
        %v763 = vpack.c.b16 %v745, %v744
        %v764 = vpack.c.b16 %v747, %v746
        %v765 = vpack.c.b16 %v749, %v748
        %782 = vmatpush.bf16.msra.mxu0 %v757
        %783 = vmatpush.bf16.msra.mxu0 %v756
        %784 = vmatpush.bf16.msra.mxu0 %v755
        %785 = vmatpush.bf16.msra.mxu0 %v754
        %786 = vmatpush.bf16.msra.mxu0 %v753
        %787 = vmatpush.bf16.msra.mxu0 %v752
        %788 = vmatpush.bf16.msra.mxu0 %v751
        %789 = vmatpush.bf16.msra.mxu0 %v750
        %790 = vmatmul.bf16.gmra.mxu0 %v670
        %v791 = vpop.f32.mrf.mxu0
        %v792 = vadd.f32 %v638, %v791
        %v793 = vpop.f32.mrf.mxu0
        %v794 = vadd.f32 %v639, %v793
        %795 = vmatmul.bf16.gmra.mxu0 %v672
        %v796 = vpop.f32.mrf.mxu0
        %v797 = vadd.f32 %v640, %v796
        %v798 = vpop.f32.mrf.mxu0
        %v799 = vadd.f32 %v641, %v798
        %800 = vmatmul.bf16.gmra.mxu0 %v674
        %v801 = vpop.f32.mrf.mxu0
        %v802 = vadd.f32 %v642, %v801
        %v803 = vpop.f32.mrf.mxu0
        %v804 = vadd.f32 %v643, %v803
        %805 = vmatmul.bf16.gmra.mxu0 %v676
        %v806 = vpop.f32.mrf.mxu0
        %v807 = vadd.f32 %v644, %v806
        %v808 = vpop.f32.mrf.mxu0
        %v809 = vadd.f32 %v645, %v808
        %810 = vdwg.mxu0
        %811 = vmatpush.bf16.msra.mxu0 %v765
        %812 = vmatpush.bf16.msra.mxu0 %v764
        %813 = vmatpush.bf16.msra.mxu0 %v763
        %814 = vmatpush.bf16.msra.mxu0 %v762
        %815 = vmatpush.bf16.msra.mxu0 %v761
        %816 = vmatpush.bf16.msra.mxu0 %v760
        %817 = vmatpush.bf16.msra.mxu0 %v759
        %818 = vmatpush.bf16.msra.mxu0 %v758
        %819 = vmatmul.bf16.gmra.mxu0 %v671
        %v820 = vpop.f32.mrf.mxu0
        %v821 = vadd.f32 %v792, %v820
        %v822 = vpop.f32.mrf.mxu0
        %v823 = vadd.f32 %v794, %v822
        %824 = vmatmul.bf16.gmra.mxu0 %v673
        %v825 = vpop.f32.mrf.mxu0
        %v826 = vadd.f32 %v797, %v825
        %v827 = vpop.f32.mrf.mxu0
        %v828 = vadd.f32 %v799, %v827
        %829 = vmatmul.bf16.gmra.mxu0 %v675
        %v830 = vpop.f32.mrf.mxu0
        %v831 = vadd.f32 %v802, %v830
        %v832 = vpop.f32.mrf.mxu0
        %v833 = vadd.f32 %v804, %v832
        %834 = vmatmul.bf16.gmra.mxu0 %v677
        %v835 = vpop.f32.mrf.mxu0
        %v836 = vadd.f32 %v807, %v835
        %v837 = vpop.f32.mrf.mxu0
        %v838 = vadd.f32 %v809, %v837
        %839 = vdwg.mxu0
        %840 = vmatpush.msra.mxu0 %v597
        %841 = vmatpush.msra.mxu0 %v596
        %842 = vmatpush.msra.mxu0 %v595
        %843 = vmatpush.msra.mxu0 %v594
        %844 = vmatpush.msra.mxu0 %v593
        %845 = vmatpush.msra.mxu0 %v592
        %846 = vmatpush.msra.mxu0 %v591
        %847 = vmatpush.msra.mxu0 %v590
        %848 = vmatpush.msra.mxu0 %v589
        %849 = vmatpush.msra.mxu0 %v588
        %850 = vmatpush.msra.mxu0 %v587
        %851 = vmatpush.msra.mxu0 %v586
        %852 = vmatpush.msra.mxu0 %v585
        %853 = vmatpush.msra.mxu0 %v584
        %854 = vmatpush.msra.mxu0 %v583
        %855 = vmatpush.msra.mxu0 %v582
        %856 = vmatmul.f32.gmra.mxu0 %v821
        %v857 = vpop.f32.mrf.mxu0
        %v858 = vadd.f32 0.0, %v857
        %859 = vmatmul.f32.gmra.mxu0 %v823
        %v860 = vpop.f32.mrf.mxu0
        %v861 = vadd.f32 0.0, %v860
        %862 = vmatmul.f32.gmra.mxu0 %v826
        %v863 = vpop.f32.mrf.mxu0
        %v864 = vadd.f32 0.0, %v863
        %865 = vmatmul.f32.gmra.mxu0 %v828
        %v866 = vpop.f32.mrf.mxu0
        %v867 = vadd.f32 0.0, %v866
        %868 = vmatmul.f32.gmra.mxu0 %v831
        %v869 = vpop.f32.mrf.mxu0
        %v870 = vadd.f32 0.0, %v869
        %871 = vmatmul.f32.gmra.mxu0 %v833
        %v872 = vpop.f32.mrf.mxu0
        %v873 = vadd.f32 0.0, %v872
        %874 = vmatmul.f32.gmra.mxu0 %v836
        %v875 = vpop.f32.mrf.mxu0
        %v876 = vadd.f32 0.0, %v875
        %877 = vmatmul.f32.gmra.mxu0 %v838
        %v878 = vpop.f32.mrf.mxu0
        %v879 = vadd.f32 0.0, %v878
        %880 = vdwg.mxu0
        %v881 = vmul.f32 %v858, 0.03125
        %v882 = vmul.f32 %v861, 0.03125
        %v883 = vmul.f32 %v864, 0.03125
        %v884 = vmul.f32 %v867, 0.03125
        %v885 = vmul.f32 %v870, 0.03125
        %v886 = vmul.f32 %v873, 0.03125
        %v887 = vmul.f32 %v876, 0.03125
        %v888 = vmul.f32 %v879, 0.03125
        %v889 = vsub.f32 %v821, %v881
        %v890 = vsub.f32 %v823, %v882
        %v891 = vsub.f32 %v826, %v883
        %v892 = vsub.f32 %v828, %v884
        %v893 = vsub.f32 %v831, %v885
        %v894 = vsub.f32 %v833, %v886
        %v895 = vsub.f32 %v836, %v887
        %v896 = vsub.f32 %v838, %v888
        %v897 = vmul.f32 %v889, %v889
        %v898 = vmul.f32 %v890, %v890
        %v899 = vmul.f32 %v891, %v891
        %v900 = vmul.f32 %v892, %v892
        %v901 = vmul.f32 %v893, %v893
        %v902 = vmul.f32 %v894, %v894
        %v903 = vmul.f32 %v895, %v895
        %v904 = vmul.f32 %v896, %v896
        %905 = vmatpush.msra.mxu0 %v597
        %906 = vmatpush.msra.mxu0 %v596
        %907 = vmatpush.msra.mxu0 %v595
        %908 = vmatpush.msra.mxu0 %v594
        %909 = vmatpush.msra.mxu0 %v593
        %910 = vmatpush.msra.mxu0 %v592
        %911 = vmatpush.msra.mxu0 %v591
        %912 = vmatpush.msra.mxu0 %v590
        %913 = vmatpush.msra.mxu0 %v589
        %914 = vmatpush.msra.mxu0 %v588
        %915 = vmatpush.msra.mxu0 %v587
        %916 = vmatpush.msra.mxu0 %v586
        %917 = vmatpush.msra.mxu0 %v585
        %918 = vmatpush.msra.mxu0 %v584
        %919 = vmatpush.msra.mxu0 %v583
        %920 = vmatpush.msra.mxu0 %v582
        %921 = vmatmul.f32.gmra.mxu0 %v897
        %v922 = vpop.f32.mrf.mxu0
        %v923 = vadd.f32 0.0, %v922
        %924 = vmatmul.f32.gmra.mxu0 %v898
        %v925 = vpop.f32.mrf.mxu0
        %v926 = vadd.f32 0.0, %v925
        %927 = vmatmul.f32.gmra.mxu0 %v899
        %v928 = vpop.f32.mrf.mxu0
        %v929 = vadd.f32 0.0, %v928
        %930 = vmatmul.f32.gmra.mxu0 %v900
        %v931 = vpop.f32.mrf.mxu0
        %v932 = vadd.f32 0.0, %v931
        %933 = vmatmul.f32.gmra.mxu0 %v901
        %v934 = vpop.f32.mrf.mxu0
        %v935 = vadd.f32 0.0, %v934
        %936 = vmatmul.f32.gmra.mxu0 %v902
        %v937 = vpop.f32.mrf.mxu0
        %v938 = vadd.f32 0.0, %v937
        %939 = vmatmul.f32.gmra.mxu0 %v903
        %v940 = vpop.f32.mrf.mxu0
        %v941 = vadd.f32 0.0, %v940
        %942 = vmatmul.f32.gmra.mxu0 %v904
        %v943 = vpop.f32.mrf.mxu0
        %v944 = vadd.f32 0.0, %v943
        %945 = vdwg.mxu0
        %v946 = vmul.f32 %v923, 0.03125
        %v947 = vmul.f32 %v926, 0.03125
        %v948 = vmul.f32 %v929, 0.03125
        %v949 = vmul.f32 %v932, 0.03125
        %v950 = vmul.f32 %v935, 0.03125
        %v951 = vmul.f32 %v938, 0.03125
        %v952 = vmul.f32 %v941, 0.03125
        %v953 = vmul.f32 %v944, 0.03125
        %v954 = vadd.f32 %v946, 1e-05
        %v955 = vadd.f32 %v947, 1e-05
        %v956 = vadd.f32 %v948, 1e-05
        %v957 = vadd.f32 %v949, 1e-05
        %v958 = vadd.f32 %v950, 1e-05
        %v959 = vadd.f32 %v951, 1e-05
        %v960 = vadd.f32 %v952, 1e-05
        %v961 = vadd.f32 %v953, 1e-05
        %v962 = vrsqrt.pop %v954
        %v963 = vmul.f32 %v962, %v954
        %v964 = vmul.f32 %v963, %v962
        %v965 = vmul.f32 0.5, %v964
        %v966 = vsub.f32 1.5, %v965
        %v967 = vmul.f32 %v962, %v966
        %vm968 = vweird.f32 %v954
        %vm969 = vweird.f32 %v962
        %vm970 = vmor %vm968, %vm969
        %v971 = vsel %vm970, %v962, %v967
        %v972 = vrsqrt.pop %v955
        %v973 = vmul.f32 %v972, %v955
        %v974 = vmul.f32 %v973, %v972
        %v975 = vmul.f32 0.5, %v974
        %v976 = vsub.f32 1.5, %v975
        %v977 = vmul.f32 %v972, %v976
        %vm978 = vweird.f32 %v955
        %vm979 = vweird.f32 %v972
        %vm980 = vmor %vm978, %vm979
        %v981 = vsel %vm980, %v972, %v977
        %v982 = vrsqrt.pop %v956
        %v983 = vmul.f32 %v982, %v956
        %v984 = vmul.f32 %v983, %v982
        %v985 = vmul.f32 0.5, %v984
        %v986 = vsub.f32 1.5, %v985
        %v987 = vmul.f32 %v982, %v986
        %vm988 = vweird.f32 %v956
        %vm989 = vweird.f32 %v982
        %vm990 = vmor %vm988, %vm989
        %v991 = vsel %vm990, %v982, %v987
        %v992 = vrsqrt.pop %v957
        %v993 = vmul.f32 %v992, %v957
        %v994 = vmul.f32 %v993, %v992
        %v995 = vmul.f32 0.5, %v994
        %v996 = vsub.f32 1.5, %v995
        %v997 = vmul.f32 %v992, %v996
        %vm998 = vweird.f32 %v957
        %vm999 = vweird.f32 %v992
        %vm1000 = vmor %vm998, %vm999
        %v1001 = vsel %vm1000, %v992, %v997
        %v1002 = vrsqrt.pop %v958
        %v1003 = vmul.f32 %v1002, %v958
        %v1004 = vmul.f32 %v1003, %v1002
        %v1005 = vmul.f32 0.5, %v1004
        %v1006 = vsub.f32 1.5, %v1005
        %v1007 = vmul.f32 %v1002, %v1006
        %vm1008 = vweird.f32 %v958
        %vm1009 = vweird.f32 %v1002
        %vm1010 = vmor %vm1008, %vm1009
        %v1011 = vsel %vm1010, %v1002, %v1007
        %v1012 = vrsqrt.pop %v959
        %v1013 = vmul.f32 %v1012, %v959
        %v1014 = vmul.f32 %v1013, %v1012
        %v1015 = vmul.f32 0.5, %v1014
        %v1016 = vsub.f32 1.5, %v1015
        %v1017 = vmul.f32 %v1012, %v1016
        %vm1018 = vweird.f32 %v959
        %vm1019 = vweird.f32 %v1012
        %vm1020 = vmor %vm1018, %vm1019
        %v1021 = vsel %vm1020, %v1012, %v1017
        %v1022 = vrsqrt.pop %v960
        %v1023 = vmul.f32 %v1022, %v960
        %v1024 = vmul.f32 %v1023, %v1022
        %v1025 = vmul.f32 0.5, %v1024
        %v1026 = vsub.f32 1.5, %v1025
        %v1027 = vmul.f32 %v1022, %v1026
        %vm1028 = vweird.f32 %v960
        %vm1029 = vweird.f32 %v1022
        %vm1030 = vmor %vm1028, %vm1029
        %v1031 = vsel %vm1030, %v1022, %v1027
        %v1032 = vrsqrt.pop %v961
        %v1033 = vmul.f32 %v1032, %v961
        %v1034 = vmul.f32 %v1033, %v1032
        %v1035 = vmul.f32 0.5, %v1034
        %v1036 = vsub.f32 1.5, %v1035
        %v1037 = vmul.f32 %v1032, %v1036
        %vm1038 = vweird.f32 %v961
        %vm1039 = vweird.f32 %v1032
        %vm1040 = vmor %vm1038, %vm1039
        %v1041 = vsel %vm1040, %v1032, %v1037
        %v1042 = vmul.f32 %v889, %v971
        %v1043 = vmul.f32 %v890, %v981
        %v1044 = vmul.f32 %v891, %v991
        %v1045 = vmul.f32 %v892, %v1001
        %v1046 = vmul.f32 %v893, %v1011
        %v1047 = vmul.f32 %v894, %v1021
        %v1048 = vmul.f32 %v895, %v1031
        %v1049 = vmul.f32 %v896, %v1041
        %v1050 = vperm.slane %v581, 0
        %v1051 = vmul.f32 %v1042, %v1050
        %v1052 = vmul.f32 %v1043, %v1050
        %v1053 = vmul.f32 %v1044, %v1050
        %v1054 = vmul.f32 %v1045, %v1050
        %v1055 = vmul.f32 %v1046, %v1050
        %v1056 = vmul.f32 %v1047, %v1050
        %v1057 = vmul.f32 %v1048, %v1050
        %v1058 = vmul.f32 %v1049, %v1050
        %v1059 = vperm.slane %v581, 1
        %v1060 = vadd.f32 %v1051, %v1059
        %v1061 = vadd.f32 %v1052, %v1059
        %v1062 = vadd.f32 %v1053, %v1059
        %v1063 = vadd.f32 %v1054, %v1059
        %v1064 = vadd.f32 %v1055, %v1059
        %v1065 = vadd.f32 %v1056, %v1059
        %v1066 = vadd.f32 %v1057, %v1059
        %v1067 = vadd.f32 %v1058, %v1059
        %v1068 = vpack.c.bf16 %v1061, %v1060
        %v1069 = vpack.c.bf16 %v1063, %v1062
        %v1070 = vpack.c.bf16 %v1065, %v1064
        %v1071 = vpack.c.bf16 %v1067, %v1066
        %v1072 = vld [vmem:[#allocation8] sm:$0xff]
        %v1073 = vld [vmem:[#allocation8 + $0x8] sm:$0xf]
        %v1074 = vld [vmem:[#allocation8 + $0xc] sm:$0xff]
        %v1075 = vld [vmem:[#allocation8 + $0x14] sm:$0xf]
        %v1076 = vld [vmem:[#allocation8 + $0x18] sm:$0xff]
        %v1077 = vld [vmem:[#allocation8 + $0x20] sm:$0xf]
        %v1078 = vld [vmem:[#allocation8 + $0x24] sm:$0xff]
        %v1079 = vld [vmem:[#allocation8 + $0x2c] sm:$0xf]
        %v1080 = vld [vmem:[#allocation8 + $0x30] sm:$0xff]
        %v1081 = vld [vmem:[#allocation8 + $0x38] sm:$0xf]
        %v1082 = vld [vmem:[#allocation8 + $0x3c] sm:$0xff]
        %v1083 = vld [vmem:[#allocation8 + $0x44] sm:$0xf]
        %v1084 = vld [vmem:[#allocation8 + $0x48] sm:$0xff]
        %v1085 = vld [vmem:[#allocation8 + $0x50] sm:$0xf]
        %v1086 = vld [vmem:[#allocation8 + $0x54] sm:$0xff]
        %v1087 = vld [vmem:[#allocation8 + $0x5c] sm:$0xf]
        %v1088 = vld [vmem:[#allocation8 + $0x60] sm:$0xff]
        %v1089 = vld [vmem:[#allocation8 + $0x68] sm:$0xf]
        %v1090 = vld [vmem:[#allocation8 + $0x6c] sm:$0xff]
        %v1091 = vld [vmem:[#allocation8 + $0x74] sm:$0xf]
        %v1092 = vld [vmem:[#allocation8 + $0x78] sm:$0xff]
        %v1093 = vld [vmem:[#allocation8 + $0x80] sm:$0xf]
        %v1094 = vld [vmem:[#allocation8 + $0x84] sm:$0xff]
        %v1095 = vld [vmem:[#allocation8 + $0x8c] sm:$0xf]
        %v1096 = vld [vmem:[#allocation8 + $0x90] sm:$0xff]
        %v1097 = vld [vmem:[#allocation8 + $0x98] sm:$0xf]
        %v1098 = vld [vmem:[#allocation8 + $0x9c] sm:$0xff]
        %v1099 = vld [vmem:[#allocation8 + $0xa4] sm:$0xf]
        %v1100 = vld [vmem:[#allocation8 + $0xa8] sm:$0xff]
        %v1101 = vld [vmem:[#allocation8 + $0xb0] sm:$0xf]
        %v1102 = vld [vmem:[#allocation8 + $0xb4] sm:$0xff]
        %v1103 = vld [vmem:[#allocation8 + $0xbc] sm:$0xf]
        %v1104 = vld [vmem:[#allocation10] sm:$0x7]
        %v1106 = vperm.slane %v1104, 0
        %v1107 = vperm.slane %v1104, 1
        %v1108 = vperm.slane %v1104, 2
        %v1144 = vunpack.c.l.b16 %v1072
        %v1145 = vunpack.c.h.b16 %v1072
        %v1146 = vunpack.c.l.b16 %v1073
        %v1147 = vunpack.c.l.b16 %v1074
        %v1148 = vunpack.c.h.b16 %v1074
        %v1149 = vunpack.c.l.b16 %v1075
        %v1150 = vunpack.c.l.b16 %v1076
        %v1151 = vunpack.c.h.b16 %v1076
        %v1152 = vunpack.c.l.b16 %v1077
        %v1153 = vunpack.c.l.b16 %v1078
        %v1154 = vunpack.c.h.b16 %v1078
        %v1155 = vunpack.c.l.b16 %v1079
        %v1156 = vunpack.c.l.b16 %v1080
        %v1157 = vunpack.c.h.b16 %v1080
        %v1158 = vunpack.c.l.b16 %v1081
        %v1159 = vunpack.c.l.b16 %v1082
        %v1160 = vunpack.c.h.b16 %v1082
        %v1161 = vunpack.c.l.b16 %v1083
        %v1162 = vunpack.c.l.b16 %v1084
        %v1163 = vunpack.c.h.b16 %v1084
        %v1164 = vunpack.c.l.b16 %v1085
        %v1165 = vunpack.c.l.b16 %v1086
        %v1166 = vunpack.c.h.b16 %v1086
        %v1167 = vunpack.c.l.b16 %v1087
        %v1168 = vunpack.c.l.b16 %v1088
        %v1169 = vunpack.c.h.b16 %v1088
        %v1170 = vunpack.c.l.b16 %v1089
        %v1171 = vunpack.c.l.b16 %v1090
        %v1172 = vunpack.c.h.b16 %v1090
        %v1173 = vunpack.c.l.b16 %v1091
        %v1174 = vunpack.c.l.b16 %v1092
        %v1175 = vunpack.c.h.b16 %v1092
        %v1176 = vunpack.c.l.b16 %v1093
        %v1177 = vunpack.c.l.b16 %v1094
        %v1178 = vunpack.c.h.b16 %v1094
        %v1179 = vunpack.c.l.b16 %v1095
        %v1180 = vunpack.c.l.b16 %v1096
        %v1181 = vunpack.c.h.b16 %v1096
        %v1182 = vunpack.c.l.b16 %v1097
        %v1183 = vunpack.c.l.b16 %v1098
        %v1184 = vunpack.c.h.b16 %v1098
        %v1185 = vunpack.c.l.b16 %v1099
        %v1186 = vunpack.c.l.b16 %v1100
        %v1187 = vunpack.c.h.b16 %v1100
        %v1188 = vunpack.c.l.b16 %v1101
        %v1189 = vunpack.c.l.b16 %v1102
        %v1190 = vunpack.c.h.b16 %v1102
        %v1191 = vunpack.c.l.b16 %v1103
        %v1192 = vpack.c.b16 %v1147, %v1144
        %v1193 = vpack.c.b16 %v1148, %v1145
        %v1194 = vpack.c.b16 %v1149, %v1146
        %v1195 = vpack.c.b16 %v1153, %v1150
        %v1196 = vpack.c.b16 %v1154, %v1151
        %v1197 = vpack.c.b16 %v1155, %v1152
        %v1198 = vpack.c.b16 %v1159, %v1156
        %v1199 = vpack.c.b16 %v1160, %v1157
        %v1200 = vpack.c.b16 %v1161, %v1158
        %v1201 = vpack.c.b16 %v1165, %v1162
        %v1202 = vpack.c.b16 %v1166, %v1163
        %v1203 = vpack.c.b16 %v1167, %v1164
        %v1204 = vpack.c.b16 %v1171, %v1168
        %v1205 = vpack.c.b16 %v1172, %v1169
        %v1206 = vpack.c.b16 %v1173, %v1170
        %v1207 = vpack.c.b16 %v1177, %v1174
        %v1208 = vpack.c.b16 %v1178, %v1175
        %v1209 = vpack.c.b16 %v1179, %v1176
        %v1210 = vpack.c.b16 %v1183, %v1180
        %v1211 = vpack.c.b16 %v1184, %v1181
        %v1212 = vpack.c.b16 %v1185, %v1182
        %v1213 = vpack.c.b16 %v1189, %v1186
        %v1214 = vpack.c.b16 %v1190, %v1187
        %v1215 = vpack.c.b16 %v1191, %v1188
        %1240 = vmatpush.bf16.msra.mxu0 %v1213
        %1241 = vmatpush.bf16.msra.mxu0 %v1210
        %1242 = vmatpush.bf16.msra.mxu0 %v1207
        %1243 = vmatpush.bf16.msra.mxu0 %v1204
        %1244 = vmatpush.bf16.msra.mxu0 %v1201
        %1245 = vmatpush.bf16.msra.mxu0 %v1198
        %1246 = vmatpush.bf16.msra.mxu0 %v1195
        %1247 = vmatpush.bf16.msra.mxu0 %v1192
        %1248 = vmatmul.bf16.gmra.mxu0 %v1068
        %v1249 = vpop.f32.mrf.mxu0
        %v1250 = vadd.f32 %v1106, %v1249
        %v1251 = vpop.f32.mrf.mxu0
        %v1252 = vadd.f32 %v1106, %v1251
        %1253 = vmatmul.bf16.gmra.mxu0 %v1069
        %v1254 = vpop.f32.mrf.mxu0
        %v1255 = vadd.f32 %v1106, %v1254
        %v1256 = vpop.f32.mrf.mxu0
        %v1257 = vadd.f32 %v1106, %v1256
        %1258 = vmatmul.bf16.gmra.mxu0 %v1070
        %v1259 = vpop.f32.mrf.mxu0
        %v1260 = vadd.f32 %v1106, %v1259
        %v1261 = vpop.f32.mrf.mxu0
        %v1262 = vadd.f32 %v1106, %v1261
        %1263 = vmatmul.bf16.gmra.mxu0 %v1071
        %v1264 = vpop.f32.mrf.mxu0
        %v1265 = vadd.f32 %v1106, %v1264
        %v1266 = vpop.f32.mrf.mxu0
        %v1267 = vadd.f32 %v1106, %v1266
        %1268 = vdwg.mxu0
        %1269 = vmatpush.bf16.msra.mxu0 %v1214
        %1270 = vmatpush.bf16.msra.mxu0 %v1211
        %1271 = vmatpush.bf16.msra.mxu0 %v1208
        %1272 = vmatpush.bf16.msra.mxu0 %v1205
        %1273 = vmatpush.bf16.msra.mxu0 %v1202
        %1274 = vmatpush.bf16.msra.mxu0 %v1199
        %1275 = vmatpush.bf16.msra.mxu0 %v1196
        %1276 = vmatpush.bf16.msra.mxu0 %v1193
        %1277 = vmatmul.bf16.gmra.mxu0 %v1068
        %v1278 = vpop.f32.mrf.mxu0
        %v1279 = vadd.f32 %v1107, %v1278
        %v1280 = vpop.f32.mrf.mxu0
        %v1281 = vadd.f32 %v1107, %v1280
        %1282 = vmatmul.bf16.gmra.mxu0 %v1069
        %v1283 = vpop.f32.mrf.mxu0
        %v1284 = vadd.f32 %v1107, %v1283
        %v1285 = vpop.f32.mrf.mxu0
        %v1286 = vadd.f32 %v1107, %v1285
        %1287 = vmatmul.bf16.gmra.mxu0 %v1070
        %v1288 = vpop.f32.mrf.mxu0
        %v1289 = vadd.f32 %v1107, %v1288
        %v1290 = vpop.f32.mrf.mxu0
        %v1291 = vadd.f32 %v1107, %v1290
        %1292 = vmatmul.bf16.gmra.mxu0 %v1071
        %v1293 = vpop.f32.mrf.mxu0
        %v1294 = vadd.f32 %v1107, %v1293
        %v1295 = vpop.f32.mrf.mxu0
        %v1296 = vadd.f32 %v1107, %v1295
        %1297 = vdwg.mxu0
        %1298 = vmatpush.bf16.msra.mxu0 %v1215
        %1299 = vmatpush.bf16.msra.mxu0 %v1212
        %1300 = vmatpush.bf16.msra.mxu0 %v1209
        %1301 = vmatpush.bf16.msra.mxu0 %v1206
        %1302 = vmatpush.bf16.msra.mxu0 %v1203
        %1303 = vmatpush.bf16.msra.mxu0 %v1200
        %1304 = vmatpush.bf16.msra.mxu0 %v1197
        %1305 = vmatpush.bf16.msra.mxu0 %v1194
        %1306 = vmatmul.bf16.gmra.mxu0 %v1068
        %v1307 = vpop.f32.mrf.mxu0
        %v1308 = vadd.f32 %v1108, %v1307
        %v1309 = vpop.f32.mrf.mxu0
        %v1310 = vadd.f32 %v1108, %v1309
        %1311 = vmatmul.bf16.gmra.mxu0 %v1069
        %v1312 = vpop.f32.mrf.mxu0
        %v1313 = vadd.f32 %v1108, %v1312
        %v1314 = vpop.f32.mrf.mxu0
        %v1315 = vadd.f32 %v1108, %v1314
        %1316 = vmatmul.bf16.gmra.mxu0 %v1070
        %v1317 = vpop.f32.mrf.mxu0
        %v1318 = vadd.f32 %v1108, %v1317
        %v1319 = vpop.f32.mrf.mxu0
        %v1320 = vadd.f32 %v1108, %v1319
        %1321 = vmatmul.bf16.gmra.mxu0 %v1071
        %v1322 = vpop.f32.mrf.mxu0
        %v1323 = vadd.f32 %v1108, %v1322
        %v1324 = vpop.f32.mrf.mxu0
        %v1325 = vadd.f32 %v1108, %v1324
        %1326 = vdwg.mxu0
        %v1327 = vld [vmem:[#allocation11] sm:$0xff]
        %v1328 = vld [vmem:[#allocation11 + $0x8] sm:$0xff]
        %v1329 = vld [vmem:[#allocation11 + $0x10] sm:$0xff]
        %v1330 = vld [vmem:[#allocation11 + $0x18] sm:$0xff]
        %v1331 = vld [vmem:[#allocation11 + $0x20] sm:$0xff]
        %v1332 = vld [vmem:[#allocation11 + $0x28] sm:$0xff]
        %v1333 = vld [vmem:[#allocation11 + $0x30] sm:$0xff]
        %v1334 = vld [vmem:[#allocation11 + $0x38] sm:$0xff]
        %v1335 = vld [vmem:[#allocation11 + $0x40] sm:$0xff]
        %v1336 = vld [vmem:[#allocation11 + $0x48] sm:$0xff]
        %v1337 = vld [vmem:[#allocation11 + $0x50] sm:$0xff]
        %v1338 = vld [vmem:[#allocation11 + $0x58] sm:$0xff]
        %v1339 = vld [vmem:[#allocation11 + $0x60] sm:$0xff]
        %v1340 = vld [vmem:[#allocation11 + $0x68] sm:$0xff]
        %v1341 = vld [vmem:[#allocation11 + $0x70] sm:$0xff]
        %v1342 = vld [vmem:[#allocation11 + $0x78] sm:$0xff]
        %v1343 = vld [vmem:[#allocation11 + $0x80] sm:$0xff]
        %v1344 = vld [vmem:[#allocation11 + $0x88] sm:$0xff]
        %v1345 = vld [vmem:[#allocation11 + $0x90] sm:$0xff]
        %v1346 = vld [vmem:[#allocation11 + $0x98] sm:$0xff]
        %v1347 = vld [vmem:[#allocation11 + $0xa0] sm:$0xff]
        %v1348 = vld [vmem:[#allocation11 + $0xa8] sm:$0xff]
        %v1349 = vld [vmem:[#allocation11 + $0xb0] sm:$0xff]
        %v1350 = vld [vmem:[#allocation11 + $0xb8] sm:$0xff]
        %v1351 = vld [vmem:[#allocation11 + $0xc0] sm:$0xff]
        %v1352 = vld [vmem:[#allocation11 + $0xc8] sm:$0xff]
        %v1353 = vld [vmem:[#allocation11 + $0xd0] sm:$0xff]
        %v1354 = vld [vmem:[#allocation11 + $0xd8] sm:$0xff]
        %v1355 = vld [vmem:[#allocation11 + $0xe0] sm:$0xff]
        %v1356 = vld [vmem:[#allocation11 + $0xe8] sm:$0xff]
        %v1357 = vld [vmem:[#allocation11 + $0xf0] sm:$0xff]
        %v1358 = vld [vmem:[#allocation11 + $0xf8] sm:$0xff]
        %v1359 = vld [vmem:[#allocation11 + $0x100] sm:$0xff]
        %v1360 = vld [vmem:[#allocation11 + $0x108] sm:$0xff]
        %v1361 = vld [vmem:[#allocation11 + $0x110] sm:$0xff]
        %v1362 = vld [vmem:[#allocation11 + $0x118] sm:$0xff]
        %v1363 = vld [vmem:[#allocation11 + $0x120] sm:$0xff]
        %v1364 = vld [vmem:[#allocation11 + $0x128] sm:$0xff]
        %v1365 = vld [vmem:[#allocation11 + $0x130] sm:$0xff]
        %v1366 = vld [vmem:[#allocation11 + $0x138] sm:$0xff]
        %v1367 = vld [vmem:[#allocation11 + $0x140] sm:$0xff]
        %v1368 = vld [vmem:[#allocation11 + $0x148] sm:$0xff]
        %v1369 = vld [vmem:[#allocation11 + $0x150] sm:$0xff]
        %v1370 = vld [vmem:[#allocation11 + $0x158] sm:$0xff]
        %v1371 = vld [vmem:[#allocation11 + $0x160] sm:$0xff]
        %v1372 = vld [vmem:[#allocation11 + $0x168] sm:$0xff]
        %v1373 = vld [vmem:[#allocation11 + $0x170] sm:$0xff]
        %v1374 = vld [vmem:[#allocation11 + $0x178] sm:$0xff]
        %v1375 = vld [vmem:[#allocation11 + $0x180] sm:$0xff]
        %v1376 = vld [vmem:[#allocation11 + $0x188] sm:$0xff]
        %v1377 = vld [vmem:[#allocation11 + $0x190] sm:$0xff]
        %v1378 = vld [vmem:[#allocation11 + $0x198] sm:$0xff]
        %v1379 = vld [vmem:[#allocation11 + $0x1a0] sm:$0xff]
        %v1380 = vld [vmem:[#allocation11 + $0x1a8] sm:$0xff]
        %v1381 = vld [vmem:[#allocation11 + $0x1b0] sm:$0xff]
        %v1382 = vld [vmem:[#allocation11 + $0x1b8] sm:$0xff]
        %v1383 = vld [vmem:[#allocation11 + $0x1c0] sm:$0xff]
        %v1384 = vld [vmem:[#allocation11 + $0x1c8] sm:$0xff]
        %v1385 = vld [vmem:[#allocation11 + $0x1d0] sm:$0xff]
        %v1386 = vld [vmem:[#allocation11 + $0x1d8] sm:$0xff]
        %v1387 = vld [vmem:[#allocation11 + $0x1e0] sm:$0xff]
        %v1388 = vld [vmem:[#allocation11 + $0x1e8] sm:$0xff]
        %v1389 = vld [vmem:[#allocation11 + $0x1f0] sm:$0xff]
        %v1390 = vld [vmem:[#allocation11 + $0x1f8] sm:$0xff]
        %v1391 = vld [vmem:[#allocation11 + $0x200] sm:$0xff]
        %v1392 = vld [vmem:[#allocation11 + $0x208] sm:$0xff]
        %v1393 = vld [vmem:[#allocation11 + $0x210] sm:$0xff]
        %v1394 = vld [vmem:[#allocation11 + $0x218] sm:$0xff]
        %v1395 = vld [vmem:[#allocation11 + $0x220] sm:$0xff]
        %v1396 = vld [vmem:[#allocation11 + $0x228] sm:$0xff]
        %v1397 = vld [vmem:[#allocation11 + $0x230] sm:$0xff]
        %v1398 = vld [vmem:[#allocation11 + $0x238] sm:$0xff]
        %v1399 = vld [vmem:[#allocation11 + $0x240] sm:$0xff]
        %v1400 = vld [vmem:[#allocation11 + $0x248] sm:$0xff]
        %v1401 = vld [vmem:[#allocation11 + $0x250] sm:$0xff]
        %v1402 = vld [vmem:[#allocation11 + $0x258] sm:$0xff]
        %v1403 = vld [vmem:[#allocation11 + $0x260] sm:$0xff]
        %v1404 = vld [vmem:[#allocation11 + $0x268] sm:$0xff]
        %v1405 = vld [vmem:[#allocation11 + $0x270] sm:$0xff]
        %v1406 = vld [vmem:[#allocation11 + $0x278] sm:$0xff]
        %v1407 = vld [vmem:[#allocation11 + $0x280] sm:$0xff]
        %v1408 = vld [vmem:[#allocation11 + $0x288] sm:$0xff]
        %v1409 = vld [vmem:[#allocation11 + $0x290] sm:$0xff]
        %v1410 = vld [vmem:[#allocation11 + $0x298] sm:$0xff]
        %v1411 = vld [vmem:[#allocation11 + $0x2a0] sm:$0xff]
        %v1412 = vld [vmem:[#allocation11 + $0x2a8] sm:$0xff]
        %v1413 = vld [vmem:[#allocation11 + $0x2b0] sm:$0xff]
        %v1414 = vld [vmem:[#allocation11 + $0x2b8] sm:$0xff]
        %v1415 = vld [vmem:[#allocation11 + $0x2c0] sm:$0xff]
        %v1416 = vld [vmem:[#allocation11 + $0x2c8] sm:$0xff]
        %v1417 = vld [vmem:[#allocation11 + $0x2d0] sm:$0xff]
        %v1418 = vld [vmem:[#allocation11 + $0x2d8] sm:$0xff]
        %v1419 = vld [vmem:[#allocation11 + $0x2e0] sm:$0xff]
        %v1420 = vld [vmem:[#allocation11 + $0x2e8] sm:$0xff]
        %v1421 = vld [vmem:[#allocation11 + $0x2f0] sm:$0xff]
        %v1422 = vld [vmem:[#allocation11 + $0x2f8] sm:$0xff]
        %v1423 = vld [vmem:[#allocation11 + $0x300] sm:$0xff]
        %v1424 = vld [vmem:[#allocation11 + $0x308] sm:$0xff]
        %v1425 = vld [vmem:[#allocation11 + $0x310] sm:$0xff]
        %v1426 = vld [vmem:[#allocation11 + $0x318] sm:$0xff]
        %v1427 = vld [vmem:[#allocation11 + $0x320] sm:$0xff]
        %v1428 = vld [vmem:[#allocation11 + $0x328] sm:$0xff]
        %v1429 = vld [vmem:[#allocation11 + $0x330] sm:$0xff]
        %v1430 = vld [vmem:[#allocation11 + $0x338] sm:$0xff]
        %v1431 = vld [vmem:[#allocation11 + $0x340] sm:$0xff]
        %v1432 = vld [vmem:[#allocation11 + $0x348] sm:$0xff]
        %v1433 = vld [vmem:[#allocation11 + $0x350] sm:$0xff]
        %v1434 = vld [vmem:[#allocation11 + $0x358] sm:$0xff]
        %v1435 = vld [vmem:[#allocation11 + $0x360] sm:$0xff]
        %v1436 = vld [vmem:[#allocation11 + $0x368] sm:$0xff]
        %v1437 = vld [vmem:[#allocation11 + $0x370] sm:$0xff]
        %v1438 = vld [vmem:[#allocation11 + $0x378] sm:$0xff]
        %v1439 = vld [vmem:[#allocation11 + $0x380] sm:$0xff]
        %v1440 = vld [vmem:[#allocation11 + $0x388] sm:$0xff]
        %v1441 = vld [vmem:[#allocation11 + $0x390] sm:$0xff]
        %v1442 = vld [vmem:[#allocation11 + $0x398] sm:$0xff]
        %v1443 = vld [vmem:[#allocation11 + $0x3a0] sm:$0xff]
        %v1444 = vld [vmem:[#allocation11 + $0x3a8] sm:$0xff]
        %v1445 = vld [vmem:[#allocation11 + $0x3b0] sm:$0xff]
        %v1446 = vld [vmem:[#allocation11 + $0x3b8] sm:$0xff]
        %v1447 = vld [vmem:[#allocation11 + $0x3c0] sm:$0xff]
        %v1448 = vld [vmem:[#allocation11 + $0x3c8] sm:$0xff]
        %v1449 = vld [vmem:[#allocation11 + $0x3d0] sm:$0xff]
        %v1450 = vld [vmem:[#allocation11 + $0x3d8] sm:$0xff]
        %v1451 = vld [vmem:[#allocation11 + $0x3e0] sm:$0xff]
        %v1452 = vld [vmem:[#allocation11 + $0x3e8] sm:$0xff]
        %v1453 = vld [vmem:[#allocation11 + $0x3f0] sm:$0xff]
        %v1454 = vld [vmem:[#allocation11 + $0x3f8] sm:$0xff]
        %v1455 = vmul.f32 %v1250, 0.35355338
        %v1456 = vmul.f32 %v1252, 0.35355338
        %v1457 = vmul.f32 %v1255, 0.35355338
        %v1458 = vmul.f32 %v1257, 0.35355338
        %v1459 = vmul.f32 %v1260, 0.35355338
        %v1460 = vmul.f32 %v1262, 0.35355338
        %v1461 = vmul.f32 %v1265, 0.35355338
        %v1462 = vmul.f32 %v1267, 0.35355338
        %v1463 = vmul.f32 %v1455, %v1327
        %v1464 = vmul.f32 %v1456, %v1328
        %v1465 = vmul.f32 %v1457, %v1329
        %v1466 = vmul.f32 %v1458, %v1330
        %v1467 = vmul.f32 %v1459, %v1331
        %v1468 = vmul.f32 %v1460, %v1332
        %v1469 = vmul.f32 %v1461, %v1333
        %v1470 = vmul.f32 %v1462, %v1334
        %v1471 = vmul.f32 %v1455, %v1335
        %v1472 = vmul.f32 %v1456, %v1336
        %v1473 = vmul.f32 %v1457, %v1337
        %v1474 = vmul.f32 %v1458, %v1338
        %v1475 = vmul.f32 %v1459, %v1339
        %v1476 = vmul.f32 %v1460, %v1340
        %v1477 = vmul.f32 %v1461, %v1341
        %v1478 = vmul.f32 %v1462, %v1342
        %v1479 = vmul.f32 %v1455, %v1343
        %v1480 = vmul.f32 %v1456, %v1344
        %v1481 = vmul.f32 %v1457, %v1345
        %v1482 = vmul.f32 %v1458, %v1346
        %v1483 = vmul.f32 %v1459, %v1347
        %v1484 = vmul.f32 %v1460, %v1348
        %v1485 = vmul.f32 %v1461, %v1349
        %v1486 = vmul.f32 %v1462, %v1350
        %v1487 = vmul.f32 %v1455, %v1351
        %v1488 = vmul.f32 %v1456, %v1352
        %v1489 = vmul.f32 %v1457, %v1353
        %v1490 = vmul.f32 %v1458, %v1354
        %v1491 = vmul.f32 %v1459, %v1355
        %v1492 = vmul.f32 %v1460, %v1356
        %v1493 = vmul.f32 %v1461, %v1357
        %v1494 = vmul.f32 %v1462, %v1358
        %v1495 = vmul.f32 %v1455, %v1359
        %v1496 = vmul.f32 %v1456, %v1360
        %v1497 = vmul.f32 %v1457, %v1361
        %v1498 = vmul.f32 %v1458, %v1362
        %v1499 = vmul.f32 %v1459, %v1363
        %v1500 = vmul.f32 %v1460, %v1364
        %v1501 = vmul.f32 %v1461, %v1365
        %v1502 = vmul.f32 %v1462, %v1366
        %v1503 = vmul.f32 %v1455, %v1367
        %v1504 = vmul.f32 %v1456, %v1368
        %v1505 = vmul.f32 %v1457, %v1369
        %v1506 = vmul.f32 %v1458, %v1370
        %v1507 = vmul.f32 %v1459, %v1371
        %v1508 = vmul.f32 %v1460, %v1372
        %v1509 = vmul.f32 %v1461, %v1373
        %v1510 = vmul.f32 %v1462, %v1374
        %v1511 = vmul.f32 %v1455, %v1375
        %v1512 = vmul.f32 %v1456, %v1376
        %v1513 = vmul.f32 %v1457, %v1377
        %v1514 = vmul.f32 %v1458, %v1378
        %v1515 = vmul.f32 %v1459, %v1379
        %v1516 = vmul.f32 %v1460, %v1380
        %v1517 = vmul.f32 %v1461, %v1381
        %v1518 = vmul.f32 %v1462, %v1382
        %v1519 = vmul.f32 %v1455, %v1383
        %v1520 = vmul.f32 %v1456, %v1384
        %v1521 = vmul.f32 %v1457, %v1385
        %v1522 = vmul.f32 %v1458, %v1386
        %v1523 = vmul.f32 %v1459, %v1387
        %v1524 = vmul.f32 %v1460, %v1388
        %v1525 = vmul.f32 %v1461, %v1389
        %v1526 = vmul.f32 %v1462, %v1390
        %v1527 = vmul.f32 %v1455, %v1391
        %v1528 = vmul.f32 %v1456, %v1392
        %v1529 = vmul.f32 %v1457, %v1393
        %v1530 = vmul.f32 %v1458, %v1394
        %v1531 = vmul.f32 %v1459, %v1395
        %v1532 = vmul.f32 %v1460, %v1396
        %v1533 = vmul.f32 %v1461, %v1397
        %v1534 = vmul.f32 %v1462, %v1398
        %v1535 = vmul.f32 %v1455, %v1399
        %v1536 = vmul.f32 %v1456, %v1400
        %v1537 = vmul.f32 %v1457, %v1401
        %v1538 = vmul.f32 %v1458, %v1402
        %v1539 = vmul.f32 %v1459, %v1403
        %v1540 = vmul.f32 %v1460, %v1404
        %v1541 = vmul.f32 %v1461, %v1405
        %v1542 = vmul.f32 %v1462, %v1406
        %v1543 = vmul.f32 %v1455, %v1407
        %v1544 = vmul.f32 %v1456, %v1408
        %v1545 = vmul.f32 %v1457, %v1409
        %v1546 = vmul.f32 %v1458, %v1410
        %v1547 = vmul.f32 %v1459, %v1411
        %v1548 = vmul.f32 %v1460, %v1412
        %v1549 = vmul.f32 %v1461, %v1413
        %v1550 = vmul.f32 %v1462, %v1414
        %v1551 = vmul.f32 %v1455, %v1415
        %v1552 = vmul.f32 %v1456, %v1416
        %v1553 = vmul.f32 %v1457, %v1417
        %v1554 = vmul.f32 %v1458, %v1418
        %v1555 = vmul.f32 %v1459, %v1419
        %v1556 = vmul.f32 %v1460, %v1420
        %v1557 = vmul.f32 %v1461, %v1421
        %v1558 = vmul.f32 %v1462, %v1422
        %v1559 = vmul.f32 %v1455, %v1423
        %v1560 = vmul.f32 %v1456, %v1424
        %v1561 = vmul.f32 %v1457, %v1425
        %v1562 = vmul.f32 %v1458, %v1426
        %v1563 = vmul.f32 %v1459, %v1427
        %v1564 = vmul.f32 %v1460, %v1428
        %v1565 = vmul.f32 %v1461, %v1429
        %v1566 = vmul.f32 %v1462, %v1430
        %v1567 = vmul.f32 %v1455, %v1431
        %v1568 = vmul.f32 %v1456, %v1432
        %v1569 = vmul.f32 %v1457, %v1433
        %v1570 = vmul.f32 %v1458, %v1434
        %v1571 = vmul.f32 %v1459, %v1435
        %v1572 = vmul.f32 %v1460, %v1436
        %v1573 = vmul.f32 %v1461, %v1437
        %v1574 = vmul.f32 %v1462, %v1438
        %v1575 = vmul.f32 %v1455, %v1439
        %v1576 = vmul.f32 %v1456, %v1440
        %v1577 = vmul.f32 %v1457, %v1441
        %v1578 = vmul.f32 %v1458, %v1442
        %v1579 = vmul.f32 %v1459, %v1443
        %v1580 = vmul.f32 %v1460, %v1444
        %v1581 = vmul.f32 %v1461, %v1445
        %v1582 = vmul.f32 %v1462, %v1446
        %v1583 = vmul.f32 %v1455, %v1447
        %v1584 = vmul.f32 %v1456, %v1448
        %v1585 = vmul.f32 %v1457, %v1449
        %v1586 = vmul.f32 %v1458, %v1450
        %v1587 = vmul.f32 %v1459, %v1451
        %v1588 = vmul.f32 %v1460, %v1452
        %v1589 = vmul.f32 %v1461, %v1453
        %v1590 = vmul.f32 %v1462, %v1454
        %1591 = vxpose.xlu0.b32.start [1/16] %v1279, 128
        %1592 = vxpose.xlu0.b32.cont [2/16] %v1281, 128
        %1593 = vxpose.xlu0.b32.cont [3/16] %v1284, 128
        %1594 = vxpose.xlu0.b32.cont [4/16] %v1286, 128
        %1595 = vxpose.xlu0.b32.cont [5/16] %v1289, 128
        %1596 = vxpose.xlu0.b32.cont [6/16] %v1291, 128
        %1597 = vxpose.xlu0.b32.cont [7/16] %v1294, 128
        %1598 = vxpose.xlu0.b32.cont [8/16] %v1296, 128
        %1599 = vxpose.xlu0.b32.cont [9/16] 0.0, 128
        %1600 = vxpose.xlu0.b32.cont [10/16] 0.0, 128
        %1601 = vxpose.xlu0.b32.cont [11/16] 0.0, 128
        %1602 = vxpose.xlu0.b32.cont [12/16] 0.0, 128
        %1603 = vxpose.xlu0.b32.cont [13/16] 0.0, 128
        %1604 = vxpose.xlu0.b32.cont [14/16] 0.0, 128
        %1605 = vxpose.xlu0.b32.cont [15/16] 0.0, 128
        %1606 = vxpose.xlu0.b32.end [16/16] 0.0, 128
        %v1607 = vpop.trf.xlu0
        %v1608 = vpop.trf.xlu0
        %v1609 = vpop.trf.xlu0
        %v1610 = vpop.trf.xlu0
        %v1611 = vpop.trf.xlu0
        %v1612 = vpop.trf.xlu0
        %v1613 = vpop.trf.xlu0
        %v1614 = vpop.trf.xlu0
        %v1615 = vpop.trf.xlu0
        %v1616 = vpop.trf.xlu0
        %v1617 = vpop.trf.xlu0
        %v1618 = vpop.trf.xlu0
        %v1619 = vpop.trf.xlu0
        %v1620 = vpop.trf.xlu0
        %v1621 = vpop.trf.xlu0
        %v1622 = vpop.trf.xlu0
        %v1623 = vpack.c.bf16 %v1464, %v1463
        %v1624 = vpack.c.bf16 %v1466, %v1465
        %v1625 = vpack.c.bf16 %v1468, %v1467
        %v1626 = vpack.c.bf16 %v1470, %v1469
        %v1627 = vpack.c.bf16 %v1472, %v1471
        %v1628 = vpack.c.bf16 %v1474, %v1473
        %v1629 = vpack.c.bf16 %v1476, %v1475
        %v1630 = vpack.c.bf16 %v1478, %v1477
        %v1631 = vpack.c.bf16 %v1480, %v1479
        %v1632 = vpack.c.bf16 %v1482, %v1481
        %v1633 = vpack.c.bf16 %v1484, %v1483
        %v1634 = vpack.c.bf16 %v1486, %v1485
        %v1635 = vpack.c.bf16 %v1488, %v1487
        %v1636 = vpack.c.bf16 %v1490, %v1489
        %v1637 = vpack.c.bf16 %v1492, %v1491
        %v1638 = vpack.c.bf16 %v1494, %v1493
        %v1639 = vpack.c.bf16 %v1496, %v1495
        %v1640 = vpack.c.bf16 %v1498, %v1497
        %v1641 = vpack.c.bf16 %v1500, %v1499
        %v1642 = vpack.c.bf16 %v1502, %v1501
        %v1643 = vpack.c.bf16 %v1504, %v1503
        %v1644 = vpack.c.bf16 %v1506, %v1505
        %v1645 = vpack.c.bf16 %v1508, %v1507
        %v1646 = vpack.c.bf16 %v1510, %v1509
        %v1647 = vpack.c.bf16 %v1512, %v1511
        %v1648 = vpack.c.bf16 %v1514, %v1513
        %v1649 = vpack.c.bf16 %v1516, %v1515
        %v1650 = vpack.c.bf16 %v1518, %v1517
        %v1651 = vpack.c.bf16 %v1520, %v1519
        %v1652 = vpack.c.bf16 %v1522, %v1521
        %v1653 = vpack.c.bf16 %v1524, %v1523
        %v1654 = vpack.c.bf16 %v1526, %v1525
        %v1655 = vpack.c.bf16 %v1528, %v1527
        %v1656 = vpack.c.bf16 %v1530, %v1529
        %v1657 = vpack.c.bf16 %v1532, %v1531
        %v1658 = vpack.c.bf16 %v1534, %v1533
        %v1659 = vpack.c.bf16 %v1536, %v1535
        %v1660 = vpack.c.bf16 %v1538, %v1537
        %v1661 = vpack.c.bf16 %v1540, %v1539
        %v1662 = vpack.c.bf16 %v1542, %v1541
        %v1663 = vpack.c.bf16 %v1544, %v1543
        %v1664 = vpack.c.bf16 %v1546, %v1545
        %v1665 = vpack.c.bf16 %v1548, %v1547
        %v1666 = vpack.c.bf16 %v1550, %v1549
        %v1667 = vpack.c.bf16 %v1552, %v1551
        %v1668 = vpack.c.bf16 %v1554, %v1553
        %v1669 = vpack.c.bf16 %v1556, %v1555
        %v1670 = vpack.c.bf16 %v1558, %v1557
        %v1671 = vpack.c.bf16 %v1560, %v1559
        %v1672 = vpack.c.bf16 %v1562, %v1561
        %v1673 = vpack.c.bf16 %v1564, %v1563
        %v1674 = vpack.c.bf16 %v1566, %v1565
        %v1675 = vpack.c.bf16 %v1568, %v1567
        %v1676 = vpack.c.bf16 %v1570, %v1569
        %v1677 = vpack.c.bf16 %v1572, %v1571
        %v1678 = vpack.c.bf16 %v1574, %v1573
        %v1679 = vpack.c.bf16 %v1576, %v1575
        %v1680 = vpack.c.bf16 %v1578, %v1577
        %v1681 = vpack.c.bf16 %v1580, %v1579
        %v1682 = vpack.c.bf16 %v1582, %v1581
        %v1683 = vpack.c.bf16 %v1584, %v1583
        %v1684 = vpack.c.bf16 %v1586, %v1585
        %v1685 = vpack.c.bf16 %v1588, %v1587
        %v1686 = vpack.c.bf16 %v1590, %v1589
        %v1687 = vpack.c.bf16 %v1608, %v1607
        %v1688 = vpack.c.bf16 %v1610, %v1609
        %v1689 = vpack.c.bf16 %v1612, %v1611
        %v1690 = vpack.c.bf16 %v1614, %v1613
        %v1691 = vpack.c.bf16 %v1616, %v1615
        %v1692 = vpack.c.bf16 %v1618, %v1617
        %v1693 = vpack.c.bf16 %v1620, %v1619
        %v1694 = vpack.c.bf16 %v1622, %v1621
        %1695 = vmatpush.bf16.msra.mxu0 %v1694
        %1696 = vmatpush.bf16.msra.mxu0 %v1693
        %1697 = vmatpush.bf16.msra.mxu0 %v1692
        %1698 = vmatpush.bf16.msra.mxu0 %v1691
        %1699 = vmatpush.bf16.msra.mxu0 %v1690
        %1700 = vmatpush.bf16.msra.mxu0 %v1689
        %1701 = vmatpush.bf16.msra.mxu0 %v1688
        %1702 = vmatpush.bf16.msra.mxu0 %v1687
        %1703 = vmatmul.bf16.gmra.mxu0 %v1623
        %v1704 = vpop.f32.mrf.mxu0
        %v1705 = vadd.f32 0.0, %v1704
        %v1706 = vpop.f32.mrf.mxu0
        %v1707 = vadd.f32 0.0, %v1706
        %1708 = vmatmul.bf16.gmra.mxu0 %v1624
        %v1709 = vpop.f32.mrf.mxu0
        %v1710 = vadd.f32 0.0, %v1709
        %v1711 = vpop.f32.mrf.mxu0
        %v1712 = vadd.f32 0.0, %v1711
        %1713 = vmatmul.bf16.gmra.mxu0 %v1625
        %v1714 = vpop.f32.mrf.mxu0
        %v1715 = vadd.f32 0.0, %v1714
        %v1716 = vpop.f32.mrf.mxu0
        %v1717 = vadd.f32 0.0, %v1716
        %1718 = vmatmul.bf16.gmra.mxu0 %v1626
        %v1719 = vpop.f32.mrf.mxu0
        %v1720 = vadd.f32 0.0, %v1719
        %v1721 = vpop.f32.mrf.mxu0
        %v1722 = vadd.f32 0.0, %v1721
        %1723 = vmatmul.bf16.gmra.mxu0 %v1627
        %v1724 = vpop.f32.mrf.mxu0
        %v1725 = vadd.f32 0.0, %v1724
        %v1726 = vpop.f32.mrf.mxu0
        %v1727 = vadd.f32 0.0, %v1726
        %1728 = vmatmul.bf16.gmra.mxu0 %v1628
        %v1729 = vpop.f32.mrf.mxu0
        %v1730 = vadd.f32 0.0, %v1729
        %v1731 = vpop.f32.mrf.mxu0
        %v1732 = vadd.f32 0.0, %v1731
        %1733 = vmatmul.bf16.gmra.mxu0 %v1629
        %v1734 = vpop.f32.mrf.mxu0
        %v1735 = vadd.f32 0.0, %v1734
        %v1736 = vpop.f32.mrf.mxu0
        %v1737 = vadd.f32 0.0, %v1736
        %1738 = vmatmul.bf16.gmra.mxu0 %v1630
        %v1739 = vpop.f32.mrf.mxu0
        %v1740 = vadd.f32 0.0, %v1739
        %v1741 = vpop.f32.mrf.mxu0
        %v1742 = vadd.f32 0.0, %v1741
        %1743 = vmatmul.bf16.gmra.mxu0 %v1631
        %v1744 = vpop.f32.mrf.mxu0
        %v1745 = vadd.f32 0.0, %v1744
        %v1746 = vpop.f32.mrf.mxu0
        %v1747 = vadd.f32 0.0, %v1746
        %1748 = vmatmul.bf16.gmra.mxu0 %v1632
        %v1749 = vpop.f32.mrf.mxu0
        %v1750 = vadd.f32 0.0, %v1749
        %v1751 = vpop.f32.mrf.mxu0
        %v1752 = vadd.f32 0.0, %v1751
        %1753 = vmatmul.bf16.gmra.mxu0 %v1633
        %v1754 = vpop.f32.mrf.mxu0
        %v1755 = vadd.f32 0.0, %v1754
        %v1756 = vpop.f32.mrf.mxu0
        %v1757 = vadd.f32 0.0, %v1756
        %1758 = vmatmul.bf16.gmra.mxu0 %v1634
        %v1759 = vpop.f32.mrf.mxu0
        %v1760 = vadd.f32 0.0, %v1759
        %v1761 = vpop.f32.mrf.mxu0
        %v1762 = vadd.f32 0.0, %v1761
        %1763 = vmatmul.bf16.gmra.mxu0 %v1635
        %v1764 = vpop.f32.mrf.mxu0
        %v1765 = vadd.f32 0.0, %v1764
        %v1766 = vpop.f32.mrf.mxu0
        %v1767 = vadd.f32 0.0, %v1766
        %1768 = vmatmul.bf16.gmra.mxu0 %v1636
        %v1769 = vpop.f32.mrf.mxu0
        %v1770 = vadd.f32 0.0, %v1769
        %v1771 = vpop.f32.mrf.mxu0
        %v1772 = vadd.f32 0.0, %v1771
        %1773 = vmatmul.bf16.gmra.mxu0 %v1637
        %v1774 = vpop.f32.mrf.mxu0
        %v1775 = vadd.f32 0.0, %v1774
        %v1776 = vpop.f32.mrf.mxu0
        %v1777 = vadd.f32 0.0, %v1776
        %1778 = vmatmul.bf16.gmra.mxu0 %v1638
        %v1779 = vpop.f32.mrf.mxu0
        %v1780 = vadd.f32 0.0, %v1779
        %v1781 = vpop.f32.mrf.mxu0
        %v1782 = vadd.f32 0.0, %v1781
        %1783 = vmatmul.bf16.gmra.mxu0 %v1639
        %v1784 = vpop.f32.mrf.mxu0
        %v1785 = vadd.f32 0.0, %v1784
        %v1786 = vpop.f32.mrf.mxu0
        %v1787 = vadd.f32 0.0, %v1786
        %1788 = vmatmul.bf16.gmra.mxu0 %v1640
        %v1789 = vpop.f32.mrf.mxu0
        %v1790 = vadd.f32 0.0, %v1789
        %v1791 = vpop.f32.mrf.mxu0
        %v1792 = vadd.f32 0.0, %v1791
        %1793 = vmatmul.bf16.gmra.mxu0 %v1641
        %v1794 = vpop.f32.mrf.mxu0
        %v1795 = vadd.f32 0.0, %v1794
        %v1796 = vpop.f32.mrf.mxu0
        %v1797 = vadd.f32 0.0, %v1796
        %1798 = vmatmul.bf16.gmra.mxu0 %v1642
        %v1799 = vpop.f32.mrf.mxu0
        %v1800 = vadd.f32 0.0, %v1799
        %v1801 = vpop.f32.mrf.mxu0
        %v1802 = vadd.f32 0.0, %v1801
        %1803 = vmatmul.bf16.gmra.mxu0 %v1643
        %v1804 = vpop.f32.mrf.mxu0
        %v1805 = vadd.f32 0.0, %v1804
        %v1806 = vpop.f32.mrf.mxu0
        %v1807 = vadd.f32 0.0, %v1806
        %1808 = vmatmul.bf16.gmra.mxu0 %v1644
        %v1809 = vpop.f32.mrf.mxu0
        %v1810 = vadd.f32 0.0, %v1809
        %v1811 = vpop.f32.mrf.mxu0
        %v1812 = vadd.f32 0.0, %v1811
        %1813 = vmatmul.bf16.gmra.mxu0 %v1645
        %v1814 = vpop.f32.mrf.mxu0
        %v1815 = vadd.f32 0.0, %v1814
        %v1816 = vpop.f32.mrf.mxu0
        %v1817 = vadd.f32 0.0, %v1816
        %1818 = vmatmul.bf16.gmra.mxu0 %v1646
        %v1819 = vpop.f32.mrf.mxu0
        %v1820 = vadd.f32 0.0, %v1819
        %v1821 = vpop.f32.mrf.mxu0
        %v1822 = vadd.f32 0.0, %v1821
        %1823 = vmatmul.bf16.gmra.mxu0 %v1647
        %v1824 = vpop.f32.mrf.mxu0
        %v1825 = vadd.f32 0.0, %v1824
        %v1826 = vpop.f32.mrf.mxu0
        %v1827 = vadd.f32 0.0, %v1826
        %1828 = vmatmul.bf16.gmra.mxu0 %v1648
        %v1829 = vpop.f32.mrf.mxu0
        %v1830 = vadd.f32 0.0, %v1829
        %v1831 = vpop.f32.mrf.mxu0
        %v1832 = vadd.f32 0.0, %v1831
        %1833 = vmatmul.bf16.gmra.mxu0 %v1649
        %v1834 = vpop.f32.mrf.mxu0
        %v1835 = vadd.f32 0.0, %v1834
        %v1836 = vpop.f32.mrf.mxu0
        %v1837 = vadd.f32 0.0, %v1836
        %1838 = vmatmul.bf16.gmra.mxu0 %v1650
        %v1839 = vpop.f32.mrf.mxu0
        %v1840 = vadd.f32 0.0, %v1839
        %v1841 = vpop.f32.mrf.mxu0
        %v1842 = vadd.f32 0.0, %v1841
        %1843 = vmatmul.bf16.gmra.mxu0 %v1651
        %v1844 = vpop.f32.mrf.mxu0
        %v1845 = vadd.f32 0.0, %v1844
        %v1846 = vpop.f32.mrf.mxu0
        %v1847 = vadd.f32 0.0, %v1846
        %1848 = vmatmul.bf16.gmra.mxu0 %v1652
        %v1849 = vpop.f32.mrf.mxu0
        %v1850 = vadd.f32 0.0, %v1849
        %v1851 = vpop.f32.mrf.mxu0
        %v1852 = vadd.f32 0.0, %v1851
        %1853 = vmatmul.bf16.gmra.mxu0 %v1653
        %v1854 = vpop.f32.mrf.mxu0
        %v1855 = vadd.f32 0.0, %v1854
        %v1856 = vpop.f32.mrf.mxu0
        %v1857 = vadd.f32 0.0, %v1856
        %1858 = vmatmul.bf16.gmra.mxu0 %v1654
        %v1859 = vpop.f32.mrf.mxu0
        %v1860 = vadd.f32 0.0, %v1859
        %v1861 = vpop.f32.mrf.mxu0
        %v1862 = vadd.f32 0.0, %v1861
        %1863 = vmatmul.bf16.gmra.mxu0 %v1655
        %v1864 = vpop.f32.mrf.mxu0
        %v1865 = vadd.f32 0.0, %v1864
        %v1866 = vpop.f32.mrf.mxu0
        %v1867 = vadd.f32 0.0, %v1866
        %1868 = vmatmul.bf16.gmra.mxu0 %v1656
        %v1869 = vpop.f32.mrf.mxu0
        %v1870 = vadd.f32 0.0, %v1869
        %v1871 = vpop.f32.mrf.mxu0
        %v1872 = vadd.f32 0.0, %v1871
        %1873 = vmatmul.bf16.gmra.mxu0 %v1657
        %v1874 = vpop.f32.mrf.mxu0
        %v1875 = vadd.f32 0.0, %v1874
        %v1876 = vpop.f32.mrf.mxu0
        %v1877 = vadd.f32 0.0, %v1876
        %1878 = vmatmul.bf16.gmra.mxu0 %v1658
        %v1879 = vpop.f32.mrf.mxu0
        %v1880 = vadd.f32 0.0, %v1879
        %v1881 = vpop.f32.mrf.mxu0
        %v1882 = vadd.f32 0.0, %v1881
        %1883 = vmatmul.bf16.gmra.mxu0 %v1659
        %v1884 = vpop.f32.mrf.mxu0
        %v1885 = vadd.f32 0.0, %v1884
        %v1886 = vpop.f32.mrf.mxu0
        %v1887 = vadd.f32 0.0, %v1886
        %1888 = vmatmul.bf16.gmra.mxu0 %v1660
        %v1889 = vpop.f32.mrf.mxu0
        %v1890 = vadd.f32 0.0, %v1889
        %v1891 = vpop.f32.mrf.mxu0
        %v1892 = vadd.f32 0.0, %v1891
        %1893 = vmatmul.bf16.gmra.mxu0 %v1661
        %v1894 = vpop.f32.mrf.mxu0
        %v1895 = vadd.f32 0.0, %v1894
        %v1896 = vpop.f32.mrf.mxu0
        %v1897 = vadd.f32 0.0, %v1896
        %1898 = vmatmul.bf16.gmra.mxu0 %v1662
        %v1899 = vpop.f32.mrf.mxu0
        %v1900 = vadd.f32 0.0, %v1899
        %v1901 = vpop.f32.mrf.mxu0
        %v1902 = vadd.f32 0.0, %v1901
        %1903 = vmatmul.bf16.gmra.mxu0 %v1663
        %v1904 = vpop.f32.mrf.mxu0
        %v1905 = vadd.f32 0.0, %v1904
        %v1906 = vpop.f32.mrf.mxu0
        %v1907 = vadd.f32 0.0, %v1906
        %1908 = vmatmul.bf16.gmra.mxu0 %v1664
        %v1909 = vpop.f32.mrf.mxu0
        %v1910 = vadd.f32 0.0, %v1909
        %v1911 = vpop.f32.mrf.mxu0
        %v1912 = vadd.f32 0.0, %v1911
        %1913 = vmatmul.bf16.gmra.mxu0 %v1665
        %v1914 = vpop.f32.mrf.mxu0
        %v1915 = vadd.f32 0.0, %v1914
        %v1916 = vpop.f32.mrf.mxu0
        %v1917 = vadd.f32 0.0, %v1916
        %1918 = vmatmul.bf16.gmra.mxu0 %v1666
        %v1919 = vpop.f32.mrf.mxu0
        %v1920 = vadd.f32 0.0, %v1919
        %v1921 = vpop.f32.mrf.mxu0
        %v1922 = vadd.f32 0.0, %v1921
        %1923 = vmatmul.bf16.gmra.mxu0 %v1667
        %v1924 = vpop.f32.mrf.mxu0
        %v1925 = vadd.f32 0.0, %v1924
        %v1926 = vpop.f32.mrf.mxu0
        %v1927 = vadd.f32 0.0, %v1926
        %1928 = vmatmul.bf16.gmra.mxu0 %v1668
        %v1929 = vpop.f32.mrf.mxu0
        %v1930 = vadd.f32 0.0, %v1929
        %v1931 = vpop.f32.mrf.mxu0
        %v1932 = vadd.f32 0.0, %v1931
        %1933 = vmatmul.bf16.gmra.mxu0 %v1669
        %v1934 = vpop.f32.mrf.mxu0
        %v1935 = vadd.f32 0.0, %v1934
        %v1936 = vpop.f32.mrf.mxu0
        %v1937 = vadd.f32 0.0, %v1936
        %1938 = vmatmul.bf16.gmra.mxu0 %v1670
        %v1939 = vpop.f32.mrf.mxu0
        %v1940 = vadd.f32 0.0, %v1939
        %v1941 = vpop.f32.mrf.mxu0
        %v1942 = vadd.f32 0.0, %v1941
        %1943 = vmatmul.bf16.gmra.mxu0 %v1671
        %v1944 = vpop.f32.mrf.mxu0
        %v1945 = vadd.f32 0.0, %v1944
        %v1946 = vpop.f32.mrf.mxu0
        %v1947 = vadd.f32 0.0, %v1946
        %1948 = vmatmul.bf16.gmra.mxu0 %v1672
        %v1949 = vpop.f32.mrf.mxu0
        %v1950 = vadd.f32 0.0, %v1949
        %v1951 = vpop.f32.mrf.mxu0
        %v1952 = vadd.f32 0.0, %v1951
        %1953 = vmatmul.bf16.gmra.mxu0 %v1673
        %v1954 = vpop.f32.mrf.mxu0
        %v1955 = vadd.f32 0.0, %v1954
        %v1956 = vpop.f32.mrf.mxu0
        %v1957 = vadd.f32 0.0, %v1956
        %1958 = vmatmul.bf16.gmra.mxu0 %v1674
        %v1959 = vpop.f32.mrf.mxu0
        %v1960 = vadd.f32 0.0, %v1959
        %v1961 = vpop.f32.mrf.mxu0
        %v1962 = vadd.f32 0.0, %v1961
        %1963 = vmatmul.bf16.gmra.mxu0 %v1675
        %v1964 = vpop.f32.mrf.mxu0
        %v1965 = vadd.f32 0.0, %v1964
        %v1966 = vpop.f32.mrf.mxu0
        %v1967 = vadd.f32 0.0, %v1966
        %1968 = vmatmul.bf16.gmra.mxu0 %v1676
        %v1969 = vpop.f32.mrf.mxu0
        %v1970 = vadd.f32 0.0, %v1969
        %v1971 = vpop.f32.mrf.mxu0
        %v1972 = vadd.f32 0.0, %v1971
        %1973 = vmatmul.bf16.gmra.mxu0 %v1677
        %v1974 = vpop.f32.mrf.mxu0
        %v1975 = vadd.f32 0.0, %v1974
        %v1976 = vpop.f32.mrf.mxu0
        %v1977 = vadd.f32 0.0, %v1976
        %1978 = vmatmul.bf16.gmra.mxu0 %v1678
        %v1979 = vpop.f32.mrf.mxu0
        %v1980 = vadd.f32 0.0, %v1979
        %v1981 = vpop.f32.mrf.mxu0
        %v1982 = vadd.f32 0.0, %v1981
        %1983 = vmatmul.bf16.gmra.mxu0 %v1679
        %v1984 = vpop.f32.mrf.mxu0
        %v1985 = vadd.f32 0.0, %v1984
        %v1986 = vpop.f32.mrf.mxu0
        %v1987 = vadd.f32 0.0, %v1986
        %1988 = vmatmul.bf16.gmra.mxu0 %v1680
        %v1989 = vpop.f32.mrf.mxu0
        %v1990 = vadd.f32 0.0, %v1989
        %v1991 = vpop.f32.mrf.mxu0
        %v1992 = vadd.f32 0.0, %v1991
        %1993 = vmatmul.bf16.gmra.mxu0 %v1681
        %v1994 = vpop.f32.mrf.mxu0
        %v1995 = vadd.f32 0.0, %v1994
        %v1996 = vpop.f32.mrf.mxu0
        %v1997 = vadd.f32 0.0, %v1996
        %1998 = vmatmul.bf16.gmra.mxu0 %v1682
        %v1999 = vpop.f32.mrf.mxu0
        %v2000 = vadd.f32 0.0, %v1999
        %v2001 = vpop.f32.mrf.mxu0
        %v2002 = vadd.f32 0.0, %v2001
        %2003 = vmatmul.bf16.gmra.mxu0 %v1683
        %v2004 = vpop.f32.mrf.mxu0
        %v2005 = vadd.f32 0.0, %v2004
        %v2006 = vpop.f32.mrf.mxu0
        %v2007 = vadd.f32 0.0, %v2006
        %2008 = vmatmul.bf16.gmra.mxu0 %v1684
        %v2009 = vpop.f32.mrf.mxu0
        %v2010 = vadd.f32 0.0, %v2009
        %v2011 = vpop.f32.mrf.mxu0
        %v2012 = vadd.f32 0.0, %v2011
        %2013 = vmatmul.bf16.gmra.mxu0 %v1685
        %v2014 = vpop.f32.mrf.mxu0
        %v2015 = vadd.f32 0.0, %v2014
        %v2016 = vpop.f32.mrf.mxu0
        %v2017 = vadd.f32 0.0, %v2016
        %2018 = vmatmul.bf16.gmra.mxu0 %v1686
        %v2019 = vpop.f32.mrf.mxu0
        %v2020 = vadd.f32 0.0, %v2019
        %v2021 = vpop.f32.mrf.mxu0
        %v2022 = vadd.f32 0.0, %v2021
        %2023 = vdwg.mxu0
        %vm2024 = vcmask 523264
        %v2025 = vsel %vm2024, %v1705, -inf
        %2026 = vmax.xlane.f32.xlu0 %v2025
        %v2027 = vpop.xlane.xlu0 %2026
        %v2028 = vsel %vm2024, %v1707, -inf
        %2029 = vmax.xlane.f32.xlu0 %v2028
        %v2030 = vpop.xlane.xlu0 %2029
        %v2031 = vsel %vm2024, %v1710, -inf
        %2032 = vmax.xlane.f32.xlu0 %v2031
        %v2033 = vpop.xlane.xlu0 %2032
        %v2034 = vsel %vm2024, %v1712, -inf
        %2035 = vmax.xlane.f32.xlu0 %v2034
        %v2036 = vpop.xlane.xlu0 %2035
        %v2037 = vsel %vm2024, %v1715, -inf
        %2038 = vmax.xlane.f32.xlu0 %v2037
        %v2039 = vpop.xlane.xlu0 %2038
        %v2040 = vsel %vm2024, %v1717, -inf
        %2041 = vmax.xlane.f32.xlu0 %v2040
        %v2042 = vpop.xlane.xlu0 %2041
        %v2043 = vsel %vm2024, %v1720, -inf
        %2044 = vmax.xlane.f32.xlu0 %v2043
        %v2045 = vpop.xlane.xlu0 %2044
        %v2046 = vsel %vm2024, %v1722, -inf
        %2047 = vmax.xlane.f32.xlu0 %v2046
        %v2048 = vpop.xlane.xlu0 %2047
        %v2049 = vsel %vm2024, %v1725, -inf
        %2050 = vmax.xlane.f32.xlu0 %v2049
        %v2051 = vpop.xlane.xlu0 %2050
        %v2052 = vsel %vm2024, %v1727, -inf
        %2053 = vmax.xlane.f32.xlu0 %v2052
        %v2054 = vpop.xlane.xlu0 %2053
        %v2055 = vsel %vm2024, %v1730, -inf
        %2056 = vmax.xlane.f32.xlu0 %v2055
        %v2057 = vpop.xlane.xlu0 %2056
        %v2058 = vsel %vm2024, %v1732, -inf
        %2059 = vmax.xlane.f32.xlu0 %v2058
        %v2060 = vpop.xlane.xlu0 %2059
        %v2061 = vsel %vm2024, %v1735, -inf
        %2062 = vmax.xlane.f32.xlu0 %v2061
        %v2063 = vpop.xlane.xlu0 %2062
        %v2064 = vsel %vm2024, %v1737, -inf
        %2065 = vmax.xlane.f32.xlu0 %v2064
        %v2066 = vpop.xlane.xlu0 %2065
        %v2067 = vsel %vm2024, %v1740, -inf
        %2068 = vmax.xlane.f32.xlu0 %v2067
        %v2069 = vpop.xlane.xlu0 %2068
        %v2070 = vsel %vm2024, %v1742, -inf
        %2071 = vmax.xlane.f32.xlu0 %v2070
        %v2072 = vpop.xlane.xlu0 %2071
        %v2073 = vsel %vm2024, %v1745, -inf
        %2074 = vmax.xlane.f32.xlu0 %v2073
        %v2075 = vpop.xlane.xlu0 %2074
        %v2076 = vsel %vm2024, %v1747, -inf
        %2077 = vmax.xlane.f32.xlu0 %v2076
        %v2078 = vpop.xlane.xlu0 %2077
        %v2079 = vsel %vm2024, %v1750, -inf
        %2080 = vmax.xlane.f32.xlu0 %v2079
        %v2081 = vpop.xlane.xlu0 %2080
        %v2082 = vsel %vm2024, %v1752, -inf
        %2083 = vmax.xlane.f32.xlu0 %v2082
        %v2084 = vpop.xlane.xlu0 %2083
        %v2085 = vsel %vm2024, %v1755, -inf
        %2086 = vmax.xlane.f32.xlu0 %v2085
        %v2087 = vpop.xlane.xlu0 %2086
        %v2088 = vsel %vm2024, %v1757, -inf
        %2089 = vmax.xlane.f32.xlu0 %v2088
        %v2090 = vpop.xlane.xlu0 %2089
        %v2091 = vsel %vm2024, %v1760, -inf
        %2092 = vmax.xlane.f32.xlu0 %v2091
        %v2093 = vpop.xlane.xlu0 %2092
        %v2094 = vsel %vm2024, %v1762, -inf
        %2095 = vmax.xlane.f32.xlu0 %v2094
        %v2096 = vpop.xlane.xlu0 %2095
        %v2097 = vsel %vm2024, %v1765, -inf
        %2098 = vmax.xlane.f32.xlu0 %v2097
        %v2099 = vpop.xlane.xlu0 %2098
        %v2100 = vsel %vm2024, %v1767, -inf
        %2101 = vmax.xlane.f32.xlu0 %v2100
        %v2102 = vpop.xlane.xlu0 %2101
        %v2103 = vsel %vm2024, %v1770, -inf
        %2104 = vmax.xlane.f32.xlu0 %v2103
        %v2105 = vpop.xlane.xlu0 %2104
        %v2106 = vsel %vm2024, %v1772, -inf
        %2107 = vmax.xlane.f32.xlu0 %v2106
        %v2108 = vpop.xlane.xlu0 %2107
        %v2109 = vsel %vm2024, %v1775, -inf
        %2110 = vmax.xlane.f32.xlu0 %v2109
        %v2111 = vpop.xlane.xlu0 %2110
        %v2112 = vsel %vm2024, %v1777, -inf
        %2113 = vmax.xlane.f32.xlu0 %v2112
        %v2114 = vpop.xlane.xlu0 %2113
        %v2115 = vsel %vm2024, %v1780, -inf
        %2116 = vmax.xlane.f32.xlu0 %v2115
        %v2117 = vpop.xlane.xlu0 %2116
        %v2118 = vsel %vm2024, %v1782, -inf
        %2119 = vmax.xlane.f32.xlu0 %v2118
        %v2120 = vpop.xlane.xlu0 %2119
        %v2121 = vsel %vm2024, %v1785, -inf
        %2122 = vmax.xlane.f32.xlu0 %v2121
        %v2123 = vpop.xlane.xlu0 %2122
        %v2124 = vsel %vm2024, %v1787, -inf
        %2125 = vmax.xlane.f32.xlu0 %v2124
        %v2126 = vpop.xlane.xlu0 %2125
        %v2127 = vsel %vm2024, %v1790, -inf
        %2128 = vmax.xlane.f32.xlu0 %v2127
        %v2129 = vpop.xlane.xlu0 %2128
        %v2130 = vsel %vm2024, %v1792, -inf
        %2131 = vmax.xlane.f32.xlu0 %v2130
        %v2132 = vpop.xlane.xlu0 %2131
        %v2133 = vsel %vm2024, %v1795, -inf
        %2134 = vmax.xlane.f32.xlu0 %v2133
        %v2135 = vpop.xlane.xlu0 %2134
        %v2136 = vsel %vm2024, %v1797, -inf
        %2137 = vmax.xlane.f32.xlu0 %v2136
        %v2138 = vpop.xlane.xlu0 %2137
        %v2139 = vsel %vm2024, %v1800, -inf
        %2140 = vmax.xlane.f32.xlu0 %v2139
        %v2141 = vpop.xlane.xlu0 %2140
        %v2142 = vsel %vm2024, %v1802, -inf
        %2143 = vmax.xlane.f32.xlu0 %v2142
        %v2144 = vpop.xlane.xlu0 %2143
        %v2145 = vsel %vm2024, %v1805, -inf
        %2146 = vmax.xlane.f32.xlu0 %v2145
        %v2147 = vpop.xlane.xlu0 %2146
        %v2148 = vsel %vm2024, %v1807, -inf
        %2149 = vmax.xlane.f32.xlu0 %v2148
        %v2150 = vpop.xlane.xlu0 %2149
        %v2151 = vsel %vm2024, %v1810, -inf
        %2152 = vmax.xlane.f32.xlu0 %v2151
        %v2153 = vpop.xlane.xlu0 %2152
        %v2154 = vsel %vm2024, %v1812, -inf
        %2155 = vmax.xlane.f32.xlu0 %v2154
        %v2156 = vpop.xlane.xlu0 %2155
        %v2157 = vsel %vm2024, %v1815, -inf
        %2158 = vmax.xlane.f32.xlu0 %v2157
        %v2159 = vpop.xlane.xlu0 %2158
        %v2160 = vsel %vm2024, %v1817, -inf
        %2161 = vmax.xlane.f32.xlu0 %v2160
        %v2162 = vpop.xlane.xlu0 %2161
        %v2163 = vsel %vm2024, %v1820, -inf
        %2164 = vmax.xlane.f32.xlu0 %v2163
        %v2165 = vpop.xlane.xlu0 %2164
        %v2166 = vsel %vm2024, %v1822, -inf
        %2167 = vmax.xlane.f32.xlu0 %v2166
        %v2168 = vpop.xlane.xlu0 %2167
        %v2169 = vsel %vm2024, %v1825, -inf
        %2170 = vmax.xlane.f32.xlu0 %v2169
        %v2171 = vpop.xlane.xlu0 %2170
        %v2172 = vsel %vm2024, %v1827, -inf
        %2173 = vmax.xlane.f32.xlu0 %v2172
        %v2174 = vpop.xlane.xlu0 %2173
        %v2175 = vsel %vm2024, %v1830, -inf
        %2176 = vmax.xlane.f32.xlu0 %v2175
        %v2177 = vpop.xlane.xlu0 %2176
        %v2178 = vsel %vm2024, %v1832, -inf
        %2179 = vmax.xlane.f32.xlu0 %v2178
        %v2180 = vpop.xlane.xlu0 %2179
        %v2181 = vsel %vm2024, %v1835, -inf
        %2182 = vmax.xlane.f32.xlu0 %v2181
        %v2183 = vpop.xlane.xlu0 %2182
        %v2184 = vsel %vm2024, %v1837, -inf
        %2185 = vmax.xlane.f32.xlu0 %v2184
        %v2186 = vpop.xlane.xlu0 %2185
        %v2187 = vsel %vm2024, %v1840, -inf
        %2188 = vmax.xlane.f32.xlu0 %v2187
        %v2189 = vpop.xlane.xlu0 %2188
        %v2190 = vsel %vm2024, %v1842, -inf
        %2191 = vmax.xlane.f32.xlu0 %v2190
        %v2192 = vpop.xlane.xlu0 %2191
        %v2193 = vsel %vm2024, %v1845, -inf
        %2194 = vmax.xlane.f32.xlu0 %v2193
        %v2195 = vpop.xlane.xlu0 %2194
        %v2196 = vsel %vm2024, %v1847, -inf
        %2197 = vmax.xlane.f32.xlu0 %v2196
        %v2198 = vpop.xlane.xlu0 %2197
        %v2199 = vsel %vm2024, %v1850, -inf
        %2200 = vmax.xlane.f32.xlu0 %v2199
        %v2201 = vpop.xlane.xlu0 %2200
        %v2202 = vsel %vm2024, %v1852, -inf
        %2203 = vmax.xlane.f32.xlu0 %v2202
        %v2204 = vpop.xlane.xlu0 %2203
        %v2205 = vsel %vm2024, %v1855, -inf
        %2206 = vmax.xlane.f32.xlu0 %v2205
        %v2207 = vpop.xlane.xlu0 %2206
        %v2208 = vsel %vm2024, %v1857, -inf
        %2209 = vmax.xlane.f32.xlu0 %v2208
        %v2210 = vpop.xlane.xlu0 %2209
        %v2211 = vsel %vm2024, %v1860, -inf
        %2212 = vmax.xlane.f32.xlu0 %v2211
        %v2213 = vpop.xlane.xlu0 %2212
        %v2214 = vsel %vm2024, %v1862, -inf
        %2215 = vmax.xlane.f32.xlu0 %v2214
        %v2216 = vpop.xlane.xlu0 %2215
        %v2217 = vsel %vm2024, %v1865, -inf
        %2218 = vmax.xlane.f32.xlu0 %v2217
        %v2219 = vpop.xlane.xlu0 %2218
        %v2220 = vsel %vm2024, %v1867, -inf
        %2221 = vmax.xlane.f32.xlu0 %v2220
        %v2222 = vpop.xlane.xlu0 %2221
        %v2223 = vsel %vm2024, %v1870, -inf
        %2224 = vmax.xlane.f32.xlu0 %v2223
        %v2225 = vpop.xlane.xlu0 %2224
        %v2226 = vsel %vm2024, %v1872, -inf
        %2227 = vmax.xlane.f32.xlu0 %v2226
        %v2228 = vpop.xlane.xlu0 %2227
        %v2229 = vsel %vm2024, %v1875, -inf
        %2230 = vmax.xlane.f32.xlu0 %v2229
        %v2231 = vpop.xlane.xlu0 %2230
        %v2232 = vsel %vm2024, %v1877, -inf
        %2233 = vmax.xlane.f32.xlu0 %v2232
        %v2234 = vpop.xlane.xlu0 %2233
        %v2235 = vsel %vm2024, %v1880, -inf
        %2236 = vmax.xlane.f32.xlu0 %v2235
        %v2237 = vpop.xlane.xlu0 %2236
        %v2238 = vsel %vm2024, %v1882, -inf
        %2239 = vmax.xlane.f32.xlu0 %v2238
        %v2240 = vpop.xlane.xlu0 %2239
        %v2241 = vsel %vm2024, %v1885, -inf
        %2242 = vmax.xlane.f32.xlu0 %v2241
        %v2243 = vpop.xlane.xlu0 %2242
        %v2244 = vsel %vm2024, %v1887, -inf
        %2245 = vmax.xlane.f32.xlu0 %v2244
        %v2246 = vpop.xlane.xlu0 %2245
        %v2247 = vsel %vm2024, %v1890, -inf
        %2248 = vmax.xlane.f32.xlu0 %v2247
        %v2249 = vpop.xlane.xlu0 %2248
        %v2250 = vsel %vm2024, %v1892, -inf
        %2251 = vmax.xlane.f32.xlu0 %v2250
        %v2252 = vpop.xlane.xlu0 %2251
        %v2253 = vsel %vm2024, %v1895, -inf
        %2254 = vmax.xlane.f32.xlu0 %v2253
        %v2255 = vpop.xlane.xlu0 %2254
        %v2256 = vsel %vm2024, %v1897, -inf
        %2257 = vmax.xlane.f32.xlu0 %v2256
        %v2258 = vpop.xlane.xlu0 %2257
        %v2259 = vsel %vm2024, %v1900, -inf
        %2260 = vmax.xlane.f32.xlu0 %v2259
        %v2261 = vpop.xlane.xlu0 %2260
        %v2262 = vsel %vm2024, %v1902, -inf
        %2263 = vmax.xlane.f32.xlu0 %v2262
        %v2264 = vpop.xlane.xlu0 %2263
        %v2265 = vsel %vm2024, %v1905, -inf
        %2266 = vmax.xlane.f32.xlu0 %v2265
        %v2267 = vpop.xlane.xlu0 %2266
        %v2268 = vsel %vm2024, %v1907, -inf
        %2269 = vmax.xlane.f32.xlu0 %v2268
        %v2270 = vpop.xlane.xlu0 %2269
        %v2271 = vsel %vm2024, %v1910, -inf
        %2272 = vmax.xlane.f32.xlu0 %v2271
        %v2273 = vpop.xlane.xlu0 %2272
        %v2274 = vsel %vm2024, %v1912, -inf
        %2275 = vmax.xlane.f32.xlu0 %v2274
        %v2276 = vpop.xlane.xlu0 %2275
        %v2277 = vsel %vm2024, %v1915, -inf
        %2278 = vmax.xlane.f32.xlu0 %v2277
        %v2279 = vpop.xlane.xlu0 %2278
        %v2280 = vsel %vm2024, %v1917, -inf
        %2281 = vmax.xlane.f32.xlu0 %v2280
        %v2282 = vpop.xlane.xlu0 %2281
        %v2283 = vsel %vm2024, %v1920, -inf
        %2284 = vmax.xlane.f32.xlu0 %v2283
        %v2285 = vpop.xlane.xlu0 %2284
        %v2286 = vsel %vm2024, %v1922, -inf
        %2287 = vmax.xlane.f32.xlu0 %v2286
        %v2288 = vpop.xlane.xlu0 %2287
        %v2289 = vsel %vm2024, %v1925, -inf
        %2290 = vmax.xlane.f32.xlu0 %v2289
        %v2291 = vpop.xlane.xlu0 %2290
        %v2292 = vsel %vm2024, %v1927, -inf
        %2293 = vmax.xlane.f32.xlu0 %v2292
        %v2294 = vpop.xlane.xlu0 %2293
        %v2295 = vsel %vm2024, %v1930, -inf
        %2296 = vmax.xlane.f32.xlu0 %v2295
        %v2297 = vpop.xlane.xlu0 %2296
        %v2298 = vsel %vm2024, %v1932, -inf
        %2299 = vmax.xlane.f32.xlu0 %v2298
        %v2300 = vpop.xlane.xlu0 %2299
        %v2301 = vsel %vm2024, %v1935, -inf
        %2302 = vmax.xlane.f32.xlu0 %v2301
        %v2303 = vpop.xlane.xlu0 %2302
        %v2304 = vsel %vm2024, %v1937, -inf
        %2305 = vmax.xlane.f32.xlu0 %v2304
        %v2306 = vpop.xlane.xlu0 %2305
        %v2307 = vsel %vm2024, %v1940, -inf
        %2308 = vmax.xlane.f32.xlu0 %v2307
        %v2309 = vpop.xlane.xlu0 %2308
        %v2310 = vsel %vm2024, %v1942, -inf
        %2311 = vmax.xlane.f32.xlu0 %v2310
        %v2312 = vpop.xlane.xlu0 %2311
        %v2313 = vsel %vm2024, %v1945, -inf
        %2314 = vmax.xlane.f32.xlu0 %v2313
        %v2315 = vpop.xlane.xlu0 %2314
        %v2316 = vsel %vm2024, %v1947, -inf
        %2317 = vmax.xlane.f32.xlu0 %v2316
        %v2318 = vpop.xlane.xlu0 %2317
        %v2319 = vsel %vm2024, %v1950, -inf
        %2320 = vmax.xlane.f32.xlu0 %v2319
        %v2321 = vpop.xlane.xlu0 %2320
        %v2322 = vsel %vm2024, %v1952, -inf
        %2323 = vmax.xlane.f32.xlu0 %v2322
        %v2324 = vpop.xlane.xlu0 %2323
        %v2325 = vsel %vm2024, %v1955, -inf
        %2326 = vmax.xlane.f32.xlu0 %v2325
        %v2327 = vpop.xlane.xlu0 %2326
        %v2328 = vsel %vm2024, %v1957, -inf
        %2329 = vmax.xlane.f32.xlu0 %v2328
        %v2330 = vpop.xlane.xlu0 %2329
        %v2331 = vsel %vm2024, %v1960, -inf
        %2332 = vmax.xlane.f32.xlu0 %v2331
        %v2333 = vpop.xlane.xlu0 %2332
        %v2334 = vsel %vm2024, %v1962, -inf
        %2335 = vmax.xlane.f32.xlu0 %v2334
        %v2336 = vpop.xlane.xlu0 %2335
        %v2337 = vsel %vm2024, %v1965, -inf
        %2338 = vmax.xlane.f32.xlu0 %v2337
        %v2339 = vpop.xlane.xlu0 %2338
        %v2340 = vsel %vm2024, %v1967, -inf
        %2341 = vmax.xlane.f32.xlu0 %v2340
        %v2342 = vpop.xlane.xlu0 %2341
        %v2343 = vsel %vm2024, %v1970, -inf
        %2344 = vmax.xlane.f32.xlu0 %v2343
        %v2345 = vpop.xlane.xlu0 %2344
        %v2346 = vsel %vm2024, %v1972, -inf
        %2347 = vmax.xlane.f32.xlu0 %v2346
        %v2348 = vpop.xlane.xlu0 %2347
        %v2349 = vsel %vm2024, %v1975, -inf
        %2350 = vmax.xlane.f32.xlu0 %v2349
        %v2351 = vpop.xlane.xlu0 %2350
        %v2352 = vsel %vm2024, %v1977, -inf
        %2353 = vmax.xlane.f32.xlu0 %v2352
        %v2354 = vpop.xlane.xlu0 %2353
        %v2355 = vsel %vm2024, %v1980, -inf
        %2356 = vmax.xlane.f32.xlu0 %v2355
        %v2357 = vpop.xlane.xlu0 %2356
        %v2358 = vsel %vm2024, %v1982, -inf
        %2359 = vmax.xlane.f32.xlu0 %v2358
        %v2360 = vpop.xlane.xlu0 %2359
        %v2361 = vsel %vm2024, %v1985, -inf
        %2362 = vmax.xlane.f32.xlu0 %v2361
        %v2363 = vpop.xlane.xlu0 %2362
        %v2364 = vsel %vm2024, %v1987, -inf
        %2365 = vmax.xlane.f32.xlu0 %v2364
        %v2366 = vpop.xlane.xlu0 %2365
        %v2367 = vsel %vm2024, %v1990, -inf
        %2368 = vmax.xlane.f32.xlu0 %v2367
        %v2369 = vpop.xlane.xlu0 %2368
        %v2370 = vsel %vm2024, %v1992, -inf
        %2371 = vmax.xlane.f32.xlu0 %v2370
        %v2372 = vpop.xlane.xlu0 %2371
        %v2373 = vsel %vm2024, %v1995, -inf
        %2374 = vmax.xlane.f32.xlu0 %v2373
        %v2375 = vpop.xlane.xlu0 %2374
        %v2376 = vsel %vm2024, %v1997, -inf
        %2377 = vmax.xlane.f32.xlu0 %v2376
        %v2378 = vpop.xlane.xlu0 %2377
        %v2379 = vsel %vm2024, %v2000, -inf
        %2380 = vmax.xlane.f32.xlu0 %v2379
        %v2381 = vpop.xlane.xlu0 %2380
        %v2382 = vsel %vm2024, %v2002, -inf
        %2383 = vmax.xlane.f32.xlu0 %v2382
        %v2384 = vpop.xlane.xlu0 %2383
        %v2385 = vsel %vm2024, %v2005, -inf
        %2386 = vmax.xlane.f32.xlu0 %v2385
        %v2387 = vpop.xlane.xlu0 %2386
        %v2388 = vsel %vm2024, %v2007, -inf
        %2389 = vmax.xlane.f32.xlu0 %v2388
        %v2390 = vpop.xlane.xlu0 %2389
        %v2391 = vsel %vm2024, %v2010, -inf
        %2392 = vmax.xlane.f32.xlu0 %v2391
        %v2393 = vpop.xlane.xlu0 %2392
        %v2394 = vsel %vm2024, %v2012, -inf
        %2395 = vmax.xlane.f32.xlu0 %v2394
        %v2396 = vpop.xlane.xlu0 %2395
        %v2397 = vsel %vm2024, %v2015, -inf
        %2398 = vmax.xlane.f32.xlu0 %v2397
        %v2399 = vpop.xlane.xlu0 %2398
        %v2400 = vsel %vm2024, %v2017, -inf
        %2401 = vmax.xlane.f32.xlu0 %v2400
        %v2402 = vpop.xlane.xlu0 %2401
        %v2403 = vsel %vm2024, %v2020, -inf
        %2404 = vmax.xlane.f32.xlu0 %v2403
        %v2405 = vpop.xlane.xlu0 %2404
        %v2406 = vsel %vm2024, %v2022, -inf
        %2407 = vmax.xlane.f32.xlu0 %v2406
        %v2408 = vpop.xlane.xlu0 %2407
        %v2409 = vsub.f32 %v1705, %v2027
        %v2410 = vsub.f32 %v1707, %v2030
        %v2411 = vsub.f32 %v1710, %v2033
        %v2412 = vsub.f32 %v1712, %v2036
        %v2413 = vsub.f32 %v1715, %v2039
        %v2414 = vsub.f32 %v1717, %v2042
        %v2415 = vsub.f32 %v1720, %v2045
        %v2416 = vsub.f32 %v1722, %v2048
        %v2417 = vsub.f32 %v1725, %v2051
        %v2418 = vsub.f32 %v1727, %v2054
        %v2419 = vsub.f32 %v1730, %v2057
        %v2420 = vsub.f32 %v1732, %v2060
        %v2421 = vsub.f32 %v1735, %v2063
        %v2422 = vsub.f32 %v1737, %v2066
        %v2423 = vsub.f32 %v1740, %v2069
        %v2424 = vsub.f32 %v1742, %v2072
        %v2425 = vsub.f32 %v1745, %v2075
        %v2426 = vsub.f32 %v1747, %v2078
        %v2427 = vsub.f32 %v1750, %v2081
        %v2428 = vsub.f32 %v1752, %v2084
        %v2429 = vsub.f32 %v1755, %v2087
        %v2430 = vsub.f32 %v1757, %v2090
        %v2431 = vsub.f32 %v1760, %v2093
        %v2432 = vsub.f32 %v1762, %v2096
        %v2433 = vsub.f32 %v1765, %v2099
        %v2434 = vsub.f32 %v1767, %v2102
        %v2435 = vsub.f32 %v1770, %v2105
        %v2436 = vsub.f32 %v1772, %v2108
        %v2437 = vsub.f32 %v1775, %v2111
        %v2438 = vsub.f32 %v1777, %v2114
        %v2439 = vsub.f32 %v1780, %v2117
        %v2440 = vsub.f32 %v1782, %v2120
        %v2441 = vsub.f32 %v1785, %v2123
        %v2442 = vsub.f32 %v1787, %v2126
        %v2443 = vsub.f32 %v1790, %v2129
        %v2444 = vsub.f32 %v1792, %v2132
        %v2445 = vsub.f32 %v1795, %v2135
        %v2446 = vsub.f32 %v1797, %v2138
        %v2447 = vsub.f32 %v1800, %v2141
        %v2448 = vsub.f32 %v1802, %v2144
        %v2449 = vsub.f32 %v1805, %v2147
        %v2450 = vsub.f32 %v1807, %v2150
        %v2451 = vsub.f32 %v1810, %v2153
        %v2452 = vsub.f32 %v1812, %v2156
        %v2453 = vsub.f32 %v1815, %v2159
        %v2454 = vsub.f32 %v1817, %v2162
        %v2455 = vsub.f32 %v1820, %v2165
        %v2456 = vsub.f32 %v1822, %v2168
        %v2457 = vsub.f32 %v1825, %v2171
        %v2458 = vsub.f32 %v1827, %v2174
        %v2459 = vsub.f32 %v1830, %v2177
        %v2460 = vsub.f32 %v1832, %v2180
        %v2461 = vsub.f32 %v1835, %v2183
        %v2462 = vsub.f32 %v1837, %v2186
        %v2463 = vsub.f32 %v1840, %v2189
        %v2464 = vsub.f32 %v1842, %v2192
        %v2465 = vsub.f32 %v1845, %v2195
        %v2466 = vsub.f32 %v1847, %v2198
        %v2467 = vsub.f32 %v1850, %v2201
        %v2468 = vsub.f32 %v1852, %v2204
        %v2469 = vsub.f32 %v1855, %v2207
        %v2470 = vsub.f32 %v1857, %v2210
        %v2471 = vsub.f32 %v1860, %v2213
        %v2472 = vsub.f32 %v1862, %v2216
        %v2473 = vsub.f32 %v1865, %v2219
        %v2474 = vsub.f32 %v1867, %v2222
        %v2475 = vsub.f32 %v1870, %v2225
        %v2476 = vsub.f32 %v1872, %v2228
        %v2477 = vsub.f32 %v1875, %v2231
        %v2478 = vsub.f32 %v1877, %v2234
        %v2479 = vsub.f32 %v1880, %v2237
        %v2480 = vsub.f32 %v1882, %v2240
        %v2481 = vsub.f32 %v1885, %v2243
        %v2482 = vsub.f32 %v1887, %v2246
        %v2483 = vsub.f32 %v1890, %v2249
        %v2484 = vsub.f32 %v1892, %v2252
        %v2485 = vsub.f32 %v1895, %v2255
        %v2486 = vsub.f32 %v1897, %v2258
        %v2487 = vsub.f32 %v1900, %v2261
        %v2488 = vsub.f32 %v1902, %v2264
        %v2489 = vsub.f32 %v1905, %v2267
        %v2490 = vsub.f32 %v1907, %v2270
        %v2491 = vsub.f32 %v1910, %v2273
        %v2492 = vsub.f32 %v1912, %v2276
        %v2493 = vsub.f32 %v1915, %v2279
        %v2494 = vsub.f32 %v1917, %v2282
        %v2495 = vsub.f32 %v1920, %v2285
        %v2496 = vsub.f32 %v1922, %v2288
        %v2497 = vsub.f32 %v1925, %v2291
        %v2498 = vsub.f32 %v1927, %v2294
        %v2499 = vsub.f32 %v1930, %v2297
        %v2500 = vsub.f32 %v1932, %v2300
        %v2501 = vsub.f32 %v1935, %v2303
        %v2502 = vsub.f32 %v1937, %v2306
        %v2503 = vsub.f32 %v1940, %v2309
        %v2504 = vsub.f32 %v1942, %v2312
        %v2505 = vsub.f32 %v1945, %v2315
        %v2506 = vsub.f32 %v1947, %v2318
        %v2507 = vsub.f32 %v1950, %v2321
        %v2508 = vsub.f32 %v1952, %v2324
        %v2509 = vsub.f32 %v1955, %v2327
        %v2510 = vsub.f32 %v1957, %v2330
        %v2511 = vsub.f32 %v1960, %v2333
        %v2512 = vsub.f32 %v1962, %v2336
        %v2513 = vsub.f32 %v1965, %v2339
        %v2514 = vsub.f32 %v1967, %v2342
        %v2515 = vsub.f32 %v1970, %v2345
        %v2516 = vsub.f32 %v1972, %v2348
        %v2517 = vsub.f32 %v1975, %v2351
        %v2518 = vsub.f32 %v1977, %v2354
        %v2519 = vsub.f32 %v1980, %v2357
        %v2520 = vsub.f32 %v1982, %v2360
        %v2521 = vsub.f32 %v1985, %v2363
        %v2522 = vsub.f32 %v1987, %v2366
        %v2523 = vsub.f32 %v1990, %v2369
        %v2524 = vsub.f32 %v1992, %v2372
        %v2525 = vsub.f32 %v1995, %v2375
        %v2526 = vsub.f32 %v1997, %v2378
        %v2527 = vsub.f32 %v2000, %v2381
        %v2528 = vsub.f32 %v2002, %v2384
        %v2529 = vsub.f32 %v2005, %v2387
        %v2530 = vsub.f32 %v2007, %v2390
        %v2531 = vsub.f32 %v2010, %v2393
        %v2532 = vsub.f32 %v2012, %v2396
        %v2533 = vsub.f32 %v2015, %v2399
        %v2534 = vsub.f32 %v2017, %v2402
        %v2535 = vsub.f32 %v2020, %v2405
        %v2536 = vsub.f32 %v2022, %v2408
        %v2537 = vmul.f32 %v2409, 1.442695
        %v2538 = vpow.pop %v2537
        %v2539 = vmul.f32 %v2410, 1.442695
        %v2540 = vpow.pop %v2539
        %v2541 = vmul.f32 %v2411, 1.442695
        %v2542 = vpow.pop %v2541
        %v2543 = vmul.f32 %v2412, 1.442695
        %v2544 = vpow.pop %v2543
        %v2545 = vmul.f32 %v2413, 1.442695
        %v2546 = vpow.pop %v2545
        %v2547 = vmul.f32 %v2414, 1.442695
        %v2548 = vpow.pop %v2547
        %v2549 = vmul.f32 %v2415, 1.442695
        %v2550 = vpow.pop %v2549
        %v2551 = vmul.f32 %v2416, 1.442695
        %v2552 = vpow.pop %v2551
        %v2553 = vmul.f32 %v2417, 1.442695
        %v2554 = vpow.pop %v2553
        %v2555 = vmul.f32 %v2418, 1.442695
        %v2556 = vpow.pop %v2555
        %v2557 = vmul.f32 %v2419, 1.442695
        %v2558 = vpow.pop %v2557
        %v2559 = vmul.f32 %v2420, 1.442695
        %v2560 = vpow.pop %v2559
        %v2561 = vmul.f32 %v2421, 1.442695
        %v2562 = vpow.pop %v2561
        %v2563 = vmul.f32 %v2422, 1.442695
        %v2564 = vpow.pop %v2563
        %v2565 = vmul.f32 %v2423, 1.442695
        %v2566 = vpow.pop %v2565
        %v2567 = vmul.f32 %v2424, 1.442695
        %v2568 = vpow.pop %v2567
        %v2569 = vmul.f32 %v2425, 1.442695
        %v2570 = vpow.pop %v2569
        %v2571 = vmul.f32 %v2426, 1.442695
        %v2572 = vpow.pop %v2571
        %v2573 = vmul.f32 %v2427, 1.442695
        %v2574 = vpow.pop %v2573
        %v2575 = vmul.f32 %v2428, 1.442695
        %v2576 = vpow.pop %v2575
        %v2577 = vmul.f32 %v2429, 1.442695
        %v2578 = vpow.pop %v2577
        %v2579 = vmul.f32 %v2430, 1.442695
        %v2580 = vpow.pop %v2579
        %v2581 = vmul.f32 %v2431, 1.442695
        %v2582 = vpow.pop %v2581
        %v2583 = vmul.f32 %v2432, 1.442695
        %v2584 = vpow.pop %v2583
        %v2585 = vmul.f32 %v2433, 1.442695
        %v2586 = vpow.pop %v2585
        %v2587 = vmul.f32 %v2434, 1.442695
        %v2588 = vpow.pop %v2587
        %v2589 = vmul.f32 %v2435, 1.442695
        %v2590 = vpow.pop %v2589
        %v2591 = vmul.f32 %v2436, 1.442695
        %v2592 = vpow.pop %v2591
        %v2593 = vmul.f32 %v2437, 1.442695
        %v2594 = vpow.pop %v2593
        %v2595 = vmul.f32 %v2438, 1.442695
        %v2596 = vpow.pop %v2595
        %v2597 = vmul.f32 %v2439, 1.442695
        %v2598 = vpow.pop %v2597
        %v2599 = vmul.f32 %v2440, 1.442695
        %v2600 = vpow.pop %v2599
        %v2601 = vmul.f32 %v2441, 1.442695
        %v2602 = vpow.pop %v2601
        %v2603 = vmul.f32 %v2442, 1.442695
        %v2604 = vpow.pop %v2603
        %v2605 = vmul.f32 %v2443, 1.442695
        %v2606 = vpow.pop %v2605
        %v2607 = vmul.f32 %v2444, 1.442695
        %v2608 = vpow.pop %v2607
        %v2609 = vmul.f32 %v2445, 1.442695
        %v2610 = vpow.pop %v2609
        %v2611 = vmul.f32 %v2446, 1.442695
        %v2612 = vpow.pop %v2611
        %v2613 = vmul.f32 %v2447, 1.442695
        %v2614 = vpow.pop %v2613
        %v2615 = vmul.f32 %v2448, 1.442695
        %v2616 = vpow.pop %v2615
        %v2617 = vmul.f32 %v2449, 1.442695
        %v2618 = vpow.pop %v2617
        %v2619 = vmul.f32 %v2450, 1.442695
        %v2620 = vpow.pop %v2619
        %v2621 = vmul.f32 %v2451, 1.442695
        %v2622 = vpow.pop %v2621
        %v2623 = vmul.f32 %v2452, 1.442695
        %v2624 = vpow.pop %v2623
        %v2625 = vmul.f32 %v2453, 1.442695
        %v2626 = vpow.pop %v2625
        %v2627 = vmul.f32 %v2454, 1.442695
        %v2628 = vpow.pop %v2627
        %v2629 = vmul.f32 %v2455, 1.442695
        %v2630 = vpow.pop %v2629
        %v2631 = vmul.f32 %v2456, 1.442695
        %v2632 = vpow.pop %v2631
        %v2633 = vmul.f32 %v2457, 1.442695
        %v2634 = vpow.pop %v2633
        %v2635 = vmul.f32 %v2458, 1.442695
        %v2636 = vpow.pop %v2635
        %v2637 = vmul.f32 %v2459, 1.442695
        %v2638 = vpow.pop %v2637
        %v2639 = vmul.f32 %v2460, 1.442695
        %v2640 = vpow.pop %v2639
        %v2641 = vmul.f32 %v2461, 1.442695
        %v2642 = vpow.pop %v2641
        %v2643 = vmul.f32 %v2462, 1.442695
        %v2644 = vpow.pop %v2643
        %v2645 = vmul.f32 %v2463, 1.442695
        %v2646 = vpow.pop %v2645
        %v2647 = vmul.f32 %v2464, 1.442695
        %v2648 = vpow.pop %v2647
        %v2649 = vmul.f32 %v2465, 1.442695
        %v2650 = vpow.pop %v2649
        %v2651 = vmul.f32 %v2466, 1.442695
        %v2652 = vpow.pop %v2651
        %v2653 = vmul.f32 %v2467, 1.442695
        %v2654 = vpow.pop %v2653
        %v2655 = vmul.f32 %v2468, 1.442695
        %v2656 = vpow.pop %v2655
        %v2657 = vmul.f32 %v2469, 1.442695
        %v2658 = vpow.pop %v2657
        %v2659 = vmul.f32 %v2470, 1.442695
        %v2660 = vpow.pop %v2659
        %v2661 = vmul.f32 %v2471, 1.442695
        %v2662 = vpow.pop %v2661
        %v2663 = vmul.f32 %v2472, 1.442695
        %v2664 = vpow.pop %v2663
        %v2665 = vmul.f32 %v2473, 1.442695
        %v2666 = vpow.pop %v2665
        %v2667 = vmul.f32 %v2474, 1.442695
        %v2668 = vpow.pop %v2667
        %v2669 = vmul.f32 %v2475, 1.442695
        %v2670 = vpow.pop %v2669
        %v2671 = vmul.f32 %v2476, 1.442695
        %v2672 = vpow.pop %v2671
        %v2673 = vmul.f32 %v2477, 1.442695
        %v2674 = vpow.pop %v2673
        %v2675 = vmul.f32 %v2478, 1.442695
        %v2676 = vpow.pop %v2675
        %v2677 = vmul.f32 %v2479, 1.442695
        %v2678 = vpow.pop %v2677
        %v2679 = vmul.f32 %v2480, 1.442695
        %v2680 = vpow.pop %v2679
        %v2681 = vmul.f32 %v2481, 1.442695
        %v2682 = vpow.pop %v2681
        %v2683 = vmul.f32 %v2482, 1.442695
        %v2684 = vpow.pop %v2683
        %v2685 = vmul.f32 %v2483, 1.442695
        %v2686 = vpow.pop %v2685
        %v2687 = vmul.f32 %v2484, 1.442695
        %v2688 = vpow.pop %v2687
        %v2689 = vmul.f32 %v2485, 1.442695
        %v2690 = vpow.pop %v2689
        %v2691 = vmul.f32 %v2486, 1.442695
        %v2692 = vpow.pop %v2691
        %v2693 = vmul.f32 %v2487, 1.442695
        %v2694 = vpow.pop %v2693
        %v2695 = vmul.f32 %v2488, 1.442695
        %v2696 = vpow.pop %v2695
        %v2697 = vmul.f32 %v2489, 1.442695
        %v2698 = vpow.pop %v2697
        %v2699 = vmul.f32 %v2490, 1.442695
        %v2700 = vpow.pop %v2699
        %v2701 = vmul.f32 %v2491, 1.442695
        %v2702 = vpow.pop %v2701
        %v2703 = vmul.f32 %v2492, 1.442695
        %v2704 = vpow.pop %v2703
        %v2705 = vmul.f32 %v2493, 1.442695
        %v2706 = vpow.pop %v2705
        %v2707 = vmul.f32 %v2494, 1.442695
        %v2708 = vpow.pop %v2707
        %v2709 = vmul.f32 %v2495, 1.442695
        %v2710 = vpow.pop %v2709
        %v2711 = vmul.f32 %v2496, 1.442695
        %v2712 = vpow.pop %v2711
        %v2713 = vmul.f32 %v2497, 1.442695
        %v2714 = vpow.pop %v2713
        %v2715 = vmul.f32 %v2498, 1.442695
        %v2716 = vpow.pop %v2715
        %v2717 = vmul.f32 %v2499, 1.442695
        %v2718 = vpow.pop %v2717
        %v2719 = vmul.f32 %v2500, 1.442695
        %v2720 = vpow.pop %v2719
        %v2721 = vmul.f32 %v2501, 1.442695
        %v2722 = vpow.pop %v2721
        %v2723 = vmul.f32 %v2502, 1.442695
        %v2724 = vpow.pop %v2723
        %v2725 = vmul.f32 %v2503, 1.442695
        %v2726 = vpow.pop %v2725
        %v2727 = vmul.f32 %v2504, 1.442695
        %v2728 = vpow.pop %v2727
        %v2729 = vmul.f32 %v2505, 1.442695
        %v2730 = vpow.pop %v2729
        %v2731 = vmul.f32 %v2506, 1.442695
        %v2732 = vpow.pop %v2731
        %v2733 = vmul.f32 %v2507, 1.442695
        %v2734 = vpow.pop %v2733
        %v2735 = vmul.f32 %v2508, 1.442695
        %v2736 = vpow.pop %v2735
        %v2737 = vmul.f32 %v2509, 1.442695
        %v2738 = vpow.pop %v2737
        %v2739 = vmul.f32 %v2510, 1.442695
        %v2740 = vpow.pop %v2739
        %v2741 = vmul.f32 %v2511, 1.442695
        %v2742 = vpow.pop %v2741
        %v2743 = vmul.f32 %v2512, 1.442695
        %v2744 = vpow.pop %v2743
        %v2745 = vmul.f32 %v2513, 1.442695
        %v2746 = vpow.pop %v2745
        %v2747 = vmul.f32 %v2514, 1.442695
        %v2748 = vpow.pop %v2747
        %v2749 = vmul.f32 %v2515, 1.442695
        %v2750 = vpow.pop %v2749
        %v2751 = vmul.f32 %v2516, 1.442695
        %v2752 = vpow.pop %v2751
        %v2753 = vmul.f32 %v2517, 1.442695
        %v2754 = vpow.pop %v2753
        %v2755 = vmul.f32 %v2518, 1.442695
        %v2756 = vpow.pop %v2755
        %v2757 = vmul.f32 %v2519, 1.442695
        %v2758 = vpow.pop %v2757
        %v2759 = vmul.f32 %v2520, 1.442695
        %v2760 = vpow.pop %v2759
        %v2761 = vmul.f32 %v2521, 1.442695
        %v2762 = vpow.pop %v2761
        %v2763 = vmul.f32 %v2522, 1.442695
        %v2764 = vpow.pop %v2763
        %v2765 = vmul.f32 %v2523, 1.442695
        %v2766 = vpow.pop %v2765
        %v2767 = vmul.f32 %v2524, 1.442695
        %v2768 = vpow.pop %v2767
        %v2769 = vmul.f32 %v2525, 1.442695
        %v2770 = vpow.pop %v2769
        %v2771 = vmul.f32 %v2526, 1.442695
        %v2772 = vpow.pop %v2771
        %v2773 = vmul.f32 %v2527, 1.442695
        %v2774 = vpow.pop %v2773
        %v2775 = vmul.f32 %v2528, 1.442695
        %v2776 = vpow.pop %v2775
        %v2777 = vmul.f32 %v2529, 1.442695
        %v2778 = vpow.pop %v2777
        %v2779 = vmul.f32 %v2530, 1.442695
        %v2780 = vpow.pop %v2779
        %v2781 = vmul.f32 %v2531, 1.442695
        %v2782 = vpow.pop %v2781
        %v2783 = vmul.f32 %v2532, 1.442695
        %v2784 = vpow.pop %v2783
        %v2785 = vmul.f32 %v2533, 1.442695
        %v2786 = vpow.pop %v2785
        %v2787 = vmul.f32 %v2534, 1.442695
        %v2788 = vpow.pop %v2787
        %v2789 = vmul.f32 %v2535, 1.442695
        %v2790 = vpow.pop %v2789
        %v2791 = vmul.f32 %v2536, 1.442695
        %v2792 = vpow.pop %v2791
        %v2793 = vsel %vm2024, %v2538, 0.0
        %2794 = vadd.xlane.f32.xlu0 %v2793
        %v2795 = vpop.xlane.xlu0 %2794
        %v2796 = vsel %vm2024, %v2540, 0.0
        %2797 = vadd.xlane.f32.xlu0 %v2796
        %v2798 = vpop.xlane.xlu0 %2797
        %v2799 = vsel %vm2024, %v2542, 0.0
        %2800 = vadd.xlane.f32.xlu0 %v2799
        %v2801 = vpop.xlane.xlu0 %2800
        %v2802 = vsel %vm2024, %v2544, 0.0
        %2803 = vadd.xlane.f32.xlu0 %v2802
        %v2804 = vpop.xlane.xlu0 %2803
        %v2805 = vsel %vm2024, %v2546, 0.0
        %2806 = vadd.xlane.f32.xlu0 %v2805
        %v2807 = vpop.xlane.xlu0 %2806
        %v2808 = vsel %vm2024, %v2548, 0.0
        %2809 = vadd.xlane.f32.xlu0 %v2808
        %v2810 = vpop.xlane.xlu0 %2809
        %v2811 = vsel %vm2024, %v2550, 0.0
        %2812 = vadd.xlane.f32.xlu0 %v2811
        %v2813 = vpop.xlane.xlu0 %2812
        %v2814 = vsel %vm2024, %v2552, 0.0
        %2815 = vadd.xlane.f32.xlu0 %v2814
        %v2816 = vpop.xlane.xlu0 %2815
        %v2817 = vsel %vm2024, %v2554, 0.0
        %2818 = vadd.xlane.f32.xlu0 %v2817
        %v2819 = vpop.xlane.xlu0 %2818
        %v2820 = vsel %vm2024, %v2556, 0.0
        %2821 = vadd.xlane.f32.xlu0 %v2820
        %v2822 = vpop.xlane.xlu0 %2821
        %v2823 = vsel %vm2024, %v2558, 0.0
        %2824 = vadd.xlane.f32.xlu0 %v2823
        %v2825 = vpop.xlane.xlu0 %2824
        %v2826 = vsel %vm2024, %v2560, 0.0
        %2827 = vadd.xlane.f32.xlu0 %v2826
        %v2828 = vpop.xlane.xlu0 %2827
        %v2829 = vsel %vm2024, %v2562, 0.0
        %2830 = vadd.xlane.f32.xlu0 %v2829
        %v2831 = vpop.xlane.xlu0 %2830
        %v2832 = vsel %vm2024, %v2564, 0.0
        %2833 = vadd.xlane.f32.xlu0 %v2832
        %v2834 = vpop.xlane.xlu0 %2833
        %v2835 = vsel %vm2024, %v2566, 0.0
        %2836 = vadd.xlane.f32.xlu0 %v2835
        %v2837 = vpop.xlane.xlu0 %2836
        %v2838 = vsel %vm2024, %v2568, 0.0
        %2839 = vadd.xlane.f32.xlu0 %v2838
        %v2840 = vpop.xlane.xlu0 %2839
        %v2841 = vsel %vm2024, %v2570, 0.0
        %2842 = vadd.xlane.f32.xlu0 %v2841
        %v2843 = vpop.xlane.xlu0 %2842
        %v2844 = vsel %vm2024, %v2572, 0.0
        %2845 = vadd.xlane.f32.xlu0 %v2844
        %v2846 = vpop.xlane.xlu0 %2845
        %v2847 = vsel %vm2024, %v2574, 0.0
        %2848 = vadd.xlane.f32.xlu0 %v2847
        %v2849 = vpop.xlane.xlu0 %2848
        %v2850 = vsel %vm2024, %v2576, 0.0
        %2851 = vadd.xlane.f32.xlu0 %v2850
        %v2852 = vpop.xlane.xlu0 %2851
        %v2853 = vsel %vm2024, %v2578, 0.0
        %2854 = vadd.xlane.f32.xlu0 %v2853
        %v2855 = vpop.xlane.xlu0 %2854
        %v2856 = vsel %vm2024, %v2580, 0.0
        %2857 = vadd.xlane.f32.xlu0 %v2856
        %v2858 = vpop.xlane.xlu0 %2857
        %v2859 = vsel %vm2024, %v2582, 0.0
        %2860 = vadd.xlane.f32.xlu0 %v2859
        %v2861 = vpop.xlane.xlu0 %2860
        %v2862 = vsel %vm2024, %v2584, 0.0
        %2863 = vadd.xlane.f32.xlu0 %v2862
        %v2864 = vpop.xlane.xlu0 %2863
        %v2865 = vsel %vm2024, %v2586, 0.0
        %2866 = vadd.xlane.f32.xlu0 %v2865
        %v2867 = vpop.xlane.xlu0 %2866
        %v2868 = vsel %vm2024, %v2588, 0.0
        %2869 = vadd.xlane.f32.xlu0 %v2868
        %v2870 = vpop.xlane.xlu0 %2869
        %v2871 = vsel %vm2024, %v2590, 0.0
        %2872 = vadd.xlane.f32.xlu0 %v2871
        %v2873 = vpop.xlane.xlu0 %2872
        %v2874 = vsel %vm2024, %v2592, 0.0
        %2875 = vadd.xlane.f32.xlu0 %v2874
        %v2876 = vpop.xlane.xlu0 %2875
        %v2877 = vsel %vm2024, %v2594, 0.0
        %2878 = vadd.xlane.f32.xlu0 %v2877
        %v2879 = vpop.xlane.xlu0 %2878
        %v2880 = vsel %vm2024, %v2596, 0.0
        %2881 = vadd.xlane.f32.xlu0 %v2880
        %v2882 = vpop.xlane.xlu0 %2881
        %v2883 = vsel %vm2024, %v2598, 0.0
        %2884 = vadd.xlane.f32.xlu0 %v2883
        %v2885 = vpop.xlane.xlu0 %2884
        %v2886 = vsel %vm2024, %v2600, 0.0
        %2887 = vadd.xlane.f32.xlu0 %v2886
        %v2888 = vpop.xlane.xlu0 %2887
        %v2889 = vsel %vm2024, %v2602, 0.0
        %2890 = vadd.xlane.f32.xlu0 %v2889
        %v2891 = vpop.xlane.xlu0 %2890
        %v2892 = vsel %vm2024, %v2604, 0.0
        %2893 = vadd.xlane.f32.xlu0 %v2892
        %v2894 = vpop.xlane.xlu0 %2893
        %v2895 = vsel %vm2024, %v2606, 0.0
        %2896 = vadd.xlane.f32.xlu0 %v2895
        %v2897 = vpop.xlane.xlu0 %2896
        %v2898 = vsel %vm2024, %v2608, 0.0
        %2899 = vadd.xlane.f32.xlu0 %v2898
        %v2900 = vpop.xlane.xlu0 %2899
        %v2901 = vsel %vm2024, %v2610, 0.0
        %2902 = vadd.xlane.f32.xlu0 %v2901
        %v2903 = vpop.xlane.xlu0 %2902
        %v2904 = vsel %vm2024, %v2612, 0.0
        %2905 = vadd.xlane.f32.xlu0 %v2904
        %v2906 = vpop.xlane.xlu0 %2905
        %v2907 = vsel %vm2024, %v2614, 0.0
        %2908 = vadd.xlane.f32.xlu0 %v2907
        %v2909 = vpop.xlane.xlu0 %2908
        %v2910 = vsel %vm2024, %v2616, 0.0
        %2911 = vadd.xlane.f32.xlu0 %v2910
        %v2912 = vpop.xlane.xlu0 %2911
        %v2913 = vsel %vm2024, %v2618, 0.0
        %2914 = vadd.xlane.f32.xlu0 %v2913
        %v2915 = vpop.xlane.xlu0 %2914
        %v2916 = vsel %vm2024, %v2620, 0.0
        %2917 = vadd.xlane.f32.xlu0 %v2916
        %v2918 = vpop.xlane.xlu0 %2917
        %v2919 = vsel %vm2024, %v2622, 0.0
        %2920 = vadd.xlane.f32.xlu0 %v2919
        %v2921 = vpop.xlane.xlu0 %2920
        %v2922 = vsel %vm2024, %v2624, 0.0
        %2923 = vadd.xlane.f32.xlu0 %v2922
        %v2924 = vpop.xlane.xlu0 %2923
        %v2925 = vsel %vm2024, %v2626, 0.0
        %2926 = vadd.xlane.f32.xlu0 %v2925
        %v2927 = vpop.xlane.xlu0 %2926
        %v2928 = vsel %vm2024, %v2628, 0.0
        %2929 = vadd.xlane.f32.xlu0 %v2928
        %v2930 = vpop.xlane.xlu0 %2929
        %v2931 = vsel %vm2024, %v2630, 0.0
        %2932 = vadd.xlane.f32.xlu0 %v2931
        %v2933 = vpop.xlane.xlu0 %2932
        %v2934 = vsel %vm2024, %v2632, 0.0
        %2935 = vadd.xlane.f32.xlu0 %v2934
        %v2936 = vpop.xlane.xlu0 %2935
        %v2937 = vsel %vm2024, %v2634, 0.0
        %2938 = vadd.xlane.f32.xlu0 %v2937
        %v2939 = vpop.xlane.xlu0 %2938
        %v2940 = vsel %vm2024, %v2636, 0.0
        %2941 = vadd.xlane.f32.xlu0 %v2940
        %v2942 = vpop.xlane.xlu0 %2941
        %v2943 = vsel %vm2024, %v2638, 0.0
        %2944 = vadd.xlane.f32.xlu0 %v2943
        %v2945 = vpop.xlane.xlu0 %2944
        %v2946 = vsel %vm2024, %v2640, 0.0
        %2947 = vadd.xlane.f32.xlu0 %v2946
        %v2948 = vpop.xlane.xlu0 %2947
        %v2949 = vsel %vm2024, %v2642, 0.0
        %2950 = vadd.xlane.f32.xlu0 %v2949
        %v2951 = vpop.xlane.xlu0 %2950
        %v2952 = vsel %vm2024, %v2644, 0.0
        %2953 = vadd.xlane.f32.xlu0 %v2952
        %v2954 = vpop.xlane.xlu0 %2953
        %v2955 = vsel %vm2024, %v2646, 0.0
        %2956 = vadd.xlane.f32.xlu0 %v2955
        %v2957 = vpop.xlane.xlu0 %2956
        %v2958 = vsel %vm2024, %v2648, 0.0
        %2959 = vadd.xlane.f32.xlu0 %v2958
        %v2960 = vpop.xlane.xlu0 %2959
        %v2961 = vsel %vm2024, %v2650, 0.0
        %2962 = vadd.xlane.f32.xlu0 %v2961
        %v2963 = vpop.xlane.xlu0 %2962
        %v2964 = vsel %vm2024, %v2652, 0.0
        %2965 = vadd.xlane.f32.xlu0 %v2964
        %v2966 = vpop.xlane.xlu0 %2965
        %v2967 = vsel %vm2024, %v2654, 0.0
        %2968 = vadd.xlane.f32.xlu0 %v2967
        %v2969 = vpop.xlane.xlu0 %2968
        %v2970 = vsel %vm2024, %v2656, 0.0
        %2971 = vadd.xlane.f32.xlu0 %v2970
        %v2972 = vpop.xlane.xlu0 %2971
        %v2973 = vsel %vm2024, %v2658, 0.0
        %2974 = vadd.xlane.f32.xlu0 %v2973
        %v2975 = vpop.xlane.xlu0 %2974
        %v2976 = vsel %vm2024, %v2660, 0.0
        %2977 = vadd.xlane.f32.xlu0 %v2976
        %v2978 = vpop.xlane.xlu0 %2977
        %v2979 = vsel %vm2024, %v2662, 0.0
        %2980 = vadd.xlane.f32.xlu0 %v2979
        %v2981 = vpop.xlane.xlu0 %2980
        %v2982 = vsel %vm2024, %v2664, 0.0
        %2983 = vadd.xlane.f32.xlu0 %v2982
        %v2984 = vpop.xlane.xlu0 %2983
        %v2985 = vsel %vm2024, %v2666, 0.0
        %2986 = vadd.xlane.f32.xlu0 %v2985
        %v2987 = vpop.xlane.xlu0 %2986
        %v2988 = vsel %vm2024, %v2668, 0.0
        %2989 = vadd.xlane.f32.xlu0 %v2988
        %v2990 = vpop.xlane.xlu0 %2989
        %v2991 = vsel %vm2024, %v2670, 0.0
        %2992 = vadd.xlane.f32.xlu0 %v2991
        %v2993 = vpop.xlane.xlu0 %2992
        %v2994 = vsel %vm2024, %v2672, 0.0
        %2995 = vadd.xlane.f32.xlu0 %v2994
        %v2996 = vpop.xlane.xlu0 %2995
        %v2997 = vsel %vm2024, %v2674, 0.0
        %2998 = vadd.xlane.f32.xlu0 %v2997
        %v2999 = vpop.xlane.xlu0 %2998
        %v3000 = vsel %vm2024, %v2676, 0.0
        %3001 = vadd.xlane.f32.xlu0 %v3000
        %v3002 = vpop.xlane.xlu0 %3001
        %v3003 = vsel %vm2024, %v2678, 0.0
        %3004 = vadd.xlane.f32.xlu0 %v3003
        %v3005 = vpop.xlane.xlu0 %3004
        %v3006 = vsel %vm2024, %v2680, 0.0
        %3007 = vadd.xlane.f32.xlu0 %v3006
        %v3008 = vpop.xlane.xlu0 %3007
        %v3009 = vsel %vm2024, %v2682, 0.0
        %3010 = vadd.xlane.f32.xlu0 %v3009
        %v3011 = vpop.xlane.xlu0 %3010
        %v3012 = vsel %vm2024, %v2684, 0.0
        %3013 = vadd.xlane.f32.xlu0 %v3012
        %v3014 = vpop.xlane.xlu0 %3013
        %v3015 = vsel %vm2024, %v2686, 0.0
        %3016 = vadd.xlane.f32.xlu0 %v3015
        %v3017 = vpop.xlane.xlu0 %3016
        %v3018 = vsel %vm2024, %v2688, 0.0
        %3019 = vadd.xlane.f32.xlu0 %v3018
        %v3020 = vpop.xlane.xlu0 %3019
        %v3021 = vsel %vm2024, %v2690, 0.0
        %3022 = vadd.xlane.f32.xlu0 %v3021
        %v3023 = vpop.xlane.xlu0 %3022
        %v3024 = vsel %vm2024, %v2692, 0.0
        %3025 = vadd.xlane.f32.xlu0 %v3024
        %v3026 = vpop.xlane.xlu0 %3025
        %v3027 = vsel %vm2024, %v2694, 0.0
        %3028 = vadd.xlane.f32.xlu0 %v3027
        %v3029 = vpop.xlane.xlu0 %3028
        %v3030 = vsel %vm2024, %v2696, 0.0
        %3031 = vadd.xlane.f32.xlu0 %v3030
        %v3032 = vpop.xlane.xlu0 %3031
        %v3033 = vsel %vm2024, %v2698, 0.0
        %3034 = vadd.xlane.f32.xlu0 %v3033
        %v3035 = vpop.xlane.xlu0 %3034
        %v3036 = vsel %vm2024, %v2700, 0.0
        %3037 = vadd.xlane.f32.xlu0 %v3036
        %v3038 = vpop.xlane.xlu0 %3037
        %v3039 = vsel %vm2024, %v2702, 0.0
        %3040 = vadd.xlane.f32.xlu0 %v3039
        %v3041 = vpop.xlane.xlu0 %3040
        %v3042 = vsel %vm2024, %v2704, 0.0
        %3043 = vadd.xlane.f32.xlu0 %v3042
        %v3044 = vpop.xlane.xlu0 %3043
        %v3045 = vsel %vm2024, %v2706, 0.0
        %3046 = vadd.xlane.f32.xlu0 %v3045
        %v3047 = vpop.xlane.xlu0 %3046
        %v3048 = vsel %vm2024, %v2708, 0.0
        %3049 = vadd.xlane.f32.xlu0 %v3048
        %v3050 = vpop.xlane.xlu0 %3049
        %v3051 = vsel %vm2024, %v2710, 0.0
        %3052 = vadd.xlane.f32.xlu0 %v3051
        %v3053 = vpop.xlane.xlu0 %3052
        %v3054 = vsel %vm2024, %v2712, 0.0
        %3055 = vadd.xlane.f32.xlu0 %v3054
        %v3056 = vpop.xlane.xlu0 %3055
        %v3057 = vsel %vm2024, %v2714, 0.0
        %3058 = vadd.xlane.f32.xlu0 %v3057
        %v3059 = vpop.xlane.xlu0 %3058
        %v3060 = vsel %vm2024, %v2716, 0.0
        %3061 = vadd.xlane.f32.xlu0 %v3060
        %v3062 = vpop.xlane.xlu0 %3061
        %v3063 = vsel %vm2024, %v2718, 0.0
        %3064 = vadd.xlane.f32.xlu0 %v3063
        %v3065 = vpop.xlane.xlu0 %3064
        %v3066 = vsel %vm2024, %v2720, 0.0
        %3067 = vadd.xlane.f32.xlu0 %v3066
        %v3068 = vpop.xlane.xlu0 %3067
        %v3069 = vsel %vm2024, %v2722, 0.0
        %3070 = vadd.xlane.f32.xlu0 %v3069
        %v3071 = vpop.xlane.xlu0 %3070
        %v3072 = vsel %vm2024, %v2724, 0.0
        %3073 = vadd.xlane.f32.xlu0 %v3072
        %v3074 = vpop.xlane.xlu0 %3073
        %v3075 = vsel %vm2024, %v2726, 0.0
        %3076 = vadd.xlane.f32.xlu0 %v3075
        %v3077 = vpop.xlane.xlu0 %3076
        %v3078 = vsel %vm2024, %v2728, 0.0
        %3079 = vadd.xlane.f32.xlu0 %v3078
        %v3080 = vpop.xlane.xlu0 %3079
        %v3081 = vsel %vm2024, %v2730, 0.0
        %3082 = vadd.xlane.f32.xlu0 %v3081
        %v3083 = vpop.xlane.xlu0 %3082
        %v3084 = vsel %vm2024, %v2732, 0.0
        %3085 = vadd.xlane.f32.xlu0 %v3084
        %v3086 = vpop.xlane.xlu0 %3085
        %v3087 = vsel %vm2024, %v2734, 0.0
        %3088 = vadd.xlane.f32.xlu0 %v3087
        %v3089 = vpop.xlane.xlu0 %3088
        %v3090 = vsel %vm2024, %v2736, 0.0
        %3091 = vadd.xlane.f32.xlu0 %v3090
        %v3092 = vpop.xlane.xlu0 %3091
        %v3093 = vsel %vm2024, %v2738, 0.0
        %3094 = vadd.xlane.f32.xlu0 %v3093
        %v3095 = vpop.xlane.xlu0 %3094
        %v3096 = vsel %vm2024, %v2740, 0.0
        %3097 = vadd.xlane.f32.xlu0 %v3096
        %v3098 = vpop.xlane.xlu0 %3097
        %v3099 = vsel %vm2024, %v2742, 0.0
        %3100 = vadd.xlane.f32.xlu0 %v3099
        %v3101 = vpop.xlane.xlu0 %3100
        %v3102 = vsel %vm2024, %v2744, 0.0
        %3103 = vadd.xlane.f32.xlu0 %v3102
        %v3104 = vpop.xlane.xlu0 %3103
        %v3105 = vsel %vm2024, %v2746, 0.0
        %3106 = vadd.xlane.f32.xlu0 %v3105
        %v3107 = vpop.xlane.xlu0 %3106
        %v3108 = vsel %vm2024, %v2748, 0.0
        %3109 = vadd.xlane.f32.xlu0 %v3108
        %v3110 = vpop.xlane.xlu0 %3109
        %v3111 = vsel %vm2024, %v2750, 0.0
        %3112 = vadd.xlane.f32.xlu0 %v3111
        %v3113 = vpop.xlane.xlu0 %3112
        %v3114 = vsel %vm2024, %v2752, 0.0
        %3115 = vadd.xlane.f32.xlu0 %v3114
        %v3116 = vpop.xlane.xlu0 %3115
        %v3117 = vsel %vm2024, %v2754, 0.0
        %3118 = vadd.xlane.f32.xlu0 %v3117
        %v3119 = vpop.xlane.xlu0 %3118
        %v3120 = vsel %vm2024, %v2756, 0.0
        %3121 = vadd.xlane.f32.xlu0 %v3120
        %v3122 = vpop.xlane.xlu0 %3121
        %v3123 = vsel %vm2024, %v2758, 0.0
        %3124 = vadd.xlane.f32.xlu0 %v3123
        %v3125 = vpop.xlane.xlu0 %3124
        %v3126 = vsel %vm2024, %v2760, 0.0
        %3127 = vadd.xlane.f32.xlu0 %v3126
        %v3128 = vpop.xlane.xlu0 %3127
        %v3129 = vsel %vm2024, %v2762, 0.0
        %3130 = vadd.xlane.f32.xlu0 %v3129
        %v3131 = vpop.xlane.xlu0 %3130
        %v3132 = vsel %vm2024, %v2764, 0.0
        %3133 = vadd.xlane.f32.xlu0 %v3132
        %v3134 = vpop.xlane.xlu0 %3133
        %v3135 = vsel %vm2024, %v2766, 0.0
        %3136 = vadd.xlane.f32.xlu0 %v3135
        %v3137 = vpop.xlane.xlu0 %3136
        %v3138 = vsel %vm2024, %v2768, 0.0
        %3139 = vadd.xlane.f32.xlu0 %v3138
        %v3140 = vpop.xlane.xlu0 %3139
        %v3141 = vsel %vm2024, %v2770, 0.0
        %3142 = vadd.xlane.f32.xlu0 %v3141
        %v3143 = vpop.xlane.xlu0 %3142
        %v3144 = vsel %vm2024, %v2772, 0.0
        %3145 = vadd.xlane.f32.xlu0 %v3144
        %v3146 = vpop.xlane.xlu0 %3145
        %v3147 = vsel %vm2024, %v2774, 0.0
        %3148 = vadd.xlane.f32.xlu0 %v3147
        %v3149 = vpop.xlane.xlu0 %3148
        %v3150 = vsel %vm2024, %v2776, 0.0
        %3151 = vadd.xlane.f32.xlu0 %v3150
        %v3152 = vpop.xlane.xlu0 %3151
        %v3153 = vsel %vm2024, %v2778, 0.0
        %3154 = vadd.xlane.f32.xlu0 %v3153
        %v3155 = vpop.xlane.xlu0 %3154
        %v3156 = vsel %vm2024, %v2780, 0.0
        %3157 = vadd.xlane.f32.xlu0 %v3156
        %v3158 = vpop.xlane.xlu0 %3157
        %v3159 = vsel %vm2024, %v2782, 0.0
        %3160 = vadd.xlane.f32.xlu0 %v3159
        %v3161 = vpop.xlane.xlu0 %3160
        %v3162 = vsel %vm2024, %v2784, 0.0
        %3163 = vadd.xlane.f32.xlu0 %v3162
        %v3164 = vpop.xlane.xlu0 %3163
        %v3165 = vsel %vm2024, %v2786, 0.0
        %3166 = vadd.xlane.f32.xlu0 %v3165
        %v3167 = vpop.xlane.xlu0 %3166
        %v3168 = vsel %vm2024, %v2788, 0.0
        %3169 = vadd.xlane.f32.xlu0 %v3168
        %v3170 = vpop.xlane.xlu0 %3169
        %v3171 = vsel %vm2024, %v2790, 0.0
        %3172 = vadd.xlane.f32.xlu0 %v3171
        %v3173 = vpop.xlane.xlu0 %3172
        %v3174 = vsel %vm2024, %v2792, 0.0
        %3175 = vadd.xlane.f32.xlu0 %v3174
        %v3176 = vpop.xlane.xlu0 %3175
        %v3177 = vrcp.pop %v2795
        %v3178 = vmul.f32 %v2795, %v3177
        %v3179 = vsub.f32 1.0, %v3178
        %v3180 = vmul.f32 %v3177, %v3179
        %v3181 = vadd.f32 %v3177, %v3180
        %vm3182 = vweird.f32 %v2795
        %vm3183 = vweird.f32 %v3177
        %vm3184 = vmor %vm3182, %vm3183
        %v3185 = vsel %vm3184, %v3177, %v3181
        %v3186 = vand.u32 2147483647, %v2795
        %vm3187 = vcmp.eq.f32.partialorder %v3186, 8.507059e+37
        %v3188 = vand.u32 %v2795, 2147483648
        %v3189 = vor.u32 1.1754944e-38, %v3188
        %v3190 = vsel %vm3187, %v3189, %v3185
        %v3191 = vmul.f32 %v2538, %v3190
        %v3192 = vrcp.pop %v2798
        %v3193 = vmul.f32 %v2798, %v3192
        %v3194 = vsub.f32 1.0, %v3193
        %v3195 = vmul.f32 %v3192, %v3194
        %v3196 = vadd.f32 %v3192, %v3195
        %vm3197 = vweird.f32 %v2798
        %vm3198 = vweird.f32 %v3192
        %vm3199 = vmor %vm3197, %vm3198
        %v3200 = vsel %vm3199, %v3192, %v3196
        %v3201 = vand.u32 2147483647, %v2798
        %vm3202 = vcmp.eq.f32.partialorder %v3201, 8.507059e+37
        %v3203 = vand.u32 %v2798, 2147483648
        %v3204 = vor.u32 1.1754944e-38, %v3203
        %v3205 = vsel %vm3202, %v3204, %v3200
        %v3206 = vmul.f32 %v2540, %v3205
        %v3207 = vrcp.pop %v2801
        %v3208 = vmul.f32 %v2801, %v3207
        %v3209 = vsub.f32 1.0, %v3208
        %v3210 = vmul.f32 %v3207, %v3209
        %v3211 = vadd.f32 %v3207, %v3210
        %vm3212 = vweird.f32 %v2801
        %vm3213 = vweird.f32 %v3207
        %vm3214 = vmor %vm3212, %vm3213
        %v3215 = vsel %vm3214, %v3207, %v3211
        %v3216 = vand.u32 2147483647, %v2801
        %vm3217 = vcmp.eq.f32.partialorder %v3216, 8.507059e+37
        %v3218 = vand.u32 %v2801, 2147483648
        %v3219 = vor.u32 1.1754944e-38, %v3218
        %v3220 = vsel %vm3217, %v3219, %v3215
        %v3221 = vmul.f32 %v2542, %v3220
        %v3222 = vrcp.pop %v2804
        %v3223 = vmul.f32 %v2804, %v3222
        %v3224 = vsub.f32 1.0, %v3223
        %v3225 = vmul.f32 %v3222, %v3224
        %v3226 = vadd.f32 %v3222, %v3225
        %vm3227 = vweird.f32 %v2804
        %vm3228 = vweird.f32 %v3222
        %vm3229 = vmor %vm3227, %vm3228
        %v3230 = vsel %vm3229, %v3222, %v3226
        %v3231 = vand.u32 2147483647, %v2804
        %vm3232 = vcmp.eq.f32.partialorder %v3231, 8.507059e+37
        %v3233 = vand.u32 %v2804, 2147483648
        %v3234 = vor.u32 1.1754944e-38, %v3233
        %v3235 = vsel %vm3232, %v3234, %v3230
        %v3236 = vmul.f32 %v2544, %v3235
        %v3237 = vrcp.pop %v2807
        %v3238 = vmul.f32 %v2807, %v3237
        %v3239 = vsub.f32 1.0, %v3238
        %v3240 = vmul.f32 %v3237, %v3239
        %v3241 = vadd.f32 %v3237, %v3240
        %vm3242 = vweird.f32 %v2807
        %vm3243 = vweird.f32 %v3237
        %vm3244 = vmor %vm3242, %vm3243
        %v3245 = vsel %vm3244, %v3237, %v3241
        %v3246 = vand.u32 2147483647, %v2807
        %vm3247 = vcmp.eq.f32.partialorder %v3246, 8.507059e+37
        %v3248 = vand.u32 %v2807, 2147483648
        %v3249 = vor.u32 1.1754944e-38, %v3248
        %v3250 = vsel %vm3247, %v3249, %v3245
        %v3251 = vmul.f32 %v2546, %v3250
        %v3252 = vrcp.pop %v2810
        %v3253 = vmul.f32 %v2810, %v3252
        %v3254 = vsub.f32 1.0, %v3253
        %v3255 = vmul.f32 %v3252, %v3254
        %v3256 = vadd.f32 %v3252, %v3255
        %vm3257 = vweird.f32 %v2810
        %vm3258 = vweird.f32 %v3252
        %vm3259 = vmor %vm3257, %vm3258
        %v3260 = vsel %vm3259, %v3252, %v3256
        %v3261 = vand.u32 2147483647, %v2810
        %vm3262 = vcmp.eq.f32.partialorder %v3261, 8.507059e+37
        %v3263 = vand.u32 %v2810, 2147483648
        %v3264 = vor.u32 1.1754944e-38, %v3263
        %v3265 = vsel %vm3262, %v3264, %v3260
        %v3266 = vmul.f32 %v2548, %v3265
        %v3267 = vrcp.pop %v2813
        %v3268 = vmul.f32 %v2813, %v3267
        %v3269 = vsub.f32 1.0, %v3268
        %v3270 = vmul.f32 %v3267, %v3269
        %v3271 = vadd.f32 %v3267, %v3270
        %vm3272 = vweird.f32 %v2813
        %vm3273 = vweird.f32 %v3267
        %vm3274 = vmor %vm3272, %vm3273
        %v3275 = vsel %vm3274, %v3267, %v3271
        %v3276 = vand.u32 2147483647, %v2813
        %vm3277 = vcmp.eq.f32.partialorder %v3276, 8.507059e+37
        %v3278 = vand.u32 %v2813, 2147483648
        %v3279 = vor.u32 1.1754944e-38, %v3278
        %v3280 = vsel %vm3277, %v3279, %v3275
        %v3281 = vmul.f32 %v2550, %v3280
        %v3282 = vrcp.pop %v2816
        %v3283 = vmul.f32 %v2816, %v3282
        %v3284 = vsub.f32 1.0, %v3283
        %v3285 = vmul.f32 %v3282, %v3284
        %v3286 = vadd.f32 %v3282, %v3285
        %vm3287 = vweird.f32 %v2816
        %vm3288 = vweird.f32 %v3282
        %vm3289 = vmor %vm3287, %vm3288
        %v3290 = vsel %vm3289, %v3282, %v3286
        %v3291 = vand.u32 2147483647, %v2816
        %vm3292 = vcmp.eq.f32.partialorder %v3291, 8.507059e+37
        %v3293 = vand.u32 %v2816, 2147483648
        %v3294 = vor.u32 1.1754944e-38, %v3293
        %v3295 = vsel %vm3292, %v3294, %v3290
        %v3296 = vmul.f32 %v2552, %v3295
        %v3297 = vrcp.pop %v2819
        %v3298 = vmul.f32 %v2819, %v3297
        %v3299 = vsub.f32 1.0, %v3298
        %v3300 = vmul.f32 %v3297, %v3299
        %v3301 = vadd.f32 %v3297, %v3300
        %vm3302 = vweird.f32 %v2819
        %vm3303 = vweird.f32 %v3297
        %vm3304 = vmor %vm3302, %vm3303
        %v3305 = vsel %vm3304, %v3297, %v3301
        %v3306 = vand.u32 2147483647, %v2819
        %vm3307 = vcmp.eq.f32.partialorder %v3306, 8.507059e+37
        %v3308 = vand.u32 %v2819, 2147483648
        %v3309 = vor.u32 1.1754944e-38, %v3308
        %v3310 = vsel %vm3307, %v3309, %v3305
        %v3311 = vmul.f32 %v2554, %v3310
        %v3312 = vrcp.pop %v2822
        %v3313 = vmul.f32 %v2822, %v3312
        %v3314 = vsub.f32 1.0, %v3313
        %v3315 = vmul.f32 %v3312, %v3314
        %v3316 = vadd.f32 %v3312, %v3315
        %vm3317 = vweird.f32 %v2822
        %vm3318 = vweird.f32 %v3312
        %vm3319 = vmor %vm3317, %vm3318
        %v3320 = vsel %vm3319, %v3312, %v3316
        %v3321 = vand.u32 2147483647, %v2822
        %vm3322 = vcmp.eq.f32.partialorder %v3321, 8.507059e+37
        %v3323 = vand.u32 %v2822, 2147483648
        %v3324 = vor.u32 1.1754944e-38, %v3323
        %v3325 = vsel %vm3322, %v3324, %v3320
        %v3326 = vmul.f32 %v2556, %v3325
        %v3327 = vrcp.pop %v2825
        %v3328 = vmul.f32 %v2825, %v3327
        %v3329 = vsub.f32 1.0, %v3328
        %v3330 = vmul.f32 %v3327, %v3329
        %v3331 = vadd.f32 %v3327, %v3330
        %vm3332 = vweird.f32 %v2825
        %vm3333 = vweird.f32 %v3327
        %vm3334 = vmor %vm3332, %vm3333
        %v3335 = vsel %vm3334, %v3327, %v3331
        %v3336 = vand.u32 2147483647, %v2825
        %vm3337 = vcmp.eq.f32.partialorder %v3336, 8.507059e+37
        %v3338 = vand.u32 %v2825, 2147483648
        %v3339 = vor.u32 1.1754944e-38, %v3338
        %v3340 = vsel %vm3337, %v3339, %v3335
        %v3341 = vmul.f32 %v2558, %v3340
        %v3342 = vrcp.pop %v2828
        %v3343 = vmul.f32 %v2828, %v3342
        %v3344 = vsub.f32 1.0, %v3343
        %v3345 = vmul.f32 %v3342, %v3344
        %v3346 = vadd.f32 %v3342, %v3345
        %vm3347 = vweird.f32 %v2828
        %vm3348 = vweird.f32 %v3342
        %vm3349 = vmor %vm3347, %vm3348
        %v3350 = vsel %vm3349, %v3342, %v3346
        %v3351 = vand.u32 2147483647, %v2828
        %vm3352 = vcmp.eq.f32.partialorder %v3351, 8.507059e+37
        %v3353 = vand.u32 %v2828, 2147483648
        %v3354 = vor.u32 1.1754944e-38, %v3353
        %v3355 = vsel %vm3352, %v3354, %v3350
        %v3356 = vmul.f32 %v2560, %v3355
        %v3357 = vrcp.pop %v2831
        %v3358 = vmul.f32 %v2831, %v3357
        %v3359 = vsub.f32 1.0, %v3358
        %v3360 = vmul.f32 %v3357, %v3359
        %v3361 = vadd.f32 %v3357, %v3360
        %vm3362 = vweird.f32 %v2831
        %vm3363 = vweird.f32 %v3357
        %vm3364 = vmor %vm3362, %vm3363
        %v3365 = vsel %vm3364, %v3357, %v3361
        %v3366 = vand.u32 2147483647, %v2831
        %vm3367 = vcmp.eq.f32.partialorder %v3366, 8.507059e+37
        %v3368 = vand.u32 %v2831, 2147483648
        %v3369 = vor.u32 1.1754944e-38, %v3368
        %v3370 = vsel %vm3367, %v3369, %v3365
        %v3371 = vmul.f32 %v2562, %v3370
        %v3372 = vrcp.pop %v2834
        %v3373 = vmul.f32 %v2834, %v3372
        %v3374 = vsub.f32 1.0, %v3373
        %v3375 = vmul.f32 %v3372, %v3374
        %v3376 = vadd.f32 %v3372, %v3375
        %vm3377 = vweird.f32 %v2834
        %vm3378 = vweird.f32 %v3372
        %vm3379 = vmor %vm3377, %vm3378
        %v3380 = vsel %vm3379, %v3372, %v3376
        %v3381 = vand.u32 2147483647, %v2834
        %vm3382 = vcmp.eq.f32.partialorder %v3381, 8.507059e+37
        %v3383 = vand.u32 %v2834, 2147483648
        %v3384 = vor.u32 1.1754944e-38, %v3383
        %v3385 = vsel %vm3382, %v3384, %v3380
        %v3386 = vmul.f32 %v2564, %v3385
        %v3387 = vrcp.pop %v2837
        %v3388 = vmul.f32 %v2837, %v3387
        %v3389 = vsub.f32 1.0, %v3388
        %v3390 = vmul.f32 %v3387, %v3389
        %v3391 = vadd.f32 %v3387, %v3390
        %vm3392 = vweird.f32 %v2837
        %vm3393 = vweird.f32 %v3387
        %vm3394 = vmor %vm3392, %vm3393
        %v3395 = vsel %vm3394, %v3387, %v3391
        %v3396 = vand.u32 2147483647, %v2837
        %vm3397 = vcmp.eq.f32.partialorder %v3396, 8.507059e+37
        %v3398 = vand.u32 %v2837, 2147483648
        %v3399 = vor.u32 1.1754944e-38, %v3398
        %v3400 = vsel %vm3397, %v3399, %v3395
        %v3401 = vmul.f32 %v2566, %v3400
        %v3402 = vrcp.pop %v2840
        %v3403 = vmul.f32 %v2840, %v3402
        %v3404 = vsub.f32 1.0, %v3403
        %v3405 = vmul.f32 %v3402, %v3404
        %v3406 = vadd.f32 %v3402, %v3405
        %vm3407 = vweird.f32 %v2840
        %vm3408 = vweird.f32 %v3402
        %vm3409 = vmor %vm3407, %vm3408
        %v3410 = vsel %vm3409, %v3402, %v3406
        %v3411 = vand.u32 2147483647, %v2840
        %vm3412 = vcmp.eq.f32.partialorder %v3411, 8.507059e+37
        %v3413 = vand.u32 %v2840, 2147483648
        %v3414 = vor.u32 1.1754944e-38, %v3413
        %v3415 = vsel %vm3412, %v3414, %v3410
        %v3416 = vmul.f32 %v2568, %v3415
        %v3417 = vrcp.pop %v2843
        %v3418 = vmul.f32 %v2843, %v3417
        %v3419 = vsub.f32 1.0, %v3418
        %v3420 = vmul.f32 %v3417, %v3419
        %v3421 = vadd.f32 %v3417, %v3420
        %vm3422 = vweird.f32 %v2843
        %vm3423 = vweird.f32 %v3417
        %vm3424 = vmor %vm3422, %vm3423
        %v3425 = vsel %vm3424, %v3417, %v3421
        %v3426 = vand.u32 2147483647, %v2843
        %vm3427 = vcmp.eq.f32.partialorder %v3426, 8.507059e+37
        %v3428 = vand.u32 %v2843, 2147483648
        %v3429 = vor.u32 1.1754944e-38, %v3428
        %v3430 = vsel %vm3427, %v3429, %v3425
        %v3431 = vmul.f32 %v2570, %v3430
        %v3432 = vrcp.pop %v2846
        %v3433 = vmul.f32 %v2846, %v3432
        %v3434 = vsub.f32 1.0, %v3433
        %v3435 = vmul.f32 %v3432, %v3434
        %v3436 = vadd.f32 %v3432, %v3435
        %vm3437 = vweird.f32 %v2846
        %vm3438 = vweird.f32 %v3432
        %vm3439 = vmor %vm3437, %vm3438
        %v3440 = vsel %vm3439, %v3432, %v3436
        %v3441 = vand.u32 2147483647, %v2846
        %vm3442 = vcmp.eq.f32.partialorder %v3441, 8.507059e+37
        %v3443 = vand.u32 %v2846, 2147483648
        %v3444 = vor.u32 1.1754944e-38, %v3443
        %v3445 = vsel %vm3442, %v3444, %v3440
        %v3446 = vmul.f32 %v2572, %v3445
        %v3447 = vrcp.pop %v2849
        %v3448 = vmul.f32 %v2849, %v3447
        %v3449 = vsub.f32 1.0, %v3448
        %v3450 = vmul.f32 %v3447, %v3449
        %v3451 = vadd.f32 %v3447, %v3450
        %vm3452 = vweird.f32 %v2849
        %vm3453 = vweird.f32 %v3447
        %vm3454 = vmor %vm3452, %vm3453
        %v3455 = vsel %vm3454, %v3447, %v3451
        %v3456 = vand.u32 2147483647, %v2849
        %vm3457 = vcmp.eq.f32.partialorder %v3456, 8.507059e+37
        %v3458 = vand.u32 %v2849, 2147483648
        %v3459 = vor.u32 1.1754944e-38, %v3458
        %v3460 = vsel %vm3457, %v3459, %v3455
        %v3461 = vmul.f32 %v2574, %v3460
        %v3462 = vrcp.pop %v2852
        %v3463 = vmul.f32 %v2852, %v3462
        %v3464 = vsub.f32 1.0, %v3463
        %v3465 = vmul.f32 %v3462, %v3464
        %v3466 = vadd.f32 %v3462, %v3465
        %vm3467 = vweird.f32 %v2852
        %vm3468 = vweird.f32 %v3462
        %vm3469 = vmor %vm3467, %vm3468
        %v3470 = vsel %vm3469, %v3462, %v3466
        %v3471 = vand.u32 2147483647, %v2852
        %vm3472 = vcmp.eq.f32.partialorder %v3471, 8.507059e+37
        %v3473 = vand.u32 %v2852, 2147483648
        %v3474 = vor.u32 1.1754944e-38, %v3473
        %v3475 = vsel %vm3472, %v3474, %v3470
        %v3476 = vmul.f32 %v2576, %v3475
        %v3477 = vrcp.pop %v2855
        %v3478 = vmul.f32 %v2855, %v3477
        %v3479 = vsub.f32 1.0, %v3478
        %v3480 = vmul.f32 %v3477, %v3479
        %v3481 = vadd.f32 %v3477, %v3480
        %vm3482 = vweird.f32 %v2855
        %vm3483 = vweird.f32 %v3477
        %vm3484 = vmor %vm3482, %vm3483
        %v3485 = vsel %vm3484, %v3477, %v3481
        %v3486 = vand.u32 2147483647, %v2855
        %vm3487 = vcmp.eq.f32.partialorder %v3486, 8.507059e+37
        %v3488 = vand.u32 %v2855, 2147483648
        %v3489 = vor.u32 1.1754944e-38, %v3488
        %v3490 = vsel %vm3487, %v3489, %v3485
        %v3491 = vmul.f32 %v2578, %v3490
        %v3492 = vrcp.pop %v2858
        %v3493 = vmul.f32 %v2858, %v3492
        %v3494 = vsub.f32 1.0, %v3493
        %v3495 = vmul.f32 %v3492, %v3494
        %v3496 = vadd.f32 %v3492, %v3495
        %vm3497 = vweird.f32 %v2858
        %vm3498 = vweird.f32 %v3492
        %vm3499 = vmor %vm3497, %vm3498
        %v3500 = vsel %vm3499, %v3492, %v3496
        %v3501 = vand.u32 2147483647, %v2858
        %vm3502 = vcmp.eq.f32.partialorder %v3501, 8.507059e+37
        %v3503 = vand.u32 %v2858, 2147483648
        %v3504 = vor.u32 1.1754944e-38, %v3503
        %v3505 = vsel %vm3502, %v3504, %v3500
        %v3506 = vmul.f32 %v2580, %v3505
        %v3507 = vrcp.pop %v2861
        %v3508 = vmul.f32 %v2861, %v3507
        %v3509 = vsub.f32 1.0, %v3508
        %v3510 = vmul.f32 %v3507, %v3509
        %v3511 = vadd.f32 %v3507, %v3510
        %vm3512 = vweird.f32 %v2861
        %vm3513 = vweird.f32 %v3507
        %vm3514 = vmor %vm3512, %vm3513
        %v3515 = vsel %vm3514, %v3507, %v3511
        %v3516 = vand.u32 2147483647, %v2861
        %vm3517 = vcmp.eq.f32.partialorder %v3516, 8.507059e+37
        %v3518 = vand.u32 %v2861, 2147483648
        %v3519 = vor.u32 1.1754944e-38, %v3518
        %v3520 = vsel %vm3517, %v3519, %v3515
        %v3521 = vmul.f32 %v2582, %v3520
        %v3522 = vrcp.pop %v2864
        %v3523 = vmul.f32 %v2864, %v3522
        %v3524 = vsub.f32 1.0, %v3523
        %v3525 = vmul.f32 %v3522, %v3524
        %v3526 = vadd.f32 %v3522, %v3525
        %vm3527 = vweird.f32 %v2864
        %vm3528 = vweird.f32 %v3522
        %vm3529 = vmor %vm3527, %vm3528
        %v3530 = vsel %vm3529, %v3522, %v3526
        %v3531 = vand.u32 2147483647, %v2864
        %vm3532 = vcmp.eq.f32.partialorder %v3531, 8.507059e+37
        %v3533 = vand.u32 %v2864, 2147483648
        %v3534 = vor.u32 1.1754944e-38, %v3533
        %v3535 = vsel %vm3532, %v3534, %v3530
        %v3536 = vmul.f32 %v2584, %v3535
        %v3537 = vrcp.pop %v2867
        %v3538 = vmul.f32 %v2867, %v3537
        %v3539 = vsub.f32 1.0, %v3538
        %v3540 = vmul.f32 %v3537, %v3539
        %v3541 = vadd.f32 %v3537, %v3540
        %vm3542 = vweird.f32 %v2867
        %vm3543 = vweird.f32 %v3537
        %vm3544 = vmor %vm3542, %vm3543
        %v3545 = vsel %vm3544, %v3537, %v3541
        %v3546 = vand.u32 2147483647, %v2867
        %vm3547 = vcmp.eq.f32.partialorder %v3546, 8.507059e+37
        %v3548 = vand.u32 %v2867, 2147483648
        %v3549 = vor.u32 1.1754944e-38, %v3548
        %v3550 = vsel %vm3547, %v3549, %v3545
        %v3551 = vmul.f32 %v2586, %v3550
        %v3552 = vrcp.pop %v2870
        %v3553 = vmul.f32 %v2870, %v3552
        %v3554 = vsub.f32 1.0, %v3553
        %v3555 = vmul.f32 %v3552, %v3554
        %v3556 = vadd.f32 %v3552, %v3555
        %vm3557 = vweird.f32 %v2870
        %vm3558 = vweird.f32 %v3552
        %vm3559 = vmor %vm3557, %vm3558
        %v3560 = vsel %vm3559, %v3552, %v3556
        %v3561 = vand.u32 2147483647, %v2870
        %vm3562 = vcmp.eq.f32.partialorder %v3561, 8.507059e+37
        %v3563 = vand.u32 %v2870, 2147483648
        %v3564 = vor.u32 1.1754944e-38, %v3563
        %v3565 = vsel %vm3562, %v3564, %v3560
        %v3566 = vmul.f32 %v2588, %v3565
        %v3567 = vrcp.pop %v2873
        %v3568 = vmul.f32 %v2873, %v3567
        %v3569 = vsub.f32 1.0, %v3568
        %v3570 = vmul.f32 %v3567, %v3569
        %v3571 = vadd.f32 %v3567, %v3570
        %vm3572 = vweird.f32 %v2873
        %vm3573 = vweird.f32 %v3567
        %vm3574 = vmor %vm3572, %vm3573
        %v3575 = vsel %vm3574, %v3567, %v3571
        %v3576 = vand.u32 2147483647, %v2873
        %vm3577 = vcmp.eq.f32.partialorder %v3576, 8.507059e+37
        %v3578 = vand.u32 %v2873, 2147483648
        %v3579 = vor.u32 1.1754944e-38, %v3578
        %v3580 = vsel %vm3577, %v3579, %v3575
        %v3581 = vmul.f32 %v2590, %v3580
        %v3582 = vrcp.pop %v2876
        %v3583 = vmul.f32 %v2876, %v3582
        %v3584 = vsub.f32 1.0, %v3583
        %v3585 = vmul.f32 %v3582, %v3584
        %v3586 = vadd.f32 %v3582, %v3585
        %vm3587 = vweird.f32 %v2876
        %vm3588 = vweird.f32 %v3582
        %vm3589 = vmor %vm3587, %vm3588
        %v3590 = vsel %vm3589, %v3582, %v3586
        %v3591 = vand.u32 2147483647, %v2876
        %vm3592 = vcmp.eq.f32.partialorder %v3591, 8.507059e+37
        %v3593 = vand.u32 %v2876, 2147483648
        %v3594 = vor.u32 1.1754944e-38, %v3593
        %v3595 = vsel %vm3592, %v3594, %v3590
        %v3596 = vmul.f32 %v2592, %v3595
        %v3597 = vrcp.pop %v2879
        %v3598 = vmul.f32 %v2879, %v3597
        %v3599 = vsub.f32 1.0, %v3598
        %v3600 = vmul.f32 %v3597, %v3599
        %v3601 = vadd.f32 %v3597, %v3600
        %vm3602 = vweird.f32 %v2879
        %vm3603 = vweird.f32 %v3597
        %vm3604 = vmor %vm3602, %vm3603
        %v3605 = vsel %vm3604, %v3597, %v3601
        %v3606 = vand.u32 2147483647, %v2879
        %vm3607 = vcmp.eq.f32.partialorder %v3606, 8.507059e+37
        %v3608 = vand.u32 %v2879, 2147483648
        %v3609 = vor.u32 1.1754944e-38, %v3608
        %v3610 = vsel %vm3607, %v3609, %v3605
        %v3611 = vmul.f32 %v2594, %v3610
        %v3612 = vrcp.pop %v2882
        %v3613 = vmul.f32 %v2882, %v3612
        %v3614 = vsub.f32 1.0, %v3613
        %v3615 = vmul.f32 %v3612, %v3614
        %v3616 = vadd.f32 %v3612, %v3615
        %vm3617 = vweird.f32 %v2882
        %vm3618 = vweird.f32 %v3612
        %vm3619 = vmor %vm3617, %vm3618
        %v3620 = vsel %vm3619, %v3612, %v3616
        %v3621 = vand.u32 2147483647, %v2882
        %vm3622 = vcmp.eq.f32.partialorder %v3621, 8.507059e+37
        %v3623 = vand.u32 %v2882, 2147483648
        %v3624 = vor.u32 1.1754944e-38, %v3623
        %v3625 = vsel %vm3622, %v3624, %v3620
        %v3626 = vmul.f32 %v2596, %v3625
        %v3627 = vrcp.pop %v2885
        %v3628 = vmul.f32 %v2885, %v3627
        %v3629 = vsub.f32 1.0, %v3628
        %v3630 = vmul.f32 %v3627, %v3629
        %v3631 = vadd.f32 %v3627, %v3630
        %vm3632 = vweird.f32 %v2885
        %vm3633 = vweird.f32 %v3627
        %vm3634 = vmor %vm3632, %vm3633
        %v3635 = vsel %vm3634, %v3627, %v3631
        %v3636 = vand.u32 2147483647, %v2885
        %vm3637 = vcmp.eq.f32.partialorder %v3636, 8.507059e+37
        %v3638 = vand.u32 %v2885, 2147483648
        %v3639 = vor.u32 1.1754944e-38, %v3638
        %v3640 = vsel %vm3637, %v3639, %v3635
        %v3641 = vmul.f32 %v2598, %v3640
        %v3642 = vrcp.pop %v2888
        %v3643 = vmul.f32 %v2888, %v3642
        %v3644 = vsub.f32 1.0, %v3643
        %v3645 = vmul.f32 %v3642, %v3644
        %v3646 = vadd.f32 %v3642, %v3645
        %vm3647 = vweird.f32 %v2888
        %vm3648 = vweird.f32 %v3642
        %vm3649 = vmor %vm3647, %vm3648
        %v3650 = vsel %vm3649, %v3642, %v3646
        %v3651 = vand.u32 2147483647, %v2888
        %vm3652 = vcmp.eq.f32.partialorder %v3651, 8.507059e+37
        %v3653 = vand.u32 %v2888, 2147483648
        %v3654 = vor.u32 1.1754944e-38, %v3653
        %v3655 = vsel %vm3652, %v3654, %v3650
        %v3656 = vmul.f32 %v2600, %v3655
        %v3657 = vrcp.pop %v2891
        %v3658 = vmul.f32 %v2891, %v3657
        %v3659 = vsub.f32 1.0, %v3658
        %v3660 = vmul.f32 %v3657, %v3659
        %v3661 = vadd.f32 %v3657, %v3660
        %vm3662 = vweird.f32 %v2891
        %vm3663 = vweird.f32 %v3657
        %vm3664 = vmor %vm3662, %vm3663
        %v3665 = vsel %vm3664, %v3657, %v3661
        %v3666 = vand.u32 2147483647, %v2891
        %vm3667 = vcmp.eq.f32.partialorder %v3666, 8.507059e+37
        %v3668 = vand.u32 %v2891, 2147483648
        %v3669 = vor.u32 1.1754944e-38, %v3668
        %v3670 = vsel %vm3667, %v3669, %v3665
        %v3671 = vmul.f32 %v2602, %v3670
        %v3672 = vrcp.pop %v2894
        %v3673 = vmul.f32 %v2894, %v3672
        %v3674 = vsub.f32 1.0, %v3673
        %v3675 = vmul.f32 %v3672, %v3674
        %v3676 = vadd.f32 %v3672, %v3675
        %vm3677 = vweird.f32 %v2894
        %vm3678 = vweird.f32 %v3672
        %vm3679 = vmor %vm3677, %vm3678
        %v3680 = vsel %vm3679, %v3672, %v3676
        %v3681 = vand.u32 2147483647, %v2894
        %vm3682 = vcmp.eq.f32.partialorder %v3681, 8.507059e+37
        %v3683 = vand.u32 %v2894, 2147483648
        %v3684 = vor.u32 1.1754944e-38, %v3683
        %v3685 = vsel %vm3682, %v3684, %v3680
        %v3686 = vmul.f32 %v2604, %v3685
        %v3687 = vrcp.pop %v2897
        %v3688 = vmul.f32 %v2897, %v3687
        %v3689 = vsub.f32 1.0, %v3688
        %v3690 = vmul.f32 %v3687, %v3689
        %v3691 = vadd.f32 %v3687, %v3690
        %vm3692 = vweird.f32 %v2897
        %vm3693 = vweird.f32 %v3687
        %vm3694 = vmor %vm3692, %vm3693
        %v3695 = vsel %vm3694, %v3687, %v3691
        %v3696 = vand.u32 2147483647, %v2897
        %vm3697 = vcmp.eq.f32.partialorder %v3696, 8.507059e+37
        %v3698 = vand.u32 %v2897, 2147483648
        %v3699 = vor.u32 1.1754944e-38, %v3698
        %v3700 = vsel %vm3697, %v3699, %v3695
        %v3701 = vmul.f32 %v2606, %v3700
        %v3702 = vrcp.pop %v2900
        %v3703 = vmul.f32 %v2900, %v3702
        %v3704 = vsub.f32 1.0, %v3703
        %v3705 = vmul.f32 %v3702, %v3704
        %v3706 = vadd.f32 %v3702, %v3705
        %vm3707 = vweird.f32 %v2900
        %vm3708 = vweird.f32 %v3702
        %vm3709 = vmor %vm3707, %vm3708
        %v3710 = vsel %vm3709, %v3702, %v3706
        %v3711 = vand.u32 2147483647, %v2900
        %vm3712 = vcmp.eq.f32.partialorder %v3711, 8.507059e+37
        %v3713 = vand.u32 %v2900, 2147483648
        %v3714 = vor.u32 1.1754944e-38, %v3713
        %v3715 = vsel %vm3712, %v3714, %v3710
        %v3716 = vmul.f32 %v2608, %v3715
        %v3717 = vrcp.pop %v2903
        %v3718 = vmul.f32 %v2903, %v3717
        %v3719 = vsub.f32 1.0, %v3718
        %v3720 = vmul.f32 %v3717, %v3719
        %v3721 = vadd.f32 %v3717, %v3720
        %vm3722 = vweird.f32 %v2903
        %vm3723 = vweird.f32 %v3717
        %vm3724 = vmor %vm3722, %vm3723
        %v3725 = vsel %vm3724, %v3717, %v3721
        %v3726 = vand.u32 2147483647, %v2903
        %vm3727 = vcmp.eq.f32.partialorder %v3726, 8.507059e+37
        %v3728 = vand.u32 %v2903, 2147483648
        %v3729 = vor.u32 1.1754944e-38, %v3728
        %v3730 = vsel %vm3727, %v3729, %v3725
        %v3731 = vmul.f32 %v2610, %v3730
        %v3732 = vrcp.pop %v2906
        %v3733 = vmul.f32 %v2906, %v3732
        %v3734 = vsub.f32 1.0, %v3733
        %v3735 = vmul.f32 %v3732, %v3734
        %v3736 = vadd.f32 %v3732, %v3735
        %vm3737 = vweird.f32 %v2906
        %vm3738 = vweird.f32 %v3732
        %vm3739 = vmor %vm3737, %vm3738
        %v3740 = vsel %vm3739, %v3732, %v3736
        %v3741 = vand.u32 2147483647, %v2906
        %vm3742 = vcmp.eq.f32.partialorder %v3741, 8.507059e+37
        %v3743 = vand.u32 %v2906, 2147483648
        %v3744 = vor.u32 1.1754944e-38, %v3743
        %v3745 = vsel %vm3742, %v3744, %v3740
        %v3746 = vmul.f32 %v2612, %v3745
        %v3747 = vrcp.pop %v2909
        %v3748 = vmul.f32 %v2909, %v3747
        %v3749 = vsub.f32 1.0, %v3748
        %v3750 = vmul.f32 %v3747, %v3749
        %v3751 = vadd.f32 %v3747, %v3750
        %vm3752 = vweird.f32 %v2909
        %vm3753 = vweird.f32 %v3747
        %vm3754 = vmor %vm3752, %vm3753
        %v3755 = vsel %vm3754, %v3747, %v3751
        %v3756 = vand.u32 2147483647, %v2909
        %vm3757 = vcmp.eq.f32.partialorder %v3756, 8.507059e+37
        %v3758 = vand.u32 %v2909, 2147483648
        %v3759 = vor.u32 1.1754944e-38, %v3758
        %v3760 = vsel %vm3757, %v3759, %v3755
        %v3761 = vmul.f32 %v2614, %v3760
        %v3762 = vrcp.pop %v2912
        %v3763 = vmul.f32 %v2912, %v3762
        %v3764 = vsub.f32 1.0, %v3763
        %v3765 = vmul.f32 %v3762, %v3764
        %v3766 = vadd.f32 %v3762, %v3765
        %vm3767 = vweird.f32 %v2912
        %vm3768 = vweird.f32 %v3762
        %vm3769 = vmor %vm3767, %vm3768
        %v3770 = vsel %vm3769, %v3762, %v3766
        %v3771 = vand.u32 2147483647, %v2912
        %vm3772 = vcmp.eq.f32.partialorder %v3771, 8.507059e+37
        %v3773 = vand.u32 %v2912, 2147483648
        %v3774 = vor.u32 1.1754944e-38, %v3773
        %v3775 = vsel %vm3772, %v3774, %v3770
        %v3776 = vmul.f32 %v2616, %v3775
        %v3777 = vrcp.pop %v2915
        %v3778 = vmul.f32 %v2915, %v3777
        %v3779 = vsub.f32 1.0, %v3778
        %v3780 = vmul.f32 %v3777, %v3779
        %v3781 = vadd.f32 %v3777, %v3780
        %vm3782 = vweird.f32 %v2915
        %vm3783 = vweird.f32 %v3777
        %vm3784 = vmor %vm3782, %vm3783
        %v3785 = vsel %vm3784, %v3777, %v3781
        %v3786 = vand.u32 2147483647, %v2915
        %vm3787 = vcmp.eq.f32.partialorder %v3786, 8.507059e+37
        %v3788 = vand.u32 %v2915, 2147483648
        %v3789 = vor.u32 1.1754944e-38, %v3788
        %v3790 = vsel %vm3787, %v3789, %v3785
        %v3791 = vmul.f32 %v2618, %v3790
        %v3792 = vrcp.pop %v2918
        %v3793 = vmul.f32 %v2918, %v3792
        %v3794 = vsub.f32 1.0, %v3793
        %v3795 = vmul.f32 %v3792, %v3794
        %v3796 = vadd.f32 %v3792, %v3795
        %vm3797 = vweird.f32 %v2918
        %vm3798 = vweird.f32 %v3792
        %vm3799 = vmor %vm3797, %vm3798
        %v3800 = vsel %vm3799, %v3792, %v3796
        %v3801 = vand.u32 2147483647, %v2918
        %vm3802 = vcmp.eq.f32.partialorder %v3801, 8.507059e+37
        %v3803 = vand.u32 %v2918, 2147483648
        %v3804 = vor.u32 1.1754944e-38, %v3803
        %v3805 = vsel %vm3802, %v3804, %v3800
        %v3806 = vmul.f32 %v2620, %v3805
        %v3807 = vrcp.pop %v2921
        %v3808 = vmul.f32 %v2921, %v3807
        %v3809 = vsub.f32 1.0, %v3808
        %v3810 = vmul.f32 %v3807, %v3809
        %v3811 = vadd.f32 %v3807, %v3810
        %vm3812 = vweird.f32 %v2921
        %vm3813 = vweird.f32 %v3807
        %vm3814 = vmor %vm3812, %vm3813
        %v3815 = vsel %vm3814, %v3807, %v3811
        %v3816 = vand.u32 2147483647, %v2921
        %vm3817 = vcmp.eq.f32.partialorder %v3816, 8.507059e+37
        %v3818 = vand.u32 %v2921, 2147483648
        %v3819 = vor.u32 1.1754944e-38, %v3818
        %v3820 = vsel %vm3817, %v3819, %v3815
        %v3821 = vmul.f32 %v2622, %v3820
        %v3822 = vrcp.pop %v2924
        %v3823 = vmul.f32 %v2924, %v3822
        %v3824 = vsub.f32 1.0, %v3823
        %v3825 = vmul.f32 %v3822, %v3824
        %v3826 = vadd.f32 %v3822, %v3825
        %vm3827 = vweird.f32 %v2924
        %vm3828 = vweird.f32 %v3822
        %vm3829 = vmor %vm3827, %vm3828
        %v3830 = vsel %vm3829, %v3822, %v3826
        %v3831 = vand.u32 2147483647, %v2924
        %vm3832 = vcmp.eq.f32.partialorder %v3831, 8.507059e+37
        %v3833 = vand.u32 %v2924, 2147483648
        %v3834 = vor.u32 1.1754944e-38, %v3833
        %v3835 = vsel %vm3832, %v3834, %v3830
        %v3836 = vmul.f32 %v2624, %v3835
        %v3837 = vrcp.pop %v2927
        %v3838 = vmul.f32 %v2927, %v3837
        %v3839 = vsub.f32 1.0, %v3838
        %v3840 = vmul.f32 %v3837, %v3839
        %v3841 = vadd.f32 %v3837, %v3840
        %vm3842 = vweird.f32 %v2927
        %vm3843 = vweird.f32 %v3837
        %vm3844 = vmor %vm3842, %vm3843
        %v3845 = vsel %vm3844, %v3837, %v3841
        %v3846 = vand.u32 2147483647, %v2927
        %vm3847 = vcmp.eq.f32.partialorder %v3846, 8.507059e+37
        %v3848 = vand.u32 %v2927, 2147483648
        %v3849 = vor.u32 1.1754944e-38, %v3848
        %v3850 = vsel %vm3847, %v3849, %v3845
        %v3851 = vmul.f32 %v2626, %v3850
        %v3852 = vrcp.pop %v2930
        %v3853 = vmul.f32 %v2930, %v3852
        %v3854 = vsub.f32 1.0, %v3853
        %v3855 = vmul.f32 %v3852, %v3854
        %v3856 = vadd.f32 %v3852, %v3855
        %vm3857 = vweird.f32 %v2930
        %vm3858 = vweird.f32 %v3852
        %vm3859 = vmor %vm3857, %vm3858
        %v3860 = vsel %vm3859, %v3852, %v3856
        %v3861 = vand.u32 2147483647, %v2930
        %vm3862 = vcmp.eq.f32.partialorder %v3861, 8.507059e+37
        %v3863 = vand.u32 %v2930, 2147483648
        %v3864 = vor.u32 1.1754944e-38, %v3863
        %v3865 = vsel %vm3862, %v3864, %v3860
        %v3866 = vmul.f32 %v2628, %v3865
        %v3867 = vrcp.pop %v2933
        %v3868 = vmul.f32 %v2933, %v3867
        %v3869 = vsub.f32 1.0, %v3868
        %v3870 = vmul.f32 %v3867, %v3869
        %v3871 = vadd.f32 %v3867, %v3870
        %vm3872 = vweird.f32 %v2933
        %vm3873 = vweird.f32 %v3867
        %vm3874 = vmor %vm3872, %vm3873
        %v3875 = vsel %vm3874, %v3867, %v3871
        %v3876 = vand.u32 2147483647, %v2933
        %vm3877 = vcmp.eq.f32.partialorder %v3876, 8.507059e+37
        %v3878 = vand.u32 %v2933, 2147483648
        %v3879 = vor.u32 1.1754944e-38, %v3878
        %v3880 = vsel %vm3877, %v3879, %v3875
        %v3881 = vmul.f32 %v2630, %v3880
        %v3882 = vrcp.pop %v2936
        %v3883 = vmul.f32 %v2936, %v3882
        %v3884 = vsub.f32 1.0, %v3883
        %v3885 = vmul.f32 %v3882, %v3884
        %v3886 = vadd.f32 %v3882, %v3885
        %vm3887 = vweird.f32 %v2936
        %vm3888 = vweird.f32 %v3882
        %vm3889 = vmor %vm3887, %vm3888
        %v3890 = vsel %vm3889, %v3882, %v3886
        %v3891 = vand.u32 2147483647, %v2936
        %vm3892 = vcmp.eq.f32.partialorder %v3891, 8.507059e+37
        %v3893 = vand.u32 %v2936, 2147483648
        %v3894 = vor.u32 1.1754944e-38, %v3893
        %v3895 = vsel %vm3892, %v3894, %v3890
        %v3896 = vmul.f32 %v2632, %v3895
        %v3897 = vrcp.pop %v2939
        %v3898 = vmul.f32 %v2939, %v3897
        %v3899 = vsub.f32 1.0, %v3898
        %v3900 = vmul.f32 %v3897, %v3899
        %v3901 = vadd.f32 %v3897, %v3900
        %vm3902 = vweird.f32 %v2939
        %vm3903 = vweird.f32 %v3897
        %vm3904 = vmor %vm3902, %vm3903
        %v3905 = vsel %vm3904, %v3897, %v3901
        %v3906 = vand.u32 2147483647, %v2939
        %vm3907 = vcmp.eq.f32.partialorder %v3906, 8.507059e+37
        %v3908 = vand.u32 %v2939, 2147483648
        %v3909 = vor.u32 1.1754944e-38, %v3908
        %v3910 = vsel %vm3907, %v3909, %v3905
        %v3911 = vmul.f32 %v2634, %v3910
        %v3912 = vrcp.pop %v2942
        %v3913 = vmul.f32 %v2942, %v3912
        %v3914 = vsub.f32 1.0, %v3913
        %v3915 = vmul.f32 %v3912, %v3914
        %v3916 = vadd.f32 %v3912, %v3915
        %vm3917 = vweird.f32 %v2942
        %vm3918 = vweird.f32 %v3912
        %vm3919 = vmor %vm3917, %vm3918
        %v3920 = vsel %vm3919, %v3912, %v3916
        %v3921 = vand.u32 2147483647, %v2942
        %vm3922 = vcmp.eq.f32.partialorder %v3921, 8.507059e+37
        %v3923 = vand.u32 %v2942, 2147483648
        %v3924 = vor.u32 1.1754944e-38, %v3923
        %v3925 = vsel %vm3922, %v3924, %v3920
        %v3926 = vmul.f32 %v2636, %v3925
        %v3927 = vrcp.pop %v2945
        %v3928 = vmul.f32 %v2945, %v3927
        %v3929 = vsub.f32 1.0, %v3928
        %v3930 = vmul.f32 %v3927, %v3929
        %v3931 = vadd.f32 %v3927, %v3930
        %vm3932 = vweird.f32 %v2945
        %vm3933 = vweird.f32 %v3927
        %vm3934 = vmor %vm3932, %vm3933
        %v3935 = vsel %vm3934, %v3927, %v3931
        %v3936 = vand.u32 2147483647, %v2945
        %vm3937 = vcmp.eq.f32.partialorder %v3936, 8.507059e+37
        %v3938 = vand.u32 %v2945, 2147483648
        %v3939 = vor.u32 1.1754944e-38, %v3938
        %v3940 = vsel %vm3937, %v3939, %v3935
        %v3941 = vmul.f32 %v2638, %v3940
        %v3942 = vrcp.pop %v2948
        %v3943 = vmul.f32 %v2948, %v3942
        %v3944 = vsub.f32 1.0, %v3943
        %v3945 = vmul.f32 %v3942, %v3944
        %v3946 = vadd.f32 %v3942, %v3945
        %vm3947 = vweird.f32 %v2948
        %vm3948 = vweird.f32 %v3942
        %vm3949 = vmor %vm3947, %vm3948
        %v3950 = vsel %vm3949, %v3942, %v3946
        %v3951 = vand.u32 2147483647, %v2948
        %vm3952 = vcmp.eq.f32.partialorder %v3951, 8.507059e+37
        %v3953 = vand.u32 %v2948, 2147483648
        %v3954 = vor.u32 1.1754944e-38, %v3953
        %v3955 = vsel %vm3952, %v3954, %v3950
        %v3956 = vmul.f32 %v2640, %v3955
        %v3957 = vrcp.pop %v2951
        %v3958 = vmul.f32 %v2951, %v3957
        %v3959 = vsub.f32 1.0, %v3958
        %v3960 = vmul.f32 %v3957, %v3959
        %v3961 = vadd.f32 %v3957, %v3960
        %vm3962 = vweird.f32 %v2951
        %vm3963 = vweird.f32 %v3957
        %vm3964 = vmor %vm3962, %vm3963
        %v3965 = vsel %vm3964, %v3957, %v3961
        %v3966 = vand.u32 2147483647, %v2951
        %vm3967 = vcmp.eq.f32.partialorder %v3966, 8.507059e+37
        %v3968 = vand.u32 %v2951, 2147483648
        %v3969 = vor.u32 1.1754944e-38, %v3968
        %v3970 = vsel %vm3967, %v3969, %v3965
        %v3971 = vmul.f32 %v2642, %v3970
        %v3972 = vrcp.pop %v2954
        %v3973 = vmul.f32 %v2954, %v3972
        %v3974 = vsub.f32 1.0, %v3973
        %v3975 = vmul.f32 %v3972, %v3974
        %v3976 = vadd.f32 %v3972, %v3975
        %vm3977 = vweird.f32 %v2954
        %vm3978 = vweird.f32 %v3972
        %vm3979 = vmor %vm3977, %vm3978
        %v3980 = vsel %vm3979, %v3972, %v3976
        %v3981 = vand.u32 2147483647, %v2954
        %vm3982 = vcmp.eq.f32.partialorder %v3981, 8.507059e+37
        %v3983 = vand.u32 %v2954, 2147483648
        %v3984 = vor.u32 1.1754944e-38, %v3983
        %v3985 = vsel %vm3982, %v3984, %v3980
        %v3986 = vmul.f32 %v2644, %v3985
        %v3987 = vrcp.pop %v2957
        %v3988 = vmul.f32 %v2957, %v3987
        %v3989 = vsub.f32 1.0, %v3988
        %v3990 = vmul.f32 %v3987, %v3989
        %v3991 = vadd.f32 %v3987, %v3990
        %vm3992 = vweird.f32 %v2957
        %vm3993 = vweird.f32 %v3987
        %vm3994 = vmor %vm3992, %vm3993
        %v3995 = vsel %vm3994, %v3987, %v3991
        %v3996 = vand.u32 2147483647, %v2957
        %vm3997 = vcmp.eq.f32.partialorder %v3996, 8.507059e+37
        %v3998 = vand.u32 %v2957, 2147483648
        %v3999 = vor.u32 1.1754944e-38, %v3998
        %v4000 = vsel %vm3997, %v3999, %v3995
        %v4001 = vmul.f32 %v2646, %v4000
        %v4002 = vrcp.pop %v2960
        %v4003 = vmul.f32 %v2960, %v4002
        %v4004 = vsub.f32 1.0, %v4003
        %v4005 = vmul.f32 %v4002, %v4004
        %v4006 = vadd.f32 %v4002, %v4005
        %vm4007 = vweird.f32 %v2960
        %vm4008 = vweird.f32 %v4002
        %vm4009 = vmor %vm4007, %vm4008
        %v4010 = vsel %vm4009, %v4002, %v4006
        %v4011 = vand.u32 2147483647, %v2960
        %vm4012 = vcmp.eq.f32.partialorder %v4011, 8.507059e+37
        %v4013 = vand.u32 %v2960, 2147483648
        %v4014 = vor.u32 1.1754944e-38, %v4013
        %v4015 = vsel %vm4012, %v4014, %v4010
        %v4016 = vmul.f32 %v2648, %v4015
        %v4017 = vrcp.pop %v2963
        %v4018 = vmul.f32 %v2963, %v4017
        %v4019 = vsub.f32 1.0, %v4018
        %v4020 = vmul.f32 %v4017, %v4019
        %v4021 = vadd.f32 %v4017, %v4020
        %vm4022 = vweird.f32 %v2963
        %vm4023 = vweird.f32 %v4017
        %vm4024 = vmor %vm4022, %vm4023
        %v4025 = vsel %vm4024, %v4017, %v4021
        %v4026 = vand.u32 2147483647, %v2963
        %vm4027 = vcmp.eq.f32.partialorder %v4026, 8.507059e+37
        %v4028 = vand.u32 %v2963, 2147483648
        %v4029 = vor.u32 1.1754944e-38, %v4028
        %v4030 = vsel %vm4027, %v4029, %v4025
        %v4031 = vmul.f32 %v2650, %v4030
        %v4032 = vrcp.pop %v2966
        %v4033 = vmul.f32 %v2966, %v4032
        %v4034 = vsub.f32 1.0, %v4033
        %v4035 = vmul.f32 %v4032, %v4034
        %v4036 = vadd.f32 %v4032, %v4035
        %vm4037 = vweird.f32 %v2966
        %vm4038 = vweird.f32 %v4032
        %vm4039 = vmor %vm4037, %vm4038
        %v4040 = vsel %vm4039, %v4032, %v4036
        %v4041 = vand.u32 2147483647, %v2966
        %vm4042 = vcmp.eq.f32.partialorder %v4041, 8.507059e+37
        %v4043 = vand.u32 %v2966, 2147483648
        %v4044 = vor.u32 1.1754944e-38, %v4043
        %v4045 = vsel %vm4042, %v4044, %v4040
        %v4046 = vmul.f32 %v2652, %v4045
        %v4047 = vrcp.pop %v2969
        %v4048 = vmul.f32 %v2969, %v4047
        %v4049 = vsub.f32 1.0, %v4048
        %v4050 = vmul.f32 %v4047, %v4049
        %v4051 = vadd.f32 %v4047, %v4050
        %vm4052 = vweird.f32 %v2969
        %vm4053 = vweird.f32 %v4047
        %vm4054 = vmor %vm4052, %vm4053
        %v4055 = vsel %vm4054, %v4047, %v4051
        %v4056 = vand.u32 2147483647, %v2969
        %vm4057 = vcmp.eq.f32.partialorder %v4056, 8.507059e+37
        %v4058 = vand.u32 %v2969, 2147483648
        %v4059 = vor.u32 1.1754944e-38, %v4058
        %v4060 = vsel %vm4057, %v4059, %v4055
        %v4061 = vmul.f32 %v2654, %v4060
        %v4062 = vrcp.pop %v2972
        %v4063 = vmul.f32 %v2972, %v4062
        %v4064 = vsub.f32 1.0, %v4063
        %v4065 = vmul.f32 %v4062, %v4064
        %v4066 = vadd.f32 %v4062, %v4065
        %vm4067 = vweird.f32 %v2972
        %vm4068 = vweird.f32 %v4062
        %vm4069 = vmor %vm4067, %vm4068
        %v4070 = vsel %vm4069, %v4062, %v4066
        %v4071 = vand.u32 2147483647, %v2972
        %vm4072 = vcmp.eq.f32.partialorder %v4071, 8.507059e+37
        %v4073 = vand.u32 %v2972, 2147483648
        %v4074 = vor.u32 1.1754944e-38, %v4073
        %v4075 = vsel %vm4072, %v4074, %v4070
        %v4076 = vmul.f32 %v2656, %v4075
        %v4077 = vrcp.pop %v2975
        %v4078 = vmul.f32 %v2975, %v4077
        %v4079 = vsub.f32 1.0, %v4078
        %v4080 = vmul.f32 %v4077, %v4079
        %v4081 = vadd.f32 %v4077, %v4080
        %vm4082 = vweird.f32 %v2975
        %vm4083 = vweird.f32 %v4077
        %vm4084 = vmor %vm4082, %vm4083
        %v4085 = vsel %vm4084, %v4077, %v4081
        %v4086 = vand.u32 2147483647, %v2975
        %vm4087 = vcmp.eq.f32.partialorder %v4086, 8.507059e+37
        %v4088 = vand.u32 %v2975, 2147483648
        %v4089 = vor.u32 1.1754944e-38, %v4088
        %v4090 = vsel %vm4087, %v4089, %v4085
        %v4091 = vmul.f32 %v2658, %v4090
        %v4092 = vrcp.pop %v2978
        %v4093 = vmul.f32 %v2978, %v4092
        %v4094 = vsub.f32 1.0, %v4093
        %v4095 = vmul.f32 %v4092, %v4094
        %v4096 = vadd.f32 %v4092, %v4095
        %vm4097 = vweird.f32 %v2978
        %vm4098 = vweird.f32 %v4092
        %vm4099 = vmor %vm4097, %vm4098
        %v4100 = vsel %vm4099, %v4092, %v4096
        %v4101 = vand.u32 2147483647, %v2978
        %vm4102 = vcmp.eq.f32.partialorder %v4101, 8.507059e+37
        %v4103 = vand.u32 %v2978, 2147483648
        %v4104 = vor.u32 1.1754944e-38, %v4103
        %v4105 = vsel %vm4102, %v4104, %v4100
        %v4106 = vmul.f32 %v2660, %v4105
        %v4107 = vrcp.pop %v2981
        %v4108 = vmul.f32 %v2981, %v4107
        %v4109 = vsub.f32 1.0, %v4108
        %v4110 = vmul.f32 %v4107, %v4109
        %v4111 = vadd.f32 %v4107, %v4110
        %vm4112 = vweird.f32 %v2981
        %vm4113 = vweird.f32 %v4107
        %vm4114 = vmor %vm4112, %vm4113
        %v4115 = vsel %vm4114, %v4107, %v4111
        %v4116 = vand.u32 2147483647, %v2981
        %vm4117 = vcmp.eq.f32.partialorder %v4116, 8.507059e+37
        %v4118 = vand.u32 %v2981, 2147483648
        %v4119 = vor.u32 1.1754944e-38, %v4118
        %v4120 = vsel %vm4117, %v4119, %v4115
        %v4121 = vmul.f32 %v2662, %v4120
        %v4122 = vrcp.pop %v2984
        %v4123 = vmul.f32 %v2984, %v4122
        %v4124 = vsub.f32 1.0, %v4123
        %v4125 = vmul.f32 %v4122, %v4124
        %v4126 = vadd.f32 %v4122, %v4125
        %vm4127 = vweird.f32 %v2984
        %vm4128 = vweird.f32 %v4122
        %vm4129 = vmor %vm4127, %vm4128
        %v4130 = vsel %vm4129, %v4122, %v4126
        %v4131 = vand.u32 2147483647, %v2984
        %vm4132 = vcmp.eq.f32.partialorder %v4131, 8.507059e+37
        %v4133 = vand.u32 %v2984, 2147483648
        %v4134 = vor.u32 1.1754944e-38, %v4133
        %v4135 = vsel %vm4132, %v4134, %v4130
        %v4136 = vmul.f32 %v2664, %v4135
        %v4137 = vrcp.pop %v2987
        %v4138 = vmul.f32 %v2987, %v4137
        %v4139 = vsub.f32 1.0, %v4138
        %v4140 = vmul.f32 %v4137, %v4139
        %v4141 = vadd.f32 %v4137, %v4140
        %vm4142 = vweird.f32 %v2987
        %vm4143 = vweird.f32 %v4137
        %vm4144 = vmor %vm4142, %vm4143
        %v4145 = vsel %vm4144, %v4137, %v4141
        %v4146 = vand.u32 2147483647, %v2987
        %vm4147 = vcmp.eq.f32.partialorder %v4146, 8.507059e+37
        %v4148 = vand.u32 %v2987, 2147483648
        %v4149 = vor.u32 1.1754944e-38, %v4148
        %v4150 = vsel %vm4147, %v4149, %v4145
        %v4151 = vmul.f32 %v2666, %v4150
        %v4152 = vrcp.pop %v2990
        %v4153 = vmul.f32 %v2990, %v4152
        %v4154 = vsub.f32 1.0, %v4153
        %v4155 = vmul.f32 %v4152, %v4154
        %v4156 = vadd.f32 %v4152, %v4155
        %vm4157 = vweird.f32 %v2990
        %vm4158 = vweird.f32 %v4152
        %vm4159 = vmor %vm4157, %vm4158
        %v4160 = vsel %vm4159, %v4152, %v4156
        %v4161 = vand.u32 2147483647, %v2990
        %vm4162 = vcmp.eq.f32.partialorder %v4161, 8.507059e+37
        %v4163 = vand.u32 %v2990, 2147483648
        %v4164 = vor.u32 1.1754944e-38, %v4163
        %v4165 = vsel %vm4162, %v4164, %v4160
        %v4166 = vmul.f32 %v2668, %v4165
        %v4167 = vrcp.pop %v2993
        %v4168 = vmul.f32 %v2993, %v4167
        %v4169 = vsub.f32 1.0, %v4168
        %v4170 = vmul.f32 %v4167, %v4169
        %v4171 = vadd.f32 %v4167, %v4170
        %vm4172 = vweird.f32 %v2993
        %vm4173 = vweird.f32 %v4167
        %vm4174 = vmor %vm4172, %vm4173
        %v4175 = vsel %vm4174, %v4167, %v4171
        %v4176 = vand.u32 2147483647, %v2993
        %vm4177 = vcmp.eq.f32.partialorder %v4176, 8.507059e+37
        %v4178 = vand.u32 %v2993, 2147483648
        %v4179 = vor.u32 1.1754944e-38, %v4178
        %v4180 = vsel %vm4177, %v4179, %v4175
        %v4181 = vmul.f32 %v2670, %v4180
        %v4182 = vrcp.pop %v2996
        %v4183 = vmul.f32 %v2996, %v4182
        %v4184 = vsub.f32 1.0, %v4183
        %v4185 = vmul.f32 %v4182, %v4184
        %v4186 = vadd.f32 %v4182, %v4185
        %vm4187 = vweird.f32 %v2996
        %vm4188 = vweird.f32 %v4182
        %vm4189 = vmor %vm4187, %vm4188
        %v4190 = vsel %vm4189, %v4182, %v4186
        %v4191 = vand.u32 2147483647, %v2996
        %vm4192 = vcmp.eq.f32.partialorder %v4191, 8.507059e+37
        %v4193 = vand.u32 %v2996, 2147483648
        %v4194 = vor.u32 1.1754944e-38, %v4193
        %v4195 = vsel %vm4192, %v4194, %v4190
        %v4196 = vmul.f32 %v2672, %v4195
        %v4197 = vrcp.pop %v2999
        %v4198 = vmul.f32 %v2999, %v4197
        %v4199 = vsub.f32 1.0, %v4198
        %v4200 = vmul.f32 %v4197, %v4199
        %v4201 = vadd.f32 %v4197, %v4200
        %vm4202 = vweird.f32 %v2999
        %vm4203 = vweird.f32 %v4197
        %vm4204 = vmor %vm4202, %vm4203
        %v4205 = vsel %vm4204, %v4197, %v4201
        %v4206 = vand.u32 2147483647, %v2999
        %vm4207 = vcmp.eq.f32.partialorder %v4206, 8.507059e+37
        %v4208 = vand.u32 %v2999, 2147483648
        %v4209 = vor.u32 1.1754944e-38, %v4208
        %v4210 = vsel %vm4207, %v4209, %v4205
        %v4211 = vmul.f32 %v2674, %v4210
        %v4212 = vrcp.pop %v3002
        %v4213 = vmul.f32 %v3002, %v4212
        %v4214 = vsub.f32 1.0, %v4213
        %v4215 = vmul.f32 %v4212, %v4214
        %v4216 = vadd.f32 %v4212, %v4215
        %vm4217 = vweird.f32 %v3002
        %vm4218 = vweird.f32 %v4212
        %vm4219 = vmor %vm4217, %vm4218
        %v4220 = vsel %vm4219, %v4212, %v4216
        %v4221 = vand.u32 2147483647, %v3002
        %vm4222 = vcmp.eq.f32.partialorder %v4221, 8.507059e+37
        %v4223 = vand.u32 %v3002, 2147483648
        %v4224 = vor.u32 1.1754944e-38, %v4223
        %v4225 = vsel %vm4222, %v4224, %v4220
        %v4226 = vmul.f32 %v2676, %v4225
        %v4227 = vrcp.pop %v3005
        %v4228 = vmul.f32 %v3005, %v4227
        %v4229 = vsub.f32 1.0, %v4228
        %v4230 = vmul.f32 %v4227, %v4229
        %v4231 = vadd.f32 %v4227, %v4230
        %vm4232 = vweird.f32 %v3005
        %vm4233 = vweird.f32 %v4227
        %vm4234 = vmor %vm4232, %vm4233
        %v4235 = vsel %vm4234, %v4227, %v4231
        %v4236 = vand.u32 2147483647, %v3005
        %vm4237 = vcmp.eq.f32.partialorder %v4236, 8.507059e+37
        %v4238 = vand.u32 %v3005, 2147483648
        %v4239 = vor.u32 1.1754944e-38, %v4238
        %v4240 = vsel %vm4237, %v4239, %v4235
        %v4241 = vmul.f32 %v2678, %v4240
        %v4242 = vrcp.pop %v3008
        %v4243 = vmul.f32 %v3008, %v4242
        %v4244 = vsub.f32 1.0, %v4243
        %v4245 = vmul.f32 %v4242, %v4244
        %v4246 = vadd.f32 %v4242, %v4245
        %vm4247 = vweird.f32 %v3008
        %vm4248 = vweird.f32 %v4242
        %vm4249 = vmor %vm4247, %vm4248
        %v4250 = vsel %vm4249, %v4242, %v4246
        %v4251 = vand.u32 2147483647, %v3008
        %vm4252 = vcmp.eq.f32.partialorder %v4251, 8.507059e+37
        %v4253 = vand.u32 %v3008, 2147483648
        %v4254 = vor.u32 1.1754944e-38, %v4253
        %v4255 = vsel %vm4252, %v4254, %v4250
        %v4256 = vmul.f32 %v2680, %v4255
        %v4257 = vrcp.pop %v3011
        %v4258 = vmul.f32 %v3011, %v4257
        %v4259 = vsub.f32 1.0, %v4258
        %v4260 = vmul.f32 %v4257, %v4259
        %v4261 = vadd.f32 %v4257, %v4260
        %vm4262 = vweird.f32 %v3011
        %vm4263 = vweird.f32 %v4257
        %vm4264 = vmor %vm4262, %vm4263
        %v4265 = vsel %vm4264, %v4257, %v4261
        %v4266 = vand.u32 2147483647, %v3011
        %vm4267 = vcmp.eq.f32.partialorder %v4266, 8.507059e+37
        %v4268 = vand.u32 %v3011, 2147483648
        %v4269 = vor.u32 1.1754944e-38, %v4268
        %v4270 = vsel %vm4267, %v4269, %v4265
        %v4271 = vmul.f32 %v2682, %v4270
        %v4272 = vrcp.pop %v3014
        %v4273 = vmul.f32 %v3014, %v4272
        %v4274 = vsub.f32 1.0, %v4273
        %v4275 = vmul.f32 %v4272, %v4274
        %v4276 = vadd.f32 %v4272, %v4275
        %vm4277 = vweird.f32 %v3014
        %vm4278 = vweird.f32 %v4272
        %vm4279 = vmor %vm4277, %vm4278
        %v4280 = vsel %vm4279, %v4272, %v4276
        %v4281 = vand.u32 2147483647, %v3014
        %vm4282 = vcmp.eq.f32.partialorder %v4281, 8.507059e+37
        %v4283 = vand.u32 %v3014, 2147483648
        %v4284 = vor.u32 1.1754944e-38, %v4283
        %v4285 = vsel %vm4282, %v4284, %v4280
        %v4286 = vmul.f32 %v2684, %v4285
        %v4287 = vrcp.pop %v3017
        %v4288 = vmul.f32 %v3017, %v4287
        %v4289 = vsub.f32 1.0, %v4288
        %v4290 = vmul.f32 %v4287, %v4289
        %v4291 = vadd.f32 %v4287, %v4290
        %vm4292 = vweird.f32 %v3017
        %vm4293 = vweird.f32 %v4287
        %vm4294 = vmor %vm4292, %vm4293
        %v4295 = vsel %vm4294, %v4287, %v4291
        %v4296 = vand.u32 2147483647, %v3017
        %vm4297 = vcmp.eq.f32.partialorder %v4296, 8.507059e+37
        %v4298 = vand.u32 %v3017, 2147483648
        %v4299 = vor.u32 1.1754944e-38, %v4298
        %v4300 = vsel %vm4297, %v4299, %v4295
        %v4301 = vmul.f32 %v2686, %v4300
        %v4302 = vrcp.pop %v3020
        %v4303 = vmul.f32 %v3020, %v4302
        %v4304 = vsub.f32 1.0, %v4303
        %v4305 = vmul.f32 %v4302, %v4304
        %v4306 = vadd.f32 %v4302, %v4305
        %vm4307 = vweird.f32 %v3020
        %vm4308 = vweird.f32 %v4302
        %vm4309 = vmor %vm4307, %vm4308
        %v4310 = vsel %vm4309, %v4302, %v4306
        %v4311 = vand.u32 2147483647, %v3020
        %vm4312 = vcmp.eq.f32.partialorder %v4311, 8.507059e+37
        %v4313 = vand.u32 %v3020, 2147483648
        %v4314 = vor.u32 1.1754944e-38, %v4313
        %v4315 = vsel %vm4312, %v4314, %v4310
        %v4316 = vmul.f32 %v2688, %v4315
        %v4317 = vrcp.pop %v3023
        %v4318 = vmul.f32 %v3023, %v4317
        %v4319 = vsub.f32 1.0, %v4318
        %v4320 = vmul.f32 %v4317, %v4319
        %v4321 = vadd.f32 %v4317, %v4320
        %vm4322 = vweird.f32 %v3023
        %vm4323 = vweird.f32 %v4317
        %vm4324 = vmor %vm4322, %vm4323
        %v4325 = vsel %vm4324, %v4317, %v4321
        %v4326 = vand.u32 2147483647, %v3023
        %vm4327 = vcmp.eq.f32.partialorder %v4326, 8.507059e+37
        %v4328 = vand.u32 %v3023, 2147483648
        %v4329 = vor.u32 1.1754944e-38, %v4328
        %v4330 = vsel %vm4327, %v4329, %v4325
        %v4331 = vmul.f32 %v2690, %v4330
        %v4332 = vrcp.pop %v3026
        %v4333 = vmul.f32 %v3026, %v4332
        %v4334 = vsub.f32 1.0, %v4333
        %v4335 = vmul.f32 %v4332, %v4334
        %v4336 = vadd.f32 %v4332, %v4335
        %vm4337 = vweird.f32 %v3026
        %vm4338 = vweird.f32 %v4332
        %vm4339 = vmor %vm4337, %vm4338
        %v4340 = vsel %vm4339, %v4332, %v4336
        %v4341 = vand.u32 2147483647, %v3026
        %vm4342 = vcmp.eq.f32.partialorder %v4341, 8.507059e+37
        %v4343 = vand.u32 %v3026, 2147483648
        %v4344 = vor.u32 1.1754944e-38, %v4343
        %v4345 = vsel %vm4342, %v4344, %v4340
        %v4346 = vmul.f32 %v2692, %v4345
        %v4347 = vrcp.pop %v3029
        %v4348 = vmul.f32 %v3029, %v4347
        %v4349 = vsub.f32 1.0, %v4348
        %v4350 = vmul.f32 %v4347, %v4349
        %v4351 = vadd.f32 %v4347, %v4350
        %vm4352 = vweird.f32 %v3029
        %vm4353 = vweird.f32 %v4347
        %vm4354 = vmor %vm4352, %vm4353
        %v4355 = vsel %vm4354, %v4347, %v4351
        %v4356 = vand.u32 2147483647, %v3029
        %vm4357 = vcmp.eq.f32.partialorder %v4356, 8.507059e+37
        %v4358 = vand.u32 %v3029, 2147483648
        %v4359 = vor.u32 1.1754944e-38, %v4358
        %v4360 = vsel %vm4357, %v4359, %v4355
        %v4361 = vmul.f32 %v2694, %v4360
        %v4362 = vrcp.pop %v3032
        %v4363 = vmul.f32 %v3032, %v4362
        %v4364 = vsub.f32 1.0, %v4363
        %v4365 = vmul.f32 %v4362, %v4364
        %v4366 = vadd.f32 %v4362, %v4365
        %vm4367 = vweird.f32 %v3032
        %vm4368 = vweird.f32 %v4362
        %vm4369 = vmor %vm4367, %vm4368
        %v4370 = vsel %vm4369, %v4362, %v4366
        %v4371 = vand.u32 2147483647, %v3032
        %vm4372 = vcmp.eq.f32.partialorder %v4371, 8.507059e+37
        %v4373 = vand.u32 %v3032, 2147483648
        %v4374 = vor.u32 1.1754944e-38, %v4373
        %v4375 = vsel %vm4372, %v4374, %v4370
        %v4376 = vmul.f32 %v2696, %v4375
        %v4377 = vrcp.pop %v3035
        %v4378 = vmul.f32 %v3035, %v4377
        %v4379 = vsub.f32 1.0, %v4378
        %v4380 = vmul.f32 %v4377, %v4379
        %v4381 = vadd.f32 %v4377, %v4380
        %vm4382 = vweird.f32 %v3035
        %vm4383 = vweird.f32 %v4377
        %vm4384 = vmor %vm4382, %vm4383
        %v4385 = vsel %vm4384, %v4377, %v4381
        %v4386 = vand.u32 2147483647, %v3035
        %vm4387 = vcmp.eq.f32.partialorder %v4386, 8.507059e+37
        %v4388 = vand.u32 %v3035, 2147483648
        %v4389 = vor.u32 1.1754944e-38, %v4388
        %v4390 = vsel %vm4387, %v4389, %v4385
        %v4391 = vmul.f32 %v2698, %v4390
        %v4392 = vrcp.pop %v3038
        %v4393 = vmul.f32 %v3038, %v4392
        %v4394 = vsub.f32 1.0, %v4393
        %v4395 = vmul.f32 %v4392, %v4394
        %v4396 = vadd.f32 %v4392, %v4395
        %vm4397 = vweird.f32 %v3038
        %vm4398 = vweird.f32 %v4392
        %vm4399 = vmor %vm4397, %vm4398
        %v4400 = vsel %vm4399, %v4392, %v4396
        %v4401 = vand.u32 2147483647, %v3038
        %vm4402 = vcmp.eq.f32.partialorder %v4401, 8.507059e+37
        %v4403 = vand.u32 %v3038, 2147483648
        %v4404 = vor.u32 1.1754944e-38, %v4403
        %v4405 = vsel %vm4402, %v4404, %v4400
        %v4406 = vmul.f32 %v2700, %v4405
        %v4407 = vrcp.pop %v3041
        %v4408 = vmul.f32 %v3041, %v4407
        %v4409 = vsub.f32 1.0, %v4408
        %v4410 = vmul.f32 %v4407, %v4409
        %v4411 = vadd.f32 %v4407, %v4410
        %vm4412 = vweird.f32 %v3041
        %vm4413 = vweird.f32 %v4407
        %vm4414 = vmor %vm4412, %vm4413
        %v4415 = vsel %vm4414, %v4407, %v4411
        %v4416 = vand.u32 2147483647, %v3041
        %vm4417 = vcmp.eq.f32.partialorder %v4416, 8.507059e+37
        %v4418 = vand.u32 %v3041, 2147483648
        %v4419 = vor.u32 1.1754944e-38, %v4418
        %v4420 = vsel %vm4417, %v4419, %v4415
        %v4421 = vmul.f32 %v2702, %v4420
        %v4422 = vrcp.pop %v3044
        %v4423 = vmul.f32 %v3044, %v4422
        %v4424 = vsub.f32 1.0, %v4423
        %v4425 = vmul.f32 %v4422, %v4424
        %v4426 = vadd.f32 %v4422, %v4425
        %vm4427 = vweird.f32 %v3044
        %vm4428 = vweird.f32 %v4422
        %vm4429 = vmor %vm4427, %vm4428
        %v4430 = vsel %vm4429, %v4422, %v4426
        %v4431 = vand.u32 2147483647, %v3044
        %vm4432 = vcmp.eq.f32.partialorder %v4431, 8.507059e+37
        %v4433 = vand.u32 %v3044, 2147483648
        %v4434 = vor.u32 1.1754944e-38, %v4433
        %v4435 = vsel %vm4432, %v4434, %v4430
        %v4436 = vmul.f32 %v2704, %v4435
        %v4437 = vrcp.pop %v3047
        %v4438 = vmul.f32 %v3047, %v4437
        %v4439 = vsub.f32 1.0, %v4438
        %v4440 = vmul.f32 %v4437, %v4439
        %v4441 = vadd.f32 %v4437, %v4440
        %vm4442 = vweird.f32 %v3047
        %vm4443 = vweird.f32 %v4437
        %vm4444 = vmor %vm4442, %vm4443
        %v4445 = vsel %vm4444, %v4437, %v4441
        %v4446 = vand.u32 2147483647, %v3047
        %vm4447 = vcmp.eq.f32.partialorder %v4446, 8.507059e+37
        %v4448 = vand.u32 %v3047, 2147483648
        %v4449 = vor.u32 1.1754944e-38, %v4448
        %v4450 = vsel %vm4447, %v4449, %v4445
        %v4451 = vmul.f32 %v2706, %v4450
        %v4452 = vrcp.pop %v3050
        %v4453 = vmul.f32 %v3050, %v4452
        %v4454 = vsub.f32 1.0, %v4453
        %v4455 = vmul.f32 %v4452, %v4454
        %v4456 = vadd.f32 %v4452, %v4455
        %vm4457 = vweird.f32 %v3050
        %vm4458 = vweird.f32 %v4452
        %vm4459 = vmor %vm4457, %vm4458
        %v4460 = vsel %vm4459, %v4452, %v4456
        %v4461 = vand.u32 2147483647, %v3050
        %vm4462 = vcmp.eq.f32.partialorder %v4461, 8.507059e+37
        %v4463 = vand.u32 %v3050, 2147483648
        %v4464 = vor.u32 1.1754944e-38, %v4463
        %v4465 = vsel %vm4462, %v4464, %v4460
        %v4466 = vmul.f32 %v2708, %v4465
        %v4467 = vrcp.pop %v3053
        %v4468 = vmul.f32 %v3053, %v4467
        %v4469 = vsub.f32 1.0, %v4468
        %v4470 = vmul.f32 %v4467, %v4469
        %v4471 = vadd.f32 %v4467, %v4470
        %vm4472 = vweird.f32 %v3053
        %vm4473 = vweird.f32 %v4467
        %vm4474 = vmor %vm4472, %vm4473
        %v4475 = vsel %vm4474, %v4467, %v4471
        %v4476 = vand.u32 2147483647, %v3053
        %vm4477 = vcmp.eq.f32.partialorder %v4476, 8.507059e+37
        %v4478 = vand.u32 %v3053, 2147483648
        %v4479 = vor.u32 1.1754944e-38, %v4478
        %v4480 = vsel %vm4477, %v4479, %v4475
        %v4481 = vmul.f32 %v2710, %v4480
        %v4482 = vrcp.pop %v3056
        %v4483 = vmul.f32 %v3056, %v4482
        %v4484 = vsub.f32 1.0, %v4483
        %v4485 = vmul.f32 %v4482, %v4484
        %v4486 = vadd.f32 %v4482, %v4485
        %vm4487 = vweird.f32 %v3056
        %vm4488 = vweird.f32 %v4482
        %vm4489 = vmor %vm4487, %vm4488
        %v4490 = vsel %vm4489, %v4482, %v4486
        %v4491 = vand.u32 2147483647, %v3056
        %vm4492 = vcmp.eq.f32.partialorder %v4491, 8.507059e+37
        %v4493 = vand.u32 %v3056, 2147483648
        %v4494 = vor.u32 1.1754944e-38, %v4493
        %v4495 = vsel %vm4492, %v4494, %v4490
        %v4496 = vmul.f32 %v2712, %v4495
        %v4497 = vrcp.pop %v3059
        %v4498 = vmul.f32 %v3059, %v4497
        %v4499 = vsub.f32 1.0, %v4498
        %v4500 = vmul.f32 %v4497, %v4499
        %v4501 = vadd.f32 %v4497, %v4500
        %vm4502 = vweird.f32 %v3059
        %vm4503 = vweird.f32 %v4497
        %vm4504 = vmor %vm4502, %vm4503
        %v4505 = vsel %vm4504, %v4497, %v4501
        %v4506 = vand.u32 2147483647, %v3059
        %vm4507 = vcmp.eq.f32.partialorder %v4506, 8.507059e+37
        %v4508 = vand.u32 %v3059, 2147483648
        %v4509 = vor.u32 1.1754944e-38, %v4508
        %v4510 = vsel %vm4507, %v4509, %v4505
        %v4511 = vmul.f32 %v2714, %v4510
        %v4512 = vrcp.pop %v3062
        %v4513 = vmul.f32 %v3062, %v4512
        %v4514 = vsub.f32 1.0, %v4513
        %v4515 = vmul.f32 %v4512, %v4514
        %v4516 = vadd.f32 %v4512, %v4515
        %vm4517 = vweird.f32 %v3062
        %vm4518 = vweird.f32 %v4512
        %vm4519 = vmor %vm4517, %vm4518
        %v4520 = vsel %vm4519, %v4512, %v4516
        %v4521 = vand.u32 2147483647, %v3062
        %vm4522 = vcmp.eq.f32.partialorder %v4521, 8.507059e+37
        %v4523 = vand.u32 %v3062, 2147483648
        %v4524 = vor.u32 1.1754944e-38, %v4523
        %v4525 = vsel %vm4522, %v4524, %v4520
        %v4526 = vmul.f32 %v2716, %v4525
        %v4527 = vrcp.pop %v3065
        %v4528 = vmul.f32 %v3065, %v4527
        %v4529 = vsub.f32 1.0, %v4528
        %v4530 = vmul.f32 %v4527, %v4529
        %v4531 = vadd.f32 %v4527, %v4530
        %vm4532 = vweird.f32 %v3065
        %vm4533 = vweird.f32 %v4527
        %vm4534 = vmor %vm4532, %vm4533
        %v4535 = vsel %vm4534, %v4527, %v4531
        %v4536 = vand.u32 2147483647, %v3065
        %vm4537 = vcmp.eq.f32.partialorder %v4536, 8.507059e+37
        %v4538 = vand.u32 %v3065, 2147483648
        %v4539 = vor.u32 1.1754944e-38, %v4538
        %v4540 = vsel %vm4537, %v4539, %v4535
        %v4541 = vmul.f32 %v2718, %v4540
        %v4542 = vrcp.pop %v3068
        %v4543 = vmul.f32 %v3068, %v4542
        %v4544 = vsub.f32 1.0, %v4543
        %v4545 = vmul.f32 %v4542, %v4544
        %v4546 = vadd.f32 %v4542, %v4545
        %vm4547 = vweird.f32 %v3068
        %vm4548 = vweird.f32 %v4542
        %vm4549 = vmor %vm4547, %vm4548
        %v4550 = vsel %vm4549, %v4542, %v4546
        %v4551 = vand.u32 2147483647, %v3068
        %vm4552 = vcmp.eq.f32.partialorder %v4551, 8.507059e+37
        %v4553 = vand.u32 %v3068, 2147483648
        %v4554 = vor.u32 1.1754944e-38, %v4553
        %v4555 = vsel %vm4552, %v4554, %v4550
        %v4556 = vmul.f32 %v2720, %v4555
        %v4557 = vrcp.pop %v3071
        %v4558 = vmul.f32 %v3071, %v4557
        %v4559 = vsub.f32 1.0, %v4558
        %v4560 = vmul.f32 %v4557, %v4559
        %v4561 = vadd.f32 %v4557, %v4560
        %vm4562 = vweird.f32 %v3071
        %vm4563 = vweird.f32 %v4557
        %vm4564 = vmor %vm4562, %vm4563
        %v4565 = vsel %vm4564, %v4557, %v4561
        %v4566 = vand.u32 2147483647, %v3071
        %vm4567 = vcmp.eq.f32.partialorder %v4566, 8.507059e+37
        %v4568 = vand.u32 %v3071, 2147483648
        %v4569 = vor.u32 1.1754944e-38, %v4568
        %v4570 = vsel %vm4567, %v4569, %v4565
        %v4571 = vmul.f32 %v2722, %v4570
        %v4572 = vrcp.pop %v3074
        %v4573 = vmul.f32 %v3074, %v4572
        %v4574 = vsub.f32 1.0, %v4573
        %v4575 = vmul.f32 %v4572, %v4574
        %v4576 = vadd.f32 %v4572, %v4575
        %vm4577 = vweird.f32 %v3074
        %vm4578 = vweird.f32 %v4572
        %vm4579 = vmor %vm4577, %vm4578
        %v4580 = vsel %vm4579, %v4572, %v4576
        %v4581 = vand.u32 2147483647, %v3074
        %vm4582 = vcmp.eq.f32.partialorder %v4581, 8.507059e+37
        %v4583 = vand.u32 %v3074, 2147483648
        %v4584 = vor.u32 1.1754944e-38, %v4583
        %v4585 = vsel %vm4582, %v4584, %v4580
        %v4586 = vmul.f32 %v2724, %v4585
        %v4587 = vrcp.pop %v3077
        %v4588 = vmul.f32 %v3077, %v4587
        %v4589 = vsub.f32 1.0, %v4588
        %v4590 = vmul.f32 %v4587, %v4589
        %v4591 = vadd.f32 %v4587, %v4590
        %vm4592 = vweird.f32 %v3077
        %vm4593 = vweird.f32 %v4587
        %vm4594 = vmor %vm4592, %vm4593
        %v4595 = vsel %vm4594, %v4587, %v4591
        %v4596 = vand.u32 2147483647, %v3077
        %vm4597 = vcmp.eq.f32.partialorder %v4596, 8.507059e+37
        %v4598 = vand.u32 %v3077, 2147483648
        %v4599 = vor.u32 1.1754944e-38, %v4598
        %v4600 = vsel %vm4597, %v4599, %v4595
        %v4601 = vmul.f32 %v2726, %v4600
        %v4602 = vrcp.pop %v3080
        %v4603 = vmul.f32 %v3080, %v4602
        %v4604 = vsub.f32 1.0, %v4603
        %v4605 = vmul.f32 %v4602, %v4604
        %v4606 = vadd.f32 %v4602, %v4605
        %vm4607 = vweird.f32 %v3080
        %vm4608 = vweird.f32 %v4602
        %vm4609 = vmor %vm4607, %vm4608
        %v4610 = vsel %vm4609, %v4602, %v4606
        %v4611 = vand.u32 2147483647, %v3080
        %vm4612 = vcmp.eq.f32.partialorder %v4611, 8.507059e+37
        %v4613 = vand.u32 %v3080, 2147483648
        %v4614 = vor.u32 1.1754944e-38, %v4613
        %v4615 = vsel %vm4612, %v4614, %v4610
        %v4616 = vmul.f32 %v2728, %v4615
        %v4617 = vrcp.pop %v3083
        %v4618 = vmul.f32 %v3083, %v4617
        %v4619 = vsub.f32 1.0, %v4618
        %v4620 = vmul.f32 %v4617, %v4619
        %v4621 = vadd.f32 %v4617, %v4620
        %vm4622 = vweird.f32 %v3083
        %vm4623 = vweird.f32 %v4617
        %vm4624 = vmor %vm4622, %vm4623
        %v4625 = vsel %vm4624, %v4617, %v4621
        %v4626 = vand.u32 2147483647, %v3083
        %vm4627 = vcmp.eq.f32.partialorder %v4626, 8.507059e+37
        %v4628 = vand.u32 %v3083, 2147483648
        %v4629 = vor.u32 1.1754944e-38, %v4628
        %v4630 = vsel %vm4627, %v4629, %v4625
        %v4631 = vmul.f32 %v2730, %v4630
        %v4632 = vrcp.pop %v3086
        %v4633 = vmul.f32 %v3086, %v4632
        %v4634 = vsub.f32 1.0, %v4633
        %v4635 = vmul.f32 %v4632, %v4634
        %v4636 = vadd.f32 %v4632, %v4635
        %vm4637 = vweird.f32 %v3086
        %vm4638 = vweird.f32 %v4632
        %vm4639 = vmor %vm4637, %vm4638
        %v4640 = vsel %vm4639, %v4632, %v4636
        %v4641 = vand.u32 2147483647, %v3086
        %vm4642 = vcmp.eq.f32.partialorder %v4641, 8.507059e+37
        %v4643 = vand.u32 %v3086, 2147483648
        %v4644 = vor.u32 1.1754944e-38, %v4643
        %v4645 = vsel %vm4642, %v4644, %v4640
        %v4646 = vmul.f32 %v2732, %v4645
        %v4647 = vrcp.pop %v3089
        %v4648 = vmul.f32 %v3089, %v4647
        %v4649 = vsub.f32 1.0, %v4648
        %v4650 = vmul.f32 %v4647, %v4649
        %v4651 = vadd.f32 %v4647, %v4650
        %vm4652 = vweird.f32 %v3089
        %vm4653 = vweird.f32 %v4647
        %vm4654 = vmor %vm4652, %vm4653
        %v4655 = vsel %vm4654, %v4647, %v4651
        %v4656 = vand.u32 2147483647, %v3089
        %vm4657 = vcmp.eq.f32.partialorder %v4656, 8.507059e+37
        %v4658 = vand.u32 %v3089, 2147483648
        %v4659 = vor.u32 1.1754944e-38, %v4658
        %v4660 = vsel %vm4657, %v4659, %v4655
        %v4661 = vmul.f32 %v2734, %v4660
        %v4662 = vrcp.pop %v3092
        %v4663 = vmul.f32 %v3092, %v4662
        %v4664 = vsub.f32 1.0, %v4663
        %v4665 = vmul.f32 %v4662, %v4664
        %v4666 = vadd.f32 %v4662, %v4665
        %vm4667 = vweird.f32 %v3092
        %vm4668 = vweird.f32 %v4662
        %vm4669 = vmor %vm4667, %vm4668
        %v4670 = vsel %vm4669, %v4662, %v4666
        %v4671 = vand.u32 2147483647, %v3092
        %vm4672 = vcmp.eq.f32.partialorder %v4671, 8.507059e+37
        %v4673 = vand.u32 %v3092, 2147483648
        %v4674 = vor.u32 1.1754944e-38, %v4673
        %v4675 = vsel %vm4672, %v4674, %v4670
        %v4676 = vmul.f32 %v2736, %v4675
        %v4677 = vrcp.pop %v3095
        %v4678 = vmul.f32 %v3095, %v4677
        %v4679 = vsub.f32 1.0, %v4678
        %v4680 = vmul.f32 %v4677, %v4679
        %v4681 = vadd.f32 %v4677, %v4680
        %vm4682 = vweird.f32 %v3095
        %vm4683 = vweird.f32 %v4677
        %vm4684 = vmor %vm4682, %vm4683
        %v4685 = vsel %vm4684, %v4677, %v4681
        %v4686 = vand.u32 2147483647, %v3095
        %vm4687 = vcmp.eq.f32.partialorder %v4686, 8.507059e+37
        %v4688 = vand.u32 %v3095, 2147483648
        %v4689 = vor.u32 1.1754944e-38, %v4688
        %v4690 = vsel %vm4687, %v4689, %v4685
        %v4691 = vmul.f32 %v2738, %v4690
        %v4692 = vrcp.pop %v3098
        %v4693 = vmul.f32 %v3098, %v4692
        %v4694 = vsub.f32 1.0, %v4693
        %v4695 = vmul.f32 %v4692, %v4694
        %v4696 = vadd.f32 %v4692, %v4695
        %vm4697 = vweird.f32 %v3098
        %vm4698 = vweird.f32 %v4692
        %vm4699 = vmor %vm4697, %vm4698
        %v4700 = vsel %vm4699, %v4692, %v4696
        %v4701 = vand.u32 2147483647, %v3098
        %vm4702 = vcmp.eq.f32.partialorder %v4701, 8.507059e+37
        %v4703 = vand.u32 %v3098, 2147483648
        %v4704 = vor.u32 1.1754944e-38, %v4703
        %v4705 = vsel %vm4702, %v4704, %v4700
        %v4706 = vmul.f32 %v2740, %v4705
        %v4707 = vrcp.pop %v3101
        %v4708 = vmul.f32 %v3101, %v4707
        %v4709 = vsub.f32 1.0, %v4708
        %v4710 = vmul.f32 %v4707, %v4709
        %v4711 = vadd.f32 %v4707, %v4710
        %vm4712 = vweird.f32 %v3101
        %vm4713 = vweird.f32 %v4707
        %vm4714 = vmor %vm4712, %vm4713
        %v4715 = vsel %vm4714, %v4707, %v4711
        %v4716 = vand.u32 2147483647, %v3101
        %vm4717 = vcmp.eq.f32.partialorder %v4716, 8.507059e+37
        %v4718 = vand.u32 %v3101, 2147483648
        %v4719 = vor.u32 1.1754944e-38, %v4718
        %v4720 = vsel %vm4717, %v4719, %v4715
        %v4721 = vmul.f32 %v2742, %v4720
        %v4722 = vrcp.pop %v3104
        %v4723 = vmul.f32 %v3104, %v4722
        %v4724 = vsub.f32 1.0, %v4723
        %v4725 = vmul.f32 %v4722, %v4724
        %v4726 = vadd.f32 %v4722, %v4725
        %vm4727 = vweird.f32 %v3104
        %vm4728 = vweird.f32 %v4722
        %vm4729 = vmor %vm4727, %vm4728
        %v4730 = vsel %vm4729, %v4722, %v4726
        %v4731 = vand.u32 2147483647, %v3104
        %vm4732 = vcmp.eq.f32.partialorder %v4731, 8.507059e+37
        %v4733 = vand.u32 %v3104, 2147483648
        %v4734 = vor.u32 1.1754944e-38, %v4733
        %v4735 = vsel %vm4732, %v4734, %v4730
        %v4736 = vmul.f32 %v2744, %v4735
        %v4737 = vrcp.pop %v3107
        %v4738 = vmul.f32 %v3107, %v4737
        %v4739 = vsub.f32 1.0, %v4738
        %v4740 = vmul.f32 %v4737, %v4739
        %v4741 = vadd.f32 %v4737, %v4740
        %vm4742 = vweird.f32 %v3107
        %vm4743 = vweird.f32 %v4737
        %vm4744 = vmor %vm4742, %vm4743
        %v4745 = vsel %vm4744, %v4737, %v4741
        %v4746 = vand.u32 2147483647, %v3107
        %vm4747 = vcmp.eq.f32.partialorder %v4746, 8.507059e+37
        %v4748 = vand.u32 %v3107, 2147483648
        %v4749 = vor.u32 1.1754944e-38, %v4748
        %v4750 = vsel %vm4747, %v4749, %v4745
        %v4751 = vmul.f32 %v2746, %v4750
        %v4752 = vrcp.pop %v3110
        %v4753 = vmul.f32 %v3110, %v4752
        %v4754 = vsub.f32 1.0, %v4753
        %v4755 = vmul.f32 %v4752, %v4754
        %v4756 = vadd.f32 %v4752, %v4755
        %vm4757 = vweird.f32 %v3110
        %vm4758 = vweird.f32 %v4752
        %vm4759 = vmor %vm4757, %vm4758
        %v4760 = vsel %vm4759, %v4752, %v4756
        %v4761 = vand.u32 2147483647, %v3110
        %vm4762 = vcmp.eq.f32.partialorder %v4761, 8.507059e+37
        %v4763 = vand.u32 %v3110, 2147483648
        %v4764 = vor.u32 1.1754944e-38, %v4763
        %v4765 = vsel %vm4762, %v4764, %v4760
        %v4766 = vmul.f32 %v2748, %v4765
        %v4767 = vrcp.pop %v3113
        %v4768 = vmul.f32 %v3113, %v4767
        %v4769 = vsub.f32 1.0, %v4768
        %v4770 = vmul.f32 %v4767, %v4769
        %v4771 = vadd.f32 %v4767, %v4770
        %vm4772 = vweird.f32 %v3113
        %vm4773 = vweird.f32 %v4767
        %vm4774 = vmor %vm4772, %vm4773
        %v4775 = vsel %vm4774, %v4767, %v4771
        %v4776 = vand.u32 2147483647, %v3113
        %vm4777 = vcmp.eq.f32.partialorder %v4776, 8.507059e+37
        %v4778 = vand.u32 %v3113, 2147483648
        %v4779 = vor.u32 1.1754944e-38, %v4778
        %v4780 = vsel %vm4777, %v4779, %v4775
        %v4781 = vmul.f32 %v2750, %v4780
        %v4782 = vrcp.pop %v3116
        %v4783 = vmul.f32 %v3116, %v4782
        %v4784 = vsub.f32 1.0, %v4783
        %v4785 = vmul.f32 %v4782, %v4784
        %v4786 = vadd.f32 %v4782, %v4785
        %vm4787 = vweird.f32 %v3116
        %vm4788 = vweird.f32 %v4782
        %vm4789 = vmor %vm4787, %vm4788
        %v4790 = vsel %vm4789, %v4782, %v4786
        %v4791 = vand.u32 2147483647, %v3116
        %vm4792 = vcmp.eq.f32.partialorder %v4791, 8.507059e+37
        %v4793 = vand.u32 %v3116, 2147483648
        %v4794 = vor.u32 1.1754944e-38, %v4793
        %v4795 = vsel %vm4792, %v4794, %v4790
        %v4796 = vmul.f32 %v2752, %v4795
        %v4797 = vrcp.pop %v3119
        %v4798 = vmul.f32 %v3119, %v4797
        %v4799 = vsub.f32 1.0, %v4798
        %v4800 = vmul.f32 %v4797, %v4799
        %v4801 = vadd.f32 %v4797, %v4800
        %vm4802 = vweird.f32 %v3119
        %vm4803 = vweird.f32 %v4797
        %vm4804 = vmor %vm4802, %vm4803
        %v4805 = vsel %vm4804, %v4797, %v4801
        %v4806 = vand.u32 2147483647, %v3119
        %vm4807 = vcmp.eq.f32.partialorder %v4806, 8.507059e+37
        %v4808 = vand.u32 %v3119, 2147483648
        %v4809 = vor.u32 1.1754944e-38, %v4808
        %v4810 = vsel %vm4807, %v4809, %v4805
        %v4811 = vmul.f32 %v2754, %v4810
        %v4812 = vrcp.pop %v3122
        %v4813 = vmul.f32 %v3122, %v4812
        %v4814 = vsub.f32 1.0, %v4813
        %v4815 = vmul.f32 %v4812, %v4814
        %v4816 = vadd.f32 %v4812, %v4815
        %vm4817 = vweird.f32 %v3122
        %vm4818 = vweird.f32 %v4812
        %vm4819 = vmor %vm4817, %vm4818
        %v4820 = vsel %vm4819, %v4812, %v4816
        %v4821 = vand.u32 2147483647, %v3122
        %vm4822 = vcmp.eq.f32.partialorder %v4821, 8.507059e+37
        %v4823 = vand.u32 %v3122, 2147483648
        %v4824 = vor.u32 1.1754944e-38, %v4823
        %v4825 = vsel %vm4822, %v4824, %v4820
        %v4826 = vmul.f32 %v2756, %v4825
        %v4827 = vrcp.pop %v3125
        %v4828 = vmul.f32 %v3125, %v4827
        %v4829 = vsub.f32 1.0, %v4828
        %v4830 = vmul.f32 %v4827, %v4829
        %v4831 = vadd.f32 %v4827, %v4830
        %vm4832 = vweird.f32 %v3125
        %vm4833 = vweird.f32 %v4827
        %vm4834 = vmor %vm4832, %vm4833
        %v4835 = vsel %vm4834, %v4827, %v4831
        %v4836 = vand.u32 2147483647, %v3125
        %vm4837 = vcmp.eq.f32.partialorder %v4836, 8.507059e+37
        %v4838 = vand.u32 %v3125, 2147483648
        %v4839 = vor.u32 1.1754944e-38, %v4838
        %v4840 = vsel %vm4837, %v4839, %v4835
        %v4841 = vmul.f32 %v2758, %v4840
        %v4842 = vrcp.pop %v3128
        %v4843 = vmul.f32 %v3128, %v4842
        %v4844 = vsub.f32 1.0, %v4843
        %v4845 = vmul.f32 %v4842, %v4844
        %v4846 = vadd.f32 %v4842, %v4845
        %vm4847 = vweird.f32 %v3128
        %vm4848 = vweird.f32 %v4842
        %vm4849 = vmor %vm4847, %vm4848
        %v4850 = vsel %vm4849, %v4842, %v4846
        %v4851 = vand.u32 2147483647, %v3128
        %vm4852 = vcmp.eq.f32.partialorder %v4851, 8.507059e+37
        %v4853 = vand.u32 %v3128, 2147483648
        %v4854 = vor.u32 1.1754944e-38, %v4853
        %v4855 = vsel %vm4852, %v4854, %v4850
        %v4856 = vmul.f32 %v2760, %v4855
        %v4857 = vrcp.pop %v3131
        %v4858 = vmul.f32 %v3131, %v4857
        %v4859 = vsub.f32 1.0, %v4858
        %v4860 = vmul.f32 %v4857, %v4859
        %v4861 = vadd.f32 %v4857, %v4860
        %vm4862 = vweird.f32 %v3131
        %vm4863 = vweird.f32 %v4857
        %vm4864 = vmor %vm4862, %vm4863
        %v4865 = vsel %vm4864, %v4857, %v4861
        %v4866 = vand.u32 2147483647, %v3131
        %vm4867 = vcmp.eq.f32.partialorder %v4866, 8.507059e+37
        %v4868 = vand.u32 %v3131, 2147483648
        %v4869 = vor.u32 1.1754944e-38, %v4868
        %v4870 = vsel %vm4867, %v4869, %v4865
        %v4871 = vmul.f32 %v2762, %v4870
        %v4872 = vrcp.pop %v3134
        %v4873 = vmul.f32 %v3134, %v4872
        %v4874 = vsub.f32 1.0, %v4873
        %v4875 = vmul.f32 %v4872, %v4874
        %v4876 = vadd.f32 %v4872, %v4875
        %vm4877 = vweird.f32 %v3134
        %vm4878 = vweird.f32 %v4872
        %vm4879 = vmor %vm4877, %vm4878
        %v4880 = vsel %vm4879, %v4872, %v4876
        %v4881 = vand.u32 2147483647, %v3134
        %vm4882 = vcmp.eq.f32.partialorder %v4881, 8.507059e+37
        %v4883 = vand.u32 %v3134, 2147483648
        %v4884 = vor.u32 1.1754944e-38, %v4883
        %v4885 = vsel %vm4882, %v4884, %v4880
        %v4886 = vmul.f32 %v2764, %v4885
        %v4887 = vrcp.pop %v3137
        %v4888 = vmul.f32 %v3137, %v4887
        %v4889 = vsub.f32 1.0, %v4888
        %v4890 = vmul.f32 %v4887, %v4889
        %v4891 = vadd.f32 %v4887, %v4890
        %vm4892 = vweird.f32 %v3137
        %vm4893 = vweird.f32 %v4887
        %vm4894 = vmor %vm4892, %vm4893
        %v4895 = vsel %vm4894, %v4887, %v4891
        %v4896 = vand.u32 2147483647, %v3137
        %vm4897 = vcmp.eq.f32.partialorder %v4896, 8.507059e+37
        %v4898 = vand.u32 %v3137, 2147483648
        %v4899 = vor.u32 1.1754944e-38, %v4898
        %v4900 = vsel %vm4897, %v4899, %v4895
        %v4901 = vmul.f32 %v2766, %v4900
        %v4902 = vrcp.pop %v3140
        %v4903 = vmul.f32 %v3140, %v4902
        %v4904 = vsub.f32 1.0, %v4903
        %v4905 = vmul.f32 %v4902, %v4904
        %v4906 = vadd.f32 %v4902, %v4905
        %vm4907 = vweird.f32 %v3140
        %vm4908 = vweird.f32 %v4902
        %vm4909 = vmor %vm4907, %vm4908
        %v4910 = vsel %vm4909, %v4902, %v4906
        %v4911 = vand.u32 2147483647, %v3140
        %vm4912 = vcmp.eq.f32.partialorder %v4911, 8.507059e+37
        %v4913 = vand.u32 %v3140, 2147483648
        %v4914 = vor.u32 1.1754944e-38, %v4913
        %v4915 = vsel %vm4912, %v4914, %v4910
        %v4916 = vmul.f32 %v2768, %v4915
        %v4917 = vrcp.pop %v3143
        %v4918 = vmul.f32 %v3143, %v4917
        %v4919 = vsub.f32 1.0, %v4918
        %v4920 = vmul.f32 %v4917, %v4919
        %v4921 = vadd.f32 %v4917, %v4920
        %vm4922 = vweird.f32 %v3143
        %vm4923 = vweird.f32 %v4917
        %vm4924 = vmor %vm4922, %vm4923
        %v4925 = vsel %vm4924, %v4917, %v4921
        %v4926 = vand.u32 2147483647, %v3143
        %vm4927 = vcmp.eq.f32.partialorder %v4926, 8.507059e+37
        %v4928 = vand.u32 %v3143, 2147483648
        %v4929 = vor.u32 1.1754944e-38, %v4928
        %v4930 = vsel %vm4927, %v4929, %v4925
        %v4931 = vmul.f32 %v2770, %v4930
        %v4932 = vrcp.pop %v3146
        %v4933 = vmul.f32 %v3146, %v4932
        %v4934 = vsub.f32 1.0, %v4933
        %v4935 = vmul.f32 %v4932, %v4934
        %v4936 = vadd.f32 %v4932, %v4935
        %vm4937 = vweird.f32 %v3146
        %vm4938 = vweird.f32 %v4932
        %vm4939 = vmor %vm4937, %vm4938
        %v4940 = vsel %vm4939, %v4932, %v4936
        %v4941 = vand.u32 2147483647, %v3146
        %vm4942 = vcmp.eq.f32.partialorder %v4941, 8.507059e+37
        %v4943 = vand.u32 %v3146, 2147483648
        %v4944 = vor.u32 1.1754944e-38, %v4943
        %v4945 = vsel %vm4942, %v4944, %v4940
        %v4946 = vmul.f32 %v2772, %v4945
        %v4947 = vrcp.pop %v3149
        %v4948 = vmul.f32 %v3149, %v4947
        %v4949 = vsub.f32 1.0, %v4948
        %v4950 = vmul.f32 %v4947, %v4949
        %v4951 = vadd.f32 %v4947, %v4950
        %vm4952 = vweird.f32 %v3149
        %vm4953 = vweird.f32 %v4947
        %vm4954 = vmor %vm4952, %vm4953
        %v4955 = vsel %vm4954, %v4947, %v4951
        %v4956 = vand.u32 2147483647, %v3149
        %vm4957 = vcmp.eq.f32.partialorder %v4956, 8.507059e+37
        %v4958 = vand.u32 %v3149, 2147483648
        %v4959 = vor.u32 1.1754944e-38, %v4958
        %v4960 = vsel %vm4957, %v4959, %v4955
        %v4961 = vmul.f32 %v2774, %v4960
        %v4962 = vrcp.pop %v3152
        %v4963 = vmul.f32 %v3152, %v4962
        %v4964 = vsub.f32 1.0, %v4963
        %v4965 = vmul.f32 %v4962, %v4964
        %v4966 = vadd.f32 %v4962, %v4965
        %vm4967 = vweird.f32 %v3152
        %vm4968 = vweird.f32 %v4962
        %vm4969 = vmor %vm4967, %vm4968
        %v4970 = vsel %vm4969, %v4962, %v4966
        %v4971 = vand.u32 2147483647, %v3152
        %vm4972 = vcmp.eq.f32.partialorder %v4971, 8.507059e+37
        %v4973 = vand.u32 %v3152, 2147483648
        %v4974 = vor.u32 1.1754944e-38, %v4973
        %v4975 = vsel %vm4972, %v4974, %v4970
        %v4976 = vmul.f32 %v2776, %v4975
        %v4977 = vrcp.pop %v3155
        %v4978 = vmul.f32 %v3155, %v4977
        %v4979 = vsub.f32 1.0, %v4978
        %v4980 = vmul.f32 %v4977, %v4979
        %v4981 = vadd.f32 %v4977, %v4980
        %vm4982 = vweird.f32 %v3155
        %vm4983 = vweird.f32 %v4977
        %vm4984 = vmor %vm4982, %vm4983
        %v4985 = vsel %vm4984, %v4977, %v4981
        %v4986 = vand.u32 2147483647, %v3155
        %vm4987 = vcmp.eq.f32.partialorder %v4986, 8.507059e+37
        %v4988 = vand.u32 %v3155, 2147483648
        %v4989 = vor.u32 1.1754944e-38, %v4988
        %v4990 = vsel %vm4987, %v4989, %v4985
        %v4991 = vmul.f32 %v2778, %v4990
        %v4992 = vrcp.pop %v3158
        %v4993 = vmul.f32 %v3158, %v4992
        %v4994 = vsub.f32 1.0, %v4993
        %v4995 = vmul.f32 %v4992, %v4994
        %v4996 = vadd.f32 %v4992, %v4995
        %vm4997 = vweird.f32 %v3158
        %vm4998 = vweird.f32 %v4992
        %vm4999 = vmor %vm4997, %vm4998
        %v5000 = vsel %vm4999, %v4992, %v4996
        %v5001 = vand.u32 2147483647, %v3158
        %vm5002 = vcmp.eq.f32.partialorder %v5001, 8.507059e+37
        %v5003 = vand.u32 %v3158, 2147483648
        %v5004 = vor.u32 1.1754944e-38, %v5003
        %v5005 = vsel %vm5002, %v5004, %v5000
        %v5006 = vmul.f32 %v2780, %v5005
        %v5007 = vrcp.pop %v3161
        %v5008 = vmul.f32 %v3161, %v5007
        %v5009 = vsub.f32 1.0, %v5008
        %v5010 = vmul.f32 %v5007, %v5009
        %v5011 = vadd.f32 %v5007, %v5010
        %vm5012 = vweird.f32 %v3161
        %vm5013 = vweird.f32 %v5007
        %vm5014 = vmor %vm5012, %vm5013
        %v5015 = vsel %vm5014, %v5007, %v5011
        %v5016 = vand.u32 2147483647, %v3161
        %vm5017 = vcmp.eq.f32.partialorder %v5016, 8.507059e+37
        %v5018 = vand.u32 %v3161, 2147483648
        %v5019 = vor.u32 1.1754944e-38, %v5018
        %v5020 = vsel %vm5017, %v5019, %v5015
        %v5021 = vmul.f32 %v2782, %v5020
        %v5022 = vrcp.pop %v3164
        %v5023 = vmul.f32 %v3164, %v5022
        %v5024 = vsub.f32 1.0, %v5023
        %v5025 = vmul.f32 %v5022, %v5024
        %v5026 = vadd.f32 %v5022, %v5025
        %vm5027 = vweird.f32 %v3164
        %vm5028 = vweird.f32 %v5022
        %vm5029 = vmor %vm5027, %vm5028
        %v5030 = vsel %vm5029, %v5022, %v5026
        %v5031 = vand.u32 2147483647, %v3164
        %vm5032 = vcmp.eq.f32.partialorder %v5031, 8.507059e+37
        %v5033 = vand.u32 %v3164, 2147483648
        %v5034 = vor.u32 1.1754944e-38, %v5033
        %v5035 = vsel %vm5032, %v5034, %v5030
        %v5036 = vmul.f32 %v2784, %v5035
        %v5037 = vrcp.pop %v3167
        %v5038 = vmul.f32 %v3167, %v5037
        %v5039 = vsub.f32 1.0, %v5038
        %v5040 = vmul.f32 %v5037, %v5039
        %v5041 = vadd.f32 %v5037, %v5040
        %vm5042 = vweird.f32 %v3167
        %vm5043 = vweird.f32 %v5037
        %vm5044 = vmor %vm5042, %vm5043
        %v5045 = vsel %vm5044, %v5037, %v5041
        %v5046 = vand.u32 2147483647, %v3167
        %vm5047 = vcmp.eq.f32.partialorder %v5046, 8.507059e+37
        %v5048 = vand.u32 %v3167, 2147483648
        %v5049 = vor.u32 1.1754944e-38, %v5048
        %v5050 = vsel %vm5047, %v5049, %v5045
        %v5051 = vmul.f32 %v2786, %v5050
        %v5052 = vrcp.pop %v3170
        %v5053 = vmul.f32 %v3170, %v5052
        %v5054 = vsub.f32 1.0, %v5053
        %v5055 = vmul.f32 %v5052, %v5054
        %v5056 = vadd.f32 %v5052, %v5055
        %vm5057 = vweird.f32 %v3170
        %vm5058 = vweird.f32 %v5052
        %vm5059 = vmor %vm5057, %vm5058
        %v5060 = vsel %vm5059, %v5052, %v5056
        %v5061 = vand.u32 2147483647, %v3170
        %vm5062 = vcmp.eq.f32.partialorder %v5061, 8.507059e+37
        %v5063 = vand.u32 %v3170, 2147483648
        %v5064 = vor.u32 1.1754944e-38, %v5063
        %v5065 = vsel %vm5062, %v5064, %v5060
        %v5066 = vmul.f32 %v2788, %v5065
        %v5067 = vrcp.pop %v3173
        %v5068 = vmul.f32 %v3173, %v5067
        %v5069 = vsub.f32 1.0, %v5068
        %v5070 = vmul.f32 %v5067, %v5069
        %v5071 = vadd.f32 %v5067, %v5070
        %vm5072 = vweird.f32 %v3173
        %vm5073 = vweird.f32 %v5067
        %vm5074 = vmor %vm5072, %vm5073
        %v5075 = vsel %vm5074, %v5067, %v5071
        %v5076 = vand.u32 2147483647, %v3173
        %vm5077 = vcmp.eq.f32.partialorder %v5076, 8.507059e+37
        %v5078 = vand.u32 %v3173, 2147483648
        %v5079 = vor.u32 1.1754944e-38, %v5078
        %v5080 = vsel %vm5077, %v5079, %v5075
        %v5081 = vmul.f32 %v2790, %v5080
        %v5082 = vrcp.pop %v3176
        %v5083 = vmul.f32 %v3176, %v5082
        %v5084 = vsub.f32 1.0, %v5083
        %v5085 = vmul.f32 %v5082, %v5084
        %v5086 = vadd.f32 %v5082, %v5085
        %vm5087 = vweird.f32 %v3176
        %vm5088 = vweird.f32 %v5082
        %vm5089 = vmor %vm5087, %vm5088
        %v5090 = vsel %vm5089, %v5082, %v5086
        %v5091 = vand.u32 2147483647, %v3176
        %vm5092 = vcmp.eq.f32.partialorder %v5091, 8.507059e+37
        %v5093 = vand.u32 %v3176, 2147483648
        %v5094 = vor.u32 1.1754944e-38, %v5093
        %v5095 = vsel %vm5092, %v5094, %v5090
        %v5096 = vmul.f32 %v2792, %v5095
        %v5097 = vpack.c.bf16 %v3206, %v3191
        %v5098 = vpack.c.bf16 %v3236, %v3221
        %v5099 = vpack.c.bf16 %v3266, %v3251
        %v5100 = vpack.c.bf16 %v3296, %v3281
        %v5101 = vpack.c.bf16 %v3326, %v3311
        %v5102 = vpack.c.bf16 %v3356, %v3341
        %v5103 = vpack.c.bf16 %v3386, %v3371
        %v5104 = vpack.c.bf16 %v3416, %v3401
        %v5105 = vpack.c.bf16 %v3446, %v3431
        %v5106 = vpack.c.bf16 %v3476, %v3461
        %v5107 = vpack.c.bf16 %v3506, %v3491
        %v5108 = vpack.c.bf16 %v3536, %v3521
        %v5109 = vpack.c.bf16 %v3566, %v3551
        %v5110 = vpack.c.bf16 %v3596, %v3581
        %v5111 = vpack.c.bf16 %v3626, %v3611
        %v5112 = vpack.c.bf16 %v3656, %v3641
        %v5113 = vpack.c.bf16 %v3686, %v3671
        %v5114 = vpack.c.bf16 %v3716, %v3701
        %v5115 = vpack.c.bf16 %v3746, %v3731
        %v5116 = vpack.c.bf16 %v3776, %v3761
        %v5117 = vpack.c.bf16 %v3806, %v3791
        %v5118 = vpack.c.bf16 %v3836, %v3821
        %v5119 = vpack.c.bf16 %v3866, %v3851
        %v5120 = vpack.c.bf16 %v3896, %v3881
        %v5121 = vpack.c.bf16 %v3926, %v3911
        %v5122 = vpack.c.bf16 %v3956, %v3941
        %v5123 = vpack.c.bf16 %v3986, %v3971
        %v5124 = vpack.c.bf16 %v4016, %v4001
        %v5125 = vpack.c.bf16 %v4046, %v4031
        %v5126 = vpack.c.bf16 %v4076, %v4061
        %v5127 = vpack.c.bf16 %v4106, %v4091
        %v5128 = vpack.c.bf16 %v4136, %v4121
        %v5129 = vpack.c.bf16 %v4166, %v4151
        %v5130 = vpack.c.bf16 %v4196, %v4181
        %v5131 = vpack.c.bf16 %v4226, %v4211
        %v5132 = vpack.c.bf16 %v4256, %v4241
        %v5133 = vpack.c.bf16 %v4286, %v4271
        %v5134 = vpack.c.bf16 %v4316, %v4301
        %v5135 = vpack.c.bf16 %v4346, %v4331
        %v5136 = vpack.c.bf16 %v4376, %v4361
        %v5137 = vpack.c.bf16 %v4406, %v4391
        %v5138 = vpack.c.bf16 %v4436, %v4421
        %v5139 = vpack.c.bf16 %v4466, %v4451
        %v5140 = vpack.c.bf16 %v4496, %v4481
        %v5141 = vpack.c.bf16 %v4526, %v4511
        %v5142 = vpack.c.bf16 %v4556, %v4541
        %v5143 = vpack.c.bf16 %v4586, %v4571
        %v5144 = vpack.c.bf16 %v4616, %v4601
        %v5145 = vpack.c.bf16 %v4646, %v4631
        %v5146 = vpack.c.bf16 %v4676, %v4661
        %v5147 = vpack.c.bf16 %v4706, %v4691
        %v5148 = vpack.c.bf16 %v4736, %v4721
        %v5149 = vpack.c.bf16 %v4766, %v4751
        %v5150 = vpack.c.bf16 %v4796, %v4781
        %v5151 = vpack.c.bf16 %v4826, %v4811
        %v5152 = vpack.c.bf16 %v4856, %v4841
        %v5153 = vpack.c.bf16 %v4886, %v4871
        %v5154 = vpack.c.bf16 %v4916, %v4901
        %v5155 = vpack.c.bf16 %v4946, %v4931
        %v5156 = vpack.c.bf16 %v4976, %v4961
        %v5157 = vpack.c.bf16 %v5006, %v4991
        %v5158 = vpack.c.bf16 %v5036, %v5021
        %v5159 = vpack.c.bf16 %v5066, %v5051
        %v5160 = vpack.c.bf16 %v5096, %v5081
        %v5161 = vpack.c.bf16 %v1310, %v1308
        %v5162 = vpack.c.bf16 %v1315, %v1313
        %v5163 = vpack.c.bf16 %v1320, %v1318
        %v5164 = vpack.c.bf16 %v1325, %v1323
        %v5166 = vsel %vm2024, %v5097, 0
        %v5169 = vsel %vm2024, %v5098, 0
        %v5172 = vsel %vm2024, %v5099, 0
        %v5175 = vsel %vm2024, %v5100, 0
        %v5178 = vsel %vm2024, %v5101, 0
        %v5181 = vsel %vm2024, %v5102, 0
        %v5184 = vsel %vm2024, %v5103, 0
        %v5187 = vsel %vm2024, %v5104, 0
        %v5190 = vsel %vm2024, %v5105, 0
        %v5193 = vsel %vm2024, %v5106, 0
        %v5196 = vsel %vm2024, %v5107, 0
        %v5199 = vsel %vm2024, %v5108, 0
        %v5202 = vsel %vm2024, %v5109, 0
        %v5205 = vsel %vm2024, %v5110, 0
        %v5208 = vsel %vm2024, %v5111, 0
        %v5211 = vsel %vm2024, %v5112, 0
        %v5214 = vsel %vm2024, %v5113, 0
        %v5217 = vsel %vm2024, %v5114, 0
        %v5220 = vsel %vm2024, %v5115, 0
        %v5223 = vsel %vm2024, %v5116, 0
        %v5226 = vsel %vm2024, %v5117, 0
        %v5229 = vsel %vm2024, %v5118, 0
        %v5232 = vsel %vm2024, %v5119, 0
        %v5235 = vsel %vm2024, %v5120, 0
        %v5238 = vsel %vm2024, %v5121, 0
        %v5241 = vsel %vm2024, %v5122, 0
        %v5244 = vsel %vm2024, %v5123, 0
        %v5247 = vsel %vm2024, %v5124, 0
        %v5250 = vsel %vm2024, %v5125, 0
        %v5253 = vsel %vm2024, %v5126, 0
        %v5256 = vsel %vm2024, %v5127, 0
        %v5259 = vsel %vm2024, %v5128, 0
        %v5262 = vsel %vm2024, %v5129, 0
        %v5265 = vsel %vm2024, %v5130, 0
        %v5268 = vsel %vm2024, %v5131, 0
        %v5271 = vsel %vm2024, %v5132, 0
        %v5274 = vsel %vm2024, %v5133, 0
        %v5277 = vsel %vm2024, %v5134, 0
        %v5280 = vsel %vm2024, %v5135, 0
        %v5283 = vsel %vm2024, %v5136, 0
        %v5286 = vsel %vm2024, %v5137, 0
        %v5289 = vsel %vm2024, %v5138, 0
        %v5292 = vsel %vm2024, %v5139, 0
        %v5295 = vsel %vm2024, %v5140, 0
        %v5298 = vsel %vm2024, %v5141, 0
        %v5301 = vsel %vm2024, %v5142, 0
        %v5304 = vsel %vm2024, %v5143, 0
        %v5307 = vsel %vm2024, %v5144, 0
        %v5310 = vsel %vm2024, %v5145, 0
        %v5313 = vsel %vm2024, %v5146, 0
        %v5316 = vsel %vm2024, %v5147, 0
        %v5319 = vsel %vm2024, %v5148, 0
        %v5322 = vsel %vm2024, %v5149, 0
        %v5325 = vsel %vm2024, %v5150, 0
        %v5328 = vsel %vm2024, %v5151, 0
        %v5331 = vsel %vm2024, %v5152, 0
        %v5334 = vsel %vm2024, %v5153, 0
        %v5337 = vsel %vm2024, %v5154, 0
        %v5340 = vsel %vm2024, %v5155, 0
        %v5343 = vsel %vm2024, %v5156, 0
        %v5346 = vsel %vm2024, %v5157, 0
        %v5349 = vsel %vm2024, %v5158, 0
        %v5352 = vsel %vm2024, %v5159, 0
        %v5355 = vsel %vm2024, %v5160, 0
        %5357 = vmatpush.bf16.msra.mxu0 0
        %5358 = vmatpush.bf16.msra.mxu0 0
        %5359 = vmatpush.bf16.msra.mxu0 0
        %5360 = vmatpush.bf16.msra.mxu0 0
        %5361 = vmatpush.bf16.msra.mxu0 %v5164
        %5362 = vmatpush.bf16.msra.mxu0 %v5163
        %5363 = vmatpush.bf16.msra.mxu0 %v5162
        %5364 = vmatpush.bf16.msra.mxu0 %v5161
        %5365 = vmatmul.bf16.gmra.mxu0 %v5166
        %v5366 = vpop.f32.mrf.mxu0
        %v5367 = vadd.f32 0.0, %v5366
        %v5368 = vpop.f32.mrf.mxu0
        %v5369 = vadd.f32 0.0, %v5368
        %5370 = vmatmul.bf16.gmra.mxu0 %v5169
        %v5371 = vpop.f32.mrf.mxu0
        %v5372 = vadd.f32 0.0, %v5371
        %v5373 = vpop.f32.mrf.mxu0
        %v5374 = vadd.f32 0.0, %v5373
        %5375 = vmatmul.bf16.gmra.mxu0 %v5172
        %v5376 = vpop.f32.mrf.mxu0
        %v5377 = vadd.f32 0.0, %v5376
        %v5378 = vpop.f32.mrf.mxu0
        %v5379 = vadd.f32 0.0, %v5378
        %5380 = vmatmul.bf16.gmra.mxu0 %v5175
        %v5381 = vpop.f32.mrf.mxu0
        %v5382 = vadd.f32 0.0, %v5381
        %v5383 = vpop.f32.mrf.mxu0
        %v5384 = vadd.f32 0.0, %v5383
        %5385 = vmatmul.bf16.gmra.mxu0 %v5178
        %v5386 = vpop.f32.mrf.mxu0
        %v5387 = vadd.f32 0.0, %v5386
        %v5388 = vpop.f32.mrf.mxu0
        %v5389 = vadd.f32 0.0, %v5388
        %5390 = vmatmul.bf16.gmra.mxu0 %v5181
        %v5391 = vpop.f32.mrf.mxu0
        %v5392 = vadd.f32 0.0, %v5391
        %v5393 = vpop.f32.mrf.mxu0
        %v5394 = vadd.f32 0.0, %v5393
        %5395 = vmatmul.bf16.gmra.mxu0 %v5184
        %v5396 = vpop.f32.mrf.mxu0
        %v5397 = vadd.f32 0.0, %v5396
        %v5398 = vpop.f32.mrf.mxu0
        %v5399 = vadd.f32 0.0, %v5398
        %5400 = vmatmul.bf16.gmra.mxu0 %v5187
        %v5401 = vpop.f32.mrf.mxu0
        %v5402 = vadd.f32 0.0, %v5401
        %v5403 = vpop.f32.mrf.mxu0
        %v5404 = vadd.f32 0.0, %v5403
        %5405 = vmatmul.bf16.gmra.mxu0 %v5190
        %v5406 = vpop.f32.mrf.mxu0
        %v5407 = vadd.f32 0.0, %v5406
        %v5408 = vpop.f32.mrf.mxu0
        %v5409 = vadd.f32 0.0, %v5408
        %5410 = vmatmul.bf16.gmra.mxu0 %v5193
        %v5411 = vpop.f32.mrf.mxu0
        %v5412 = vadd.f32 0.0, %v5411
        %v5413 = vpop.f32.mrf.mxu0
        %v5414 = vadd.f32 0.0, %v5413
        %5415 = vmatmul.bf16.gmra.mxu0 %v5196
        %v5416 = vpop.f32.mrf.mxu0
        %v5417 = vadd.f32 0.0, %v5416
        %v5418 = vpop.f32.mrf.mxu0
        %v5419 = vadd.f32 0.0, %v5418
        %5420 = vmatmul.bf16.gmra.mxu0 %v5199
        %v5421 = vpop.f32.mrf.mxu0
        %v5422 = vadd.f32 0.0, %v5421
        %v5423 = vpop.f32.mrf.mxu0
        %v5424 = vadd.f32 0.0, %v5423
        %5425 = vmatmul.bf16.gmra.mxu0 %v5202
        %v5426 = vpop.f32.mrf.mxu0
        %v5427 = vadd.f32 0.0, %v5426
        %v5428 = vpop.f32.mrf.mxu0
        %v5429 = vadd.f32 0.0, %v5428
        %5430 = vmatmul.bf16.gmra.mxu0 %v5205
        %v5431 = vpop.f32.mrf.mxu0
        %v5432 = vadd.f32 0.0, %v5431
        %v5433 = vpop.f32.mrf.mxu0
        %v5434 = vadd.f32 0.0, %v5433
        %5435 = vmatmul.bf16.gmra.mxu0 %v5208
        %v5436 = vpop.f32.mrf.mxu0
        %v5437 = vadd.f32 0.0, %v5436
        %v5438 = vpop.f32.mrf.mxu0
        %v5439 = vadd.f32 0.0, %v5438
        %5440 = vmatmul.bf16.gmra.mxu0 %v5211
        %v5441 = vpop.f32.mrf.mxu0
        %v5442 = vadd.f32 0.0, %v5441
        %v5443 = vpop.f32.mrf.mxu0
        %v5444 = vadd.f32 0.0, %v5443
        %5445 = vmatmul.bf16.gmra.mxu0 %v5214
        %v5446 = vpop.f32.mrf.mxu0
        %v5447 = vadd.f32 0.0, %v5446
        %v5448 = vpop.f32.mrf.mxu0
        %v5449 = vadd.f32 0.0, %v5448
        %5450 = vmatmul.bf16.gmra.mxu0 %v5217
        %v5451 = vpop.f32.mrf.mxu0
        %v5452 = vadd.f32 0.0, %v5451
        %v5453 = vpop.f32.mrf.mxu0
        %v5454 = vadd.f32 0.0, %v5453
        %5455 = vmatmul.bf16.gmra.mxu0 %v5220
        %v5456 = vpop.f32.mrf.mxu0
        %v5457 = vadd.f32 0.0, %v5456
        %v5458 = vpop.f32.mrf.mxu0
        %v5459 = vadd.f32 0.0, %v5458
        %5460 = vmatmul.bf16.gmra.mxu0 %v5223
        %v5461 = vpop.f32.mrf.mxu0
        %v5462 = vadd.f32 0.0, %v5461
        %v5463 = vpop.f32.mrf.mxu0
        %v5464 = vadd.f32 0.0, %v5463
        %5465 = vmatmul.bf16.gmra.mxu0 %v5226
        %v5466 = vpop.f32.mrf.mxu0
        %v5467 = vadd.f32 0.0, %v5466
        %v5468 = vpop.f32.mrf.mxu0
        %v5469 = vadd.f32 0.0, %v5468
        %5470 = vmatmul.bf16.gmra.mxu0 %v5229
        %v5471 = vpop.f32.mrf.mxu0
        %v5472 = vadd.f32 0.0, %v5471
        %v5473 = vpop.f32.mrf.mxu0
        %v5474 = vadd.f32 0.0, %v5473
        %5475 = vmatmul.bf16.gmra.mxu0 %v5232
        %v5476 = vpop.f32.mrf.mxu0
        %v5477 = vadd.f32 0.0, %v5476
        %v5478 = vpop.f32.mrf.mxu0
        %v5479 = vadd.f32 0.0, %v5478
        %5480 = vmatmul.bf16.gmra.mxu0 %v5235
        %v5481 = vpop.f32.mrf.mxu0
        %v5482 = vadd.f32 0.0, %v5481
        %v5483 = vpop.f32.mrf.mxu0
        %v5484 = vadd.f32 0.0, %v5483
        %5485 = vmatmul.bf16.gmra.mxu0 %v5238
        %v5486 = vpop.f32.mrf.mxu0
        %v5487 = vadd.f32 0.0, %v5486
        %v5488 = vpop.f32.mrf.mxu0
        %v5489 = vadd.f32 0.0, %v5488
        %5490 = vmatmul.bf16.gmra.mxu0 %v5241
        %v5491 = vpop.f32.mrf.mxu0
        %v5492 = vadd.f32 0.0, %v5491
        %v5493 = vpop.f32.mrf.mxu0
        %v5494 = vadd.f32 0.0, %v5493
        %5495 = vmatmul.bf16.gmra.mxu0 %v5244
        %v5496 = vpop.f32.mrf.mxu0
        %v5497 = vadd.f32 0.0, %v5496
        %v5498 = vpop.f32.mrf.mxu0
        %v5499 = vadd.f32 0.0, %v5498
        %5500 = vmatmul.bf16.gmra.mxu0 %v5247
        %v5501 = vpop.f32.mrf.mxu0
        %v5502 = vadd.f32 0.0, %v5501
        %v5503 = vpop.f32.mrf.mxu0
        %v5504 = vadd.f32 0.0, %v5503
        %5505 = vmatmul.bf16.gmra.mxu0 %v5250
        %v5506 = vpop.f32.mrf.mxu0
        %v5507 = vadd.f32 0.0, %v5506
        %v5508 = vpop.f32.mrf.mxu0
        %v5509 = vadd.f32 0.0, %v5508
        %5510 = vmatmul.bf16.gmra.mxu0 %v5253
        %v5511 = vpop.f32.mrf.mxu0
        %v5512 = vadd.f32 0.0, %v5511
        %v5513 = vpop.f32.mrf.mxu0
        %v5514 = vadd.f32 0.0, %v5513
        %5515 = vmatmul.bf16.gmra.mxu0 %v5256
        %v5516 = vpop.f32.mrf.mxu0
        %v5517 = vadd.f32 0.0, %v5516
        %v5518 = vpop.f32.mrf.mxu0
        %v5519 = vadd.f32 0.0, %v5518
        %5520 = vmatmul.bf16.gmra.mxu0 %v5259
        %v5521 = vpop.f32.mrf.mxu0
        %v5522 = vadd.f32 0.0, %v5521
        %v5523 = vpop.f32.mrf.mxu0
        %v5524 = vadd.f32 0.0, %v5523
        %5525 = vmatmul.bf16.gmra.mxu0 %v5262
        %v5526 = vpop.f32.mrf.mxu0
        %v5527 = vadd.f32 0.0, %v5526
        %v5528 = vpop.f32.mrf.mxu0
        %v5529 = vadd.f32 0.0, %v5528
        %5530 = vmatmul.bf16.gmra.mxu0 %v5265
        %v5531 = vpop.f32.mrf.mxu0
        %v5532 = vadd.f32 0.0, %v5531
        %v5533 = vpop.f32.mrf.mxu0
        %v5534 = vadd.f32 0.0, %v5533
        %5535 = vmatmul.bf16.gmra.mxu0 %v5268
        %v5536 = vpop.f32.mrf.mxu0
        %v5537 = vadd.f32 0.0, %v5536
        %v5538 = vpop.f32.mrf.mxu0
        %v5539 = vadd.f32 0.0, %v5538
        %5540 = vmatmul.bf16.gmra.mxu0 %v5271
        %v5541 = vpop.f32.mrf.mxu0
        %v5542 = vadd.f32 0.0, %v5541
        %v5543 = vpop.f32.mrf.mxu0
        %v5544 = vadd.f32 0.0, %v5543
        %5545 = vmatmul.bf16.gmra.mxu0 %v5274
        %v5546 = vpop.f32.mrf.mxu0
        %v5547 = vadd.f32 0.0, %v5546
        %v5548 = vpop.f32.mrf.mxu0
        %v5549 = vadd.f32 0.0, %v5548
        %5550 = vmatmul.bf16.gmra.mxu0 %v5277
        %v5551 = vpop.f32.mrf.mxu0
        %v5552 = vadd.f32 0.0, %v5551
        %v5553 = vpop.f32.mrf.mxu0
        %v5554 = vadd.f32 0.0, %v5553
        %5555 = vmatmul.bf16.gmra.mxu0 %v5280
        %v5556 = vpop.f32.mrf.mxu0
        %v5557 = vadd.f32 0.0, %v5556
        %v5558 = vpop.f32.mrf.mxu0
        %v5559 = vadd.f32 0.0, %v5558
        %5560 = vmatmul.bf16.gmra.mxu0 %v5283
        %v5561 = vpop.f32.mrf.mxu0
        %v5562 = vadd.f32 0.0, %v5561
        %v5563 = vpop.f32.mrf.mxu0
        %v5564 = vadd.f32 0.0, %v5563
        %5565 = vmatmul.bf16.gmra.mxu0 %v5286
        %v5566 = vpop.f32.mrf.mxu0
        %v5567 = vadd.f32 0.0, %v5566
        %v5568 = vpop.f32.mrf.mxu0
        %v5569 = vadd.f32 0.0, %v5568
        %5570 = vmatmul.bf16.gmra.mxu0 %v5289
        %v5571 = vpop.f32.mrf.mxu0
        %v5572 = vadd.f32 0.0, %v5571
        %v5573 = vpop.f32.mrf.mxu0
        %v5574 = vadd.f32 0.0, %v5573
        %5575 = vmatmul.bf16.gmra.mxu0 %v5292
        %v5576 = vpop.f32.mrf.mxu0
        %v5577 = vadd.f32 0.0, %v5576
        %v5578 = vpop.f32.mrf.mxu0
        %v5579 = vadd.f32 0.0, %v5578
        %5580 = vmatmul.bf16.gmra.mxu0 %v5295
        %v5581 = vpop.f32.mrf.mxu0
        %v5582 = vadd.f32 0.0, %v5581
        %v5583 = vpop.f32.mrf.mxu0
        %v5584 = vadd.f32 0.0, %v5583
        %5585 = vmatmul.bf16.gmra.mxu0 %v5298
        %v5586 = vpop.f32.mrf.mxu0
        %v5587 = vadd.f32 0.0, %v5586
        %v5588 = vpop.f32.mrf.mxu0
        %v5589 = vadd.f32 0.0, %v5588
        %5590 = vmatmul.bf16.gmra.mxu0 %v5301
        %v5591 = vpop.f32.mrf.mxu0
        %v5592 = vadd.f32 0.0, %v5591
        %v5593 = vpop.f32.mrf.mxu0
        %v5594 = vadd.f32 0.0, %v5593
        %5595 = vmatmul.bf16.gmra.mxu0 %v5304
        %v5596 = vpop.f32.mrf.mxu0
        %v5597 = vadd.f32 0.0, %v5596
        %v5598 = vpop.f32.mrf.mxu0
        %v5599 = vadd.f32 0.0, %v5598
        %5600 = vmatmul.bf16.gmra.mxu0 %v5307
        %v5601 = vpop.f32.mrf.mxu0
        %v5602 = vadd.f32 0.0, %v5601
        %v5603 = vpop.f32.mrf.mxu0
        %v5604 = vadd.f32 0.0, %v5603
        %5605 = vmatmul.bf16.gmra.mxu0 %v5310
        %v5606 = vpop.f32.mrf.mxu0
        %v5607 = vadd.f32 0.0, %v5606
        %v5608 = vpop.f32.mrf.mxu0
        %v5609 = vadd.f32 0.0, %v5608
        %5610 = vmatmul.bf16.gmra.mxu0 %v5313
        %v5611 = vpop.f32.mrf.mxu0
        %v5612 = vadd.f32 0.0, %v5611
        %v5613 = vpop.f32.mrf.mxu0
        %v5614 = vadd.f32 0.0, %v5613
        %5615 = vmatmul.bf16.gmra.mxu0 %v5316
        %v5616 = vpop.f32.mrf.mxu0
        %v5617 = vadd.f32 0.0, %v5616
        %v5618 = vpop.f32.mrf.mxu0
        %v5619 = vadd.f32 0.0, %v5618
        %5620 = vmatmul.bf16.gmra.mxu0 %v5319
        %v5621 = vpop.f32.mrf.mxu0
        %v5622 = vadd.f32 0.0, %v5621
        %v5623 = vpop.f32.mrf.mxu0
        %v5624 = vadd.f32 0.0, %v5623
        %5625 = vmatmul.bf16.gmra.mxu0 %v5322
        %v5626 = vpop.f32.mrf.mxu0
        %v5627 = vadd.f32 0.0, %v5626
        %v5628 = vpop.f32.mrf.mxu0
        %v5629 = vadd.f32 0.0, %v5628
        %5630 = vmatmul.bf16.gmra.mxu0 %v5325
        %v5631 = vpop.f32.mrf.mxu0
        %v5632 = vadd.f32 0.0, %v5631
        %v5633 = vpop.f32.mrf.mxu0
        %v5634 = vadd.f32 0.0, %v5633
        %5635 = vmatmul.bf16.gmra.mxu0 %v5328
        %v5636 = vpop.f32.mrf.mxu0
        %v5637 = vadd.f32 0.0, %v5636
        %v5638 = vpop.f32.mrf.mxu0
        %v5639 = vadd.f32 0.0, %v5638
        %5640 = vmatmul.bf16.gmra.mxu0 %v5331
        %v5641 = vpop.f32.mrf.mxu0
        %v5642 = vadd.f32 0.0, %v5641
        %v5643 = vpop.f32.mrf.mxu0
        %v5644 = vadd.f32 0.0, %v5643
        %5645 = vmatmul.bf16.gmra.mxu0 %v5334
        %v5646 = vpop.f32.mrf.mxu0
        %v5647 = vadd.f32 0.0, %v5646
        %v5648 = vpop.f32.mrf.mxu0
        %v5649 = vadd.f32 0.0, %v5648
        %5650 = vmatmul.bf16.gmra.mxu0 %v5337
        %v5651 = vpop.f32.mrf.mxu0
        %v5652 = vadd.f32 0.0, %v5651
        %v5653 = vpop.f32.mrf.mxu0
        %v5654 = vadd.f32 0.0, %v5653
        %5655 = vmatmul.bf16.gmra.mxu0 %v5340
        %v5656 = vpop.f32.mrf.mxu0
        %v5657 = vadd.f32 0.0, %v5656
        %v5658 = vpop.f32.mrf.mxu0
        %v5659 = vadd.f32 0.0, %v5658
        %5660 = vmatmul.bf16.gmra.mxu0 %v5343
        %v5661 = vpop.f32.mrf.mxu0
        %v5662 = vadd.f32 0.0, %v5661
        %v5663 = vpop.f32.mrf.mxu0
        %v5664 = vadd.f32 0.0, %v5663
        %5665 = vmatmul.bf16.gmra.mxu0 %v5346
        %v5666 = vpop.f32.mrf.mxu0
        %v5667 = vadd.f32 0.0, %v5666
        %v5668 = vpop.f32.mrf.mxu0
        %v5669 = vadd.f32 0.0, %v5668
        %5670 = vmatmul.bf16.gmra.mxu0 %v5349
        %v5671 = vpop.f32.mrf.mxu0
        %v5672 = vadd.f32 0.0, %v5671
        %v5673 = vpop.f32.mrf.mxu0
        %v5674 = vadd.f32 0.0, %v5673
        %5675 = vmatmul.bf16.gmra.mxu0 %v5352
        %v5676 = vpop.f32.mrf.mxu0
        %v5677 = vadd.f32 0.0, %v5676
        %v5678 = vpop.f32.mrf.mxu0
        %v5679 = vadd.f32 0.0, %v5678
        %5680 = vmatmul.bf16.gmra.mxu0 %v5355
        %v5681 = vpop.f32.mrf.mxu0
        %v5682 = vadd.f32 0.0, %v5681
        %v5683 = vpop.f32.mrf.mxu0
        %v5684 = vadd.f32 0.0, %v5683
        %5685 = vdwg.mxu0
        %v5686 = vmul.f32 %v5367, %v1327
        %v5687 = vmul.f32 %v5369, %v1328
        %v5688 = vmul.f32 %v5372, %v1329
        %v5689 = vmul.f32 %v5374, %v1330
        %v5690 = vmul.f32 %v5377, %v1331
        %v5691 = vmul.f32 %v5379, %v1332
        %v5692 = vmul.f32 %v5382, %v1333
        %v5693 = vmul.f32 %v5384, %v1334
        %v5694 = vmul.f32 %v5387, %v1335
        %v5695 = vmul.f32 %v5389, %v1336
        %v5696 = vmul.f32 %v5392, %v1337
        %v5697 = vmul.f32 %v5394, %v1338
        %v5698 = vmul.f32 %v5397, %v1339
        %v5699 = vmul.f32 %v5399, %v1340
        %v5700 = vmul.f32 %v5402, %v1341
        %v5701 = vmul.f32 %v5404, %v1342
        %v5702 = vmul.f32 %v5407, %v1343
        %v5703 = vmul.f32 %v5409, %v1344
        %v5704 = vmul.f32 %v5412, %v1345
        %v5705 = vmul.f32 %v5414, %v1346
        %v5706 = vmul.f32 %v5417, %v1347
        %v5707 = vmul.f32 %v5419, %v1348
        %v5708 = vmul.f32 %v5422, %v1349
        %v5709 = vmul.f32 %v5424, %v1350
        %v5710 = vmul.f32 %v5427, %v1351
        %v5711 = vmul.f32 %v5429, %v1352
        %v5712 = vmul.f32 %v5432, %v1353
        %v5713 = vmul.f32 %v5434, %v1354
        %v5714 = vmul.f32 %v5437, %v1355
        %v5715 = vmul.f32 %v5439, %v1356
        %v5716 = vmul.f32 %v5442, %v1357
        %v5717 = vmul.f32 %v5444, %v1358
        %v5718 = vmul.f32 %v5447, %v1359
        %v5719 = vmul.f32 %v5449, %v1360
        %v5720 = vmul.f32 %v5452, %v1361
        %v5721 = vmul.f32 %v5454, %v1362
        %v5722 = vmul.f32 %v5457, %v1363
        %v5723 = vmul.f32 %v5459, %v1364
        %v5724 = vmul.f32 %v5462, %v1365
        %v5725 = vmul.f32 %v5464, %v1366
        %v5726 = vmul.f32 %v5467, %v1367
        %v5727 = vmul.f32 %v5469, %v1368
        %v5728 = vmul.f32 %v5472, %v1369
        %v5729 = vmul.f32 %v5474, %v1370
        %v5730 = vmul.f32 %v5477, %v1371
        %v5731 = vmul.f32 %v5479, %v1372
        %v5732 = vmul.f32 %v5482, %v1373
        %v5733 = vmul.f32 %v5484, %v1374
        %v5734 = vmul.f32 %v5487, %v1375
        %v5735 = vmul.f32 %v5489, %v1376
        %v5736 = vmul.f32 %v5492, %v1377
        %v5737 = vmul.f32 %v5494, %v1378
        %v5738 = vmul.f32 %v5497, %v1379
        %v5739 = vmul.f32 %v5499, %v1380
        %v5740 = vmul.f32 %v5502, %v1381
        %v5741 = vmul.f32 %v5504, %v1382
        %v5742 = vmul.f32 %v5507, %v1383
        %v5743 = vmul.f32 %v5509, %v1384
        %v5744 = vmul.f32 %v5512, %v1385
        %v5745 = vmul.f32 %v5514, %v1386
        %v5746 = vmul.f32 %v5517, %v1387
        %v5747 = vmul.f32 %v5519, %v1388
        %v5748 = vmul.f32 %v5522, %v1389
        %v5749 = vmul.f32 %v5524, %v1390
        %v5750 = vmul.f32 %v5527, %v1391
        %v5751 = vmul.f32 %v5529, %v1392
        %v5752 = vmul.f32 %v5532, %v1393
        %v5753 = vmul.f32 %v5534, %v1394
        %v5754 = vmul.f32 %v5537, %v1395
        %v5755 = vmul.f32 %v5539, %v1396
        %v5756 = vmul.f32 %v5542, %v1397
        %v5757 = vmul.f32 %v5544, %v1398
        %v5758 = vmul.f32 %v5547, %v1399
        %v5759 = vmul.f32 %v5549, %v1400
        %v5760 = vmul.f32 %v5552, %v1401
        %v5761 = vmul.f32 %v5554, %v1402
        %v5762 = vmul.f32 %v5557, %v1403
        %v5763 = vmul.f32 %v5559, %v1404
        %v5764 = vmul.f32 %v5562, %v1405
        %v5765 = vmul.f32 %v5564, %v1406
        %v5766 = vmul.f32 %v5567, %v1407
        %v5767 = vmul.f32 %v5569, %v1408
        %v5768 = vmul.f32 %v5572, %v1409
        %v5769 = vmul.f32 %v5574, %v1410
        %v5770 = vmul.f32 %v5577, %v1411
        %v5771 = vmul.f32 %v5579, %v1412
        %v5772 = vmul.f32 %v5582, %v1413
        %v5773 = vmul.f32 %v5584, %v1414
        %v5774 = vmul.f32 %v5587, %v1415
        %v5775 = vmul.f32 %v5589, %v1416
        %v5776 = vmul.f32 %v5592, %v1417
        %v5777 = vmul.f32 %v5594, %v1418
        %v5778 = vmul.f32 %v5597, %v1419
        %v5779 = vmul.f32 %v5599, %v1420
        %v5780 = vmul.f32 %v5602, %v1421
        %v5781 = vmul.f32 %v5604, %v1422
        %v5782 = vmul.f32 %v5607, %v1423
        %v5783 = vmul.f32 %v5609, %v1424
        %v5784 = vmul.f32 %v5612, %v1425
        %v5785 = vmul.f32 %v5614, %v1426
        %v5786 = vmul.f32 %v5617, %v1427
        %v5787 = vmul.f32 %v5619, %v1428
        %v5788 = vmul.f32 %v5622, %v1429
        %v5789 = vmul.f32 %v5624, %v1430
        %v5790 = vmul.f32 %v5627, %v1431
        %v5791 = vmul.f32 %v5629, %v1432
        %v5792 = vmul.f32 %v5632, %v1433
        %v5793 = vmul.f32 %v5634, %v1434
        %v5794 = vmul.f32 %v5637, %v1435
        %v5795 = vmul.f32 %v5639, %v1436
        %v5796 = vmul.f32 %v5642, %v1437
        %v5797 = vmul.f32 %v5644, %v1438
        %v5798 = vmul.f32 %v5647, %v1439
        %v5799 = vmul.f32 %v5649, %v1440
        %v5800 = vmul.f32 %v5652, %v1441
        %v5801 = vmul.f32 %v5654, %v1442
        %v5802 = vmul.f32 %v5657, %v1443
        %v5803 = vmul.f32 %v5659, %v1444
        %v5804 = vmul.f32 %v5662, %v1445
        %v5805 = vmul.f32 %v5664, %v1446
        %v5806 = vmul.f32 %v5667, %v1447
        %v5807 = vmul.f32 %v5669, %v1448
        %v5808 = vmul.f32 %v5672, %v1449
        %v5809 = vmul.f32 %v5674, %v1450
        %v5810 = vmul.f32 %v5677, %v1451
        %v5811 = vmul.f32 %v5679, %v1452
        %v5812 = vmul.f32 %v5682, %v1453
        %v5813 = vmul.f32 %v5684, %v1454
        %v5814 = vadd.f32 %v5686, %v5694
        %v5815 = vadd.f32 %v5814, %v5702
        %v5816 = vadd.f32 %v5815, %v5710
        %v5817 = vadd.f32 %v5816, %v5718
        %v5818 = vadd.f32 %v5817, %v5726
        %v5819 = vadd.f32 %v5818, %v5734
        %v5820 = vadd.f32 %v5819, %v5742
        %v5821 = vadd.f32 %v5820, %v5750
        %v5822 = vadd.f32 %v5821, %v5758
        %v5823 = vadd.f32 %v5822, %v5766
        %v5824 = vadd.f32 %v5823, %v5774
        %v5825 = vadd.f32 %v5824, %v5782
        %v5826 = vadd.f32 %v5825, %v5790
        %v5827 = vadd.f32 %v5826, %v5798
        %v5828 = vadd.f32 %v5827, %v5806
        %v5829 = vadd.f32 %v5687, %v5695
        %v5830 = vadd.f32 %v5829, %v5703
        %v5831 = vadd.f32 %v5830, %v5711
        %v5832 = vadd.f32 %v5831, %v5719
        %v5833 = vadd.f32 %v5832, %v5727
        %v5834 = vadd.f32 %v5833, %v5735
        %v5835 = vadd.f32 %v5834, %v5743
        %v5836 = vadd.f32 %v5835, %v5751
        %v5837 = vadd.f32 %v5836, %v5759
        %v5838 = vadd.f32 %v5837, %v5767
        %v5839 = vadd.f32 %v5838, %v5775
        %v5840 = vadd.f32 %v5839, %v5783
        %v5841 = vadd.f32 %v5840, %v5791
        %v5842 = vadd.f32 %v5841, %v5799
        %v5843 = vadd.f32 %v5842, %v5807
        %v5844 = vadd.f32 %v5688, %v5696
        %v5845 = vadd.f32 %v5844, %v5704
        %v5846 = vadd.f32 %v5845, %v5712
        %v5847 = vadd.f32 %v5846, %v5720
        %v5848 = vadd.f32 %v5847, %v5728
        %v5849 = vadd.f32 %v5848, %v5736
        %v5850 = vadd.f32 %v5849, %v5744
        %v5851 = vadd.f32 %v5850, %v5752
        %v5852 = vadd.f32 %v5851, %v5760
        %v5853 = vadd.f32 %v5852, %v5768
        %v5854 = vadd.f32 %v5853, %v5776
        %v5855 = vadd.f32 %v5854, %v5784
        %v5856 = vadd.f32 %v5855, %v5792
        %v5857 = vadd.f32 %v5856, %v5800
        %v5858 = vadd.f32 %v5857, %v5808
        %v5859 = vadd.f32 %v5689, %v5697
        %v5860 = vadd.f32 %v5859, %v5705
        %v5861 = vadd.f32 %v5860, %v5713
        %v5862 = vadd.f32 %v5861, %v5721
        %v5863 = vadd.f32 %v5862, %v5729
        %v5864 = vadd.f32 %v5863, %v5737
        %v5865 = vadd.f32 %v5864, %v5745
        %v5866 = vadd.f32 %v5865, %v5753
        %v5867 = vadd.f32 %v5866, %v5761
        %v5868 = vadd.f32 %v5867, %v5769
        %v5869 = vadd.f32 %v5868, %v5777
        %v5870 = vadd.f32 %v5869, %v5785
        %v5871 = vadd.f32 %v5870, %v5793
        %v5872 = vadd.f32 %v5871, %v5801
        %v5873 = vadd.f32 %v5872, %v5809
        %v5874 = vadd.f32 %v5690, %v5698
        %v5875 = vadd.f32 %v5874, %v5706
        %v5876 = vadd.f32 %v5875, %v5714
        %v5877 = vadd.f32 %v5876, %v5722
        %v5878 = vadd.f32 %v5877, %v5730
        %v5879 = vadd.f32 %v5878, %v5738
        %v5880 = vadd.f32 %v5879, %v5746
        %v5881 = vadd.f32 %v5880, %v5754
        %v5882 = vadd.f32 %v5881, %v5762
        %v5883 = vadd.f32 %v5882, %v5770
        %v5884 = vadd.f32 %v5883, %v5778
        %v5885 = vadd.f32 %v5884, %v5786
        %v5886 = vadd.f32 %v5885, %v5794
        %v5887 = vadd.f32 %v5886, %v5802
        %v5888 = vadd.f32 %v5887, %v5810
        %v5889 = vadd.f32 %v5691, %v5699
        %v5890 = vadd.f32 %v5889, %v5707
        %v5891 = vadd.f32 %v5890, %v5715
        %v5892 = vadd.f32 %v5891, %v5723
        %v5893 = vadd.f32 %v5892, %v5731
        %v5894 = vadd.f32 %v5893, %v5739
        %v5895 = vadd.f32 %v5894, %v5747
        %v5896 = vadd.f32 %v5895, %v5755
        %v5897 = vadd.f32 %v5896, %v5763
        %v5898 = vadd.f32 %v5897, %v5771
        %v5899 = vadd.f32 %v5898, %v5779
        %v5900 = vadd.f32 %v5899, %v5787
        %v5901 = vadd.f32 %v5900, %v5795
        %v5902 = vadd.f32 %v5901, %v5803
        %v5903 = vadd.f32 %v5902, %v5811
        %v5904 = vadd.f32 %v5692, %v5700
        %v5905 = vadd.f32 %v5904, %v5708
        %v5906 = vadd.f32 %v5905, %v5716
        %v5907 = vadd.f32 %v5906, %v5724
        %v5908 = vadd.f32 %v5907, %v5732
        %v5909 = vadd.f32 %v5908, %v5740
        %v5910 = vadd.f32 %v5909, %v5748
        %v5911 = vadd.f32 %v5910, %v5756
        %v5912 = vadd.f32 %v5911, %v5764
        %v5913 = vadd.f32 %v5912, %v5772
        %v5914 = vadd.f32 %v5913, %v5780
        %v5915 = vadd.f32 %v5914, %v5788
        %v5916 = vadd.f32 %v5915, %v5796
        %v5917 = vadd.f32 %v5916, %v5804
        %v5918 = vadd.f32 %v5917, %v5812
        %v5919 = vadd.f32 %v5693, %v5701
        %v5920 = vadd.f32 %v5919, %v5709
        %v5921 = vadd.f32 %v5920, %v5717
        %v5922 = vadd.f32 %v5921, %v5725
        %v5923 = vadd.f32 %v5922, %v5733
        %v5924 = vadd.f32 %v5923, %v5741
        %v5925 = vadd.f32 %v5924, %v5749
        %v5926 = vadd.f32 %v5925, %v5757
        %v5927 = vadd.f32 %v5926, %v5765
        %v5928 = vadd.f32 %v5927, %v5773
        %v5929 = vadd.f32 %v5928, %v5781
        %v5930 = vadd.f32 %v5929, %v5789
        %v5931 = vadd.f32 %v5930, %v5797
        %v5932 = vadd.f32 %v5931, %v5805
        %v5933 = vadd.f32 %v5932, %v5813
        %v5934 = vpack.c.bf16 %v5843, %v5828
        %v5935 = vpack.c.bf16 %v5873, %v5858
        %v5936 = vpack.c.bf16 %v5903, %v5888
        %v5937 = vpack.c.bf16 %v5933, %v5918
        %v5938 = vld [vmem:[#allocation13] sm:$0xf]
        %v5939 = vld [vmem:[#allocation13 + $0x4] sm:$0xf]
        %v5940 = vld [vmem:[#allocation13 + $0x8] sm:$0xf]
        %v5941 = vld [vmem:[#allocation13 + $0xc] sm:$0xf]
        %v5942 = vld [vmem:[#allocation13 + $0x10] sm:$0xf]
        %v5943 = vld [vmem:[#allocation13 + $0x14] sm:$0xf]
        %v5944 = vld [vmem:[#allocation13 + $0x18] sm:$0xf]
        %v5945 = vld [vmem:[#allocation13 + $0x1c] sm:$0xf]
        %v5946 = vld [vmem:[#allocation13 + $0x20] sm:$0xf]
        %v5947 = vld [vmem:[#allocation13 + $0x24] sm:$0xf]
        %v5948 = vld [vmem:[#allocation13 + $0x28] sm:$0xf]
        %v5949 = vld [vmem:[#allocation13 + $0x2c] sm:$0xf]
        %v5950 = vld [vmem:[#allocation13 + $0x30] sm:$0xf]
        %v5951 = vld [vmem:[#allocation13 + $0x34] sm:$0xf]
        %v5952 = vld [vmem:[#allocation13 + $0x38] sm:$0xf]
        %v5953 = vld [vmem:[#allocation13 + $0x3c] sm:$0xf]
        %v5954 = vperm.slane %v581, 2
        %v5971 = vunpack.c.l.b16 %v5938
        %v5972 = vunpack.c.l.b16 %v5939
        %v5973 = vunpack.c.l.b16 %v5940
        %v5974 = vunpack.c.l.b16 %v5941
        %v5975 = vunpack.c.l.b16 %v5942
        %v5976 = vunpack.c.l.b16 %v5943
        %v5977 = vunpack.c.l.b16 %v5944
        %v5978 = vunpack.c.l.b16 %v5945
        %v5979 = vunpack.c.l.b16 %v5946
        %v5980 = vunpack.c.l.b16 %v5947
        %v5981 = vunpack.c.l.b16 %v5948
        %v5982 = vunpack.c.l.b16 %v5949
        %v5983 = vunpack.c.l.b16 %v5950
        %v5984 = vunpack.c.l.b16 %v5951
        %v5985 = vunpack.c.l.b16 %v5952
        %v5986 = vunpack.c.l.b16 %v5953
        %v5987 = vpack.c.b16 %v5972, %v5971
        %v5988 = vpack.c.b16 %v5974, %v5973
        %v5989 = vpack.c.b16 %v5976, %v5975
        %v5990 = vpack.c.b16 %v5978, %v5977
        %v5991 = vpack.c.b16 %v5980, %v5979
        %v5992 = vpack.c.b16 %v5982, %v5981
        %v5993 = vpack.c.b16 %v5984, %v5983
        %v5994 = vpack.c.b16 %v5986, %v5985
        %6003 = vmatpush.bf16.msra.mxu0 %v5994
        %6004 = vmatpush.bf16.msra.mxu0 %v5993
        %6005 = vmatpush.bf16.msra.mxu0 %v5992
        %6006 = vmatpush.bf16.msra.mxu0 %v5991
        %6007 = vmatpush.bf16.msra.mxu0 %v5990
        %6008 = vmatpush.bf16.msra.mxu0 %v5989
        %6009 = vmatpush.bf16.msra.mxu0 %v5988
        %6010 = vmatpush.bf16.msra.mxu0 %v5987
        %6011 = vmatmul.bf16.gmra.mxu0 %v5934
        %v6012 = vpop.f32.mrf.mxu0
        %v6013 = vadd.f32 %v5954, %v6012
        %v6014 = vpop.f32.mrf.mxu0
        %v6015 = vadd.f32 %v5954, %v6014
        %6016 = vmatmul.bf16.gmra.mxu0 %v5935
        %v6017 = vpop.f32.mrf.mxu0
        %v6018 = vadd.f32 %v5954, %v6017
        %v6019 = vpop.f32.mrf.mxu0
        %v6020 = vadd.f32 %v5954, %v6019
        %6021 = vmatmul.bf16.gmra.mxu0 %v5936
        %v6022 = vpop.f32.mrf.mxu0
        %v6023 = vadd.f32 %v5954, %v6022
        %v6024 = vpop.f32.mrf.mxu0
        %v6025 = vadd.f32 %v5954, %v6024
        %6026 = vmatmul.bf16.gmra.mxu0 %v5937
        %v6027 = vpop.f32.mrf.mxu0
        %v6028 = vadd.f32 %v5954, %v6027
        %v6029 = vpop.f32.mrf.mxu0
        %v6030 = vadd.f32 %v5954, %v6029
        %6031 = vdwg.mxu0
        %v6032 = vadd.f32 %v1060, %v6013
        %v6033 = vadd.f32 %v1061, %v6015
        %v6034 = vadd.f32 %v1062, %v6018
        %v6035 = vadd.f32 %v1063, %v6020
        %v6036 = vadd.f32 %v1064, %v6023
        %v6037 = vadd.f32 %v1065, %v6025
        %v6038 = vadd.f32 %v1066, %v6028
        %v6039 = vadd.f32 %v1067, %v6030
        %6040 = vmatpush.msra.mxu0 %v597
        %6041 = vmatpush.msra.mxu0 %v596
        %6042 = vmatpush.msra.mxu0 %v595
        %6043 = vmatpush.msra.mxu0 %v594
        %6044 = vmatpush.msra.mxu0 %v593
        %6045 = vmatpush.msra.mxu0 %v592
        %6046 = vmatpush.msra.mxu0 %v591
        %6047 = vmatpush.msra.mxu0 %v590
        %6048 = vmatpush.msra.mxu0 %v589
        %6049 = vmatpush.msra.mxu0 %v588
        %6050 = vmatpush.msra.mxu0 %v587
        %6051 = vmatpush.msra.mxu0 %v586
        %6052 = vmatpush.msra.mxu0 %v585
        %6053 = vmatpush.msra.mxu0 %v584
        %6054 = vmatpush.msra.mxu0 %v583
        %6055 = vmatpush.msra.mxu0 %v582
        %6056 = vmatmul.f32.gmra.mxu0 %v6032
        %v6057 = vpop.f32.mrf.mxu0
        %v6058 = vadd.f32 0.0, %v6057
        %6059 = vmatmul.f32.gmra.mxu0 %v6033
        %v6060 = vpop.f32.mrf.mxu0
        %v6061 = vadd.f32 0.0, %v6060
        %6062 = vmatmul.f32.gmra.mxu0 %v6034
        %v6063 = vpop.f32.mrf.mxu0
        %v6064 = vadd.f32 0.0, %v6063
        %6065 = vmatmul.f32.gmra.mxu0 %v6035
        %v6066 = vpop.f32.mrf.mxu0
        %v6067 = vadd.f32 0.0, %v6066
        %6068 = vmatmul.f32.gmra.mxu0 %v6036
        %v6069 = vpop.f32.mrf.mxu0
        %v6070 = vadd.f32 0.0, %v6069
        %6071 = vmatmul.f32.gmra.mxu0 %v6037
        %v6072 = vpop.f32.mrf.mxu0
        %v6073 = vadd.f32 0.0, %v6072
        %6074 = vmatmul.f32.gmra.mxu0 %v6038
        %v6075 = vpop.f32.mrf.mxu0
        %v6076 = vadd.f32 0.0, %v6075
        %6077 = vmatmul.f32.gmra.mxu0 %v6039
        %v6078 = vpop.f32.mrf.mxu0
        %v6079 = vadd.f32 0.0, %v6078
        %6080 = vdwg.mxu0
        %v6081 = vmul.f32 %v6058, 0.03125
        %v6082 = vmul.f32 %v6061, 0.03125
        %v6083 = vmul.f32 %v6064, 0.03125
        %v6084 = vmul.f32 %v6067, 0.03125
        %v6085 = vmul.f32 %v6070, 0.03125
        %v6086 = vmul.f32 %v6073, 0.03125
        %v6087 = vmul.f32 %v6076, 0.03125
        %v6088 = vmul.f32 %v6079, 0.03125
        %v6089 = vsub.f32 %v6032, %v6081
        %v6090 = vsub.f32 %v6033, %v6082
        %v6091 = vsub.f32 %v6034, %v6083
        %v6092 = vsub.f32 %v6035, %v6084
        %v6093 = vsub.f32 %v6036, %v6085
        %v6094 = vsub.f32 %v6037, %v6086
        %v6095 = vsub.f32 %v6038, %v6087
        %v6096 = vsub.f32 %v6039, %v6088
        %v6097 = vmul.f32 %v6089, %v6089
        %v6098 = vmul.f32 %v6090, %v6090
        %v6099 = vmul.f32 %v6091, %v6091
        %v6100 = vmul.f32 %v6092, %v6092
        %v6101 = vmul.f32 %v6093, %v6093
        %v6102 = vmul.f32 %v6094, %v6094
        %v6103 = vmul.f32 %v6095, %v6095
        %v6104 = vmul.f32 %v6096, %v6096
        %6105 = vmatpush.msra.mxu0 %v597
        %6106 = vmatpush.msra.mxu0 %v596
        %6107 = vmatpush.msra.mxu0 %v595
        %6108 = vmatpush.msra.mxu0 %v594
        %6109 = vmatpush.msra.mxu0 %v593
        %6110 = vmatpush.msra.mxu0 %v592
        %6111 = vmatpush.msra.mxu0 %v591
        %6112 = vmatpush.msra.mxu0 %v590
        %6113 = vmatpush.msra.mxu0 %v589
        %6114 = vmatpush.msra.mxu0 %v588
        %6115 = vmatpush.msra.mxu0 %v587
        %6116 = vmatpush.msra.mxu0 %v586
        %6117 = vmatpush.msra.mxu0 %v585
        %6118 = vmatpush.msra.mxu0 %v584
        %6119 = vmatpush.msra.mxu0 %v583
        %6120 = vmatpush.msra.mxu0 %v582
        %6121 = vmatmul.f32.gmra.mxu0 %v6097
        %v6122 = vpop.f32.mrf.mxu0
        %v6123 = vadd.f32 0.0, %v6122
        %6124 = vmatmul.f32.gmra.mxu0 %v6098
        %v6125 = vpop.f32.mrf.mxu0
        %v6126 = vadd.f32 0.0, %v6125
        %6127 = vmatmul.f32.gmra.mxu0 %v6099
        %v6128 = vpop.f32.mrf.mxu0
        %v6129 = vadd.f32 0.0, %v6128
        %6130 = vmatmul.f32.gmra.mxu0 %v6100
        %v6131 = vpop.f32.mrf.mxu0
        %v6132 = vadd.f32 0.0, %v6131
        %6133 = vmatmul.f32.gmra.mxu0 %v6101
        %v6134 = vpop.f32.mrf.mxu0
        %v6135 = vadd.f32 0.0, %v6134
        %6136 = vmatmul.f32.gmra.mxu0 %v6102
        %v6137 = vpop.f32.mrf.mxu0
        %v6138 = vadd.f32 0.0, %v6137
        %6139 = vmatmul.f32.gmra.mxu0 %v6103
        %v6140 = vpop.f32.mrf.mxu0
        %v6141 = vadd.f32 0.0, %v6140
        %6142 = vmatmul.f32.gmra.mxu0 %v6104
        %v6143 = vpop.f32.mrf.mxu0
        %v6144 = vadd.f32 0.0, %v6143
        %6145 = vdwg.mxu0
        %v6146 = vmul.f32 %v6123, 0.03125
        %v6147 = vmul.f32 %v6126, 0.03125
        %v6148 = vmul.f32 %v6129, 0.03125
        %v6149 = vmul.f32 %v6132, 0.03125
        %v6150 = vmul.f32 %v6135, 0.03125
        %v6151 = vmul.f32 %v6138, 0.03125
        %v6152 = vmul.f32 %v6141, 0.03125
        %v6153 = vmul.f32 %v6144, 0.03125
        %v6154 = vadd.f32 %v6146, 1e-05
        %v6155 = vadd.f32 %v6147, 1e-05
        %v6156 = vadd.f32 %v6148, 1e-05
        %v6157 = vadd.f32 %v6149, 1e-05
        %v6158 = vadd.f32 %v6150, 1e-05
        %v6159 = vadd.f32 %v6151, 1e-05
        %v6160 = vadd.f32 %v6152, 1e-05
        %v6161 = vadd.f32 %v6153, 1e-05
        %v6162 = vrsqrt.pop %v6154
        %v6163 = vmul.f32 %v6162, %v6154
        %v6164 = vmul.f32 %v6163, %v6162
        %v6165 = vmul.f32 0.5, %v6164
        %v6166 = vsub.f32 1.5, %v6165
        %v6167 = vmul.f32 %v6162, %v6166
        %vm6168 = vweird.f32 %v6154
        %vm6169 = vweird.f32 %v6162
        %vm6170 = vmor %vm6168, %vm6169
        %v6171 = vsel %vm6170, %v6162, %v6167
        %v6172 = vrsqrt.pop %v6155
        %v6173 = vmul.f32 %v6172, %v6155
        %v6174 = vmul.f32 %v6173, %v6172
        %v6175 = vmul.f32 0.5, %v6174
        %v6176 = vsub.f32 1.5, %v6175
        %v6177 = vmul.f32 %v6172, %v6176
        %vm6178 = vweird.f32 %v6155
        %vm6179 = vweird.f32 %v6172
        %vm6180 = vmor %vm6178, %vm6179
        %v6181 = vsel %vm6180, %v6172, %v6177
        %v6182 = vrsqrt.pop %v6156
        %v6183 = vmul.f32 %v6182, %v6156
        %v6184 = vmul.f32 %v6183, %v6182
        %v6185 = vmul.f32 0.5, %v6184
        %v6186 = vsub.f32 1.5, %v6185
        %v6187 = vmul.f32 %v6182, %v6186
        %vm6188 = vweird.f32 %v6156
        %vm6189 = vweird.f32 %v6182
        %vm6190 = vmor %vm6188, %vm6189
        %v6191 = vsel %vm6190, %v6182, %v6187
        %v6192 = vrsqrt.pop %v6157
        %v6193 = vmul.f32 %v6192, %v6157
        %v6194 = vmul.f32 %v6193, %v6192
        %v6195 = vmul.f32 0.5, %v6194
        %v6196 = vsub.f32 1.5, %v6195
        %v6197 = vmul.f32 %v6192, %v6196
        %vm6198 = vweird.f32 %v6157
        %vm6199 = vweird.f32 %v6192
        %vm6200 = vmor %vm6198, %vm6199
        %v6201 = vsel %vm6200, %v6192, %v6197
        %v6202 = vrsqrt.pop %v6158
        %v6203 = vmul.f32 %v6202, %v6158
        %v6204 = vmul.f32 %v6203, %v6202
        %v6205 = vmul.f32 0.5, %v6204
        %v6206 = vsub.f32 1.5, %v6205
        %v6207 = vmul.f32 %v6202, %v6206
        %vm6208 = vweird.f32 %v6158
        %vm6209 = vweird.f32 %v6202
        %vm6210 = vmor %vm6208, %vm6209
        %v6211 = vsel %vm6210, %v6202, %v6207
        %v6212 = vrsqrt.pop %v6159
        %v6213 = vmul.f32 %v6212, %v6159
        %v6214 = vmul.f32 %v6213, %v6212
        %v6215 = vmul.f32 0.5, %v6214
        %v6216 = vsub.f32 1.5, %v6215
        %v6217 = vmul.f32 %v6212, %v6216
        %vm6218 = vweird.f32 %v6159
        %vm6219 = vweird.f32 %v6212
        %vm6220 = vmor %vm6218, %vm6219
        %v6221 = vsel %vm6220, %v6212, %v6217
        %v6222 = vrsqrt.pop %v6160
        %v6223 = vmul.f32 %v6222, %v6160
        %v6224 = vmul.f32 %v6223, %v6222
        %v6225 = vmul.f32 0.5, %v6224
        %v6226 = vsub.f32 1.5, %v6225
        %v6227 = vmul.f32 %v6222, %v6226
        %vm6228 = vweird.f32 %v6160
        %vm6229 = vweird.f32 %v6222
        %vm6230 = vmor %vm6228, %vm6229
        %v6231 = vsel %vm6230, %v6222, %v6227
        %v6232 = vrsqrt.pop %v6161
        %v6233 = vmul.f32 %v6232, %v6161
        %v6234 = vmul.f32 %v6233, %v6232
        %v6235 = vmul.f32 0.5, %v6234
        %v6236 = vsub.f32 1.5, %v6235
        %v6237 = vmul.f32 %v6232, %v6236
        %vm6238 = vweird.f32 %v6161
        %vm6239 = vweird.f32 %v6232
        %vm6240 = vmor %vm6238, %vm6239
        %v6241 = vsel %vm6240, %v6232, %v6237
        %v6242 = vmul.f32 %v6089, %v6171
        %v6243 = vmul.f32 %v6090, %v6181
        %v6244 = vmul.f32 %v6091, %v6191
        %v6245 = vmul.f32 %v6092, %v6201
        %v6246 = vmul.f32 %v6093, %v6211
        %v6247 = vmul.f32 %v6094, %v6221
        %v6248 = vmul.f32 %v6095, %v6231
        %v6249 = vmul.f32 %v6096, %v6241
        %v6250 = vperm.slane %v581, 3
        %v6251 = vmul.f32 %v6242, %v6250
        %v6252 = vmul.f32 %v6243, %v6250
        %v6253 = vmul.f32 %v6244, %v6250
        %v6254 = vmul.f32 %v6245, %v6250
        %v6255 = vmul.f32 %v6246, %v6250
        %v6256 = vmul.f32 %v6247, %v6250
        %v6257 = vmul.f32 %v6248, %v6250
        %v6258 = vmul.f32 %v6249, %v6250
        %v6259 = vperm.slane %v581, 4
        %v6260 = vadd.f32 %v6251, %v6259
        %v6261 = vadd.f32 %v6252, %v6259
        %v6262 = vadd.f32 %v6253, %v6259
        %v6263 = vadd.f32 %v6254, %v6259
        %v6264 = vadd.f32 %v6255, %v6259
        %v6265 = vadd.f32 %v6256, %v6259
        %v6266 = vadd.f32 %v6257, %v6259
        %v6267 = vadd.f32 %v6258, %v6259
        %v6268 = vpack.c.bf16 %v6261, %v6260
        %v6269 = vpack.c.bf16 %v6263, %v6262
        %v6270 = vpack.c.bf16 %v6265, %v6264
        %v6271 = vpack.c.bf16 %v6267, %v6266
        %v6272 = vld [vmem:[#allocation14] sm:$0xff]
        %v6273 = vld [vmem:[#allocation14 + $0x8] sm:$0xff]
        %v6274 = vld [vmem:[#allocation14 + $0x10] sm:$0xff]
        %v6275 = vld [vmem:[#allocation14 + $0x18] sm:$0xff]
        %v6276 = vld [vmem:[#allocation14 + $0x20] sm:$0xff]
        %v6277 = vld [vmem:[#allocation14 + $0x28] sm:$0xff]
        %v6278 = vld [vmem:[#allocation14 + $0x30] sm:$0xff]
        %v6279 = vld [vmem:[#allocation14 + $0x38] sm:$0xff]
        %v6280 = vld [vmem:[#allocation14 + $0x40] sm:$0xff]
        %v6281 = vld [vmem:[#allocation14 + $0x48] sm:$0xff]
        %v6282 = vld [vmem:[#allocation14 + $0x50] sm:$0xff]
        %v6283 = vld [vmem:[#allocation14 + $0x58] sm:$0xff]
        %v6284 = vld [vmem:[#allocation14 + $0x60] sm:$0xff]
        %v6285 = vld [vmem:[#allocation14 + $0x68] sm:$0xff]
        %v6286 = vld [vmem:[#allocation14 + $0x70] sm:$0xff]
        %v6287 = vld [vmem:[#allocation14 + $0x78] sm:$0xff]
        %v6288 = vld [vmem:[%s8] sm:$0x3]
        %v6290 = vperm.slane %v6288, 0
        %v6291 = vperm.slane %v6288, 1
        %v6310 = vunpack.c.l.b16 %v6272
        %v6311 = vunpack.c.h.b16 %v6272
        %v6312 = vunpack.c.l.b16 %v6273
        %v6313 = vunpack.c.h.b16 %v6273
        %v6314 = vunpack.c.l.b16 %v6274
        %v6315 = vunpack.c.h.b16 %v6274
        %v6316 = vunpack.c.l.b16 %v6275
        %v6317 = vunpack.c.h.b16 %v6275
        %v6318 = vunpack.c.l.b16 %v6276
        %v6319 = vunpack.c.h.b16 %v6276
        %v6320 = vunpack.c.l.b16 %v6277
        %v6321 = vunpack.c.h.b16 %v6277
        %v6322 = vunpack.c.l.b16 %v6278
        %v6323 = vunpack.c.h.b16 %v6278
        %v6324 = vunpack.c.l.b16 %v6279
        %v6325 = vunpack.c.h.b16 %v6279
        %v6326 = vunpack.c.l.b16 %v6280
        %v6327 = vunpack.c.h.b16 %v6280
        %v6328 = vunpack.c.l.b16 %v6281
        %v6329 = vunpack.c.h.b16 %v6281
        %v6330 = vunpack.c.l.b16 %v6282
        %v6331 = vunpack.c.h.b16 %v6282
        %v6332 = vunpack.c.l.b16 %v6283
        %v6333 = vunpack.c.h.b16 %v6283
        %v6334 = vunpack.c.l.b16 %v6284
        %v6335 = vunpack.c.h.b16 %v6284
        %v6336 = vunpack.c.l.b16 %v6285
        %v6337 = vunpack.c.h.b16 %v6285
        %v6338 = vunpack.c.l.b16 %v6286
        %v6339 = vunpack.c.h.b16 %v6286
        %v6340 = vunpack.c.l.b16 %v6287
        %v6341 = vunpack.c.h.b16 %v6287
        %v6342 = vpack.c.b16 %v6312, %v6310
        %v6343 = vpack.c.b16 %v6313, %v6311
        %v6344 = vpack.c.b16 %v6316, %v6314
        %v6345 = vpack.c.b16 %v6317, %v6315
        %v6346 = vpack.c.b16 %v6320, %v6318
        %v6347 = vpack.c.b16 %v6321, %v6319
        %v6348 = vpack.c.b16 %v6324, %v6322
        %v6349 = vpack.c.b16 %v6325, %v6323
        %v6350 = vpack.c.b16 %v6328, %v6326
        %v6351 = vpack.c.b16 %v6329, %v6327
        %v6352 = vpack.c.b16 %v6332, %v6330
        %v6353 = vpack.c.b16 %v6333, %v6331
        %v6354 = vpack.c.b16 %v6336, %v6334
        %v6355 = vpack.c.b16 %v6337, %v6335
        %v6356 = vpack.c.b16 %v6340, %v6338
        %v6357 = vpack.c.b16 %v6341, %v6339
        %6374 = vmatpush.bf16.msra.mxu0 %v6356
        %6375 = vmatpush.bf16.msra.mxu0 %v6354
        %6376 = vmatpush.bf16.msra.mxu0 %v6352
        %6377 = vmatpush.bf16.msra.mxu0 %v6350
        %6378 = vmatpush.bf16.msra.mxu0 %v6348
        %6379 = vmatpush.bf16.msra.mxu0 %v6346
        %6380 = vmatpush.bf16.msra.mxu0 %v6344
        %6381 = vmatpush.bf16.msra.mxu0 %v6342
        %6382 = vmatmul.bf16.gmra.mxu0 %v6268
        %v6383 = vpop.f32.mrf.mxu0
        %v6384 = vadd.f32 %v6290, %v6383
        %v6385 = vpop.f32.mrf.mxu0
        %v6386 = vadd.f32 %v6290, %v6385
        %6387 = vmatmul.bf16.gmra.mxu0 %v6269
        %v6388 = vpop.f32.mrf.mxu0
        %v6389 = vadd.f32 %v6290, %v6388
        %v6390 = vpop.f32.mrf.mxu0
        %v6391 = vadd.f32 %v6290, %v6390
        %6392 = vmatmul.bf16.gmra.mxu0 %v6270
        %v6393 = vpop.f32.mrf.mxu0
        %v6394 = vadd.f32 %v6290, %v6393
        %v6395 = vpop.f32.mrf.mxu0
        %v6396 = vadd.f32 %v6290, %v6395
        %6397 = vmatmul.bf16.gmra.mxu0 %v6271
        %v6398 = vpop.f32.mrf.mxu0
        %v6399 = vadd.f32 %v6290, %v6398
        %v6400 = vpop.f32.mrf.mxu0
        %v6401 = vadd.f32 %v6290, %v6400
        %6402 = vdwg.mxu0
        %6403 = vmatpush.bf16.msra.mxu0 %v6357
        %6404 = vmatpush.bf16.msra.mxu0 %v6355
        %6405 = vmatpush.bf16.msra.mxu0 %v6353
        %6406 = vmatpush.bf16.msra.mxu0 %v6351
        %6407 = vmatpush.bf16.msra.mxu0 %v6349
        %6408 = vmatpush.bf16.msra.mxu0 %v6347
        %6409 = vmatpush.bf16.msra.mxu0 %v6345
        %6410 = vmatpush.bf16.msra.mxu0 %v6343
        %6411 = vmatmul.bf16.gmra.mxu0 %v6268
        %v6412 = vpop.f32.mrf.mxu0
        %v6413 = vadd.f32 %v6291, %v6412
        %v6414 = vpop.f32.mrf.mxu0
        %v6415 = vadd.f32 %v6291, %v6414
        %6416 = vmatmul.bf16.gmra.mxu0 %v6269
        %v6417 = vpop.f32.mrf.mxu0
        %v6418 = vadd.f32 %v6291, %v6417
        %v6419 = vpop.f32.mrf.mxu0
        %v6420 = vadd.f32 %v6291, %v6419
        %6421 = vmatmul.bf16.gmra.mxu0 %v6270
        %v6422 = vpop.f32.mrf.mxu0
        %v6423 = vadd.f32 %v6291, %v6422
        %v6424 = vpop.f32.mrf.mxu0
        %v6425 = vadd.f32 %v6291, %v6424
        %6426 = vmatmul.bf16.gmra.mxu0 %v6271
        %v6427 = vpop.f32.mrf.mxu0
        %v6428 = vadd.f32 %v6291, %v6427
        %v6429 = vpop.f32.mrf.mxu0
        %v6430 = vadd.f32 %v6291, %v6429
        %6431 = vdwg.mxu0
        %v6432 = vmax.f32 %v6384, 0.0
        %v6433 = vmax.f32 %v6413, 0.0
        %v6434 = vmax.f32 %v6386, 0.0
        %v6435 = vmax.f32 %v6415, 0.0
        %v6436 = vmax.f32 %v6389, 0.0
        %v6437 = vmax.f32 %v6418, 0.0
        %v6438 = vmax.f32 %v6391, 0.0
        %v6439 = vmax.f32 %v6420, 0.0
        %v6440 = vmax.f32 %v6394, 0.0
        %v6441 = vmax.f32 %v6423, 0.0
        %v6442 = vmax.f32 %v6396, 0.0
        %v6443 = vmax.f32 %v6425, 0.0
        %v6444 = vmax.f32 %v6399, 0.0
        %v6445 = vmax.f32 %v6428, 0.0
        %v6446 = vmax.f32 %v6401, 0.0
        %v6447 = vmax.f32 %v6430, 0.0
        %v6448 = vpack.c.bf16 %v6434, %v6432
        %v6449 = vpack.c.bf16 %v6435, %v6433
        %v6450 = vpack.c.bf16 %v6438, %v6436
        %v6451 = vpack.c.bf16 %v6439, %v6437
        %v6452 = vpack.c.bf16 %v6442, %v6440
        %v6453 = vpack.c.bf16 %v6443, %v6441
        %v6454 = vpack.c.bf16 %v6446, %v6444
        %v6455 = vpack.c.bf16 %v6447, %v6445
        %v6456 = vld [vmem:[#allocation16] sm:$0xf]
        %v6457 = vld [vmem:[#allocation16 + $0x4] sm:$0xf]
        %v6458 = vld [vmem:[#allocation16 + $0x8] sm:$0xf]
        %v6459 = vld [vmem:[#allocation16 + $0xc] sm:$0xf]
        %v6460 = vld [vmem:[#allocation16 + $0x10] sm:$0xf]
        %v6461 = vld [vmem:[#allocation16 + $0x14] sm:$0xf]
        %v6462 = vld [vmem:[#allocation16 + $0x18] sm:$0xf]
        %v6463 = vld [vmem:[#allocation16 + $0x1c] sm:$0xf]
        %v6464 = vld [vmem:[#allocation16 + $0x20] sm:$0xf]
        %v6465 = vld [vmem:[#allocation16 + $0x24] sm:$0xf]
        %v6466 = vld [vmem:[#allocation16 + $0x28] sm:$0xf]
        %v6467 = vld [vmem:[#allocation16 + $0x2c] sm:$0xf]
        %v6468 = vld [vmem:[#allocation16 + $0x30] sm:$0xf]
        %v6469 = vld [vmem:[#allocation16 + $0x34] sm:$0xf]
        %v6470 = vld [vmem:[#allocation16 + $0x38] sm:$0xf]
        %v6471 = vld [vmem:[#allocation16 + $0x3c] sm:$0xf]
        %v6472 = vld [vmem:[#allocation16 + $0x40] sm:$0xf]
        %v6473 = vld [vmem:[#allocation16 + $0x44] sm:$0xf]
        %v6474 = vld [vmem:[#allocation16 + $0x48] sm:$0xf]
        %v6475 = vld [vmem:[#allocation16 + $0x4c] sm:$0xf]
        %v6476 = vld [vmem:[#allocation16 + $0x50] sm:$0xf]
        %v6477 = vld [vmem:[#allocation16 + $0x54] sm:$0xf]
        %v6478 = vld [vmem:[#allocation16 + $0x58] sm:$0xf]
        %v6479 = vld [vmem:[#allocation16 + $0x5c] sm:$0xf]
        %v6480 = vld [vmem:[#allocation16 + $0x60] sm:$0xf]
        %v6481 = vld [vmem:[#allocation16 + $0x64] sm:$0xf]
        %v6482 = vld [vmem:[#allocation16 + $0x68] sm:$0xf]
        %v6483 = vld [vmem:[#allocation16 + $0x6c] sm:$0xf]
        %v6484 = vld [vmem:[#allocation16 + $0x70] sm:$0xf]
        %v6485 = vld [vmem:[#allocation16 + $0x74] sm:$0xf]
        %v6486 = vld [vmem:[#allocation16 + $0x78] sm:$0xf]
        %v6487 = vld [vmem:[#allocation16 + $0x7c] sm:$0xf]
        %v6488 = vperm.slane %v581, 5
        %v6521 = vunpack.c.l.b16 %v6456
        %v6522 = vunpack.c.l.b16 %v6457
        %v6523 = vunpack.c.l.b16 %v6458
        %v6524 = vunpack.c.l.b16 %v6459
        %v6525 = vunpack.c.l.b16 %v6460
        %v6526 = vunpack.c.l.b16 %v6461
        %v6527 = vunpack.c.l.b16 %v6462
        %v6528 = vunpack.c.l.b16 %v6463
        %v6529 = vunpack.c.l.b16 %v6464
        %v6530 = vunpack.c.l.b16 %v6465
        %v6531 = vunpack.c.l.b16 %v6466
        %v6532 = vunpack.c.l.b16 %v6467
        %v6533 = vunpack.c.l.b16 %v6468
        %v6534 = vunpack.c.l.b16 %v6469
        %v6535 = vunpack.c.l.b16 %v6470
        %v6536 = vunpack.c.l.b16 %v6471
        %v6537 = vunpack.c.l.b16 %v6472
        %v6538 = vunpack.c.l.b16 %v6473
        %v6539 = vunpack.c.l.b16 %v6474
        %v6540 = vunpack.c.l.b16 %v6475
        %v6541 = vunpack.c.l.b16 %v6476
        %v6542 = vunpack.c.l.b16 %v6477
        %v6543 = vunpack.c.l.b16 %v6478
        %v6544 = vunpack.c.l.b16 %v6479
        %v6545 = vunpack.c.l.b16 %v6480
        %v6546 = vunpack.c.l.b16 %v6481
        %v6547 = vunpack.c.l.b16 %v6482
        %v6548 = vunpack.c.l.b16 %v6483
        %v6549 = vunpack.c.l.b16 %v6484
        %v6550 = vunpack.c.l.b16 %v6485
        %v6551 = vunpack.c.l.b16 %v6486
        %v6552 = vunpack.c.l.b16 %v6487
        %v6553 = vpack.c.b16 %v6522, %v6521
        %v6554 = vpack.c.b16 %v6524, %v6523
        %v6555 = vpack.c.b16 %v6526, %v6525
        %v6556 = vpack.c.b16 %v6528, %v6527
        %v6557 = vpack.c.b16 %v6530, %v6529
        %v6558 = vpack.c.b16 %v6532, %v6531
        %v6559 = vpack.c.b16 %v6534, %v6533
        %v6560 = vpack.c.b16 %v6536, %v6535
        %v6561 = vpack.c.b16 %v6538, %v6537
        %v6562 = vpack.c.b16 %v6540, %v6539
        %v6563 = vpack.c.b16 %v6542, %v6541
        %v6564 = vpack.c.b16 %v6544, %v6543
        %v6565 = vpack.c.b16 %v6546, %v6545
        %v6566 = vpack.c.b16 %v6548, %v6547
        %v6567 = vpack.c.b16 %v6550, %v6549
        %v6568 = vpack.c.b16 %v6552, %v6551
        %6585 = vmatpush.bf16.msra.mxu0 %v6560
        %6586 = vmatpush.bf16.msra.mxu0 %v6559
        %6587 = vmatpush.bf16.msra.mxu0 %v6558
        %6588 = vmatpush.bf16.msra.mxu0 %v6557
        %6589 = vmatpush.bf16.msra.mxu0 %v6556
        %6590 = vmatpush.bf16.msra.mxu0 %v6555
        %6591 = vmatpush.bf16.msra.mxu0 %v6554
        %6592 = vmatpush.bf16.msra.mxu0 %v6553
        %6593 = vmatmul.bf16.gmra.mxu0 %v6448
        %v6594 = vpop.f32.mrf.mxu0
        %v6595 = vadd.f32 %v6488, %v6594
        %v6596 = vpop.f32.mrf.mxu0
        %v6597 = vadd.f32 %v6488, %v6596
        %6598 = vmatmul.bf16.gmra.mxu0 %v6450
        %v6599 = vpop.f32.mrf.mxu0
        %v6600 = vadd.f32 %v6488, %v6599
        %v6601 = vpop.f32.mrf.mxu0
        %v6602 = vadd.f32 %v6488, %v6601
        %6603 = vmatmul.bf16.gmra.mxu0 %v6452
        %v6604 = vpop.f32.mrf.mxu0
        %v6605 = vadd.f32 %v6488, %v6604
        %v6606 = vpop.f32.mrf.mxu0
        %v6607 = vadd.f32 %v6488, %v6606
        %6608 = vmatmul.bf16.gmra.mxu0 %v6454
        %v6609 = vpop.f32.mrf.mxu0
        %v6610 = vadd.f32 %v6488, %v6609
        %v6611 = vpop.f32.mrf.mxu0
        %v6612 = vadd.f32 %v6488, %v6611
        %6613 = vdwg.mxu0
        %6614 = vmatpush.bf16.msra.mxu0 %v6568
        %6615 = vmatpush.bf16.msra.mxu0 %v6567
        %6616 = vmatpush.bf16.msra.mxu0 %v6566
        %6617 = vmatpush.bf16.msra.mxu0 %v6565
        %6618 = vmatpush.bf16.msra.mxu0 %v6564
        %6619 = vmatpush.bf16.msra.mxu0 %v6563
        %6620 = vmatpush.bf16.msra.mxu0 %v6562
        %6621 = vmatpush.bf16.msra.mxu0 %v6561
        %6622 = vmatmul.bf16.gmra.mxu0 %v6449
        %v6623 = vpop.f32.mrf.mxu0
        %v6624 = vadd.f32 %v6595, %v6623
        %v6625 = vpop.f32.mrf.mxu0
        %v6626 = vadd.f32 %v6597, %v6625
        %6627 = vmatmul.bf16.gmra.mxu0 %v6451
        %v6628 = vpop.f32.mrf.mxu0
        %v6629 = vadd.f32 %v6600, %v6628
        %v6630 = vpop.f32.mrf.mxu0
        %v6631 = vadd.f32 %v6602, %v6630
        %6632 = vmatmul.bf16.gmra.mxu0 %v6453
        %v6633 = vpop.f32.mrf.mxu0
        %v6634 = vadd.f32 %v6605, %v6633
        %v6635 = vpop.f32.mrf.mxu0
        %v6636 = vadd.f32 %v6607, %v6635
        %6637 = vmatmul.bf16.gmra.mxu0 %v6455
        %v6638 = vpop.f32.mrf.mxu0
        %v6639 = vadd.f32 %v6610, %v6638
        %v6640 = vpop.f32.mrf.mxu0
        %v6641 = vadd.f32 %v6612, %v6640
        %6642 = vdwg.mxu0
        %v6643 = vadd.f32 %v6260, %v6624
        %v6644 = vadd.f32 %v6261, %v6626
        %v6645 = vadd.f32 %v6262, %v6629
        %v6646 = vadd.f32 %v6263, %v6631
        %v6647 = vadd.f32 %v6264, %v6634
        %v6648 = vadd.f32 %v6265, %v6636
        %v6649 = vadd.f32 %v6266, %v6639
        %v6650 = vadd.f32 %v6267, %v6641
        %6651 = vmatpush.msra.mxu0 %v597
        %6652 = vmatpush.msra.mxu0 %v596
        %6653 = vmatpush.msra.mxu0 %v595
        %6654 = vmatpush.msra.mxu0 %v594
        %6655 = vmatpush.msra.mxu0 %v593
        %6656 = vmatpush.msra.mxu0 %v592
        %6657 = vmatpush.msra.mxu0 %v591
        %6658 = vmatpush.msra.mxu0 %v590
        %6659 = vmatpush.msra.mxu0 %v589
        %6660 = vmatpush.msra.mxu0 %v588
        %6661 = vmatpush.msra.mxu0 %v587
        %6662 = vmatpush.msra.mxu0 %v586
        %6663 = vmatpush.msra.mxu0 %v585
        %6664 = vmatpush.msra.mxu0 %v584
        %6665 = vmatpush.msra.mxu0 %v583
        %6666 = vmatpush.msra.mxu0 %v582
        %6667 = vmatmul.f32.gmra.mxu0 %v6643
        %v6668 = vpop.f32.mrf.mxu0
        %v6669 = vadd.f32 0.0, %v6668
        %6670 = vmatmul.f32.gmra.mxu0 %v6644
        %v6671 = vpop.f32.mrf.mxu0
        %v6672 = vadd.f32 0.0, %v6671
        %6673 = vmatmul.f32.gmra.mxu0 %v6645
        %v6674 = vpop.f32.mrf.mxu0
        %v6675 = vadd.f32 0.0, %v6674
        %6676 = vmatmul.f32.gmra.mxu0 %v6646
        %v6677 = vpop.f32.mrf.mxu0
        %v6678 = vadd.f32 0.0, %v6677
        %6679 = vmatmul.f32.gmra.mxu0 %v6647
        %v6680 = vpop.f32.mrf.mxu0
        %v6681 = vadd.f32 0.0, %v6680
        %6682 = vmatmul.f32.gmra.mxu0 %v6648
        %v6683 = vpop.f32.mrf.mxu0
        %v6684 = vadd.f32 0.0, %v6683
        %6685 = vmatmul.f32.gmra.mxu0 %v6649
        %v6686 = vpop.f32.mrf.mxu0
        %v6687 = vadd.f32 0.0, %v6686
        %6688 = vmatmul.f32.gmra.mxu0 %v6650
        %v6689 = vpop.f32.mrf.mxu0
        %v6690 = vadd.f32 0.0, %v6689
        %6691 = vdwg.mxu0
        %v6692 = vmul.f32 %v6669, 0.03125
        %v6693 = vmul.f32 %v6672, 0.03125
        %v6694 = vmul.f32 %v6675, 0.03125
        %v6695 = vmul.f32 %v6678, 0.03125
        %v6696 = vmul.f32 %v6681, 0.03125
        %v6697 = vmul.f32 %v6684, 0.03125
        %v6698 = vmul.f32 %v6687, 0.03125
        %v6699 = vmul.f32 %v6690, 0.03125
        %v6700 = vsub.f32 %v6643, %v6692
        %v6701 = vsub.f32 %v6644, %v6693
        %v6702 = vsub.f32 %v6645, %v6694
        %v6703 = vsub.f32 %v6646, %v6695
        %v6704 = vsub.f32 %v6647, %v6696
        %v6705 = vsub.f32 %v6648, %v6697
        %v6706 = vsub.f32 %v6649, %v6698
        %v6707 = vsub.f32 %v6650, %v6699
        %v6708 = vmul.f32 %v6700, %v6700
        %v6709 = vmul.f32 %v6701, %v6701
        %v6710 = vmul.f32 %v6702, %v6702
        %v6711 = vmul.f32 %v6703, %v6703
        %v6712 = vmul.f32 %v6704, %v6704
        %v6713 = vmul.f32 %v6705, %v6705
        %v6714 = vmul.f32 %v6706, %v6706
        %v6715 = vmul.f32 %v6707, %v6707
        %6716 = vmatpush.msra.mxu0 %v597
        %6717 = vmatpush.msra.mxu0 %v596
        %6718 = vmatpush.msra.mxu0 %v595
        %6719 = vmatpush.msra.mxu0 %v594
        %6720 = vmatpush.msra.mxu0 %v593
        %6721 = vmatpush.msra.mxu0 %v592
        %6722 = vmatpush.msra.mxu0 %v591
        %6723 = vmatpush.msra.mxu0 %v590
        %6724 = vmatpush.msra.mxu0 %v589
        %6725 = vmatpush.msra.mxu0 %v588
        %6726 = vmatpush.msra.mxu0 %v587
        %6727 = vmatpush.msra.mxu0 %v586
        %6728 = vmatpush.msra.mxu0 %v585
        %6729 = vmatpush.msra.mxu0 %v584
        %6730 = vmatpush.msra.mxu0 %v583
        %6731 = vmatpush.msra.mxu0 %v582
        %6732 = vmatmul.f32.gmra.mxu0 %v6708
        %v6733 = vpop.f32.mrf.mxu0
        %v6734 = vadd.f32 0.0, %v6733
        %6735 = vmatmul.f32.gmra.mxu0 %v6709
        %v6736 = vpop.f32.mrf.mxu0
        %v6737 = vadd.f32 0.0, %v6736
        %6738 = vmatmul.f32.gmra.mxu0 %v6710
        %v6739 = vpop.f32.mrf.mxu0
        %v6740 = vadd.f32 0.0, %v6739
        %6741 = vmatmul.f32.gmra.mxu0 %v6711
        %v6742 = vpop.f32.mrf.mxu0
        %v6743 = vadd.f32 0.0, %v6742
        %6744 = vmatmul.f32.gmra.mxu0 %v6712
        %v6745 = vpop.f32.mrf.mxu0
        %v6746 = vadd.f32 0.0, %v6745
        %6747 = vmatmul.f32.gmra.mxu0 %v6713
        %v6748 = vpop.f32.mrf.mxu0
        %v6749 = vadd.f32 0.0, %v6748
        %6750 = vmatmul.f32.gmra.mxu0 %v6714
        %v6751 = vpop.f32.mrf.mxu0
        %v6752 = vadd.f32 0.0, %v6751
        %6753 = vmatmul.f32.gmra.mxu0 %v6715
        %v6754 = vpop.f32.mrf.mxu0
        %v6755 = vadd.f32 0.0, %v6754
        %6756 = vdwg.mxu0
        %v6757 = vmul.f32 %v6734, 0.03125
        %v6758 = vmul.f32 %v6737, 0.03125
        %v6759 = vmul.f32 %v6740, 0.03125
        %v6760 = vmul.f32 %v6743, 0.03125
        %v6761 = vmul.f32 %v6746, 0.03125
        %v6762 = vmul.f32 %v6749, 0.03125
        %v6763 = vmul.f32 %v6752, 0.03125
        %v6764 = vmul.f32 %v6755, 0.03125
        %v6765 = vadd.f32 %v6757, 1e-05
        %v6766 = vadd.f32 %v6758, 1e-05
        %v6767 = vadd.f32 %v6759, 1e-05
        %v6768 = vadd.f32 %v6760, 1e-05
        %v6769 = vadd.f32 %v6761, 1e-05
        %v6770 = vadd.f32 %v6762, 1e-05
        %v6771 = vadd.f32 %v6763, 1e-05
        %v6772 = vadd.f32 %v6764, 1e-05
        %v6773 = vrsqrt.pop %v6765
        %v6774 = vmul.f32 %v6773, %v6765
        %v6775 = vmul.f32 %v6774, %v6773
        %v6776 = vmul.f32 0.5, %v6775
        %v6777 = vsub.f32 1.5, %v6776
        %v6778 = vmul.f32 %v6773, %v6777
        %vm6779 = vweird.f32 %v6765
        %vm6780 = vweird.f32 %v6773
        %vm6781 = vmor %vm6779, %vm6780
        %v6782 = vsel %vm6781, %v6773, %v6778
        %v6783 = vrsqrt.pop %v6766
        %v6784 = vmul.f32 %v6783, %v6766
        %v6785 = vmul.f32 %v6784, %v6783
        %v6786 = vmul.f32 0.5, %v6785
        %v6787 = vsub.f32 1.5, %v6786
        %v6788 = vmul.f32 %v6783, %v6787
        %vm6789 = vweird.f32 %v6766
        %vm6790 = vweird.f32 %v6783
        %vm6791 = vmor %vm6789, %vm6790
        %v6792 = vsel %vm6791, %v6783, %v6788
        %v6793 = vrsqrt.pop %v6767
        %v6794 = vmul.f32 %v6793, %v6767
        %v6795 = vmul.f32 %v6794, %v6793
        %v6796 = vmul.f32 0.5, %v6795
        %v6797 = vsub.f32 1.5, %v6796
        %v6798 = vmul.f32 %v6793, %v6797
        %vm6799 = vweird.f32 %v6767
        %vm6800 = vweird.f32 %v6793
        %vm6801 = vmor %vm6799, %vm6800
        %v6802 = vsel %vm6801, %v6793, %v6798
        %v6803 = vrsqrt.pop %v6768
        %v6804 = vmul.f32 %v6803, %v6768
        %v6805 = vmul.f32 %v6804, %v6803
        %v6806 = vmul.f32 0.5, %v6805
        %v6807 = vsub.f32 1.5, %v6806
        %v6808 = vmul.f32 %v6803, %v6807
        %vm6809 = vweird.f32 %v6768
        %vm6810 = vweird.f32 %v6803
        %vm6811 = vmor %vm6809, %vm6810
        %v6812 = vsel %vm6811, %v6803, %v6808
        %v6813 = vrsqrt.pop %v6769
        %v6814 = vmul.f32 %v6813, %v6769
        %v6815 = vmul.f32 %v6814, %v6813
        %v6816 = vmul.f32 0.5, %v6815
        %v6817 = vsub.f32 1.5, %v6816
        %v6818 = vmul.f32 %v6813, %v6817
        %vm6819 = vweird.f32 %v6769
        %vm6820 = vweird.f32 %v6813
        %vm6821 = vmor %vm6819, %vm6820
        %v6822 = vsel %vm6821, %v6813, %v6818
        %v6823 = vrsqrt.pop %v6770
        %v6824 = vmul.f32 %v6823, %v6770
        %v6825 = vmul.f32 %v6824, %v6823
        %v6826 = vmul.f32 0.5, %v6825
        %v6827 = vsub.f32 1.5, %v6826
        %v6828 = vmul.f32 %v6823, %v6827
        %vm6829 = vweird.f32 %v6770
        %vm6830 = vweird.f32 %v6823
        %vm6831 = vmor %vm6829, %vm6830
        %v6832 = vsel %vm6831, %v6823, %v6828
        %v6833 = vrsqrt.pop %v6771
        %v6834 = vmul.f32 %v6833, %v6771
        %v6835 = vmul.f32 %v6834, %v6833
        %v6836 = vmul.f32 0.5, %v6835
        %v6837 = vsub.f32 1.5, %v6836
        %v6838 = vmul.f32 %v6833, %v6837
        %vm6839 = vweird.f32 %v6771
        %vm6840 = vweird.f32 %v6833
        %vm6841 = vmor %vm6839, %vm6840
        %v6842 = vsel %vm6841, %v6833, %v6838
        %v6843 = vrsqrt.pop %v6772
        %v6844 = vmul.f32 %v6843, %v6772
        %v6845 = vmul.f32 %v6844, %v6843
        %v6846 = vmul.f32 0.5, %v6845
        %v6847 = vsub.f32 1.5, %v6846
        %v6848 = vmul.f32 %v6843, %v6847
        %vm6849 = vweird.f32 %v6772
        %vm6850 = vweird.f32 %v6843
        %vm6851 = vmor %vm6849, %vm6850
        %v6852 = vsel %vm6851, %v6843, %v6848
        %v6853 = vmul.f32 %v6700, %v6782
        %v6854 = vmul.f32 %v6701, %v6792
        %v6855 = vmul.f32 %v6702, %v6802
        %v6856 = vmul.f32 %v6703, %v6812
        %v6857 = vmul.f32 %v6704, %v6822
        %v6858 = vmul.f32 %v6705, %v6832
        %v6859 = vmul.f32 %v6706, %v6842
        %v6860 = vmul.f32 %v6707, %v6852
        %v6861 = vperm.slane %v581, 6
        %v6862 = vmul.f32 %v6853, %v6861
        %v6863 = vmul.f32 %v6854, %v6861
        %v6864 = vmul.f32 %v6855, %v6861
        %v6865 = vmul.f32 %v6856, %v6861
        %v6866 = vmul.f32 %v6857, %v6861
        %v6867 = vmul.f32 %v6858, %v6861
        %v6868 = vmul.f32 %v6859, %v6861
        %v6869 = vmul.f32 %v6860, %v6861
        %v6870 = vperm.slane %v581, 7
        %v6871 = vadd.f32 %v6862, %v6870
        %v6872 = vadd.f32 %v6863, %v6870
        %v6873 = vadd.f32 %v6864, %v6870
        %v6874 = vadd.f32 %v6865, %v6870
        %v6875 = vadd.f32 %v6866, %v6870
        %v6876 = vadd.f32 %v6867, %v6870
        %v6877 = vadd.f32 %v6868, %v6870
        %v6878 = vadd.f32 %v6869, %v6870
        %6879 = vst [vmem:[%s579] sm:$0xff] %v6871
        %6880 = vst [vmem:[%s579 + $0x8] sm:$0xff] %v6872
        %6881 = vst [vmem:[%s579 + $0x10] sm:$0xff] %v6873
        %6882 = vst [vmem:[%s579 + $0x18] sm:$0xff] %v6874
        %6883 = vst [vmem:[%s579 + $0x20] sm:$0xff] %v6875
        %6884 = vst [vmem:[%s579 + $0x28] sm:$0xff] %v6876
        %6885 = vst [vmem:[%s579 + $0x30] sm:$0xff] %v6877
        %6886 = vst [vmem:[%s579 + $0x38] sm:$0xff] %v6878
        %s6887 = sand.u32 %s299, 1
        %s6888 = scalar_lea.sflag [#allocation4], %s6887
        %s6889 = sand.u32 %s299, 1
        %s6890 = smul.addr %s6889, 64
        %s6891 = scalar_lea.vmem [#allocation19], %s6890
        // Predicated region
        $region109: #{tpu_custom_call.1} parent=67 // pred_check
          %p6892 = pneg %p309
        $region110: #{tpu_custom_call.1} parent=67 // pred_check_branch
          %6894 = sbr.rel (%p6892) target = $region112
        $region111: #{tpu_custom_call.1} parent=67 // pred_region
          %6896 = vsyncadd %s6888, 0
          %s6897 = smul.addr %s34, 8
          %s6898 = scalar_lea.hbm %s12, %s6897
          %s6899 = sshll.u32 %s6891, 4
          %s6900 = int_to_ptr.vmem [resolvable:$true] %s6899
          %s6901 = sshll.u32 %s6898, 4
          %s6902 = int_to_ptr.hbm [resolvable:$true] %s6901
          %6907 = dma.vmem_to_hbm [thread:$0]  %s6900, 1024, %s6902, %s6888, 128, 256, 8
        $region112: #{tpu_custom_call.1} parent=67 // pred_fallthru
          _
      $region68: #{tpu_custom_call.1} parent=5 // pred_fallthru
        _
      %p6908 = scmp.le.s32.totalorder 2, %s29
      // Predicated region
      $region113: #{tpu_custom_call.1} parent=5 // pred_check
        %p6909 = pneg %p6908
      $region114: #{tpu_custom_call.1} parent=5 // pred_check_branch
        %6911 = sbr.rel (%p6909) target = $region116
      $region115: #{tpu_custom_call.1} parent=5 // pred_region
        %s6912 = ssub.s32 %s29, 2
        // Predicated region
        $region117: #{tpu_custom_call.1} parent=115 // pred_check
          %p6913 = pneg %p315
        $region118: #{tpu_custom_call.1} parent=115 // pred_check_branch
          %6915 = sbr.rel (%p6913) target = $region120
        $region119: #{tpu_custom_call.1} parent=115 // pred_region
          %s6916 = sand.u32 %s300, 1
          %s6917 = scalar_lea.sflag [#allocation4], %s6916
          %s6918 = sand.u32 %s300, 1
          %s6919 = smul.addr %s6918, 64
          %s6920 = scalar_lea.vmem [#allocation19], %s6919
          %6922 = dma.done %s6917, 1024
        $region120: #{tpu_custom_call.1} parent=115 // pred_fallthru
          _
      $region116: #{tpu_custom_call.1} parent=5 // pred_fallthru
        _
    $region6: #{tpu_custom_call.1} parent=1 // loop_footer
      %s33 = sadd.s32 1, %s29
    $region7: #{tpu_custom_call.1} parent=1 // loop_footer_branch
      %28 = sbr.rel target = $region3
    $region8: #{tpu_custom_call.1} parent=1 // loop_exit
      _
    %6923 = vsyncpa [#allocation3], 1
    %s6924 = scalar_lea.sflag [#allocation3], 1
    %6925 = vsyncpa %s6924, 1
    %6926 = vsyncpa [#allocation6], 1
    %6927 = vsyncpa [#allocation9], 1
    %6928 = vsyncpa [#allocation12], 1
    %6929 = vsyncpa [#allocation15], 1
    %6930 = vsyncpa [#allocation18], 1
    %6931 = vsyncpa [#allocation4], 1
    %s6932 = scalar_lea.sflag [#allocation4], 1
    %6933 = vsyncpa %s6932, 1

</llo_original>
